<compile_context>
chip_gen: v5e
topology: v5e:2x2
jax: 0.10.0
libtpu: 0.0.40
codegen_flags: <defaults>
</compile_context>

<pallas_src>
import math
import numpy as np
import jax
import jax.numpy as jnp
from jax.experimental import pallas as pl
from jax.experimental.pallas import tpu as pltpu


_INV_SQRT2 = 1.0 / math.sqrt(2.0)


def _gelu_exact(x):
    # PyTorch nn.GELU() default = exact erf-based GELU.
    return 0.5 * x * (1.0 + jax.lax.erf(x * _INV_SQRT2))


def _predictor_kernel(x_ref, p_ref,
                      sf_ref, stf_ref, sv_ref, stv_ref,
                      gamma_ref, beta_ref,
                      w1_ref, b1_ref,
                      w2l_ref, w2f_ref, w2v_ref, b2_ref,
                      w3_ref, b3_ref,
                      w4_ref, b4_ref,
                      o_ref):
    """One grid step processes Bt batch elements flattened into R = Bt*N rows."""
    x = x_ref[...].astype(jnp.float32)          # (R, C)
    p = p_ref[...].astype(jnp.float32)          # (R, 1)

    # ---- in_conv: LayerNorm (single-pass variance) -> Linear -> GELU ----
    mean = jnp.mean(x, axis=-1, keepdims=True)
    mean_sq = jnp.mean(x * x, axis=-1, keepdims=True)
    var = mean_sq - mean * mean
    xn = (x - mean) * jax.lax.rsqrt(var + 1e-5)
    xn = xn * gamma_ref[...] + beta_ref[...]

    h = jnp.dot(xn.astype(jnp.bfloat16), w1_ref[...],
                preferred_element_type=jnp.float32) + b1_ref[...]
    h = _gelu_exact(h)                          # (R, C) f32

    h_b = h.astype(jnp.bfloat16)
    hp_b = (h * p).astype(jnp.bfloat16)         # policy-weighted activations
    p_b = p.astype(jnp.bfloat16)

    # ---- tubelet ("frame") weighted mean via block-diagonal selection matmuls ----
    # NOTE: like the PyTorch module, all-zero policies would give inf/nan here.
    frame_sum = jnp.dot(sf_ref[...], hp_b, preferred_element_type=jnp.float32)   # (Bt*t, C)
    frame_psum = jnp.dot(sf_ref[...], p_b, preferred_element_type=jnp.float32)   # (Bt*t, 1)
    frame_avg = frame_sum * pl.reciprocal(frame_psum, approx=True)

    # ---- video weighted mean (one per batch element in the block) ----
    video_sum = jnp.dot(sv_ref[...], hp_b, preferred_element_type=jnp.float32)   # (Bt, C)
    video_psum = jnp.dot(sv_ref[...], p_b, preferred_element_type=jnp.float32)   # (Bt, 1)
    video_avg = video_sum * pl.reciprocal(video_psum, approx=True)

    # ---- out_conv Linear #1, algebraically fused (no concat / slices / broadcasts):
    #   feat @ w2 == h @ w2_local_pad
    #              + (ST_f @ frame_avg) @ w2_frame_pad
    #              + (ST_v @ video_avg) @ w2_video_pad
    y = jnp.dot(h_b, w2l_ref[...], preferred_element_type=jnp.float32)           # (R, C/2)
    frame_proj = jnp.dot(frame_avg.astype(jnp.bfloat16), w2f_ref[...],
                         preferred_element_type=jnp.float32)                     # (Bt*t, C/2)
    y = y + jnp.dot(stf_ref[...], frame_proj.astype(jnp.bfloat16),
                    preferred_element_type=jnp.float32)
    video_proj = jnp.dot(video_avg.astype(jnp.bfloat16), w2v_ref[...],
                         preferred_element_type=jnp.float32)                     # (Bt, C/2)
    y = y + jnp.dot(stv_ref[...], video_proj.astype(jnp.bfloat16),
                    preferred_element_type=jnp.float32)
    y = _gelu_exact(y + b2_ref[...])

    # ---- remaining head: Linear -> GELU -> Linear -> LogSoftmax ----
    y = _gelu_exact(jnp.dot(y.astype(jnp.bfloat16), w3_ref[...],
                            preferred_element_type=jnp.float32) + b3_ref[...])
    logits = jnp.dot(y.astype(jnp.bfloat16), w4_ref[...],
                     preferred_element_type=jnp.float32) + b4_ref[...]           # (R, 2)

    m = jnp.max(logits, axis=-1, keepdims=True)
    z = logits - m
    lse = jnp.log(jnp.sum(jnp.exp(z), axis=-1, keepdims=True))
    o_ref[...] = (z - lse).astype(o_ref.dtype)


def _pick_batch_block(B, N, target_rows=256, max_rows=2048):
    """Pick Bt (batch elems per grid step): want Bt*N >= 256 rows for the MXU,
    but keep >= 2 grid steps when the batch allows (v7x has 2 TensorCores)."""
    divisors = [d for d in range(1, B + 1) if B % d == 0 and d * N <= max_rows]
    if not divisors:
        return 1
    good = [d for d in divisors if d * N >= target_rows and B // d >= 2]
    if good:
        return min(good)
    two_step = [d for d in divisors if B // d >= 2]
    if two_step:
        return max(two_step)
    return max(divisors)


def predictor_lg_pallas(x, policy, params, num_tubelet, batch_block=None):
    """x: (B, N, C) f32, policy: (B, N, 1) f32 -> (B, N, 2) f32 log-probs."""
    B, N, C = x.shape
    t = num_tubelet
    assert N % t == 0, "token count must be divisible by num_tubelet"
    assert C % 3 == 0, "embed_dim must be divisible by 3 (required by the PyTorch module)"
    n = N // t
    C3 = C // 3

    gamma, beta, w1, b1, w2, b2, w3, b3, w4, b4 = params

    Bt = batch_block if batch_block is not None else _pick_batch_block(B, N)
    assert B % Bt == 0
    R = Bt * N          # rows per grid step
    G = Bt * t          # tubelet groups per grid step

    # ---- trace-time 0/1 selection matrices (block-diagonal over Bt) ----
    rows = np.arange(R)
    tub_of_row = rows // n                  # global tubelet id within the block
    bat_of_row = rows // N                  # batch id within the block
    sf_np = (tub_of_row[None, :] == np.arange(G)[:, None]).astype(np.float32)   # (G, R)
    sv_np = (bat_of_row[None, :] == np.arange(Bt)[:, None]).astype(np.float32)  # (Bt, R)
    sf = jnp.asarray(sf_np, jnp.bfloat16)
    stf = jnp.asarray(np.ascontiguousarray(sf_np.T), jnp.bfloat16)               # (R, G)
    sv = jnp.asarray(sv_np, jnp.bfloat16)
    stv = jnp.asarray(np.ascontiguousarray(sv_np.T), jnp.bfloat16)               # (R, Bt)

    # ---- pre-split w2 into row-padded local/frame/video pieces (sum == w2) ----
    zero_w2 = jnp.zeros_like(w2)
    w2_lp = zero_w2.at[:C3].set(w2[:C3]).astype(jnp.bfloat16)
    w2_fp = zero_w2.at[C3:2 * C3].set(w2[C3:2 * C3]).astype(jnp.bfloat16)
    w2_vp = zero_w2.at[2 * C3:].set(w2[2 * C3:]).astype(jnp.bfloat16)

    w1_b = w1.astype(jnp.bfloat16)
    w3_b = w3.astype(jnp.bfloat16)
    w4_b = w4.astype(jnp.bfloat16)

    # ---- flatten batch+token so each grid step is one big (R, C) slab ----
    x2 = x.reshape(B * N, C)
    p2 = policy.reshape(B * N, 1)

    full_arrays = [sf, stf, sv, stv, gamma, beta, w1_b, b1,
                   w2_lp, w2_fp, w2_vp, b2, w3_b, b3, w4_b, b4]

    in_specs = [
        pl.BlockSpec((R, C), lambda i: (i, 0)),
        pl.BlockSpec((R, 1), lambda i: (i, 0)),
    ] + [
        pl.BlockSpec(a.shape, lambda i, _nd=a.ndim: (0,) * _nd)
        for a in full_arrays
    ]
    out_spec = pl.BlockSpec((R, 2), lambda i: (i, 0))

    out = pl.pallas_call(
        _predictor_kernel,
        out_shape=jax.ShapeDtypeStruct((B * N, 2), jnp.float32),
        grid_spec=pltpu.PrefetchScalarGridSpec(
            num_scalar_prefetch=0,
            grid=(B // Bt,),
            in_specs=in_specs,
            out_specs=out_spec,
        ),
        compiler_params=pltpu.CompilerParams(
            dimension_semantics=("parallel",),
        ),
    )(x2, p2, *full_arrays)
    return out.reshape(B, N, 2)


def predictor_lg_reference(x, policy, params, num_tubelet):
    """Pure-JAX f32 reference mirroring the PyTorch forward exactly."""
    gamma, beta, w1, b1, w2, b2, w3, b3, w4, b4 = params
    B, N, C = x.shape
    t = num_tubelet
    n = N // t
    C3 = C // 3

    mean = jnp.mean(x, axis=-1, keepdims=True)
    var = jnp.mean((x - mean) ** 2, axis=-1, keepdims=True)
    xn = (x - mean) / jnp.sqrt(var + 1e-5) * gamma + beta
    h = _gelu_exact(xn @ w1 + b1)

    hr = h.reshape(B, t, n, C)
    pr = policy.reshape(B, t, n, 1)
    local_x = hr[..., :C3]
    frame_x = (hr[..., C3:2 * C3] * pr).sum(axis=2, keepdims=True) / pr.sum(axis=2, keepdims=True)
    video_x = (hr[..., 2 * C3:] * pr).sum(axis=(1, 2), keepdims=True) / pr.sum(axis=(1, 2), keepdims=True)
    feat = jnp.concatenate(
        [local_x,
         jnp.broadcast_to(frame_x, (B, t, n, C3)),
         jnp.broadcast_to(video_x, (B, t, n, C3))], axis=-1).reshape(B, N, C)

    y = _gelu_exact(feat @ w2 + b2)
    y = _gelu_exact(y @ w3 + b3)
    logits = y @ w4 + b4
    return jax.nn.log_softmax(logits, axis=-1)


def init_params(key, embed_dim):
    C = embed_dim
    ks = jax.random.split(key, 8)
    scale = 0.02
    gamma = jnp.ones((1, C), jnp.float32)
    beta = jnp.zeros((1, C), jnp.float32)
    w1 = scale * jax.random.normal(ks[0], (C, C), jnp.float32)
    b1 = scale * jax.random.normal(ks[1], (1, C), jnp.float32)
    w2 = scale * jax.random.normal(ks[2], (C, C // 2), jnp.float32)
    b2 = scale * jax.random.normal(ks[3], (1, C // 2), jnp.float32)
    w3 = scale * jax.random.normal(ks[4], (C // 2, C // 4), jnp.float32)
    b3 = scale * jax.random.normal(ks[5], (1, C // 4), jnp.float32)
    w4 = scale * jax.random.normal(ks[6], (C // 4, 2), jnp.float32)
    b4 = scale * jax.random.normal(ks[7], (1, 2), jnp.float32)
    return (gamma, beta, w1, b1, w2, b2, w3, b3, w4, b4)


if __name__ == "__main__":
    key = jax.random.PRNGKey(0)
    k_x, k_p, k_w = jax.random.split(key, 3)

    B = 16                  # batch; blocked Bt=8 per grid step -> 256-row matmuls, 2 grid steps
    embed_dim = 96          # divisible by 3 (module requirement) and by 4
    num_tubelet = 4
    tokens_per_tubelet = 8
    N = num_tubelet * tokens_per_tubelet   # 32 tokens

    x = jax.random.normal(k_x, (B, N, embed_dim), jnp.float32)
    # strictly-positive soft policy so weighted means are well-defined
    policy = jax.random.uniform(k_p, (B, N, 1), jnp.float32, minval=0.5, maxval=1.0)

    params = init_params(k_w, embed_dim)

    out = predictor_lg_pallas(x, policy, params, num_tubelet)
    out = jax.block_until_ready(out)

    ref = predictor_lg_reference(x, policy, params, num_tubelet)
    assert out.shape == (B, N, 2)
    max_err = jnp.max(jnp.abs(out - ref))
    # bf16 MXU operands + approx reciprocal perturb numerics slightly vs the f32 reference
    assert jnp.allclose(out, ref, atol=5e-3, rtol=5e-3), f"max abs err = {max_err}"

    print("KERNEL_OK")
</pallas_src>

<mosaic_0001>
module attributes {stable_mosaic.version = 11 : i64} {
  func.func @_predictor_kernel(%arg0: i32, %arg1: memref<256x96xf32, #tpu.memory_space<vmem>>, %arg2: memref<256x1xf32, #tpu.memory_space<vmem>>, %arg3: memref<32x256xbf16, #tpu.memory_space<vmem>>, %arg4: memref<256x32xbf16, #tpu.memory_space<vmem>>, %arg5: memref<8x256xbf16, #tpu.memory_space<vmem>>, %arg6: memref<256x8xbf16, #tpu.memory_space<vmem>>, %arg7: memref<1x96xf32, #tpu.memory_space<vmem>>, %arg8: memref<1x96xf32, #tpu.memory_space<vmem>>, %arg9: memref<96x96xbf16, #tpu.memory_space<vmem>>, %arg10: memref<1x96xf32, #tpu.memory_space<vmem>>, %arg11: memref<96x48xbf16, #tpu.memory_space<vmem>>, %arg12: memref<96x48xbf16, #tpu.memory_space<vmem>>, %arg13: memref<96x48xbf16, #tpu.memory_space<vmem>>, %arg14: memref<1x48xf32, #tpu.memory_space<vmem>>, %arg15: memref<48x24xbf16, #tpu.memory_space<vmem>>, %arg16: memref<1x24xf32, #tpu.memory_space<vmem>>, %arg17: memref<24x2xbf16, #tpu.memory_space<vmem>>, %arg18: memref<1x2xf32, #tpu.memory_space<vmem>>, %arg19: memref<256x2xf32, #tpu.memory_space<vmem>>) attributes {dimension_semantics = [#tpu.dimension_semantics<parallel>], iteration_bounds = array<i64: 2>, scalar_prefetch = 0 : i64, scratch_operands = 0 : i64, tpu.core_type = #tpu.core_type<tc>, window_params = [{transform_indices = @transform_0, window_bounds = array<i64: 256, 96>}, {transform_indices = @transform_1, window_bounds = array<i64: 256, 1>}, {pipeline_mode = #tpu.pipeline_mode<synchronous>, transform_indices = @transform_2, window_bounds = array<i64: 32, 256>}, {pipeline_mode = #tpu.pipeline_mode<synchronous>, transform_indices = @transform_3, window_bounds = array<i64: 256, 32>}, {pipeline_mode = #tpu.pipeline_mode<synchronous>, transform_indices = @transform_4, window_bounds = array<i64: 8, 256>}, {pipeline_mode = #tpu.pipeline_mode<synchronous>, transform_indices = @transform_5, window_bounds = array<i64: 256, 8>}, {pipeline_mode = #tpu.pipeline_mode<synchronous>, transform_indices = @transform_6, window_bounds = array<i64: 1, 96>}, {pipeline_mode = #tpu.pipeline_mode<synchronous>, transform_indices = @transform_7, window_bounds = array<i64: 1, 96>}, {pipeline_mode = #tpu.pipeline_mode<synchronous>, transform_indices = @transform_8, window_bounds = array<i64: 96, 96>}, {pipeline_mode = #tpu.pipeline_mode<synchronous>, transform_indices = @transform_9, window_bounds = array<i64: 1, 96>}, {pipeline_mode = #tpu.pipeline_mode<synchronous>, transform_indices = @transform_10, window_bounds = array<i64: 96, 48>}, {pipeline_mode = #tpu.pipeline_mode<synchronous>, transform_indices = @transform_11, window_bounds = array<i64: 96, 48>}, {pipeline_mode = #tpu.pipeline_mode<synchronous>, transform_indices = @transform_12, window_bounds = array<i64: 96, 48>}, {pipeline_mode = #tpu.pipeline_mode<synchronous>, transform_indices = @transform_13, window_bounds = array<i64: 1, 48>}, {pipeline_mode = #tpu.pipeline_mode<synchronous>, transform_indices = @transform_14, window_bounds = array<i64: 48, 24>}, {pipeline_mode = #tpu.pipeline_mode<synchronous>, transform_indices = @transform_15, window_bounds = array<i64: 1, 24>}, {pipeline_mode = #tpu.pipeline_mode<synchronous>, transform_indices = @transform_16, window_bounds = array<i64: 24, 2>}, {pipeline_mode = #tpu.pipeline_mode<synchronous>, transform_indices = @transform_17, window_bounds = array<i64: 1, 2>}, {transform_indices = @transform_18, window_bounds = array<i64: 256, 2>}]} {
    %c0 = arith.constant 0 : index
    %c0_0 = arith.constant 0 : index
    %0 = vector.load %arg1[%c0, %c0_0] : memref<256x96xf32, #tpu.memory_space<vmem>>, vector<256x96xf32>
    %c0_1 = arith.constant 0 : index
    %c0_2 = arith.constant 0 : index
    %1 = vector.load %arg2[%c0_1, %c0_2] : memref<256x1xf32, #tpu.memory_space<vmem>>, vector<256x1xf32>
    %cst = arith.constant dense<0.000000e+00> : vector<256xf32>
    %2 = vector.multi_reduction <add>, %0, %cst [1] : vector<256x96xf32> to vector<256xf32>
    %3 = vector.shape_cast %2 : vector<256xf32> to vector<256x1xf32>
    %cst_3 = arith.constant 9.600000e+01 : f32
    %4 = vector.broadcast %cst_3 : f32 to vector<256x1xf32>
    %5 = arith.divf %3, %4 : vector<256x1xf32>
    %6 = arith.mulf %0, %0 : vector<256x96xf32>
    %cst_4 = arith.constant dense<0.000000e+00> : vector<256xf32>
    %7 = vector.multi_reduction <add>, %6, %cst_4 [1] : vector<256x96xf32> to vector<256xf32>
    %8 = vector.shape_cast %7 : vector<256xf32> to vector<256x1xf32>
    %cst_5 = arith.constant 9.600000e+01 : f32
    %9 = vector.broadcast %cst_5 : f32 to vector<256x1xf32>
    %10 = arith.divf %8, %9 : vector<256x1xf32>
    %11 = arith.mulf %5, %5 : vector<256x1xf32>
    %12 = arith.subf %10, %11 : vector<256x1xf32>
    %13 = vector.broadcast %5 : vector<256x1xf32> to vector<256x96xf32>
    %14 = arith.subf %0, %13 : vector<256x96xf32>
    %cst_6 = arith.constant 9.99999974E-6 : f32
    %15 = vector.broadcast %cst_6 : f32 to vector<256x1xf32>
    %16 = arith.addf %12, %15 : vector<256x1xf32>
    %17 = math.rsqrt %16 : vector<256x1xf32>
    %18 = vector.broadcast %17 : vector<256x1xf32> to vector<256x96xf32>
    %19 = arith.mulf %14, %18 : vector<256x96xf32>
    %c0_7 = arith.constant 0 : index
    %c0_8 = arith.constant 0 : index
    %20 = vector.load %arg7[%c0_7, %c0_8] : memref<1x96xf32, #tpu.memory_space<vmem>>, vector<1x96xf32>
    %21 = vector.broadcast %20 : vector<1x96xf32> to vector<256x96xf32>
    %22 = arith.mulf %19, %21 : vector<256x96xf32>
    %c0_9 = arith.constant 0 : index
    %c0_10 = arith.constant 0 : index
    %23 = vector.load %arg8[%c0_9, %c0_10] : memref<1x96xf32, #tpu.memory_space<vmem>>, vector<1x96xf32>
    %24 = vector.broadcast %23 : vector<1x96xf32> to vector<256x96xf32>
    %25 = arith.addf %22, %24 : vector<256x96xf32>
    %26 = arith.truncf %25 : vector<256x96xf32> to vector<256x96xbf16>
    %c0_11 = arith.constant 0 : index
    %c0_12 = arith.constant 0 : index
    %27 = vector.load %arg9[%c0_11, %c0_12] : memref<96x96xbf16, #tpu.memory_space<vmem>>, vector<96x96xbf16>
    %cst_13 = arith.constant dense<0.000000e+00> : vector<256x96xf32>
    %28 = tpu.matmul %26, %27, %cst_13 {dimension_numbers = #tpu.dot_dimension_numbers<[1], [0], [0], [1], [0, 0, 1, 1], [], []>} : vector<256x96xbf16>, vector<96x96xbf16>, vector<256x96xf32> -> vector<256x96xf32>
    %c0_14 = arith.constant 0 : index
    %c0_15 = arith.constant 0 : index
    %29 = vector.load %arg10[%c0_14, %c0_15] : memref<1x96xf32, #tpu.memory_space<vmem>>, vector<1x96xf32>
    %30 = vector.broadcast %29 : vector<1x96xf32> to vector<256x96xf32>
    %31 = arith.addf %28, %30 : vector<256x96xf32>
    %cst_16 = arith.constant 5.000000e-01 : f32
    %32 = vector.broadcast %cst_16 : f32 to vector<256x96xf32>
    %33 = arith.mulf %32, %31 : vector<256x96xf32>
    %cst_17 = arith.constant 0.707106769 : f32
    %34 = vector.broadcast %cst_17 : f32 to vector<256x96xf32>
    %35 = arith.mulf %31, %34 : vector<256x96xf32>
    %36 = math.erf %35 : vector<256x96xf32>
    %cst_18 = arith.constant 1.000000e+00 : f32
    %37 = vector.broadcast %cst_18 : f32 to vector<256x96xf32>
    %38 = arith.addf %37, %36 : vector<256x96xf32>
    %39 = arith.mulf %33, %38 : vector<256x96xf32>
    %40 = arith.truncf %39 : vector<256x96xf32> to vector<256x96xbf16>
    %41 = vector.broadcast %1 : vector<256x1xf32> to vector<256x96xf32>
    %42 = arith.mulf %39, %41 : vector<256x96xf32>
    %43 = arith.truncf %42 : vector<256x96xf32> to vector<256x96xbf16>
    %44 = arith.truncf %1 : vector<256x1xf32> to vector<256x1xbf16>
    %c0_19 = arith.constant 0 : index
    %c0_20 = arith.constant 0 : index
    %45 = vector.load %arg3[%c0_19, %c0_20] : memref<32x256xbf16, #tpu.memory_space<vmem>>, vector<32x256xbf16>
    %cst_21 = arith.constant dense<0.000000e+00> : vector<32x96xf32>
    %46 = tpu.matmul %45, %43, %cst_21 {dimension_numbers = #tpu.dot_dimension_numbers<[1], [0], [0], [1], [0, 0, 1, 1], [], []>} : vector<32x256xbf16>, vector<256x96xbf16>, vector<32x96xf32> -> vector<32x96xf32>
    %c0_22 = arith.constant 0 : index
    %c0_23 = arith.constant 0 : index
    %47 = vector.load %arg3[%c0_22, %c0_23] : memref<32x256xbf16, #tpu.memory_space<vmem>>, vector<32x256xbf16>
    %cst_24 = arith.constant dense<0.000000e+00> : vector<32x1xf32>
    %48 = tpu.matmul %47, %44, %cst_24 {dimension_numbers = #tpu.dot_dimension_numbers<[1], [0], [0], [1], [0, 0, 1, 1], [], []>} : vector<32x256xbf16>, vector<256x1xbf16>, vector<32x1xf32> -> vector<32x1xf32>
    %49 = tpu.reciprocal %48 {approx = true} : vector<32x1xf32> -> vector<32x1xf32>
    %50 = vector.broadcast %49 : vector<32x1xf32> to vector<32x96xf32>
    %51 = arith.mulf %46, %50 : vector<32x96xf32>
    %c0_25 = arith.constant 0 : index
    %c0_26 = arith.constant 0 : index
    %52 = vector.load %arg5[%c0_25, %c0_26] : memref<8x256xbf16, #tpu.memory_space<vmem>>, vector<8x256xbf16>
    %cst_27 = arith.constant dense<0.000000e+00> : vector<8x96xf32>
    %53 = tpu.matmul %52, %43, %cst_27 {dimension_numbers = #tpu.dot_dimension_numbers<[1], [0], [0], [1], [0, 0, 1, 1], [], []>} : vector<8x256xbf16>, vector<256x96xbf16>, vector<8x96xf32> -> vector<8x96xf32>
    %c0_28 = arith.constant 0 : index
    %c0_29 = arith.constant 0 : index
    %54 = vector.load %arg5[%c0_28, %c0_29] : memref<8x256xbf16, #tpu.memory_space<vmem>>, vector<8x256xbf16>
    %cst_30 = arith.constant dense<0.000000e+00> : vector<8x1xf32>
    %55 = tpu.matmul %54, %44, %cst_30 {dimension_numbers = #tpu.dot_dimension_numbers<[1], [0], [0], [1], [0, 0, 1, 1], [], []>} : vector<8x256xbf16>, vector<256x1xbf16>, vector<8x1xf32> -> vector<8x1xf32>
    %56 = tpu.reciprocal %55 {approx = true} : vector<8x1xf32> -> vector<8x1xf32>
    %57 = vector.broadcast %56 : vector<8x1xf32> to vector<8x96xf32>
    %58 = arith.mulf %53, %57 : vector<8x96xf32>
    %c0_31 = arith.constant 0 : index
    %c0_32 = arith.constant 0 : index
    %59 = vector.load %arg11[%c0_31, %c0_32] : memref<96x48xbf16, #tpu.memory_space<vmem>>, vector<96x48xbf16>
    %cst_33 = arith.constant dense<0.000000e+00> : vector<256x48xf32>
    %60 = tpu.matmul %40, %59, %cst_33 {dimension_numbers = #tpu.dot_dimension_numbers<[1], [0], [0], [1], [0, 0, 1, 1], [], []>} : vector<256x96xbf16>, vector<96x48xbf16>, vector<256x48xf32> -> vector<256x48xf32>
    %61 = arith.truncf %51 : vector<32x96xf32> to vector<32x96xbf16>
    %c0_34 = arith.constant 0 : index
    %c0_35 = arith.constant 0 : index
    %62 = vector.load %arg12[%c0_34, %c0_35] : memref<96x48xbf16, #tpu.memory_space<vmem>>, vector<96x48xbf16>
    %cst_36 = arith.constant dense<0.000000e+00> : vector<32x48xf32>
    %63 = tpu.matmul %61, %62, %cst_36 {dimension_numbers = #tpu.dot_dimension_numbers<[1], [0], [0], [1], [0, 0, 1, 1], [], []>} : vector<32x96xbf16>, vector<96x48xbf16>, vector<32x48xf32> -> vector<32x48xf32>
    %c0_37 = arith.constant 0 : index
    %c0_38 = arith.constant 0 : index
    %64 = vector.load %arg4[%c0_37, %c0_38] : memref<256x32xbf16, #tpu.memory_space<vmem>>, vector<256x32xbf16>
    %65 = arith.truncf %63 : vector<32x48xf32> to vector<32x48xbf16>
    %cst_39 = arith.constant dense<0.000000e+00> : vector<256x48xf32>
    %66 = tpu.matmul %64, %65, %cst_39 {dimension_numbers = #tpu.dot_dimension_numbers<[1], [0], [0], [1], [0, 0, 1, 1], [], []>} : vector<256x32xbf16>, vector<32x48xbf16>, vector<256x48xf32> -> vector<256x48xf32>
    %67 = arith.addf %60, %66 : vector<256x48xf32>
    %68 = arith.truncf %58 : vector<8x96xf32> to vector<8x96xbf16>
    %c0_40 = arith.constant 0 : index
    %c0_41 = arith.constant 0 : index
    %69 = vector.load %arg13[%c0_40, %c0_41] : memref<96x48xbf16, #tpu.memory_space<vmem>>, vector<96x48xbf16>
    %cst_42 = arith.constant dense<0.000000e+00> : vector<8x48xf32>
    %70 = tpu.matmul %68, %69, %cst_42 {dimension_numbers = #tpu.dot_dimension_numbers<[1], [0], [0], [1], [0, 0, 1, 1], [], []>} : vector<8x96xbf16>, vector<96x48xbf16>, vector<8x48xf32> -> vector<8x48xf32>
    %c0_43 = arith.constant 0 : index
    %c0_44 = arith.constant 0 : index
    %71 = vector.load %arg6[%c0_43, %c0_44] : memref<256x8xbf16, #tpu.memory_space<vmem>>, vector<256x8xbf16>
    %72 = arith.truncf %70 : vector<8x48xf32> to vector<8x48xbf16>
    %cst_45 = arith.constant dense<0.000000e+00> : vector<256x48xf32>
    %73 = tpu.matmul %71, %72, %cst_45 {dimension_numbers = #tpu.dot_dimension_numbers<[1], [0], [0], [1], [0, 0, 1, 1], [], []>} : vector<256x8xbf16>, vector<8x48xbf16>, vector<256x48xf32> -> vector<256x48xf32>
    %74 = arith.addf %67, %73 : vector<256x48xf32>
    %c0_46 = arith.constant 0 : index
    %c0_47 = arith.constant 0 : index
    %75 = vector.load %arg14[%c0_46, %c0_47] : memref<1x48xf32, #tpu.memory_space<vmem>>, vector<1x48xf32>
    %76 = vector.broadcast %75 : vector<1x48xf32> to vector<256x48xf32>
    %77 = arith.addf %74, %76 : vector<256x48xf32>
    %cst_48 = arith.constant 5.000000e-01 : f32
    %78 = vector.broadcast %cst_48 : f32 to vector<256x48xf32>
    %79 = arith.mulf %78, %77 : vector<256x48xf32>
    %cst_49 = arith.constant 0.707106769 : f32
    %80 = vector.broadcast %cst_49 : f32 to vector<256x48xf32>
    %81 = arith.mulf %77, %80 : vector<256x48xf32>
    %82 = math.erf %81 : vector<256x48xf32>
    %cst_50 = arith.constant 1.000000e+00 : f32
    %83 = vector.broadcast %cst_50 : f32 to vector<256x48xf32>
    %84 = arith.addf %83, %82 : vector<256x48xf32>
    %85 = arith.mulf %79, %84 : vector<256x48xf32>
    %86 = arith.truncf %85 : vector<256x48xf32> to vector<256x48xbf16>
    %c0_51 = arith.constant 0 : index
    %c0_52 = arith.constant 0 : index
    %87 = vector.load %arg15[%c0_51, %c0_52] : memref<48x24xbf16, #tpu.memory_space<vmem>>, vector<48x24xbf16>
    %cst_53 = arith.constant dense<0.000000e+00> : vector<256x24xf32>
    %88 = tpu.matmul %86, %87, %cst_53 {dimension_numbers = #tpu.dot_dimension_numbers<[1], [0], [0], [1], [0, 0, 1, 1], [], []>} : vector<256x48xbf16>, vector<48x24xbf16>, vector<256x24xf32> -> vector<256x24xf32>
    %c0_54 = arith.constant 0 : index
    %c0_55 = arith.constant 0 : index
    %89 = vector.load %arg16[%c0_54, %c0_55] : memref<1x24xf32, #tpu.memory_space<vmem>>, vector<1x24xf32>
    %90 = vector.broadcast %89 : vector<1x24xf32> to vector<256x24xf32>
    %91 = arith.addf %88, %90 : vector<256x24xf32>
    %cst_56 = arith.constant 5.000000e-01 : f32
    %92 = vector.broadcast %cst_56 : f32 to vector<256x24xf32>
    %93 = arith.mulf %92, %91 : vector<256x24xf32>
    %cst_57 = arith.constant 0.707106769 : f32
    %94 = vector.broadcast %cst_57 : f32 to vector<256x24xf32>
    %95 = arith.mulf %91, %94 : vector<256x24xf32>
    %96 = math.erf %95 : vector<256x24xf32>
    %cst_58 = arith.constant 1.000000e+00 : f32
    %97 = vector.broadcast %cst_58 : f32 to vector<256x24xf32>
    %98 = arith.addf %97, %96 : vector<256x24xf32>
    %99 = arith.mulf %93, %98 : vector<256x24xf32>
    %100 = arith.truncf %99 : vector<256x24xf32> to vector<256x24xbf16>
    %c0_59 = arith.constant 0 : index
    %c0_60 = arith.constant 0 : index
    %101 = vector.load %arg17[%c0_59, %c0_60] : memref<24x2xbf16, #tpu.memory_space<vmem>>, vector<24x2xbf16>
    %cst_61 = arith.constant dense<0.000000e+00> : vector<256x2xf32>
    %102 = tpu.matmul %100, %101, %cst_61 {dimension_numbers = #tpu.dot_dimension_numbers<[1], [0], [0], [1], [0, 0, 1, 1], [], []>} : vector<256x24xbf16>, vector<24x2xbf16>, vector<256x2xf32> -> vector<256x2xf32>
    %c0_62 = arith.constant 0 : index
    %c0_63 = arith.constant 0 : index
    %103 = vector.load %arg18[%c0_62, %c0_63] : memref<1x2xf32, #tpu.memory_space<vmem>>, vector<1x2xf32>
    %104 = vector.broadcast %103 : vector<1x2xf32> to vector<256x2xf32>
    %105 = arith.addf %102, %104 : vector<256x2xf32>
    %cst_64 = arith.constant dense<0xFF800000> : vector<256xf32>
    %106 = vector.multi_reduction <maximumf>, %105, %cst_64 [1] : vector<256x2xf32> to vector<256xf32>
    %107 = vector.shape_cast %106 : vector<256xf32> to vector<256x1xf32>
    %108 = vector.broadcast %107 : vector<256x1xf32> to vector<256x2xf32>
    %109 = arith.subf %105, %108 : vector<256x2xf32>
    %110 = math.exp %109 : vector<256x2xf32>
    %cst_65 = arith.constant dense<0.000000e+00> : vector<256xf32>
    %111 = vector.multi_reduction <add>, %110, %cst_65 [1] : vector<256x2xf32> to vector<256xf32>
    %112 = vector.shape_cast %111 : vector<256xf32> to vector<256x1xf32>
    %113 = math.log %112 : vector<256x1xf32>
    %114 = vector.broadcast %113 : vector<256x1xf32> to vector<256x2xf32>
    %115 = arith.subf %109, %114 : vector<256x2xf32>
    %c0_66 = arith.constant 0 : index
    %c0_67 = arith.constant 0 : index
    %116 = vector.load %arg19[%c0_66, %c0_67] : memref<256x2xf32, #tpu.memory_space<vmem>>, vector<256x2xf32>
    tpu.vector_store %arg19[%c0_66, %c0_67], %115 {strides = array<i32>} : memref<256x2xf32, #tpu.memory_space<vmem>>, vector<256x2xf32>,
    return
  }
  func.func @transform_0(%arg0: i32) -> (i32, i32) {
    %c0_i32 = arith.constant 0 : i32
    %c0_i32_0 = arith.constant 0 : i32
    return %arg0, %c0_i32 : i32, i32
  }
  func.func @transform_1(%arg0: i32) -> (i32, i32) {
    %c0_i32 = arith.constant 0 : i32
    %c0_i32_0 = arith.constant 0 : i32
    return %arg0, %c0_i32 : i32, i32
  }
  func.func @transform_2(%arg0: i32) -> (i32, i32) {
    %c0_i32 = arith.constant 0 : i32
    %c0_i32_0 = arith.constant 0 : i32
    %c0_i32_1 = arith.constant 0 : i32
    return %c0_i32, %c0_i32_0 : i32, i32
  }
  func.func @transform_3(%arg0: i32) -> (i32, i32) {
    %c0_i32 = arith.constant 0 : i32
    %c0_i32_0 = arith.constant 0 : i32
    %c0_i32_1 = arith.constant 0 : i32
    return %c0_i32, %c0_i32_0 : i32, i32
  }
  func.func @transform_4(%arg0: i32) -> (i32, i32) {
    %c0_i32 = arith.constant 0 : i32
    %c0_i32_0 = arith.constant 0 : i32
    %c0_i32_1 = arith.constant 0 : i32
    return %c0_i32, %c0_i32_0 : i32, i32
  }
  func.func @transform_5(%arg0: i32) -> (i32, i32) {
    %c0_i32 = arith.constant 0 : i32
    %c0_i32_0 = arith.constant 0 : i32
    %c0_i32_1 = arith.constant 0 : i32
    return %c0_i32, %c0_i32_0 : i32, i32
  }
  func.func @transform_6(%arg0: i32) -> (i32, i32) {
    %c0_i32 = arith.constant 0 : i32
    %c0_i32_0 = arith.constant 0 : i32
    %c0_i32_1 = arith.constant 0 : i32
    return %c0_i32, %c0_i32_0 : i32, i32
  }
  func.func @transform_7(%arg0: i32) -> (i32, i32) {
    %c0_i32 = arith.constant 0 : i32
    %c0_i32_0 = arith.constant 0 : i32
    %c0_i32_1 = arith.constant 0 : i32
    return %c0_i32, %c0_i32_0 : i32, i32
  }
  func.func @transform_8(%arg0: i32) -> (i32, i32) {
    %c0_i32 = arith.constant 0 : i32
    %c0_i32_0 = arith.constant 0 : i32
    %c0_i32_1 = arith.constant 0 : i32
    return %c0_i32, %c0_i32_0 : i32, i32
  }
  func.func @transform_9(%arg0: i32) -> (i32, i32) {
    %c0_i32 = arith.constant 0 : i32
    %c0_i32_0 = arith.constant 0 : i32
    %c0_i32_1 = arith.constant 0 : i32
    return %c0_i32, %c0_i32_0 : i32, i32
  }
  func.func @transform_10(%arg0: i32) -> (i32, i32) {
    %c0_i32 = arith.constant 0 : i32
    %c0_i32_0 = arith.constant 0 : i32
    %c0_i32_1 = arith.constant 0 : i32
    return %c0_i32, %c0_i32_0 : i32, i32
  }
  func.func @transform_11(%arg0: i32) -> (i32, i32) {
    %c0_i32 = arith.constant 0 : i32
    %c0_i32_0 = arith.constant 0 : i32
    %c0_i32_1 = arith.constant 0 : i32
    return %c0_i32, %c0_i32_0 : i32, i32
  }
  func.func @transform_12(%arg0: i32) -> (i32, i32) {
    %c0_i32 = arith.constant 0 : i32
    %c0_i32_0 = arith.constant 0 : i32
    %c0_i32_1 = arith.constant 0 : i32
    return %c0_i32, %c0_i32_0 : i32, i32
  }
  func.func @transform_13(%arg0: i32) -> (i32, i32) {
    %c0_i32 = arith.constant 0 : i32
    %c0_i32_0 = arith.constant 0 : i32
    %c0_i32_1 = arith.constant 0 : i32
    return %c0_i32, %c0_i32_0 : i32, i32
  }
  func.func @transform_14(%arg0: i32) -> (i32, i32) {
    %c0_i32 = arith.constant 0 : i32
    %c0_i32_0 = arith.constant 0 : i32
    %c0_i32_1 = arith.constant 0 : i32
    return %c0_i32, %c0_i32_0 : i32, i32
  }
  func.func @transform_15(%arg0: i32) -> (i32, i32) {
    %c0_i32 = arith.constant 0 : i32
    %c0_i32_0 = arith.constant 0 : i32
    %c0_i32_1 = arith.constant 0 : i32
    return %c0_i32, %c0_i32_0 : i32, i32
  }
  func.func @transform_16(%arg0: i32) -> (i32, i32) {
    %c0_i32 = arith.constant 0 : i32
    %c0_i32_0 = arith.constant 0 : i32
    %c0_i32_1 = arith.constant 0 : i32
    return %c0_i32, %c0_i32_0 : i32, i32
  }
  func.func @transform_17(%arg0: i32) -> (i32, i32) {
    %c0_i32 = arith.constant 0 : i32
    %c0_i32_0 = arith.constant 0 : i32
    %c0_i32_1 = arith.constant 0 : i32
    return %c0_i32, %c0_i32_0 : i32, i32
  }
  func.func @transform_18(%arg0: i32) -> (i32, i32) {
    %c0_i32 = arith.constant 0 : i32
    %c0_i32_0 = arith.constant 0 : i32
    return %arg0, %c0_i32 : i32, i32
  }
}

</mosaic_0001>

<llo_original>
// kernel: tpu_custom_call.1
$region0: #{tpu_custom_call.1}
  #allocation0 [shape = 'u32[]', space=smem, size = 0x4, offset = 0x4, fixed_abs, tag = 'smem constant byte address 0x4 - core index']
  #allocation1 [shape = 'u32[72,128]{1,0:T(1,128)}', space=vmem, size = 0x9000, scoped, tag = 'internal scratch']
  %s0 = inlined_call_operand.vmem [shape: f32[512,96], index: 0, kind: input, shape index: {}]
  %s1 = inlined_call_operand.vmem [shape: f32[512,1], index: 1, kind: input, shape index: {}]
  %s2 = inlined_call_operand.vmem [shape: bf16[32,256], index: 2, kind: input, shape index: {}]
  %s3 = inlined_call_operand.vmem [shape: bf16[256,32], index: 3, kind: input, shape index: {}]
  %s4 = inlined_call_operand.vmem [shape: bf16[8,256], index: 4, kind: input, shape index: {}]
  %s5 = inlined_call_operand.vmem [shape: bf16[256,8], index: 5, kind: input, shape index: {}]
  %s6 = inlined_call_operand.vmem [shape: f32[1,96], index: 6, kind: input, shape index: {}]
  %s7 = inlined_call_operand.vmem [shape: f32[1,96], index: 7, kind: input, shape index: {}]
  %s8 = inlined_call_operand.vmem [shape: bf16[96,96], index: 8, kind: input, shape index: {}]
  %s9 = inlined_call_operand.vmem [shape: f32[1,96], index: 9, kind: input, shape index: {}]
  %s10 = inlined_call_operand.vmem [shape: bf16[96,48], index: 10, kind: input, shape index: {}]
  %s11 = inlined_call_operand.vmem [shape: bf16[96,48], index: 11, kind: input, shape index: {}]
  %s12 = inlined_call_operand.vmem [shape: bf16[96,48], index: 12, kind: input, shape index: {}]
  %s13 = inlined_call_operand.vmem [shape: f32[1,48], index: 13, kind: input, shape index: {}]
  %s14 = inlined_call_operand.vmem [shape: bf16[48,24], index: 14, kind: input, shape index: {}]
  %s15 = inlined_call_operand.vmem [shape: f32[1,24], index: 15, kind: input, shape index: {}]
  %s16 = inlined_call_operand.vmem [shape: bf16[24,2], index: 16, kind: input, shape index: {}]
  %s17 = inlined_call_operand.vmem [shape: f32[1,2], index: 17, kind: input, shape index: {}]
  %s18 = inlined_call_operand.vmem [shape: f32[512,2], index: 18, kind: output, shape index: {}]
  %s19 = sld [smem:[#allocation0]]
  $region105: #{tpu_custom_call.1} parent=0
    _
  %s21 = ssub.s32 1, %s19
  %s22 = scalar_select 0, %s21, %s19
  loop: start=0, step=1, limit=4
  $region2: #{tpu_custom_call.1} parent=0 // loop_pre_header
    _
  $region3: #{tpu_custom_call.1} parent=0 // loop_header
    %s24 = sphi 0, %s28
    %p25 = scmp.ge.s32.totalorder %s24, 4
    %s34 = sphi 0, %s36
    %s37 = sphi 0, %s34
    %s38 = sphi 0, %s37
    %s54 = sphi 0, %s38
    %s60 = sphi 0, %s62
    %s63 = sphi 0, %s60
    %s64 = sphi 0, %s63
    %s80 = sphi 0, %s64
    %s84 = sphi 0, %s84
    %s86 = sphi 0, %s84
    %s87 = sphi 0, %s86
    %s101 = sphi 0, %s87
    %s105 = sphi 0, %s105
    %s107 = sphi 0, %s105
    %s108 = sphi 0, %s107
    %s122 = sphi 0, %s108
    %s126 = sphi 0, %s126
    %s128 = sphi 0, %s126
    %s129 = sphi 0, %s128
    %s143 = sphi 0, %s129
    %s147 = sphi 0, %s147
    %s149 = sphi 0, %s147
    %s150 = sphi 0, %s149
    %s164 = sphi 0, %s150
    %s168 = sphi 0, %s168
    %s170 = sphi 0, %s168
    %s171 = sphi 0, %s170
    %s185 = sphi 0, %s171
    %s189 = sphi 0, %s189
    %s191 = sphi 0, %s189
    %s192 = sphi 0, %s191
    %s206 = sphi 0, %s192
    %s210 = sphi 0, %s210
    %s212 = sphi 0, %s210
    %s213 = sphi 0, %s212
    %s227 = sphi 0, %s213
    %s231 = sphi 0, %s231
    %s233 = sphi 0, %s231
    %s234 = sphi 0, %s233
    %s248 = sphi 0, %s234
    %s252 = sphi 0, %s252
    %s254 = sphi 0, %s252
    %s255 = sphi 0, %s254
    %s269 = sphi 0, %s255
    %s273 = sphi 0, %s273
    %s275 = sphi 0, %s273
    %s276 = sphi 0, %s275
    %s290 = sphi 0, %s276
    %s294 = sphi 0, %s294
    %s296 = sphi 0, %s294
    %s297 = sphi 0, %s296
    %s311 = sphi 0, %s297
    %s315 = sphi 0, %s315
    %s317 = sphi 0, %s315
    %s318 = sphi 0, %s317
    %s332 = sphi 0, %s318
    %s336 = sphi 0, %s336
    %s338 = sphi 0, %s336
    %s339 = sphi 0, %s338
    %s353 = sphi 0, %s339
    %s357 = sphi 0, %s357
    %s359 = sphi 0, %s357
    %s360 = sphi 0, %s359
    %s374 = sphi 0, %s360
    %s378 = sphi 0, %s378
    %s380 = sphi 0, %s378
    %s381 = sphi 0, %s380
    %s395 = sphi 0, %s381
    %s399 = sphi 0, %s399
    %s401 = sphi 0, %s399
    %s402 = sphi 0, %s401
    %s416 = sphi 0, %s402
    %s422 = sphi 0, %s424
    %s425 = sphi 0, %s422
    %s426 = sphi 0, %s425
    %s442 = sphi 0, %s426
  $region4: #{tpu_custom_call.1} parent=0 // loop_header_branch
    %27 = sbr.rel (%p25) target = $region8
  $region5: #{tpu_custom_call.1} parent=0 // loop_body
    %s29 = ssub.s32 %s24, 1
    %s30 = ssub.s32 %s24, 2
    %s31 = sadd.s32 %s24, 1
    %s32 = ssub.s32 %s24, %s31
    %p33 = scmp.eq.s32.totalorder %s32, 0
    %s35 = sadd.s32 %s34, 1
    %s36 = scalar_select %p33, %s34, %s35
    %p39 = pneg %p33
    %p40 = scmp.eq.s32.totalorder %s24, 1
    %p41 = por %p39, %p40
    %p42 = scmp.ne.s32.totalorder %s34, %s37
    %p43 = scmp.eq.s32.totalorder %s24, 0
    %p44 = por %p42, %p43
    %p45 = scmp.ne.s32.totalorder %s34, %s37
    %p46 = scmp.eq.s32.totalorder %s29, 1
    %p47 = por %p45, %p46
    %p48 = scmp.ne.s32.totalorder %s37, %s38
    %p49 = scmp.eq.s32.totalorder %s29, 0
    %p50 = por %p48, %p49
    %p51 = scmp.ne.s32.totalorder %s37, %s38
    %p52 = scmp.eq.s32.totalorder %s30, 1
    %p53 = por %p51, %p52
    %p55 = scmp.ne.s32.totalorder %s38, %s54
    %p56 = scmp.eq.s32.totalorder %s30, 0
    %p57 = por %p55, %p56
    %s58 = ssub.s32 %s24, %s31
    %p59 = scmp.eq.s32.totalorder %s58, 0
    %s61 = sadd.s32 %s60, 1
    %s62 = scalar_select %p59, %s60, %s61
    %p65 = pneg %p59
    %p66 = scmp.eq.s32.totalorder %s24, 1
    %p67 = por %p65, %p66
    %p68 = scmp.ne.s32.totalorder %s60, %s63
    %p69 = scmp.eq.s32.totalorder %s24, 0
    %p70 = por %p68, %p69
    %p71 = scmp.ne.s32.totalorder %s60, %s63
    %p72 = scmp.eq.s32.totalorder %s29, 1
    %p73 = por %p71, %p72
    %p74 = scmp.ne.s32.totalorder %s63, %s64
    %p75 = scmp.eq.s32.totalorder %s29, 0
    %p76 = por %p74, %p75
    %p77 = scmp.ne.s32.totalorder %s63, %s64
    %p78 = scmp.eq.s32.totalorder %s30, 1
    %p79 = por %p77, %p78
    %p81 = scmp.ne.s32.totalorder %s64, %s80
    %p82 = scmp.eq.s32.totalorder %s30, 0
    %p83 = por %p81, %p82
    %s85 = sadd.s32 %s84, 1
    %p88 = scmp.eq.s32.totalorder %s24, 1
    %p89 = scmp.ne.s32.totalorder %s84, %s86
    %p90 = scmp.eq.s32.totalorder %s24, 0
    %p91 = por %p89, %p90
    %p92 = scmp.ne.s32.totalorder %s84, %s86
    %p93 = scmp.eq.s32.totalorder %s29, 1
    %p94 = por %p92, %p93
    %p95 = scmp.ne.s32.totalorder %s86, %s87
    %p96 = scmp.eq.s32.totalorder %s29, 0
    %p97 = por %p95, %p96
    %p98 = scmp.ne.s32.totalorder %s86, %s87
    %p99 = scmp.eq.s32.totalorder %s30, 1
    %p100 = por %p98, %p99
    %p102 = scmp.ne.s32.totalorder %s87, %s101
    %p103 = scmp.eq.s32.totalorder %s30, 0
    %p104 = por %p102, %p103
    %s106 = sadd.s32 %s105, 1
    %p109 = scmp.eq.s32.totalorder %s24, 1
    %p110 = scmp.ne.s32.totalorder %s105, %s107
    %p111 = scmp.eq.s32.totalorder %s24, 0
    %p112 = por %p110, %p111
    %p113 = scmp.ne.s32.totalorder %s105, %s107
    %p114 = scmp.eq.s32.totalorder %s29, 1
    %p115 = por %p113, %p114
    %p116 = scmp.ne.s32.totalorder %s107, %s108
    %p117 = scmp.eq.s32.totalorder %s29, 0
    %p118 = por %p116, %p117
    %p119 = scmp.ne.s32.totalorder %s107, %s108
    %p120 = scmp.eq.s32.totalorder %s30, 1
    %p121 = por %p119, %p120
    %p123 = scmp.ne.s32.totalorder %s108, %s122
    %p124 = scmp.eq.s32.totalorder %s30, 0
    %p125 = por %p123, %p124
    %s127 = sadd.s32 %s126, 1
    %p130 = scmp.eq.s32.totalorder %s24, 1
    %p131 = scmp.ne.s32.totalorder %s126, %s128
    %p132 = scmp.eq.s32.totalorder %s24, 0
    %p133 = por %p131, %p132
    %p134 = scmp.ne.s32.totalorder %s126, %s128
    %p135 = scmp.eq.s32.totalorder %s29, 1
    %p136 = por %p134, %p135
    %p137 = scmp.ne.s32.totalorder %s128, %s129
    %p138 = scmp.eq.s32.totalorder %s29, 0
    %p139 = por %p137, %p138
    %p140 = scmp.ne.s32.totalorder %s128, %s129
    %p141 = scmp.eq.s32.totalorder %s30, 1
    %p142 = por %p140, %p141
    %p144 = scmp.ne.s32.totalorder %s129, %s143
    %p145 = scmp.eq.s32.totalorder %s30, 0
    %p146 = por %p144, %p145
    %s148 = sadd.s32 %s147, 1
    %p151 = scmp.eq.s32.totalorder %s24, 1
    %p152 = scmp.ne.s32.totalorder %s147, %s149
    %p153 = scmp.eq.s32.totalorder %s24, 0
    %p154 = por %p152, %p153
    %p155 = scmp.ne.s32.totalorder %s147, %s149
    %p156 = scmp.eq.s32.totalorder %s29, 1
    %p157 = por %p155, %p156
    %p158 = scmp.ne.s32.totalorder %s149, %s150
    %p159 = scmp.eq.s32.totalorder %s29, 0
    %p160 = por %p158, %p159
    %p161 = scmp.ne.s32.totalorder %s149, %s150
    %p162 = scmp.eq.s32.totalorder %s30, 1
    %p163 = por %p161, %p162
    %p165 = scmp.ne.s32.totalorder %s150, %s164
    %p166 = scmp.eq.s32.totalorder %s30, 0
    %p167 = por %p165, %p166
    %s169 = sadd.s32 %s168, 1
    %p172 = scmp.eq.s32.totalorder %s24, 1
    %p173 = scmp.ne.s32.totalorder %s168, %s170
    %p174 = scmp.eq.s32.totalorder %s24, 0
    %p175 = por %p173, %p174
    %p176 = scmp.ne.s32.totalorder %s168, %s170
    %p177 = scmp.eq.s32.totalorder %s29, 1
    %p178 = por %p176, %p177
    %p179 = scmp.ne.s32.totalorder %s170, %s171
    %p180 = scmp.eq.s32.totalorder %s29, 0
    %p181 = por %p179, %p180
    %p182 = scmp.ne.s32.totalorder %s170, %s171
    %p183 = scmp.eq.s32.totalorder %s30, 1
    %p184 = por %p182, %p183
    %p186 = scmp.ne.s32.totalorder %s171, %s185
    %p187 = scmp.eq.s32.totalorder %s30, 0
    %p188 = por %p186, %p187
    %s190 = sadd.s32 %s189, 1
    %p193 = scmp.eq.s32.totalorder %s24, 1
    %p194 = scmp.ne.s32.totalorder %s189, %s191
    %p195 = scmp.eq.s32.totalorder %s24, 0
    %p196 = por %p194, %p195
    %p197 = scmp.ne.s32.totalorder %s189, %s191
    %p198 = scmp.eq.s32.totalorder %s29, 1
    %p199 = por %p197, %p198
    %p200 = scmp.ne.s32.totalorder %s191, %s192
    %p201 = scmp.eq.s32.totalorder %s29, 0
    %p202 = por %p200, %p201
    %p203 = scmp.ne.s32.totalorder %s191, %s192
    %p204 = scmp.eq.s32.totalorder %s30, 1
    %p205 = por %p203, %p204
    %p207 = scmp.ne.s32.totalorder %s192, %s206
    %p208 = scmp.eq.s32.totalorder %s30, 0
    %p209 = por %p207, %p208
    %s211 = sadd.s32 %s210, 1
    %p214 = scmp.eq.s32.totalorder %s24, 1
    %p215 = scmp.ne.s32.totalorder %s210, %s212
    %p216 = scmp.eq.s32.totalorder %s24, 0
    %p217 = por %p215, %p216
    %p218 = scmp.ne.s32.totalorder %s210, %s212
    %p219 = scmp.eq.s32.totalorder %s29, 1
    %p220 = por %p218, %p219
    %p221 = scmp.ne.s32.totalorder %s212, %s213
    %p222 = scmp.eq.s32.totalorder %s29, 0
    %p223 = por %p221, %p222
    %p224 = scmp.ne.s32.totalorder %s212, %s213
    %p225 = scmp.eq.s32.totalorder %s30, 1
    %p226 = por %p224, %p225
    %p228 = scmp.ne.s32.totalorder %s213, %s227
    %p229 = scmp.eq.s32.totalorder %s30, 0
    %p230 = por %p228, %p229
    %s232 = sadd.s32 %s231, 1
    %p235 = scmp.eq.s32.totalorder %s24, 1
    %p236 = scmp.ne.s32.totalorder %s231, %s233
    %p237 = scmp.eq.s32.totalorder %s24, 0
    %p238 = por %p236, %p237
    %p239 = scmp.ne.s32.totalorder %s231, %s233
    %p240 = scmp.eq.s32.totalorder %s29, 1
    %p241 = por %p239, %p240
    %p242 = scmp.ne.s32.totalorder %s233, %s234
    %p243 = scmp.eq.s32.totalorder %s29, 0
    %p244 = por %p242, %p243
    %p245 = scmp.ne.s32.totalorder %s233, %s234
    %p246 = scmp.eq.s32.totalorder %s30, 1
    %p247 = por %p245, %p246
    %p249 = scmp.ne.s32.totalorder %s234, %s248
    %p250 = scmp.eq.s32.totalorder %s30, 0
    %p251 = por %p249, %p250
    %s253 = sadd.s32 %s252, 1
    %p256 = scmp.eq.s32.totalorder %s24, 1
    %p257 = scmp.ne.s32.totalorder %s252, %s254
    %p258 = scmp.eq.s32.totalorder %s24, 0
    %p259 = por %p257, %p258
    %p260 = scmp.ne.s32.totalorder %s252, %s254
    %p261 = scmp.eq.s32.totalorder %s29, 1
    %p262 = por %p260, %p261
    %p263 = scmp.ne.s32.totalorder %s254, %s255
    %p264 = scmp.eq.s32.totalorder %s29, 0
    %p265 = por %p263, %p264
    %p266 = scmp.ne.s32.totalorder %s254, %s255
    %p267 = scmp.eq.s32.totalorder %s30, 1
    %p268 = por %p266, %p267
    %p270 = scmp.ne.s32.totalorder %s255, %s269
    %p271 = scmp.eq.s32.totalorder %s30, 0
    %p272 = por %p270, %p271
    %s274 = sadd.s32 %s273, 1
    %p277 = scmp.eq.s32.totalorder %s24, 1
    %p278 = scmp.ne.s32.totalorder %s273, %s275
    %p279 = scmp.eq.s32.totalorder %s24, 0
    %p280 = por %p278, %p279
    %p281 = scmp.ne.s32.totalorder %s273, %s275
    %p282 = scmp.eq.s32.totalorder %s29, 1
    %p283 = por %p281, %p282
    %p284 = scmp.ne.s32.totalorder %s275, %s276
    %p285 = scmp.eq.s32.totalorder %s29, 0
    %p286 = por %p284, %p285
    %p287 = scmp.ne.s32.totalorder %s275, %s276
    %p288 = scmp.eq.s32.totalorder %s30, 1
    %p289 = por %p287, %p288
    %p291 = scmp.ne.s32.totalorder %s276, %s290
    %p292 = scmp.eq.s32.totalorder %s30, 0
    %p293 = por %p291, %p292
    %s295 = sadd.s32 %s294, 1
    %p298 = scmp.eq.s32.totalorder %s24, 1
    %p299 = scmp.ne.s32.totalorder %s294, %s296
    %p300 = scmp.eq.s32.totalorder %s24, 0
    %p301 = por %p299, %p300
    %p302 = scmp.ne.s32.totalorder %s294, %s296
    %p303 = scmp.eq.s32.totalorder %s29, 1
    %p304 = por %p302, %p303
    %p305 = scmp.ne.s32.totalorder %s296, %s297
    %p306 = scmp.eq.s32.totalorder %s29, 0
    %p307 = por %p305, %p306
    %p308 = scmp.ne.s32.totalorder %s296, %s297
    %p309 = scmp.eq.s32.totalorder %s30, 1
    %p310 = por %p308, %p309
    %p312 = scmp.ne.s32.totalorder %s297, %s311
    %p313 = scmp.eq.s32.totalorder %s30, 0
    %p314 = por %p312, %p313
    %s316 = sadd.s32 %s315, 1
    %p319 = scmp.eq.s32.totalorder %s24, 1
    %p320 = scmp.ne.s32.totalorder %s315, %s317
    %p321 = scmp.eq.s32.totalorder %s24, 0
    %p322 = por %p320, %p321
    %p323 = scmp.ne.s32.totalorder %s315, %s317
    %p324 = scmp.eq.s32.totalorder %s29, 1
    %p325 = por %p323, %p324
    %p326 = scmp.ne.s32.totalorder %s317, %s318
    %p327 = scmp.eq.s32.totalorder %s29, 0
    %p328 = por %p326, %p327
    %p329 = scmp.ne.s32.totalorder %s317, %s318
    %p330 = scmp.eq.s32.totalorder %s30, 1
    %p331 = por %p329, %p330
    %p333 = scmp.ne.s32.totalorder %s318, %s332
    %p334 = scmp.eq.s32.totalorder %s30, 0
    %p335 = por %p333, %p334
    %s337 = sadd.s32 %s336, 1
    %p340 = scmp.eq.s32.totalorder %s24, 1
    %p341 = scmp.ne.s32.totalorder %s336, %s338
    %p342 = scmp.eq.s32.totalorder %s24, 0
    %p343 = por %p341, %p342
    %p344 = scmp.ne.s32.totalorder %s336, %s338
    %p345 = scmp.eq.s32.totalorder %s29, 1
    %p346 = por %p344, %p345
    %p347 = scmp.ne.s32.totalorder %s338, %s339
    %p348 = scmp.eq.s32.totalorder %s29, 0
    %p349 = por %p347, %p348
    %p350 = scmp.ne.s32.totalorder %s338, %s339
    %p351 = scmp.eq.s32.totalorder %s30, 1
    %p352 = por %p350, %p351
    %p354 = scmp.ne.s32.totalorder %s339, %s353
    %p355 = scmp.eq.s32.totalorder %s30, 0
    %p356 = por %p354, %p355
    %s358 = sadd.s32 %s357, 1
    %p361 = scmp.eq.s32.totalorder %s24, 1
    %p362 = scmp.ne.s32.totalorder %s357, %s359
    %p363 = scmp.eq.s32.totalorder %s24, 0
    %p364 = por %p362, %p363
    %p365 = scmp.ne.s32.totalorder %s357, %s359
    %p366 = scmp.eq.s32.totalorder %s29, 1
    %p367 = por %p365, %p366
    %p368 = scmp.ne.s32.totalorder %s359, %s360
    %p369 = scmp.eq.s32.totalorder %s29, 0
    %p370 = por %p368, %p369
    %p371 = scmp.ne.s32.totalorder %s359, %s360
    %p372 = scmp.eq.s32.totalorder %s30, 1
    %p373 = por %p371, %p372
    %p375 = scmp.ne.s32.totalorder %s360, %s374
    %p376 = scmp.eq.s32.totalorder %s30, 0
    %p377 = por %p375, %p376
    %s379 = sadd.s32 %s378, 1
    %p382 = scmp.eq.s32.totalorder %s24, 1
    %p383 = scmp.ne.s32.totalorder %s378, %s380
    %p384 = scmp.eq.s32.totalorder %s24, 0
    %p385 = por %p383, %p384
    %p386 = scmp.ne.s32.totalorder %s378, %s380
    %p387 = scmp.eq.s32.totalorder %s29, 1
    %p388 = por %p386, %p387
    %p389 = scmp.ne.s32.totalorder %s380, %s381
    %p390 = scmp.eq.s32.totalorder %s29, 0
    %p391 = por %p389, %p390
    %p392 = scmp.ne.s32.totalorder %s380, %s381
    %p393 = scmp.eq.s32.totalorder %s30, 1
    %p394 = por %p392, %p393
    %p396 = scmp.ne.s32.totalorder %s381, %s395
    %p397 = scmp.eq.s32.totalorder %s30, 0
    %p398 = por %p396, %p397
    %s400 = sadd.s32 %s399, 1
    %p403 = scmp.eq.s32.totalorder %s24, 1
    %p404 = scmp.ne.s32.totalorder %s399, %s401
    %p405 = scmp.eq.s32.totalorder %s24, 0
    %p406 = por %p404, %p405
    %p407 = scmp.ne.s32.totalorder %s399, %s401
    %p408 = scmp.eq.s32.totalorder %s29, 1
    %p409 = por %p407, %p408
    %p410 = scmp.ne.s32.totalorder %s401, %s402
    %p411 = scmp.eq.s32.totalorder %s29, 0
    %p412 = por %p410, %p411
    %p413 = scmp.ne.s32.totalorder %s401, %s402
    %p414 = scmp.eq.s32.totalorder %s30, 1
    %p415 = por %p413, %p414
    %p417 = scmp.ne.s32.totalorder %s402, %s416
    %p418 = scmp.eq.s32.totalorder %s30, 0
    %p419 = por %p417, %p418
    %s420 = ssub.s32 %s24, %s31
    %p421 = scmp.eq.s32.totalorder %s420, 0
    %s423 = sadd.s32 %s422, 1
    %s424 = scalar_select %p421, %s422, %s423
    %p427 = pneg %p421
    %p428 = scmp.eq.s32.totalorder %s24, 1
    %p429 = por %p427, %p428
    %p430 = scmp.ne.s32.totalorder %s422, %s425
    %p431 = scmp.eq.s32.totalorder %s24, 0
    %p432 = por %p430, %p431
    %p433 = scmp.ne.s32.totalorder %s422, %s425
    %p434 = scmp.eq.s32.totalorder %s29, 1
    %p435 = por %p433, %p434
    %p436 = scmp.ne.s32.totalorder %s425, %s426
    %p437 = scmp.eq.s32.totalorder %s29, 0
    %p438 = por %p436, %p437
    %p439 = scmp.ne.s32.totalorder %s425, %s426
    %p440 = scmp.eq.s32.totalorder %s30, 1
    %p441 = por %p439, %p440
    %p443 = scmp.ne.s32.totalorder %s426, %s442
    %p444 = scmp.eq.s32.totalorder %s30, 0
    %p445 = por %p443, %p444
    %p446 = scmp.le.s32.totalorder 1, %s24
    %p447 = scmp.lt.s32.totalorder %s24, 3
    %p448 = pnand %p446, %p447
    %p449 = pneg %p448
    // Predicated region
    $region9: #{tpu_custom_call.1} parent=5 // pred_check
      _
    $region10: #{tpu_custom_call.1} parent=5 // pred_check_branch
      %451 = sbr.rel (%p448) target = $region12
    $region11: #{tpu_custom_call.1} parent=5 // pred_region
      %s452 = ssub.s32 %s24, 1
      // Predicated region
      $region13: #{tpu_custom_call.1} parent=11 // pred_check
        %p453 = pneg %p97
      $region14: #{tpu_custom_call.1} parent=11 // pred_check_branch
        %455 = sbr.rel (%p453) target = $region16
      $region15: #{tpu_custom_call.1} parent=11 // pred_region
        _
      $region16: #{tpu_custom_call.1} parent=11 // pred_fallthru
        _
      // Predicated region
      $region17: #{tpu_custom_call.1} parent=11 // pred_check
        %p456 = pneg %p118
      $region18: #{tpu_custom_call.1} parent=11 // pred_check_branch
        %458 = sbr.rel (%p456) target = $region20
      $region19: #{tpu_custom_call.1} parent=11 // pred_region
        _
      $region20: #{tpu_custom_call.1} parent=11 // pred_fallthru
        _
      // Predicated region
      $region21: #{tpu_custom_call.1} parent=11 // pred_check
        %p459 = pneg %p139
      $region22: #{tpu_custom_call.1} parent=11 // pred_check_branch
        %461 = sbr.rel (%p459) target = $region24
      $region23: #{tpu_custom_call.1} parent=11 // pred_region
        _
      $region24: #{tpu_custom_call.1} parent=11 // pred_fallthru
        _
      // Predicated region
      $region25: #{tpu_custom_call.1} parent=11 // pred_check
        %p462 = pneg %p160
      $region26: #{tpu_custom_call.1} parent=11 // pred_check_branch
        %464 = sbr.rel (%p462) target = $region28
      $region27: #{tpu_custom_call.1} parent=11 // pred_region
        _
      $region28: #{tpu_custom_call.1} parent=11 // pred_fallthru
        _
      // Predicated region
      $region29: #{tpu_custom_call.1} parent=11 // pred_check
        %p465 = pneg %p181
      $region30: #{tpu_custom_call.1} parent=11 // pred_check_branch
        %467 = sbr.rel (%p465) target = $region32
      $region31: #{tpu_custom_call.1} parent=11 // pred_region
        _
      $region32: #{tpu_custom_call.1} parent=11 // pred_fallthru
        _
      // Predicated region
      $region33: #{tpu_custom_call.1} parent=11 // pred_check
        %p468 = pneg %p202
      $region34: #{tpu_custom_call.1} parent=11 // pred_check_branch
        %470 = sbr.rel (%p468) target = $region36
      $region35: #{tpu_custom_call.1} parent=11 // pred_region
        _
      $region36: #{tpu_custom_call.1} parent=11 // pred_fallthru
        _
      // Predicated region
      $region37: #{tpu_custom_call.1} parent=11 // pred_check
        %p471 = pneg %p223
      $region38: #{tpu_custom_call.1} parent=11 // pred_check_branch
        %473 = sbr.rel (%p471) target = $region40
      $region39: #{tpu_custom_call.1} parent=11 // pred_region
        _
      $region40: #{tpu_custom_call.1} parent=11 // pred_fallthru
        _
      // Predicated region
      $region41: #{tpu_custom_call.1} parent=11 // pred_check
        %p474 = pneg %p244
      $region42: #{tpu_custom_call.1} parent=11 // pred_check_branch
        %476 = sbr.rel (%p474) target = $region44
      $region43: #{tpu_custom_call.1} parent=11 // pred_region
        _
      $region44: #{tpu_custom_call.1} parent=11 // pred_fallthru
        _
      // Predicated region
      $region45: #{tpu_custom_call.1} parent=11 // pred_check
        %p477 = pneg %p265
      $region46: #{tpu_custom_call.1} parent=11 // pred_check_branch
        %479 = sbr.rel (%p477) target = $region48
      $region47: #{tpu_custom_call.1} parent=11 // pred_region
        _
      $region48: #{tpu_custom_call.1} parent=11 // pred_fallthru
        _
      // Predicated region
      $region49: #{tpu_custom_call.1} parent=11 // pred_check
        %p480 = pneg %p286
      $region50: #{tpu_custom_call.1} parent=11 // pred_check_branch
        %482 = sbr.rel (%p480) target = $region52
      $region51: #{tpu_custom_call.1} parent=11 // pred_region
        _
      $region52: #{tpu_custom_call.1} parent=11 // pred_fallthru
        _
      // Predicated region
      $region53: #{tpu_custom_call.1} parent=11 // pred_check
        %p483 = pneg %p307
      $region54: #{tpu_custom_call.1} parent=11 // pred_check_branch
        %485 = sbr.rel (%p483) target = $region56
      $region55: #{tpu_custom_call.1} parent=11 // pred_region
        _
      $region56: #{tpu_custom_call.1} parent=11 // pred_fallthru
        _
      // Predicated region
      $region57: #{tpu_custom_call.1} parent=11 // pred_check
        %p486 = pneg %p328
      $region58: #{tpu_custom_call.1} parent=11 // pred_check_branch
        %488 = sbr.rel (%p486) target = $region60
      $region59: #{tpu_custom_call.1} parent=11 // pred_region
        _
      $region60: #{tpu_custom_call.1} parent=11 // pred_fallthru
        _
      // Predicated region
      $region61: #{tpu_custom_call.1} parent=11 // pred_check
        %p489 = pneg %p349
      $region62: #{tpu_custom_call.1} parent=11 // pred_check_branch
        %491 = sbr.rel (%p489) target = $region64
      $region63: #{tpu_custom_call.1} parent=11 // pred_region
        _
      $region64: #{tpu_custom_call.1} parent=11 // pred_fallthru
        _
      // Predicated region
      $region65: #{tpu_custom_call.1} parent=11 // pred_check
        %p492 = pneg %p370
      $region66: #{tpu_custom_call.1} parent=11 // pred_check_branch
        %494 = sbr.rel (%p492) target = $region68
      $region67: #{tpu_custom_call.1} parent=11 // pred_region
        _
      $region68: #{tpu_custom_call.1} parent=11 // pred_fallthru
        _
      // Predicated region
      $region69: #{tpu_custom_call.1} parent=11 // pred_check
        %p495 = pneg %p391
      $region70: #{tpu_custom_call.1} parent=11 // pred_check_branch
        %497 = sbr.rel (%p495) target = $region72
      $region71: #{tpu_custom_call.1} parent=11 // pred_region
        _
      $region72: #{tpu_custom_call.1} parent=11 // pred_fallthru
        _
      // Predicated region
      $region73: #{tpu_custom_call.1} parent=11 // pred_check
        %p498 = pneg %p412
      $region74: #{tpu_custom_call.1} parent=11 // pred_check_branch
        %500 = sbr.rel (%p498) target = $region76
      $region75: #{tpu_custom_call.1} parent=11 // pred_region
        _
      $region76: #{tpu_custom_call.1} parent=11 // pred_fallthru
        _
    $region12: #{tpu_custom_call.1} parent=5 // pred_fallthru
      _
    %p501 = scmp.lt.s32.totalorder %s24, 2
    // Predicated region
    $region77: #{tpu_custom_call.1} parent=5 // pred_check
      %p502 = pneg %p501
    $region78: #{tpu_custom_call.1} parent=5 // pred_check_branch
      %504 = sbr.rel (%p502) target = $region80
    $region79: #{tpu_custom_call.1} parent=5 // pred_region
      // Predicated region
      $region81: #{tpu_custom_call.1} parent=79 // pred_check
        %p505 = pneg %p44
      $region82: #{tpu_custom_call.1} parent=79 // pred_check_branch
        %507 = sbr.rel (%p505) target = $region84
      $region83: #{tpu_custom_call.1} parent=79 // pred_region
        %s508 = smul.u32 32, %s24
        %p509 = scmp.lt.s32.totalorder %s508, 63
        %s510 = scalar_select %p509, %s508, 63
        %s511 = smul.addr %s510, 8
        %s512 = scalar_lea.vmem %s0, %s511
        %s513 = smul.u32 32, %s24
      $region84: #{tpu_custom_call.1} parent=79 // pred_fallthru
        _
      // Predicated region
      $region85: #{tpu_custom_call.1} parent=79 // pred_check
        %p514 = pneg %p70
      $region86: #{tpu_custom_call.1} parent=79 // pred_check_branch
        %516 = sbr.rel (%p514) target = $region88
      $region87: #{tpu_custom_call.1} parent=79 // pred_region
        %s517 = smul.u32 32, %s24
        %p518 = scmp.lt.s32.totalorder %s517, 63
        %s519 = scalar_select %p518, %s517, 63
        %s520 = smul.addr %s519, 8
        %s521 = scalar_lea.vmem %s1, %s520
        %s522 = smul.u32 32, %s24
      $region88: #{tpu_custom_call.1} parent=79 // pred_fallthru
        _
    $region80: #{tpu_custom_call.1} parent=5 // pred_fallthru
      _
    %p523 = scmp.le.s32.totalorder 1, %s24
    %p524 = scmp.lt.s32.totalorder %s24, 3
    %p525 = pnand %p523, %p524
    %p526 = pneg %p525
    // Predicated region
    $region89: #{tpu_custom_call.1} parent=5 // pred_check
      _
    $region90: #{tpu_custom_call.1} parent=5 // pred_check_branch
      %528 = sbr.rel (%p525) target = $region92
    $region91: #{tpu_custom_call.1} parent=5 // pred_region
      %s529 = ssub.s32 %s24, 1
      %s530 = smul.u32 32, %s29
      %p531 = scmp.lt.s32.totalorder %s530, 63
      %s532 = scalar_select %p531, %s530, 63
      %s533 = smul.addr %s532, 8
      %s534 = scalar_lea.vmem %s0, %s533
      %p535 = pneg %p50
      %p536 = pneg %p47
      %s537 = smul.u32 32, %s29
      %p538 = scmp.lt.s32.totalorder %s537, 63
      %s539 = scalar_select %p538, %s537, 63
      %s540 = smul.addr %s539, 8
      %s541 = scalar_lea.vmem %s1, %s540
      %p542 = pneg %p76
      %p543 = pneg %p73
      %p544 = pneg %p97
      %p545 = pneg %p94
      %p546 = pneg %p118
      %p547 = pneg %p115
      %p548 = pneg %p139
      %p549 = pneg %p136
      %p550 = pneg %p160
      %p551 = pneg %p157
      %p552 = pneg %p181
      %p553 = pneg %p178
      %p554 = pneg %p202
      %p555 = pneg %p199
      %p556 = pneg %p223
      %p557 = pneg %p220
      %p558 = pneg %p244
      %p559 = pneg %p241
      %p560 = pneg %p265
      %p561 = pneg %p262
      %p562 = pneg %p286
      %p563 = pneg %p283
      %p564 = pneg %p307
      %p565 = pneg %p304
      %p566 = pneg %p328
      %p567 = pneg %p325
      %p568 = pneg %p349
      %p569 = pneg %p346
      %p570 = pneg %p370
      %p571 = pneg %p367
      %p572 = pneg %p391
      %p573 = pneg %p388
      %p574 = pneg %p412
      %p575 = pneg %p409
      %p576 = pneg %p438
      %p577 = pneg %p435
      %s578 = smul.u32 32, %s29
      %p579 = scmp.lt.s32.totalorder %s578, 63
      %s580 = scalar_select %p579, %s578, 63
      %s581 = smul.addr %s580, 8
      %s582 = scalar_lea.vmem %s18, %s581
      %s583 = smul.u32 32, %s29
      %p584 = scmp.lt.s32.totalorder %s583, 63
      %s585 = scalar_select %p584, %s583, 63
      %s586 = smul.addr %s585, 8
      %s587 = scalar_lea.vmem %s0, %s586
      %s588 = smul.u32 32, %s29
      %s589 = smul.u32 32, %s29
      %p590 = scmp.lt.s32.totalorder %s589, 63
      %s591 = scalar_select %p590, %s589, 63
      %s592 = smul.addr %s591, 8
      %s593 = scalar_lea.vmem %s1, %s592
      %s594 = smul.u32 32, %s29
      %s595 = smul.u32 32, %s29
      %p596 = scmp.lt.s32.totalorder %s595, 63
      %s597 = scalar_select %p596, %s595, 63
      %s598 = smul.addr %s597, 8
      %s599 = scalar_lea.vmem %s18, %s598
      %s600 = smul.u32 32, %s29
      %v602 = vld [vmem:[%s587] sm:$0xff]
      %v603 = vld [vmem:[%s587 + $0x8] sm:$0xff]
      %v604 = vld [vmem:[%s587 + $0x10] sm:$0xff]
      %v605 = vld [vmem:[%s587 + $0x18] sm:$0xff]
      %v606 = vld [vmem:[%s587 + $0x20] sm:$0xff]
      %v607 = vld [vmem:[%s587 + $0x28] sm:$0xff]
      %v608 = vld [vmem:[%s587 + $0x30] sm:$0xff]
      %v609 = vld [vmem:[%s587 + $0x38] sm:$0xff]
      %v610 = vld [vmem:[%s587 + $0x40] sm:$0xff]
      %v611 = vld [vmem:[%s587 + $0x48] sm:$0xff]
      %v612 = vld [vmem:[%s587 + $0x50] sm:$0xff]
      %v613 = vld [vmem:[%s587 + $0x58] sm:$0xff]
      %v614 = vld [vmem:[%s587 + $0x60] sm:$0xff]
      %v615 = vld [vmem:[%s587 + $0x68] sm:$0xff]
      %v616 = vld [vmem:[%s587 + $0x70] sm:$0xff]
      %v617 = vld [vmem:[%s587 + $0x78] sm:$0xff]
      %v618 = vld [vmem:[%s587 + $0x80] sm:$0xff]
      %v619 = vld [vmem:[%s587 + $0x88] sm:$0xff]
      %v620 = vld [vmem:[%s587 + $0x90] sm:$0xff]
      %v621 = vld [vmem:[%s587 + $0x98] sm:$0xff]
      %v622 = vld [vmem:[%s587 + $0xa0] sm:$0xff]
      %v623 = vld [vmem:[%s587 + $0xa8] sm:$0xff]
      %v624 = vld [vmem:[%s587 + $0xb0] sm:$0xff]
      %v625 = vld [vmem:[%s587 + $0xb8] sm:$0xff]
      %v626 = vld [vmem:[%s587 + $0xc0] sm:$0xff]
      %v627 = vld [vmem:[%s587 + $0xc8] sm:$0xff]
      %v628 = vld [vmem:[%s587 + $0xd0] sm:$0xff]
      %v629 = vld [vmem:[%s587 + $0xd8] sm:$0xff]
      %v630 = vld [vmem:[%s587 + $0xe0] sm:$0xff]
      %v631 = vld [vmem:[%s587 + $0xe8] sm:$0xff]
      %v632 = vld [vmem:[%s587 + $0xf0] sm:$0xff]
      %v633 = vld [vmem:[%s587 + $0xf8] sm:$0xff]
      %v634 = vld [vmem:[%s593] sm:$0xff]
      %v635 = vld [vmem:[%s593 + $0x8] sm:$0xff]
      %v636 = vld [vmem:[%s593 + $0x10] sm:$0xff]
      %v637 = vld [vmem:[%s593 + $0x18] sm:$0xff]
      %v638 = vld [vmem:[%s593 + $0x20] sm:$0xff]
      %v639 = vld [vmem:[%s593 + $0x28] sm:$0xff]
      %v640 = vld [vmem:[%s593 + $0x30] sm:$0xff]
      %v641 = vld [vmem:[%s593 + $0x38] sm:$0xff]
      %v642 = vld [vmem:[%s593 + $0x40] sm:$0xff]
      %v643 = vld [vmem:[%s593 + $0x48] sm:$0xff]
      %v644 = vld [vmem:[%s593 + $0x50] sm:$0xff]
      %v645 = vld [vmem:[%s593 + $0x58] sm:$0xff]
      %v646 = vld [vmem:[%s593 + $0x60] sm:$0xff]
      %v647 = vld [vmem:[%s593 + $0x68] sm:$0xff]
      %v648 = vld [vmem:[%s593 + $0x70] sm:$0xff]
      %v649 = vld [vmem:[%s593 + $0x78] sm:$0xff]
      %v650 = vld [vmem:[%s593 + $0x80] sm:$0xff]
      %v651 = vld [vmem:[%s593 + $0x88] sm:$0xff]
      %v652 = vld [vmem:[%s593 + $0x90] sm:$0xff]
      %v653 = vld [vmem:[%s593 + $0x98] sm:$0xff]
      %v654 = vld [vmem:[%s593 + $0xa0] sm:$0xff]
      %v655 = vld [vmem:[%s593 + $0xa8] sm:$0xff]
      %v656 = vld [vmem:[%s593 + $0xb0] sm:$0xff]
      %v657 = vld [vmem:[%s593 + $0xb8] sm:$0xff]
      %v658 = vld [vmem:[%s593 + $0xc0] sm:$0xff]
      %v659 = vld [vmem:[%s593 + $0xc8] sm:$0xff]
      %v660 = vld [vmem:[%s593 + $0xd0] sm:$0xff]
      %v661 = vld [vmem:[%s593 + $0xd8] sm:$0xff]
      %v662 = vld [vmem:[%s593 + $0xe0] sm:$0xff]
      %v663 = vld [vmem:[%s593 + $0xe8] sm:$0xff]
      %v664 = vld [vmem:[%s593 + $0xf0] sm:$0xff]
      %v665 = vld [vmem:[%s593 + $0xf8] sm:$0xff]
      %vm666 = vcmask 785408
      %v667 = vsel %vm666, %v602, 0.0
      %668 = vadd.xlane.f32.xlu0 %v667
      %v669 = vpop.xlane.xlu0 %668
      %v670 = vsel %vm666, %v603, 0.0
      %671 = vadd.xlane.f32.xlu0 %v670
      %v672 = vpop.xlane.xlu0 %671
      %v673 = vsel %vm666, %v604, 0.0
      %674 = vadd.xlane.f32.xlu0 %v673
      %v675 = vpop.xlane.xlu0 %674
      %v676 = vsel %vm666, %v605, 0.0
      %677 = vadd.xlane.f32.xlu0 %v676
      %v678 = vpop.xlane.xlu0 %677
      %v679 = vsel %vm666, %v606, 0.0
      %680 = vadd.xlane.f32.xlu0 %v679
      %v681 = vpop.xlane.xlu0 %680
      %v682 = vsel %vm666, %v607, 0.0
      %683 = vadd.xlane.f32.xlu0 %v682
      %v684 = vpop.xlane.xlu0 %683
      %v685 = vsel %vm666, %v608, 0.0
      %686 = vadd.xlane.f32.xlu0 %v685
      %v687 = vpop.xlane.xlu0 %686
      %v688 = vsel %vm666, %v609, 0.0
      %689 = vadd.xlane.f32.xlu0 %v688
      %v690 = vpop.xlane.xlu0 %689
      %v691 = vsel %vm666, %v610, 0.0
      %692 = vadd.xlane.f32.xlu0 %v691
      %v693 = vpop.xlane.xlu0 %692
      %v694 = vsel %vm666, %v611, 0.0
      %695 = vadd.xlane.f32.xlu0 %v694
      %v696 = vpop.xlane.xlu0 %695
      %v697 = vsel %vm666, %v612, 0.0
      %698 = vadd.xlane.f32.xlu0 %v697
      %v699 = vpop.xlane.xlu0 %698
      %v700 = vsel %vm666, %v613, 0.0
      %701 = vadd.xlane.f32.xlu0 %v700
      %v702 = vpop.xlane.xlu0 %701
      %v703 = vsel %vm666, %v614, 0.0
      %704 = vadd.xlane.f32.xlu0 %v703
      %v705 = vpop.xlane.xlu0 %704
      %v706 = vsel %vm666, %v615, 0.0
      %707 = vadd.xlane.f32.xlu0 %v706
      %v708 = vpop.xlane.xlu0 %707
      %v709 = vsel %vm666, %v616, 0.0
      %710 = vadd.xlane.f32.xlu0 %v709
      %v711 = vpop.xlane.xlu0 %710
      %v712 = vsel %vm666, %v617, 0.0
      %713 = vadd.xlane.f32.xlu0 %v712
      %v714 = vpop.xlane.xlu0 %713
      %v715 = vsel %vm666, %v618, 0.0
      %716 = vadd.xlane.f32.xlu0 %v715
      %v717 = vpop.xlane.xlu0 %716
      %v718 = vsel %vm666, %v619, 0.0
      %719 = vadd.xlane.f32.xlu0 %v718
      %v720 = vpop.xlane.xlu0 %719
      %v721 = vsel %vm666, %v620, 0.0
      %722 = vadd.xlane.f32.xlu0 %v721
      %v723 = vpop.xlane.xlu0 %722
      %v724 = vsel %vm666, %v621, 0.0
      %725 = vadd.xlane.f32.xlu0 %v724
      %v726 = vpop.xlane.xlu0 %725
      %v727 = vsel %vm666, %v622, 0.0
      %728 = vadd.xlane.f32.xlu0 %v727
      %v729 = vpop.xlane.xlu0 %728
      %v730 = vsel %vm666, %v623, 0.0
      %731 = vadd.xlane.f32.xlu0 %v730
      %v732 = vpop.xlane.xlu0 %731
      %v733 = vsel %vm666, %v624, 0.0
      %734 = vadd.xlane.f32.xlu0 %v733
      %v735 = vpop.xlane.xlu0 %734
      %v736 = vsel %vm666, %v625, 0.0
      %737 = vadd.xlane.f32.xlu0 %v736
      %v738 = vpop.xlane.xlu0 %737
      %v739 = vsel %vm666, %v626, 0.0
      %740 = vadd.xlane.f32.xlu0 %v739
      %v741 = vpop.xlane.xlu0 %740
      %v742 = vsel %vm666, %v627, 0.0
      %743 = vadd.xlane.f32.xlu0 %v742
      %v744 = vpop.xlane.xlu0 %743
      %v745 = vsel %vm666, %v628, 0.0
      %746 = vadd.xlane.f32.xlu0 %v745
      %v747 = vpop.xlane.xlu0 %746
      %v748 = vsel %vm666, %v629, 0.0
      %749 = vadd.xlane.f32.xlu0 %v748
      %v750 = vpop.xlane.xlu0 %749
      %v751 = vsel %vm666, %v630, 0.0
      %752 = vadd.xlane.f32.xlu0 %v751
      %v753 = vpop.xlane.xlu0 %752
      %v754 = vsel %vm666, %v631, 0.0
      %755 = vadd.xlane.f32.xlu0 %v754
      %v756 = vpop.xlane.xlu0 %755
      %v757 = vsel %vm666, %v632, 0.0
      %758 = vadd.xlane.f32.xlu0 %v757
      %v759 = vpop.xlane.xlu0 %758
      %v760 = vsel %vm666, %v633, 0.0
      %761 = vadd.xlane.f32.xlu0 %v760
      %v762 = vpop.xlane.xlu0 %761
      %v763 = vrcp.pop 96.0
      %v764 = vmul.f32 96.0, %v763
      %v765 = vsub.f32 1.0, %v764
      %v766 = vmul.f32 %v763, %v765
      %v767 = vadd.f32 %v763, %v766
      %vm768 = vweird.f32 %v763
      %v769 = vsel %vm768, %v763, %v767
      %v770 = vmul.f32 %v669, %v769
      %v771 = vmul.f32 %v672, %v769
      %v772 = vmul.f32 %v675, %v769
      %v773 = vmul.f32 %v678, %v769
      %v774 = vmul.f32 %v681, %v769
      %v775 = vmul.f32 %v684, %v769
      %v776 = vmul.f32 %v687, %v769
      %v777 = vmul.f32 %v690, %v769
      %v778 = vmul.f32 %v693, %v769
      %v779 = vmul.f32 %v696, %v769
      %v780 = vmul.f32 %v699, %v769
      %v781 = vmul.f32 %v702, %v769
      %v782 = vmul.f32 %v705, %v769
      %v783 = vmul.f32 %v708, %v769
      %v784 = vmul.f32 %v711, %v769
      %v785 = vmul.f32 %v714, %v769
      %v786 = vmul.f32 %v717, %v769
      %v787 = vmul.f32 %v720, %v769
      %v788 = vmul.f32 %v723, %v769
      %v789 = vmul.f32 %v726, %v769
      %v790 = vmul.f32 %v729, %v769
      %v791 = vmul.f32 %v732, %v769
      %v792 = vmul.f32 %v735, %v769
      %v793 = vmul.f32 %v738, %v769
      %v794 = vmul.f32 %v741, %v769
      %v795 = vmul.f32 %v744, %v769
      %v796 = vmul.f32 %v747, %v769
      %v797 = vmul.f32 %v750, %v769
      %v798 = vmul.f32 %v753, %v769
      %v799 = vmul.f32 %v756, %v769
      %v800 = vmul.f32 %v759, %v769
      %v801 = vmul.f32 %v762, %v769
      %v802 = vmul.f32 %v602, %v602
      %v803 = vmul.f32 %v603, %v603
      %v804 = vmul.f32 %v604, %v604
      %v805 = vmul.f32 %v605, %v605
      %v806 = vmul.f32 %v606, %v606
      %v807 = vmul.f32 %v607, %v607
      %v808 = vmul.f32 %v608, %v608
      %v809 = vmul.f32 %v609, %v609
      %v810 = vmul.f32 %v610, %v610
      %v811 = vmul.f32 %v611, %v611
      %v812 = vmul.f32 %v612, %v612
      %v813 = vmul.f32 %v613, %v613
      %v814 = vmul.f32 %v614, %v614
      %v815 = vmul.f32 %v615, %v615
      %v816 = vmul.f32 %v616, %v616
      %v817 = vmul.f32 %v617, %v617
      %v818 = vmul.f32 %v618, %v618
      %v819 = vmul.f32 %v619, %v619
      %v820 = vmul.f32 %v620, %v620
      %v821 = vmul.f32 %v621, %v621
      %v822 = vmul.f32 %v622, %v622
      %v823 = vmul.f32 %v623, %v623
      %v824 = vmul.f32 %v624, %v624
      %v825 = vmul.f32 %v625, %v625
      %v826 = vmul.f32 %v626, %v626
      %v827 = vmul.f32 %v627, %v627
      %v828 = vmul.f32 %v628, %v628
      %v829 = vmul.f32 %v629, %v629
      %v830 = vmul.f32 %v630, %v630
      %v831 = vmul.f32 %v631, %v631
      %v832 = vmul.f32 %v632, %v632
      %v833 = vmul.f32 %v633, %v633
      %v834 = vsel %vm666, %v802, 0.0
      %835 = vadd.xlane.f32.xlu0 %v834
      %v836 = vpop.xlane.xlu0 %835
      %v837 = vsel %vm666, %v803, 0.0
      %838 = vadd.xlane.f32.xlu0 %v837
      %v839 = vpop.xlane.xlu0 %838
      %v840 = vsel %vm666, %v804, 0.0
      %841 = vadd.xlane.f32.xlu0 %v840
      %v842 = vpop.xlane.xlu0 %841
      %v843 = vsel %vm666, %v805, 0.0
      %844 = vadd.xlane.f32.xlu0 %v843
      %v845 = vpop.xlane.xlu0 %844
      %v846 = vsel %vm666, %v806, 0.0
      %847 = vadd.xlane.f32.xlu0 %v846
      %v848 = vpop.xlane.xlu0 %847
      %v849 = vsel %vm666, %v807, 0.0
      %850 = vadd.xlane.f32.xlu0 %v849
      %v851 = vpop.xlane.xlu0 %850
      %v852 = vsel %vm666, %v808, 0.0
      %853 = vadd.xlane.f32.xlu0 %v852
      %v854 = vpop.xlane.xlu0 %853
      %v855 = vsel %vm666, %v809, 0.0
      %856 = vadd.xlane.f32.xlu0 %v855
      %v857 = vpop.xlane.xlu0 %856
      %v858 = vsel %vm666, %v810, 0.0
      %859 = vadd.xlane.f32.xlu0 %v858
      %v860 = vpop.xlane.xlu0 %859
      %v861 = vsel %vm666, %v811, 0.0
      %862 = vadd.xlane.f32.xlu0 %v861
      %v863 = vpop.xlane.xlu0 %862
      %v864 = vsel %vm666, %v812, 0.0
      %865 = vadd.xlane.f32.xlu0 %v864
      %v866 = vpop.xlane.xlu0 %865
      %v867 = vsel %vm666, %v813, 0.0
      %868 = vadd.xlane.f32.xlu0 %v867
      %v869 = vpop.xlane.xlu0 %868
      %v870 = vsel %vm666, %v814, 0.0
      %871 = vadd.xlane.f32.xlu0 %v870
      %v872 = vpop.xlane.xlu0 %871
      %v873 = vsel %vm666, %v815, 0.0
      %874 = vadd.xlane.f32.xlu0 %v873
      %v875 = vpop.xlane.xlu0 %874
      %v876 = vsel %vm666, %v816, 0.0
      %877 = vadd.xlane.f32.xlu0 %v876
      %v878 = vpop.xlane.xlu0 %877
      %v879 = vsel %vm666, %v817, 0.0
      %880 = vadd.xlane.f32.xlu0 %v879
      %v881 = vpop.xlane.xlu0 %880
      %v882 = vsel %vm666, %v818, 0.0
      %883 = vadd.xlane.f32.xlu0 %v882
      %v884 = vpop.xlane.xlu0 %883
      %v885 = vsel %vm666, %v819, 0.0
      %886 = vadd.xlane.f32.xlu0 %v885
      %v887 = vpop.xlane.xlu0 %886
      %v888 = vsel %vm666, %v820, 0.0
      %889 = vadd.xlane.f32.xlu0 %v888
      %v890 = vpop.xlane.xlu0 %889
      %v891 = vsel %vm666, %v821, 0.0
      %892 = vadd.xlane.f32.xlu0 %v891
      %v893 = vpop.xlane.xlu0 %892
      %v894 = vsel %vm666, %v822, 0.0
      %895 = vadd.xlane.f32.xlu0 %v894
      %v896 = vpop.xlane.xlu0 %895
      %v897 = vsel %vm666, %v823, 0.0
      %898 = vadd.xlane.f32.xlu0 %v897
      %v899 = vpop.xlane.xlu0 %898
      %v900 = vsel %vm666, %v824, 0.0
      %901 = vadd.xlane.f32.xlu0 %v900
      %v902 = vpop.xlane.xlu0 %901
      %v903 = vsel %vm666, %v825, 0.0
      %904 = vadd.xlane.f32.xlu0 %v903
      %v905 = vpop.xlane.xlu0 %904
      %v906 = vsel %vm666, %v826, 0.0
      %907 = vadd.xlane.f32.xlu0 %v906
      %v908 = vpop.xlane.xlu0 %907
      %v909 = vsel %vm666, %v827, 0.0
      %910 = vadd.xlane.f32.xlu0 %v909
      %v911 = vpop.xlane.xlu0 %910
      %v912 = vsel %vm666, %v828, 0.0
      %913 = vadd.xlane.f32.xlu0 %v912
      %v914 = vpop.xlane.xlu0 %913
      %v915 = vsel %vm666, %v829, 0.0
      %916 = vadd.xlane.f32.xlu0 %v915
      %v917 = vpop.xlane.xlu0 %916
      %v918 = vsel %vm666, %v830, 0.0
      %919 = vadd.xlane.f32.xlu0 %v918
      %v920 = vpop.xlane.xlu0 %919
      %v921 = vsel %vm666, %v831, 0.0
      %922 = vadd.xlane.f32.xlu0 %v921
      %v923 = vpop.xlane.xlu0 %922
      %v924 = vsel %vm666, %v832, 0.0
      %925 = vadd.xlane.f32.xlu0 %v924
      %v926 = vpop.xlane.xlu0 %925
      %v927 = vsel %vm666, %v833, 0.0
      %928 = vadd.xlane.f32.xlu0 %v927
      %v929 = vpop.xlane.xlu0 %928
      %v930 = vmul.f32 %v836, %v769
      %v931 = vmul.f32 %v839, %v769
      %v932 = vmul.f32 %v842, %v769
      %v933 = vmul.f32 %v845, %v769
      %v934 = vmul.f32 %v848, %v769
      %v935 = vmul.f32 %v851, %v769
      %v936 = vmul.f32 %v854, %v769
      %v937 = vmul.f32 %v857, %v769
      %v938 = vmul.f32 %v860, %v769
      %v939 = vmul.f32 %v863, %v769
      %v940 = vmul.f32 %v866, %v769
      %v941 = vmul.f32 %v869, %v769
      %v942 = vmul.f32 %v872, %v769
      %v943 = vmul.f32 %v875, %v769
      %v944 = vmul.f32 %v878, %v769
      %v945 = vmul.f32 %v881, %v769
      %v946 = vmul.f32 %v884, %v769
      %v947 = vmul.f32 %v887, %v769
      %v948 = vmul.f32 %v890, %v769
      %v949 = vmul.f32 %v893, %v769
      %v950 = vmul.f32 %v896, %v769
      %v951 = vmul.f32 %v899, %v769
      %v952 = vmul.f32 %v902, %v769
      %v953 = vmul.f32 %v905, %v769
      %v954 = vmul.f32 %v908, %v769
      %v955 = vmul.f32 %v911, %v769
      %v956 = vmul.f32 %v914, %v769
      %v957 = vmul.f32 %v917, %v769
      %v958 = vmul.f32 %v920, %v769
      %v959 = vmul.f32 %v923, %v769
      %v960 = vmul.f32 %v926, %v769
      %v961 = vmul.f32 %v929, %v769
      %v962 = vmul.f32 %v770, %v770
      %v963 = vmul.f32 %v771, %v771
      %v964 = vmul.f32 %v772, %v772
      %v965 = vmul.f32 %v773, %v773
      %v966 = vmul.f32 %v774, %v774
      %v967 = vmul.f32 %v775, %v775
      %v968 = vmul.f32 %v776, %v776
      %v969 = vmul.f32 %v777, %v777
      %v970 = vmul.f32 %v778, %v778
      %v971 = vmul.f32 %v779, %v779
      %v972 = vmul.f32 %v780, %v780
      %v973 = vmul.f32 %v781, %v781
      %v974 = vmul.f32 %v782, %v782
      %v975 = vmul.f32 %v783, %v783
      %v976 = vmul.f32 %v784, %v784
      %v977 = vmul.f32 %v785, %v785
      %v978 = vmul.f32 %v786, %v786
      %v979 = vmul.f32 %v787, %v787
      %v980 = vmul.f32 %v788, %v788
      %v981 = vmul.f32 %v789, %v789
      %v982 = vmul.f32 %v790, %v790
      %v983 = vmul.f32 %v791, %v791
      %v984 = vmul.f32 %v792, %v792
      %v985 = vmul.f32 %v793, %v793
      %v986 = vmul.f32 %v794, %v794
      %v987 = vmul.f32 %v795, %v795
      %v988 = vmul.f32 %v796, %v796
      %v989 = vmul.f32 %v797, %v797
      %v990 = vmul.f32 %v798, %v798
      %v991 = vmul.f32 %v799, %v799
      %v992 = vmul.f32 %v800, %v800
      %v993 = vmul.f32 %v801, %v801
      %v994 = vsub.f32 %v930, %v962
      %v995 = vsub.f32 %v931, %v963
      %v996 = vsub.f32 %v932, %v964
      %v997 = vsub.f32 %v933, %v965
      %v998 = vsub.f32 %v934, %v966
      %v999 = vsub.f32 %v935, %v967
      %v1000 = vsub.f32 %v936, %v968
      %v1001 = vsub.f32 %v937, %v969
      %v1002 = vsub.f32 %v938, %v970
      %v1003 = vsub.f32 %v939, %v971
      %v1004 = vsub.f32 %v940, %v972
      %v1005 = vsub.f32 %v941, %v973
      %v1006 = vsub.f32 %v942, %v974
      %v1007 = vsub.f32 %v943, %v975
      %v1008 = vsub.f32 %v944, %v976
      %v1009 = vsub.f32 %v945, %v977
      %v1010 = vsub.f32 %v946, %v978
      %v1011 = vsub.f32 %v947, %v979
      %v1012 = vsub.f32 %v948, %v980
      %v1013 = vsub.f32 %v949, %v981
      %v1014 = vsub.f32 %v950, %v982
      %v1015 = vsub.f32 %v951, %v983
      %v1016 = vsub.f32 %v952, %v984
      %v1017 = vsub.f32 %v953, %v985
      %v1018 = vsub.f32 %v954, %v986
      %v1019 = vsub.f32 %v955, %v987
      %v1020 = vsub.f32 %v956, %v988
      %v1021 = vsub.f32 %v957, %v989
      %v1022 = vsub.f32 %v958, %v990
      %v1023 = vsub.f32 %v959, %v991
      %v1024 = vsub.f32 %v960, %v992
      %v1025 = vsub.f32 %v961, %v993
      %v1026 = vsub.f32 %v602, %v770
      %v1027 = vsub.f32 %v603, %v771
      %v1028 = vsub.f32 %v604, %v772
      %v1029 = vsub.f32 %v605, %v773
      %v1030 = vsub.f32 %v606, %v774
      %v1031 = vsub.f32 %v607, %v775
      %v1032 = vsub.f32 %v608, %v776
      %v1033 = vsub.f32 %v609, %v777
      %v1034 = vsub.f32 %v610, %v778
      %v1035 = vsub.f32 %v611, %v779
      %v1036 = vsub.f32 %v612, %v780
      %v1037 = vsub.f32 %v613, %v781
      %v1038 = vsub.f32 %v614, %v782
      %v1039 = vsub.f32 %v615, %v783
      %v1040 = vsub.f32 %v616, %v784
      %v1041 = vsub.f32 %v617, %v785
      %v1042 = vsub.f32 %v618, %v786
      %v1043 = vsub.f32 %v619, %v787
      %v1044 = vsub.f32 %v620, %v788
      %v1045 = vsub.f32 %v621, %v789
      %v1046 = vsub.f32 %v622, %v790
      %v1047 = vsub.f32 %v623, %v791
      %v1048 = vsub.f32 %v624, %v792
      %v1049 = vsub.f32 %v625, %v793
      %v1050 = vsub.f32 %v626, %v794
      %v1051 = vsub.f32 %v627, %v795
      %v1052 = vsub.f32 %v628, %v796
      %v1053 = vsub.f32 %v629, %v797
      %v1054 = vsub.f32 %v630, %v798
      %v1055 = vsub.f32 %v631, %v799
      %v1056 = vsub.f32 %v632, %v800
      %v1057 = vsub.f32 %v633, %v801
      %v1058 = vadd.f32 %v994, 1e-05
      %v1059 = vadd.f32 %v995, 1e-05
      %v1060 = vadd.f32 %v996, 1e-05
      %v1061 = vadd.f32 %v997, 1e-05
      %v1062 = vadd.f32 %v998, 1e-05
      %v1063 = vadd.f32 %v999, 1e-05
      %v1064 = vadd.f32 %v1000, 1e-05
      %v1065 = vadd.f32 %v1001, 1e-05
      %v1066 = vadd.f32 %v1002, 1e-05
      %v1067 = vadd.f32 %v1003, 1e-05
      %v1068 = vadd.f32 %v1004, 1e-05
      %v1069 = vadd.f32 %v1005, 1e-05
      %v1070 = vadd.f32 %v1006, 1e-05
      %v1071 = vadd.f32 %v1007, 1e-05
      %v1072 = vadd.f32 %v1008, 1e-05
      %v1073 = vadd.f32 %v1009, 1e-05
      %v1074 = vadd.f32 %v1010, 1e-05
      %v1075 = vadd.f32 %v1011, 1e-05
      %v1076 = vadd.f32 %v1012, 1e-05
      %v1077 = vadd.f32 %v1013, 1e-05
      %v1078 = vadd.f32 %v1014, 1e-05
      %v1079 = vadd.f32 %v1015, 1e-05
      %v1080 = vadd.f32 %v1016, 1e-05
      %v1081 = vadd.f32 %v1017, 1e-05
      %v1082 = vadd.f32 %v1018, 1e-05
      %v1083 = vadd.f32 %v1019, 1e-05
      %v1084 = vadd.f32 %v1020, 1e-05
      %v1085 = vadd.f32 %v1021, 1e-05
      %v1086 = vadd.f32 %v1022, 1e-05
      %v1087 = vadd.f32 %v1023, 1e-05
      %v1088 = vadd.f32 %v1024, 1e-05
      %v1089 = vadd.f32 %v1025, 1e-05
      %v1090 = vrsqrt.pop %v1058
      %v1091 = vmul.f32 %v1090, %v1058
      %v1092 = vmul.f32 %v1091, %v1090
      %v1093 = vmul.f32 0.5, %v1092
      %v1094 = vsub.f32 1.5, %v1093
      %v1095 = vmul.f32 %v1090, %v1094
      %vm1096 = vweird.f32 %v1058
      %vm1097 = vweird.f32 %v1090
      %vm1098 = vmor %vm1096, %vm1097
      %v1099 = vsel %vm1098, %v1090, %v1095
      %v1100 = vrsqrt.pop %v1059
      %v1101 = vmul.f32 %v1100, %v1059
      %v1102 = vmul.f32 %v1101, %v1100
      %v1103 = vmul.f32 0.5, %v1102
      %v1104 = vsub.f32 1.5, %v1103
      %v1105 = vmul.f32 %v1100, %v1104
      %vm1106 = vweird.f32 %v1059
      %vm1107 = vweird.f32 %v1100
      %vm1108 = vmor %vm1106, %vm1107
      %v1109 = vsel %vm1108, %v1100, %v1105
      %v1110 = vrsqrt.pop %v1060
      %v1111 = vmul.f32 %v1110, %v1060
      %v1112 = vmul.f32 %v1111, %v1110
      %v1113 = vmul.f32 0.5, %v1112
      %v1114 = vsub.f32 1.5, %v1113
      %v1115 = vmul.f32 %v1110, %v1114
      %vm1116 = vweird.f32 %v1060
      %vm1117 = vweird.f32 %v1110
      %vm1118 = vmor %vm1116, %vm1117
      %v1119 = vsel %vm1118, %v1110, %v1115
      %v1120 = vrsqrt.pop %v1061
      %v1121 = vmul.f32 %v1120, %v1061
      %v1122 = vmul.f32 %v1121, %v1120
      %v1123 = vmul.f32 0.5, %v1122
      %v1124 = vsub.f32 1.5, %v1123
      %v1125 = vmul.f32 %v1120, %v1124
      %vm1126 = vweird.f32 %v1061
      %vm1127 = vweird.f32 %v1120
      %vm1128 = vmor %vm1126, %vm1127
      %v1129 = vsel %vm1128, %v1120, %v1125
      %v1130 = vrsqrt.pop %v1062
      %v1131 = vmul.f32 %v1130, %v1062
      %v1132 = vmul.f32 %v1131, %v1130
      %v1133 = vmul.f32 0.5, %v1132
      %v1134 = vsub.f32 1.5, %v1133
      %v1135 = vmul.f32 %v1130, %v1134
      %vm1136 = vweird.f32 %v1062
      %vm1137 = vweird.f32 %v1130
      %vm1138 = vmor %vm1136, %vm1137
      %v1139 = vsel %vm1138, %v1130, %v1135
      %v1140 = vrsqrt.pop %v1063
      %v1141 = vmul.f32 %v1140, %v1063
      %v1142 = vmul.f32 %v1141, %v1140
      %v1143 = vmul.f32 0.5, %v1142
      %v1144 = vsub.f32 1.5, %v1143
      %v1145 = vmul.f32 %v1140, %v1144
      %vm1146 = vweird.f32 %v1063
      %vm1147 = vweird.f32 %v1140
      %vm1148 = vmor %vm1146, %vm1147
      %v1149 = vsel %vm1148, %v1140, %v1145
      %v1150 = vrsqrt.pop %v1064
      %v1151 = vmul.f32 %v1150, %v1064
      %v1152 = vmul.f32 %v1151, %v1150
      %v1153 = vmul.f32 0.5, %v1152
      %v1154 = vsub.f32 1.5, %v1153
      %v1155 = vmul.f32 %v1150, %v1154
      %vm1156 = vweird.f32 %v1064
      %vm1157 = vweird.f32 %v1150
      %vm1158 = vmor %vm1156, %vm1157
      %v1159 = vsel %vm1158, %v1150, %v1155
      %v1160 = vrsqrt.pop %v1065
      %v1161 = vmul.f32 %v1160, %v1065
      %v1162 = vmul.f32 %v1161, %v1160
      %v1163 = vmul.f32 0.5, %v1162
      %v1164 = vsub.f32 1.5, %v1163
      %v1165 = vmul.f32 %v1160, %v1164
      %vm1166 = vweird.f32 %v1065
      %vm1167 = vweird.f32 %v1160
      %vm1168 = vmor %vm1166, %vm1167
      %v1169 = vsel %vm1168, %v1160, %v1165
      %v1170 = vrsqrt.pop %v1066
      %v1171 = vmul.f32 %v1170, %v1066
      %v1172 = vmul.f32 %v1171, %v1170
      %v1173 = vmul.f32 0.5, %v1172
      %v1174 = vsub.f32 1.5, %v1173
      %v1175 = vmul.f32 %v1170, %v1174
      %vm1176 = vweird.f32 %v1066
      %vm1177 = vweird.f32 %v1170
      %vm1178 = vmor %vm1176, %vm1177
      %v1179 = vsel %vm1178, %v1170, %v1175
      %v1180 = vrsqrt.pop %v1067
      %v1181 = vmul.f32 %v1180, %v1067
      %v1182 = vmul.f32 %v1181, %v1180
      %v1183 = vmul.f32 0.5, %v1182
      %v1184 = vsub.f32 1.5, %v1183
      %v1185 = vmul.f32 %v1180, %v1184
      %vm1186 = vweird.f32 %v1067
      %vm1187 = vweird.f32 %v1180
      %vm1188 = vmor %vm1186, %vm1187
      %v1189 = vsel %vm1188, %v1180, %v1185
      %v1190 = vrsqrt.pop %v1068
      %v1191 = vmul.f32 %v1190, %v1068
      %v1192 = vmul.f32 %v1191, %v1190
      %v1193 = vmul.f32 0.5, %v1192
      %v1194 = vsub.f32 1.5, %v1193
      %v1195 = vmul.f32 %v1190, %v1194
      %vm1196 = vweird.f32 %v1068
      %vm1197 = vweird.f32 %v1190
      %vm1198 = vmor %vm1196, %vm1197
      %v1199 = vsel %vm1198, %v1190, %v1195
      %v1200 = vrsqrt.pop %v1069
      %v1201 = vmul.f32 %v1200, %v1069
      %v1202 = vmul.f32 %v1201, %v1200
      %v1203 = vmul.f32 0.5, %v1202
      %v1204 = vsub.f32 1.5, %v1203
      %v1205 = vmul.f32 %v1200, %v1204
      %vm1206 = vweird.f32 %v1069
      %vm1207 = vweird.f32 %v1200
      %vm1208 = vmor %vm1206, %vm1207
      %v1209 = vsel %vm1208, %v1200, %v1205
      %v1210 = vrsqrt.pop %v1070
      %v1211 = vmul.f32 %v1210, %v1070
      %v1212 = vmul.f32 %v1211, %v1210
      %v1213 = vmul.f32 0.5, %v1212
      %v1214 = vsub.f32 1.5, %v1213
      %v1215 = vmul.f32 %v1210, %v1214
      %vm1216 = vweird.f32 %v1070
      %vm1217 = vweird.f32 %v1210
      %vm1218 = vmor %vm1216, %vm1217
      %v1219 = vsel %vm1218, %v1210, %v1215
      %v1220 = vrsqrt.pop %v1071
      %v1221 = vmul.f32 %v1220, %v1071
      %v1222 = vmul.f32 %v1221, %v1220
      %v1223 = vmul.f32 0.5, %v1222
      %v1224 = vsub.f32 1.5, %v1223
      %v1225 = vmul.f32 %v1220, %v1224
      %vm1226 = vweird.f32 %v1071
      %vm1227 = vweird.f32 %v1220
      %vm1228 = vmor %vm1226, %vm1227
      %v1229 = vsel %vm1228, %v1220, %v1225
      %v1230 = vrsqrt.pop %v1072
      %v1231 = vmul.f32 %v1230, %v1072
      %v1232 = vmul.f32 %v1231, %v1230
      %v1233 = vmul.f32 0.5, %v1232
      %v1234 = vsub.f32 1.5, %v1233
      %v1235 = vmul.f32 %v1230, %v1234
      %vm1236 = vweird.f32 %v1072
      %vm1237 = vweird.f32 %v1230
      %vm1238 = vmor %vm1236, %vm1237
      %v1239 = vsel %vm1238, %v1230, %v1235
      %v1240 = vrsqrt.pop %v1073
      %v1241 = vmul.f32 %v1240, %v1073
      %v1242 = vmul.f32 %v1241, %v1240
      %v1243 = vmul.f32 0.5, %v1242
      %v1244 = vsub.f32 1.5, %v1243
      %v1245 = vmul.f32 %v1240, %v1244
      %vm1246 = vweird.f32 %v1073
      %vm1247 = vweird.f32 %v1240
      %vm1248 = vmor %vm1246, %vm1247
      %v1249 = vsel %vm1248, %v1240, %v1245
      %v1250 = vrsqrt.pop %v1074
      %v1251 = vmul.f32 %v1250, %v1074
      %v1252 = vmul.f32 %v1251, %v1250
      %v1253 = vmul.f32 0.5, %v1252
      %v1254 = vsub.f32 1.5, %v1253
      %v1255 = vmul.f32 %v1250, %v1254
      %vm1256 = vweird.f32 %v1074
      %vm1257 = vweird.f32 %v1250
      %vm1258 = vmor %vm1256, %vm1257
      %v1259 = vsel %vm1258, %v1250, %v1255
      %v1260 = vrsqrt.pop %v1075
      %v1261 = vmul.f32 %v1260, %v1075
      %v1262 = vmul.f32 %v1261, %v1260
      %v1263 = vmul.f32 0.5, %v1262
      %v1264 = vsub.f32 1.5, %v1263
      %v1265 = vmul.f32 %v1260, %v1264
      %vm1266 = vweird.f32 %v1075
      %vm1267 = vweird.f32 %v1260
      %vm1268 = vmor %vm1266, %vm1267
      %v1269 = vsel %vm1268, %v1260, %v1265
      %v1270 = vrsqrt.pop %v1076
      %v1271 = vmul.f32 %v1270, %v1076
      %v1272 = vmul.f32 %v1271, %v1270
      %v1273 = vmul.f32 0.5, %v1272
      %v1274 = vsub.f32 1.5, %v1273
      %v1275 = vmul.f32 %v1270, %v1274
      %vm1276 = vweird.f32 %v1076
      %vm1277 = vweird.f32 %v1270
      %vm1278 = vmor %vm1276, %vm1277
      %v1279 = vsel %vm1278, %v1270, %v1275
      %v1280 = vrsqrt.pop %v1077
      %v1281 = vmul.f32 %v1280, %v1077
      %v1282 = vmul.f32 %v1281, %v1280
      %v1283 = vmul.f32 0.5, %v1282
      %v1284 = vsub.f32 1.5, %v1283
      %v1285 = vmul.f32 %v1280, %v1284
      %vm1286 = vweird.f32 %v1077
      %vm1287 = vweird.f32 %v1280
      %vm1288 = vmor %vm1286, %vm1287
      %v1289 = vsel %vm1288, %v1280, %v1285
      %v1290 = vrsqrt.pop %v1078
      %v1291 = vmul.f32 %v1290, %v1078
      %v1292 = vmul.f32 %v1291, %v1290
      %v1293 = vmul.f32 0.5, %v1292
      %v1294 = vsub.f32 1.5, %v1293
      %v1295 = vmul.f32 %v1290, %v1294
      %vm1296 = vweird.f32 %v1078
      %vm1297 = vweird.f32 %v1290
      %vm1298 = vmor %vm1296, %vm1297
      %v1299 = vsel %vm1298, %v1290, %v1295
      %v1300 = vrsqrt.pop %v1079
      %v1301 = vmul.f32 %v1300, %v1079
      %v1302 = vmul.f32 %v1301, %v1300
      %v1303 = vmul.f32 0.5, %v1302
      %v1304 = vsub.f32 1.5, %v1303
      %v1305 = vmul.f32 %v1300, %v1304
      %vm1306 = vweird.f32 %v1079
      %vm1307 = vweird.f32 %v1300
      %vm1308 = vmor %vm1306, %vm1307
      %v1309 = vsel %vm1308, %v1300, %v1305
      %v1310 = vrsqrt.pop %v1080
      %v1311 = vmul.f32 %v1310, %v1080
      %v1312 = vmul.f32 %v1311, %v1310
      %v1313 = vmul.f32 0.5, %v1312
      %v1314 = vsub.f32 1.5, %v1313
      %v1315 = vmul.f32 %v1310, %v1314
      %vm1316 = vweird.f32 %v1080
      %vm1317 = vweird.f32 %v1310
      %vm1318 = vmor %vm1316, %vm1317
      %v1319 = vsel %vm1318, %v1310, %v1315
      %v1320 = vrsqrt.pop %v1081
      %v1321 = vmul.f32 %v1320, %v1081
      %v1322 = vmul.f32 %v1321, %v1320
      %v1323 = vmul.f32 0.5, %v1322
      %v1324 = vsub.f32 1.5, %v1323
      %v1325 = vmul.f32 %v1320, %v1324
      %vm1326 = vweird.f32 %v1081
      %vm1327 = vweird.f32 %v1320
      %vm1328 = vmor %vm1326, %vm1327
      %v1329 = vsel %vm1328, %v1320, %v1325
      %v1330 = vrsqrt.pop %v1082
      %v1331 = vmul.f32 %v1330, %v1082
      %v1332 = vmul.f32 %v1331, %v1330
      %v1333 = vmul.f32 0.5, %v1332
      %v1334 = vsub.f32 1.5, %v1333
      %v1335 = vmul.f32 %v1330, %v1334
      %vm1336 = vweird.f32 %v1082
      %vm1337 = vweird.f32 %v1330
      %vm1338 = vmor %vm1336, %vm1337
      %v1339 = vsel %vm1338, %v1330, %v1335
      %v1340 = vrsqrt.pop %v1083
      %v1341 = vmul.f32 %v1340, %v1083
      %v1342 = vmul.f32 %v1341, %v1340
      %v1343 = vmul.f32 0.5, %v1342
      %v1344 = vsub.f32 1.5, %v1343
      %v1345 = vmul.f32 %v1340, %v1344
      %vm1346 = vweird.f32 %v1083
      %vm1347 = vweird.f32 %v1340
      %vm1348 = vmor %vm1346, %vm1347
      %v1349 = vsel %vm1348, %v1340, %v1345
      %v1350 = vrsqrt.pop %v1084
      %v1351 = vmul.f32 %v1350, %v1084
      %v1352 = vmul.f32 %v1351, %v1350
      %v1353 = vmul.f32 0.5, %v1352
      %v1354 = vsub.f32 1.5, %v1353
      %v1355 = vmul.f32 %v1350, %v1354
      %vm1356 = vweird.f32 %v1084
      %vm1357 = vweird.f32 %v1350
      %vm1358 = vmor %vm1356, %vm1357
      %v1359 = vsel %vm1358, %v1350, %v1355
      %v1360 = vrsqrt.pop %v1085
      %v1361 = vmul.f32 %v1360, %v1085
      %v1362 = vmul.f32 %v1361, %v1360
      %v1363 = vmul.f32 0.5, %v1362
      %v1364 = vsub.f32 1.5, %v1363
      %v1365 = vmul.f32 %v1360, %v1364
      %vm1366 = vweird.f32 %v1085
      %vm1367 = vweird.f32 %v1360
      %vm1368 = vmor %vm1366, %vm1367
      %v1369 = vsel %vm1368, %v1360, %v1365
      %v1370 = vrsqrt.pop %v1086
      %v1371 = vmul.f32 %v1370, %v1086
      %v1372 = vmul.f32 %v1371, %v1370
      %v1373 = vmul.f32 0.5, %v1372
      %v1374 = vsub.f32 1.5, %v1373
      %v1375 = vmul.f32 %v1370, %v1374
      %vm1376 = vweird.f32 %v1086
      %vm1377 = vweird.f32 %v1370
      %vm1378 = vmor %vm1376, %vm1377
      %v1379 = vsel %vm1378, %v1370, %v1375
      %v1380 = vrsqrt.pop %v1087
      %v1381 = vmul.f32 %v1380, %v1087
      %v1382 = vmul.f32 %v1381, %v1380
      %v1383 = vmul.f32 0.5, %v1382
      %v1384 = vsub.f32 1.5, %v1383
      %v1385 = vmul.f32 %v1380, %v1384
      %vm1386 = vweird.f32 %v1087
      %vm1387 = vweird.f32 %v1380
      %vm1388 = vmor %vm1386, %vm1387
      %v1389 = vsel %vm1388, %v1380, %v1385
      %v1390 = vrsqrt.pop %v1088
      %v1391 = vmul.f32 %v1390, %v1088
      %v1392 = vmul.f32 %v1391, %v1390
      %v1393 = vmul.f32 0.5, %v1392
      %v1394 = vsub.f32 1.5, %v1393
      %v1395 = vmul.f32 %v1390, %v1394
      %vm1396 = vweird.f32 %v1088
      %vm1397 = vweird.f32 %v1390
      %vm1398 = vmor %vm1396, %vm1397
      %v1399 = vsel %vm1398, %v1390, %v1395
      %v1400 = vrsqrt.pop %v1089
      %v1401 = vmul.f32 %v1400, %v1089
      %v1402 = vmul.f32 %v1401, %v1400
      %v1403 = vmul.f32 0.5, %v1402
      %v1404 = vsub.f32 1.5, %v1403
      %v1405 = vmul.f32 %v1400, %v1404
      %vm1406 = vweird.f32 %v1089
      %vm1407 = vweird.f32 %v1400
      %vm1408 = vmor %vm1406, %vm1407
      %v1409 = vsel %vm1408, %v1400, %v1405
      %v1410 = vmul.f32 %v1026, %v1099
      %v1411 = vmul.f32 %v1027, %v1109
      %v1412 = vmul.f32 %v1028, %v1119
      %v1413 = vmul.f32 %v1029, %v1129
      %v1414 = vmul.f32 %v1030, %v1139
      %v1415 = vmul.f32 %v1031, %v1149
      %v1416 = vmul.f32 %v1032, %v1159
      %v1417 = vmul.f32 %v1033, %v1169
      %v1418 = vmul.f32 %v1034, %v1179
      %v1419 = vmul.f32 %v1035, %v1189
      %v1420 = vmul.f32 %v1036, %v1199
      %v1421 = vmul.f32 %v1037, %v1209
      %v1422 = vmul.f32 %v1038, %v1219
      %v1423 = vmul.f32 %v1039, %v1229
      %v1424 = vmul.f32 %v1040, %v1239
      %v1425 = vmul.f32 %v1041, %v1249
      %v1426 = vmul.f32 %v1042, %v1259
      %v1427 = vmul.f32 %v1043, %v1269
      %v1428 = vmul.f32 %v1044, %v1279
      %v1429 = vmul.f32 %v1045, %v1289
      %v1430 = vmul.f32 %v1046, %v1299
      %v1431 = vmul.f32 %v1047, %v1309
      %v1432 = vmul.f32 %v1048, %v1319
      %v1433 = vmul.f32 %v1049, %v1329
      %v1434 = vmul.f32 %v1050, %v1339
      %v1435 = vmul.f32 %v1051, %v1349
      %v1436 = vmul.f32 %v1052, %v1359
      %v1437 = vmul.f32 %v1053, %v1369
      %v1438 = vmul.f32 %v1054, %v1379
      %v1439 = vmul.f32 %v1055, %v1389
      %v1440 = vmul.f32 %v1056, %v1399
      %v1441 = vmul.f32 %v1057, %v1409
      %v1442 = vld [vmem:[%s6] sm:$0x1]
      %v1444 = vperm.slane %v1442, 0
      %v1446 = vmul.f32 %v1410, %v1444
      %v1447 = vmul.f32 %v1411, %v1444
      %v1448 = vmul.f32 %v1412, %v1444
      %v1449 = vmul.f32 %v1413, %v1444
      %v1450 = vmul.f32 %v1414, %v1444
      %v1451 = vmul.f32 %v1415, %v1444
      %v1452 = vmul.f32 %v1416, %v1444
      %v1453 = vmul.f32 %v1417, %v1444
      %v1454 = vmul.f32 %v1418, %v1444
      %v1455 = vmul.f32 %v1419, %v1444
      %v1456 = vmul.f32 %v1420, %v1444
      %v1457 = vmul.f32 %v1421, %v1444
      %v1458 = vmul.f32 %v1422, %v1444
      %v1459 = vmul.f32 %v1423, %v1444
      %v1460 = vmul.f32 %v1424, %v1444
      %v1461 = vmul.f32 %v1425, %v1444
      %v1462 = vmul.f32 %v1426, %v1444
      %v1463 = vmul.f32 %v1427, %v1444
      %v1464 = vmul.f32 %v1428, %v1444
      %v1465 = vmul.f32 %v1429, %v1444
      %v1466 = vmul.f32 %v1430, %v1444
      %v1467 = vmul.f32 %v1431, %v1444
      %v1468 = vmul.f32 %v1432, %v1444
      %v1469 = vmul.f32 %v1433, %v1444
      %v1470 = vmul.f32 %v1434, %v1444
      %v1471 = vmul.f32 %v1435, %v1444
      %v1472 = vmul.f32 %v1436, %v1444
      %v1473 = vmul.f32 %v1437, %v1444
      %v1474 = vmul.f32 %v1438, %v1444
      %v1475 = vmul.f32 %v1439, %v1444
      %v1476 = vmul.f32 %v1440, %v1444
      %v1477 = vmul.f32 %v1441, %v1444
      %v1478 = vld [vmem:[%s7] sm:$0x1]
      %v1480 = vperm.slane %v1478, 0
      %v1482 = vadd.f32 %v1446, %v1480
      %v1483 = vadd.f32 %v1447, %v1480
      %v1484 = vadd.f32 %v1448, %v1480
      %v1485 = vadd.f32 %v1449, %v1480
      %v1486 = vadd.f32 %v1450, %v1480
      %v1487 = vadd.f32 %v1451, %v1480
      %v1488 = vadd.f32 %v1452, %v1480
      %v1489 = vadd.f32 %v1453, %v1480
      %v1490 = vadd.f32 %v1454, %v1480
      %v1491 = vadd.f32 %v1455, %v1480
      %v1492 = vadd.f32 %v1456, %v1480
      %v1493 = vadd.f32 %v1457, %v1480
      %v1494 = vadd.f32 %v1458, %v1480
      %v1495 = vadd.f32 %v1459, %v1480
      %v1496 = vadd.f32 %v1460, %v1480
      %v1497 = vadd.f32 %v1461, %v1480
      %v1498 = vadd.f32 %v1462, %v1480
      %v1499 = vadd.f32 %v1463, %v1480
      %v1500 = vadd.f32 %v1464, %v1480
      %v1501 = vadd.f32 %v1465, %v1480
      %v1502 = vadd.f32 %v1466, %v1480
      %v1503 = vadd.f32 %v1467, %v1480
      %v1504 = vadd.f32 %v1468, %v1480
      %v1505 = vadd.f32 %v1469, %v1480
      %v1506 = vadd.f32 %v1470, %v1480
      %v1507 = vadd.f32 %v1471, %v1480
      %v1508 = vadd.f32 %v1472, %v1480
      %v1509 = vadd.f32 %v1473, %v1480
      %v1510 = vadd.f32 %v1474, %v1480
      %v1511 = vadd.f32 %v1475, %v1480
      %v1512 = vadd.f32 %v1476, %v1480
      %v1513 = vadd.f32 %v1477, %v1480
      %v1514 = vpack.c.bf16 %v1483, %v1482
      %v1515 = vpack.c.bf16 %v1485, %v1484
      %v1516 = vpack.c.bf16 %v1487, %v1486
      %v1517 = vpack.c.bf16 %v1489, %v1488
      %v1518 = vpack.c.bf16 %v1491, %v1490
      %v1519 = vpack.c.bf16 %v1493, %v1492
      %v1520 = vpack.c.bf16 %v1495, %v1494
      %v1521 = vpack.c.bf16 %v1497, %v1496
      %v1522 = vpack.c.bf16 %v1499, %v1498
      %v1523 = vpack.c.bf16 %v1501, %v1500
      %v1524 = vpack.c.bf16 %v1503, %v1502
      %v1525 = vpack.c.bf16 %v1505, %v1504
      %v1526 = vpack.c.bf16 %v1507, %v1506
      %v1527 = vpack.c.bf16 %v1509, %v1508
      %v1528 = vpack.c.bf16 %v1511, %v1510
      %v1529 = vpack.c.bf16 %v1513, %v1512
      %v1530 = vld [vmem:[%s8] sm:$0xf]
      %v1531 = vld [vmem:[%s8 + $0x4] sm:$0xf]
      %v1532 = vld [vmem:[%s8 + $0x8] sm:$0xf]
      %v1533 = vld [vmem:[%s8 + $0xc] sm:$0xf]
      %v1534 = vld [vmem:[%s8 + $0x10] sm:$0xf]
      %v1535 = vld [vmem:[%s8 + $0x14] sm:$0xf]
      %v1536 = vld [vmem:[%s8 + $0x18] sm:$0xf]
      %v1537 = vld [vmem:[%s8 + $0x1c] sm:$0xf]
      %v1538 = vld [vmem:[%s8 + $0x20] sm:$0xf]
      %v1539 = vld [vmem:[%s8 + $0x24] sm:$0xf]
      %v1540 = vld [vmem:[%s8 + $0x28] sm:$0xf]
      %v1541 = vld [vmem:[%s8 + $0x2c] sm:$0xf]
      %v1542 = vld [vmem:[%s9] sm:$0x1]
      %v1544 = vperm.slane %v1542, 0
      %v1558 = vunpack.c.l.b16 %v1530
      %v1559 = vunpack.c.l.b16 %v1531
      %v1560 = vunpack.c.l.b16 %v1532
      %v1561 = vunpack.c.l.b16 %v1533
      %v1562 = vunpack.c.l.b16 %v1534
      %v1563 = vunpack.c.l.b16 %v1535
      %v1564 = vunpack.c.l.b16 %v1536
      %v1565 = vunpack.c.l.b16 %v1537
      %v1566 = vunpack.c.l.b16 %v1538
      %v1567 = vunpack.c.l.b16 %v1539
      %v1568 = vunpack.c.l.b16 %v1540
      %v1569 = vunpack.c.l.b16 %v1541
      %v1570 = vpack.c.b16 %v1559, %v1558
      %v1571 = vpack.c.b16 %v1561, %v1560
      %v1572 = vpack.c.b16 %v1563, %v1562
      %v1573 = vpack.c.b16 %v1565, %v1564
      %v1574 = vpack.c.b16 %v1567, %v1566
      %v1575 = vpack.c.b16 %v1569, %v1568
      %v1583 = vsel %vm666, %v1514, 0
      %v1586 = vsel %vm666, %v1515, 0
      %v1589 = vsel %vm666, %v1516, 0
      %v1592 = vsel %vm666, %v1517, 0
      %v1595 = vsel %vm666, %v1518, 0
      %v1598 = vsel %vm666, %v1519, 0
      %v1601 = vsel %vm666, %v1520, 0
      %v1604 = vsel %vm666, %v1521, 0
      %v1607 = vsel %vm666, %v1522, 0
      %v1610 = vsel %vm666, %v1523, 0
      %v1613 = vsel %vm666, %v1524, 0
      %v1616 = vsel %vm666, %v1525, 0
      %v1619 = vsel %vm666, %v1526, 0
      %v1622 = vsel %vm666, %v1527, 0
      %v1625 = vsel %vm666, %v1528, 0
      %v1628 = vsel %vm666, %v1529, 0
      %1630 = vmatpush.bf16.msra.mxu0 0
      %1631 = vmatpush.bf16.msra.mxu0 0
      %1632 = vmatpush.bf16.msra.mxu0 %v1575
      %1633 = vmatpush.bf16.msra.mxu0 %v1574
      %1634 = vmatpush.bf16.msra.mxu0 %v1573
      %1635 = vmatpush.bf16.msra.mxu0 %v1572
      %1636 = vmatpush.bf16.msra.mxu0 %v1571
      %1637 = vmatpush.bf16.msra.mxu0 %v1570
      %1638 = vmatmul.bf16.gmra.mxu0 %v1583
      %v1639 = vpop.f32.mrf.mxu0
      %v1640 = vadd.f32 %v1544, %v1639
      %v1641 = vpop.f32.mrf.mxu0
      %v1642 = vadd.f32 %v1544, %v1641
      %1643 = vmatmul.bf16.gmra.mxu0 %v1586
      %v1644 = vpop.f32.mrf.mxu0
      %v1645 = vadd.f32 %v1544, %v1644
      %v1646 = vpop.f32.mrf.mxu0
      %v1647 = vadd.f32 %v1544, %v1646
      %1648 = vmatmul.bf16.gmra.mxu0 %v1589
      %v1649 = vpop.f32.mrf.mxu0
      %v1650 = vadd.f32 %v1544, %v1649
      %v1651 = vpop.f32.mrf.mxu0
      %v1652 = vadd.f32 %v1544, %v1651
      %1653 = vmatmul.bf16.gmra.mxu0 %v1592
      %v1654 = vpop.f32.mrf.mxu0
      %v1655 = vadd.f32 %v1544, %v1654
      %v1656 = vpop.f32.mrf.mxu0
      %v1657 = vadd.f32 %v1544, %v1656
      %1658 = vmatmul.bf16.gmra.mxu0 %v1595
      %v1659 = vpop.f32.mrf.mxu0
      %v1660 = vadd.f32 %v1544, %v1659
      %v1661 = vpop.f32.mrf.mxu0
      %v1662 = vadd.f32 %v1544, %v1661
      %1663 = vmatmul.bf16.gmra.mxu0 %v1598
      %v1664 = vpop.f32.mrf.mxu0
      %v1665 = vadd.f32 %v1544, %v1664
      %v1666 = vpop.f32.mrf.mxu0
      %v1667 = vadd.f32 %v1544, %v1666
      %1668 = vmatmul.bf16.gmra.mxu0 %v1601
      %v1669 = vpop.f32.mrf.mxu0
      %v1670 = vadd.f32 %v1544, %v1669
      %v1671 = vpop.f32.mrf.mxu0
      %v1672 = vadd.f32 %v1544, %v1671
      %1673 = vmatmul.bf16.gmra.mxu0 %v1604
      %v1674 = vpop.f32.mrf.mxu0
      %v1675 = vadd.f32 %v1544, %v1674
      %v1676 = vpop.f32.mrf.mxu0
      %v1677 = vadd.f32 %v1544, %v1676
      %1678 = vmatmul.bf16.gmra.mxu0 %v1607
      %v1679 = vpop.f32.mrf.mxu0
      %v1680 = vadd.f32 %v1544, %v1679
      %v1681 = vpop.f32.mrf.mxu0
      %v1682 = vadd.f32 %v1544, %v1681
      %1683 = vmatmul.bf16.gmra.mxu0 %v1610
      %v1684 = vpop.f32.mrf.mxu0
      %v1685 = vadd.f32 %v1544, %v1684
      %v1686 = vpop.f32.mrf.mxu0
      %v1687 = vadd.f32 %v1544, %v1686
      %1688 = vmatmul.bf16.gmra.mxu0 %v1613
      %v1689 = vpop.f32.mrf.mxu0
      %v1690 = vadd.f32 %v1544, %v1689
      %v1691 = vpop.f32.mrf.mxu0
      %v1692 = vadd.f32 %v1544, %v1691
      %1693 = vmatmul.bf16.gmra.mxu0 %v1616
      %v1694 = vpop.f32.mrf.mxu0
      %v1695 = vadd.f32 %v1544, %v1694
      %v1696 = vpop.f32.mrf.mxu0
      %v1697 = vadd.f32 %v1544, %v1696
      %1698 = vmatmul.bf16.gmra.mxu0 %v1619
      %v1699 = vpop.f32.mrf.mxu0
      %v1700 = vadd.f32 %v1544, %v1699
      %v1701 = vpop.f32.mrf.mxu0
      %v1702 = vadd.f32 %v1544, %v1701
      %1703 = vmatmul.bf16.gmra.mxu0 %v1622
      %v1704 = vpop.f32.mrf.mxu0
      %v1705 = vadd.f32 %v1544, %v1704
      %v1706 = vpop.f32.mrf.mxu0
      %v1707 = vadd.f32 %v1544, %v1706
      %1708 = vmatmul.bf16.gmra.mxu0 %v1625
      %v1709 = vpop.f32.mrf.mxu0
      %v1710 = vadd.f32 %v1544, %v1709
      %v1711 = vpop.f32.mrf.mxu0
      %v1712 = vadd.f32 %v1544, %v1711
      %1713 = vmatmul.bf16.gmra.mxu0 %v1628
      %v1714 = vpop.f32.mrf.mxu0
      %v1715 = vadd.f32 %v1544, %v1714
      %v1716 = vpop.f32.mrf.mxu0
      %v1717 = vadd.f32 %v1544, %v1716
      %1718 = vdwg.mxu0
      %v1719 = vmul.f32 %v1640, 0.5
      %v1720 = vmul.f32 %v1642, 0.5
      %v1721 = vmul.f32 %v1645, 0.5
      %v1722 = vmul.f32 %v1647, 0.5
      %v1723 = vmul.f32 %v1650, 0.5
      %v1724 = vmul.f32 %v1652, 0.5
      %v1725 = vmul.f32 %v1655, 0.5
      %v1726 = vmul.f32 %v1657, 0.5
      %v1727 = vmul.f32 %v1660, 0.5
      %v1728 = vmul.f32 %v1662, 0.5
      %v1729 = vmul.f32 %v1665, 0.5
      %v1730 = vmul.f32 %v1667, 0.5
      %v1731 = vmul.f32 %v1670, 0.5
      %v1732 = vmul.f32 %v1672, 0.5
      %v1733 = vmul.f32 %v1675, 0.5
      %v1734 = vmul.f32 %v1677, 0.5
      %v1735 = vmul.f32 %v1680, 0.5
      %v1736 = vmul.f32 %v1682, 0.5
      %v1737 = vmul.f32 %v1685, 0.5
      %v1738 = vmul.f32 %v1687, 0.5
      %v1739 = vmul.f32 %v1690, 0.5
      %v1740 = vmul.f32 %v1692, 0.5
      %v1741 = vmul.f32 %v1695, 0.5
      %v1742 = vmul.f32 %v1697, 0.5
      %v1743 = vmul.f32 %v1700, 0.5
      %v1744 = vmul.f32 %v1702, 0.5
      %v1745 = vmul.f32 %v1705, 0.5
      %v1746 = vmul.f32 %v1707, 0.5
      %v1747 = vmul.f32 %v1710, 0.5
      %v1748 = vmul.f32 %v1712, 0.5
      %v1749 = vmul.f32 %v1715, 0.5
      %v1750 = vmul.f32 %v1717, 0.5
      %v1751 = vmul.f32 %v1640, 0.70710677
      %v1752 = vmul.f32 %v1642, 0.70710677
      %v1753 = vmul.f32 %v1645, 0.70710677
      %v1754 = vmul.f32 %v1647, 0.70710677
      %v1755 = vmul.f32 %v1650, 0.70710677
      %v1756 = vmul.f32 %v1652, 0.70710677
      %v1757 = vmul.f32 %v1655, 0.70710677
      %v1758 = vmul.f32 %v1657, 0.70710677
      %v1759 = vmul.f32 %v1660, 0.70710677
      %v1760 = vmul.f32 %v1662, 0.70710677
      %v1761 = vmul.f32 %v1665, 0.70710677
      %v1762 = vmul.f32 %v1667, 0.70710677
      %v1763 = vmul.f32 %v1670, 0.70710677
      %v1764 = vmul.f32 %v1672, 0.70710677
      %v1765 = vmul.f32 %v1675, 0.70710677
      %v1766 = vmul.f32 %v1677, 0.70710677
      %v1767 = vmul.f32 %v1680, 0.70710677
      %v1768 = vmul.f32 %v1682, 0.70710677
      %v1769 = vmul.f32 %v1685, 0.70710677
      %v1770 = vmul.f32 %v1687, 0.70710677
      %v1771 = vmul.f32 %v1690, 0.70710677
      %v1772 = vmul.f32 %v1692, 0.70710677
      %v1773 = vmul.f32 %v1695, 0.70710677
      %v1774 = vmul.f32 %v1697, 0.70710677
      %v1775 = vmul.f32 %v1700, 0.70710677
      %v1776 = vmul.f32 %v1702, 0.70710677
      %v1777 = vmul.f32 %v1705, 0.70710677
      %v1778 = vmul.f32 %v1707, 0.70710677
      %v1779 = vmul.f32 %v1710, 0.70710677
      %v1780 = vmul.f32 %v1712, 0.70710677
      %v1781 = vmul.f32 %v1715, 0.70710677
      %v1782 = vmul.f32 %v1717, 0.70710677
      %v1783 = vmul.f32 %v1751, %v1751
      %v1784 = vmin.f32 16.0, %v1783
      %v1785 = vmul.f32 %v1784, 2.1237322e-06
      %v1786 = vadd.f32 %v1785, 0.00028619796
      %v1787 = vmul.f32 %v1784, %v1786
      %v1788 = vadd.f32 %v1787, 0.0036580483
      %v1789 = vmul.f32 %v1784, %v1788
      %v1790 = vadd.f32 %v1789, 0.05243302
      %v1791 = vmul.f32 %v1784, %v1790
      %v1792 = vadd.f32 %v1791, 0.18741608
      %v1793 = vmul.f32 %v1784, %v1792
      %v1794 = vadd.f32 %v1793, 1.1283791
      %v1795 = vmul.f32 %v1751, %v1794
      %v1796 = vmul.f32 %v1784, 3.8918573e-05
      %v1797 = vadd.f32 %v1796, 0.001143296
      %v1798 = vmul.f32 %v1784, %v1797
      %v1799 = vadd.f32 %v1798, 0.014752088
      %v1800 = vmul.f32 %v1784, %v1799
      %v1801 = vadd.f32 %v1800, 0.112945676
      %v1802 = vmul.f32 %v1784, %v1801
      %v1803 = vadd.f32 %v1802, 0.4994258
      %v1804 = vmul.f32 %v1784, %v1803
      %v1805 = vadd.f32 %v1804, 1.0
      %v1806 = vrcp.pop %v1805
      %v1807 = vmul.f32 %v1805, %v1806
      %v1808 = vsub.f32 1.0, %v1807
      %v1809 = vmul.f32 %v1806, %v1808
      %v1810 = vadd.f32 %v1806, %v1809
      %vm1811 = vweird.f32 %v1805
      %vm1812 = vweird.f32 %v1806
      %vm1813 = vmor %vm1811, %vm1812
      %v1814 = vsel %vm1813, %v1806, %v1810
      %v1815 = vand.u32 2147483647, %v1805
      %vm1816 = vcmp.eq.f32.partialorder %v1815, 8.507059e+37
      %v1817 = vand.u32 %v1805, 2147483648
      %v1818 = vor.u32 1.1754944e-38, %v1817
      %v1819 = vsel %vm1816, %v1818, %v1814
      %v1820 = vmul.f32 %v1795, %v1819
      %v1821 = vmin.f32 %v1820, 1.0
      %v1822 = vmax.f32 %v1821, -1.0
      %v1823 = vmul.f32 %v1752, %v1752
      %v1824 = vmin.f32 16.0, %v1823
      %v1825 = vmul.f32 %v1824, 2.1237322e-06
      %v1826 = vadd.f32 %v1825, 0.00028619796
      %v1827 = vmul.f32 %v1824, %v1826
      %v1828 = vadd.f32 %v1827, 0.0036580483
      %v1829 = vmul.f32 %v1824, %v1828
      %v1830 = vadd.f32 %v1829, 0.05243302
      %v1831 = vmul.f32 %v1824, %v1830
      %v1832 = vadd.f32 %v1831, 0.18741608
      %v1833 = vmul.f32 %v1824, %v1832
      %v1834 = vadd.f32 %v1833, 1.1283791
      %v1835 = vmul.f32 %v1752, %v1834
      %v1836 = vmul.f32 %v1824, 3.8918573e-05
      %v1837 = vadd.f32 %v1836, 0.001143296
      %v1838 = vmul.f32 %v1824, %v1837
      %v1839 = vadd.f32 %v1838, 0.014752088
      %v1840 = vmul.f32 %v1824, %v1839
      %v1841 = vadd.f32 %v1840, 0.112945676
      %v1842 = vmul.f32 %v1824, %v1841
      %v1843 = vadd.f32 %v1842, 0.4994258
      %v1844 = vmul.f32 %v1824, %v1843
      %v1845 = vadd.f32 %v1844, 1.0
      %v1846 = vrcp.pop %v1845
      %v1847 = vmul.f32 %v1845, %v1846
      %v1848 = vsub.f32 1.0, %v1847
      %v1849 = vmul.f32 %v1846, %v1848
      %v1850 = vadd.f32 %v1846, %v1849
      %vm1851 = vweird.f32 %v1845
      %vm1852 = vweird.f32 %v1846
      %vm1853 = vmor %vm1851, %vm1852
      %v1854 = vsel %vm1853, %v1846, %v1850
      %v1855 = vand.u32 2147483647, %v1845
      %vm1856 = vcmp.eq.f32.partialorder %v1855, 8.507059e+37
      %v1857 = vand.u32 %v1845, 2147483648
      %v1858 = vor.u32 1.1754944e-38, %v1857
      %v1859 = vsel %vm1856, %v1858, %v1854
      %v1860 = vmul.f32 %v1835, %v1859
      %v1861 = vmin.f32 %v1860, 1.0
      %v1862 = vmax.f32 %v1861, -1.0
      %v1863 = vmul.f32 %v1753, %v1753
      %v1864 = vmin.f32 16.0, %v1863
      %v1865 = vmul.f32 %v1864, 2.1237322e-06
      %v1866 = vadd.f32 %v1865, 0.00028619796
      %v1867 = vmul.f32 %v1864, %v1866
      %v1868 = vadd.f32 %v1867, 0.0036580483
      %v1869 = vmul.f32 %v1864, %v1868
      %v1870 = vadd.f32 %v1869, 0.05243302
      %v1871 = vmul.f32 %v1864, %v1870
      %v1872 = vadd.f32 %v1871, 0.18741608
      %v1873 = vmul.f32 %v1864, %v1872
      %v1874 = vadd.f32 %v1873, 1.1283791
      %v1875 = vmul.f32 %v1753, %v1874
      %v1876 = vmul.f32 %v1864, 3.8918573e-05
      %v1877 = vadd.f32 %v1876, 0.001143296
      %v1878 = vmul.f32 %v1864, %v1877
      %v1879 = vadd.f32 %v1878, 0.014752088
      %v1880 = vmul.f32 %v1864, %v1879
      %v1881 = vadd.f32 %v1880, 0.112945676
      %v1882 = vmul.f32 %v1864, %v1881
      %v1883 = vadd.f32 %v1882, 0.4994258
      %v1884 = vmul.f32 %v1864, %v1883
      %v1885 = vadd.f32 %v1884, 1.0
      %v1886 = vrcp.pop %v1885
      %v1887 = vmul.f32 %v1885, %v1886
      %v1888 = vsub.f32 1.0, %v1887
      %v1889 = vmul.f32 %v1886, %v1888
      %v1890 = vadd.f32 %v1886, %v1889
      %vm1891 = vweird.f32 %v1885
      %vm1892 = vweird.f32 %v1886
      %vm1893 = vmor %vm1891, %vm1892
      %v1894 = vsel %vm1893, %v1886, %v1890
      %v1895 = vand.u32 2147483647, %v1885
      %vm1896 = vcmp.eq.f32.partialorder %v1895, 8.507059e+37
      %v1897 = vand.u32 %v1885, 2147483648
      %v1898 = vor.u32 1.1754944e-38, %v1897
      %v1899 = vsel %vm1896, %v1898, %v1894
      %v1900 = vmul.f32 %v1875, %v1899
      %v1901 = vmin.f32 %v1900, 1.0
      %v1902 = vmax.f32 %v1901, -1.0
      %v1903 = vmul.f32 %v1754, %v1754
      %v1904 = vmin.f32 16.0, %v1903
      %v1905 = vmul.f32 %v1904, 2.1237322e-06
      %v1906 = vadd.f32 %v1905, 0.00028619796
      %v1907 = vmul.f32 %v1904, %v1906
      %v1908 = vadd.f32 %v1907, 0.0036580483
      %v1909 = vmul.f32 %v1904, %v1908
      %v1910 = vadd.f32 %v1909, 0.05243302
      %v1911 = vmul.f32 %v1904, %v1910
      %v1912 = vadd.f32 %v1911, 0.18741608
      %v1913 = vmul.f32 %v1904, %v1912
      %v1914 = vadd.f32 %v1913, 1.1283791
      %v1915 = vmul.f32 %v1754, %v1914
      %v1916 = vmul.f32 %v1904, 3.8918573e-05
      %v1917 = vadd.f32 %v1916, 0.001143296
      %v1918 = vmul.f32 %v1904, %v1917
      %v1919 = vadd.f32 %v1918, 0.014752088
      %v1920 = vmul.f32 %v1904, %v1919
      %v1921 = vadd.f32 %v1920, 0.112945676
      %v1922 = vmul.f32 %v1904, %v1921
      %v1923 = vadd.f32 %v1922, 0.4994258
      %v1924 = vmul.f32 %v1904, %v1923
      %v1925 = vadd.f32 %v1924, 1.0
      %v1926 = vrcp.pop %v1925
      %v1927 = vmul.f32 %v1925, %v1926
      %v1928 = vsub.f32 1.0, %v1927
      %v1929 = vmul.f32 %v1926, %v1928
      %v1930 = vadd.f32 %v1926, %v1929
      %vm1931 = vweird.f32 %v1925
      %vm1932 = vweird.f32 %v1926
      %vm1933 = vmor %vm1931, %vm1932
      %v1934 = vsel %vm1933, %v1926, %v1930
      %v1935 = vand.u32 2147483647, %v1925
      %vm1936 = vcmp.eq.f32.partialorder %v1935, 8.507059e+37
      %v1937 = vand.u32 %v1925, 2147483648
      %v1938 = vor.u32 1.1754944e-38, %v1937
      %v1939 = vsel %vm1936, %v1938, %v1934
      %v1940 = vmul.f32 %v1915, %v1939
      %v1941 = vmin.f32 %v1940, 1.0
      %v1942 = vmax.f32 %v1941, -1.0
      %v1943 = vmul.f32 %v1755, %v1755
      %v1944 = vmin.f32 16.0, %v1943
      %v1945 = vmul.f32 %v1944, 2.1237322e-06
      %v1946 = vadd.f32 %v1945, 0.00028619796
      %v1947 = vmul.f32 %v1944, %v1946
      %v1948 = vadd.f32 %v1947, 0.0036580483
      %v1949 = vmul.f32 %v1944, %v1948
      %v1950 = vadd.f32 %v1949, 0.05243302
      %v1951 = vmul.f32 %v1944, %v1950
      %v1952 = vadd.f32 %v1951, 0.18741608
      %v1953 = vmul.f32 %v1944, %v1952
      %v1954 = vadd.f32 %v1953, 1.1283791
      %v1955 = vmul.f32 %v1755, %v1954
      %v1956 = vmul.f32 %v1944, 3.8918573e-05
      %v1957 = vadd.f32 %v1956, 0.001143296
      %v1958 = vmul.f32 %v1944, %v1957
      %v1959 = vadd.f32 %v1958, 0.014752088
      %v1960 = vmul.f32 %v1944, %v1959
      %v1961 = vadd.f32 %v1960, 0.112945676
      %v1962 = vmul.f32 %v1944, %v1961
      %v1963 = vadd.f32 %v1962, 0.4994258
      %v1964 = vmul.f32 %v1944, %v1963
      %v1965 = vadd.f32 %v1964, 1.0
      %v1966 = vrcp.pop %v1965
      %v1967 = vmul.f32 %v1965, %v1966
      %v1968 = vsub.f32 1.0, %v1967
      %v1969 = vmul.f32 %v1966, %v1968
      %v1970 = vadd.f32 %v1966, %v1969
      %vm1971 = vweird.f32 %v1965
      %vm1972 = vweird.f32 %v1966
      %vm1973 = vmor %vm1971, %vm1972
      %v1974 = vsel %vm1973, %v1966, %v1970
      %v1975 = vand.u32 2147483647, %v1965
      %vm1976 = vcmp.eq.f32.partialorder %v1975, 8.507059e+37
      %v1977 = vand.u32 %v1965, 2147483648
      %v1978 = vor.u32 1.1754944e-38, %v1977
      %v1979 = vsel %vm1976, %v1978, %v1974
      %v1980 = vmul.f32 %v1955, %v1979
      %v1981 = vmin.f32 %v1980, 1.0
      %v1982 = vmax.f32 %v1981, -1.0
      %v1983 = vmul.f32 %v1756, %v1756
      %v1984 = vmin.f32 16.0, %v1983
      %v1985 = vmul.f32 %v1984, 2.1237322e-06
      %v1986 = vadd.f32 %v1985, 0.00028619796
      %v1987 = vmul.f32 %v1984, %v1986
      %v1988 = vadd.f32 %v1987, 0.0036580483
      %v1989 = vmul.f32 %v1984, %v1988
      %v1990 = vadd.f32 %v1989, 0.05243302
      %v1991 = vmul.f32 %v1984, %v1990
      %v1992 = vadd.f32 %v1991, 0.18741608
      %v1993 = vmul.f32 %v1984, %v1992
      %v1994 = vadd.f32 %v1993, 1.1283791
      %v1995 = vmul.f32 %v1756, %v1994
      %v1996 = vmul.f32 %v1984, 3.8918573e-05
      %v1997 = vadd.f32 %v1996, 0.001143296
      %v1998 = vmul.f32 %v1984, %v1997
      %v1999 = vadd.f32 %v1998, 0.014752088
      %v2000 = vmul.f32 %v1984, %v1999
      %v2001 = vadd.f32 %v2000, 0.112945676
      %v2002 = vmul.f32 %v1984, %v2001
      %v2003 = vadd.f32 %v2002, 0.4994258
      %v2004 = vmul.f32 %v1984, %v2003
      %v2005 = vadd.f32 %v2004, 1.0
      %v2006 = vrcp.pop %v2005
      %v2007 = vmul.f32 %v2005, %v2006
      %v2008 = vsub.f32 1.0, %v2007
      %v2009 = vmul.f32 %v2006, %v2008
      %v2010 = vadd.f32 %v2006, %v2009
      %vm2011 = vweird.f32 %v2005
      %vm2012 = vweird.f32 %v2006
      %vm2013 = vmor %vm2011, %vm2012
      %v2014 = vsel %vm2013, %v2006, %v2010
      %v2015 = vand.u32 2147483647, %v2005
      %vm2016 = vcmp.eq.f32.partialorder %v2015, 8.507059e+37
      %v2017 = vand.u32 %v2005, 2147483648
      %v2018 = vor.u32 1.1754944e-38, %v2017
      %v2019 = vsel %vm2016, %v2018, %v2014
      %v2020 = vmul.f32 %v1995, %v2019
      %v2021 = vmin.f32 %v2020, 1.0
      %v2022 = vmax.f32 %v2021, -1.0
      %v2023 = vmul.f32 %v1757, %v1757
      %v2024 = vmin.f32 16.0, %v2023
      %v2025 = vmul.f32 %v2024, 2.1237322e-06
      %v2026 = vadd.f32 %v2025, 0.00028619796
      %v2027 = vmul.f32 %v2024, %v2026
      %v2028 = vadd.f32 %v2027, 0.0036580483
      %v2029 = vmul.f32 %v2024, %v2028
      %v2030 = vadd.f32 %v2029, 0.05243302
      %v2031 = vmul.f32 %v2024, %v2030
      %v2032 = vadd.f32 %v2031, 0.18741608
      %v2033 = vmul.f32 %v2024, %v2032
      %v2034 = vadd.f32 %v2033, 1.1283791
      %v2035 = vmul.f32 %v1757, %v2034
      %v2036 = vmul.f32 %v2024, 3.8918573e-05
      %v2037 = vadd.f32 %v2036, 0.001143296
      %v2038 = vmul.f32 %v2024, %v2037
      %v2039 = vadd.f32 %v2038, 0.014752088
      %v2040 = vmul.f32 %v2024, %v2039
      %v2041 = vadd.f32 %v2040, 0.112945676
      %v2042 = vmul.f32 %v2024, %v2041
      %v2043 = vadd.f32 %v2042, 0.4994258
      %v2044 = vmul.f32 %v2024, %v2043
      %v2045 = vadd.f32 %v2044, 1.0
      %v2046 = vrcp.pop %v2045
      %v2047 = vmul.f32 %v2045, %v2046
      %v2048 = vsub.f32 1.0, %v2047
      %v2049 = vmul.f32 %v2046, %v2048
      %v2050 = vadd.f32 %v2046, %v2049
      %vm2051 = vweird.f32 %v2045
      %vm2052 = vweird.f32 %v2046
      %vm2053 = vmor %vm2051, %vm2052
      %v2054 = vsel %vm2053, %v2046, %v2050
      %v2055 = vand.u32 2147483647, %v2045
      %vm2056 = vcmp.eq.f32.partialorder %v2055, 8.507059e+37
      %v2057 = vand.u32 %v2045, 2147483648
      %v2058 = vor.u32 1.1754944e-38, %v2057
      %v2059 = vsel %vm2056, %v2058, %v2054
      %v2060 = vmul.f32 %v2035, %v2059
      %v2061 = vmin.f32 %v2060, 1.0
      %v2062 = vmax.f32 %v2061, -1.0
      %v2063 = vmul.f32 %v1758, %v1758
      %v2064 = vmin.f32 16.0, %v2063
      %v2065 = vmul.f32 %v2064, 2.1237322e-06
      %v2066 = vadd.f32 %v2065, 0.00028619796
      %v2067 = vmul.f32 %v2064, %v2066
      %v2068 = vadd.f32 %v2067, 0.0036580483
      %v2069 = vmul.f32 %v2064, %v2068
      %v2070 = vadd.f32 %v2069, 0.05243302
      %v2071 = vmul.f32 %v2064, %v2070
      %v2072 = vadd.f32 %v2071, 0.18741608
      %v2073 = vmul.f32 %v2064, %v2072
      %v2074 = vadd.f32 %v2073, 1.1283791
      %v2075 = vmul.f32 %v1758, %v2074
      %v2076 = vmul.f32 %v2064, 3.8918573e-05
      %v2077 = vadd.f32 %v2076, 0.001143296
      %v2078 = vmul.f32 %v2064, %v2077
      %v2079 = vadd.f32 %v2078, 0.014752088
      %v2080 = vmul.f32 %v2064, %v2079
      %v2081 = vadd.f32 %v2080, 0.112945676
      %v2082 = vmul.f32 %v2064, %v2081
      %v2083 = vadd.f32 %v2082, 0.4994258
      %v2084 = vmul.f32 %v2064, %v2083
      %v2085 = vadd.f32 %v2084, 1.0
      %v2086 = vrcp.pop %v2085
      %v2087 = vmul.f32 %v2085, %v2086
      %v2088 = vsub.f32 1.0, %v2087
      %v2089 = vmul.f32 %v2086, %v2088
      %v2090 = vadd.f32 %v2086, %v2089
      %vm2091 = vweird.f32 %v2085
      %vm2092 = vweird.f32 %v2086
      %vm2093 = vmor %vm2091, %vm2092
      %v2094 = vsel %vm2093, %v2086, %v2090
      %v2095 = vand.u32 2147483647, %v2085
      %vm2096 = vcmp.eq.f32.partialorder %v2095, 8.507059e+37
      %v2097 = vand.u32 %v2085, 2147483648
      %v2098 = vor.u32 1.1754944e-38, %v2097
      %v2099 = vsel %vm2096, %v2098, %v2094
      %v2100 = vmul.f32 %v2075, %v2099
      %v2101 = vmin.f32 %v2100, 1.0
      %v2102 = vmax.f32 %v2101, -1.0
      %v2103 = vmul.f32 %v1759, %v1759
      %v2104 = vmin.f32 16.0, %v2103
      %v2105 = vmul.f32 %v2104, 2.1237322e-06
      %v2106 = vadd.f32 %v2105, 0.00028619796
      %v2107 = vmul.f32 %v2104, %v2106
      %v2108 = vadd.f32 %v2107, 0.0036580483
      %v2109 = vmul.f32 %v2104, %v2108
      %v2110 = vadd.f32 %v2109, 0.05243302
      %v2111 = vmul.f32 %v2104, %v2110
      %v2112 = vadd.f32 %v2111, 0.18741608
      %v2113 = vmul.f32 %v2104, %v2112
      %v2114 = vadd.f32 %v2113, 1.1283791
      %v2115 = vmul.f32 %v1759, %v2114
      %v2116 = vmul.f32 %v2104, 3.8918573e-05
      %v2117 = vadd.f32 %v2116, 0.001143296
      %v2118 = vmul.f32 %v2104, %v2117
      %v2119 = vadd.f32 %v2118, 0.014752088
      %v2120 = vmul.f32 %v2104, %v2119
      %v2121 = vadd.f32 %v2120, 0.112945676
      %v2122 = vmul.f32 %v2104, %v2121
      %v2123 = vadd.f32 %v2122, 0.4994258
      %v2124 = vmul.f32 %v2104, %v2123
      %v2125 = vadd.f32 %v2124, 1.0
      %v2126 = vrcp.pop %v2125
      %v2127 = vmul.f32 %v2125, %v2126
      %v2128 = vsub.f32 1.0, %v2127
      %v2129 = vmul.f32 %v2126, %v2128
      %v2130 = vadd.f32 %v2126, %v2129
      %vm2131 = vweird.f32 %v2125
      %vm2132 = vweird.f32 %v2126
      %vm2133 = vmor %vm2131, %vm2132
      %v2134 = vsel %vm2133, %v2126, %v2130
      %v2135 = vand.u32 2147483647, %v2125
      %vm2136 = vcmp.eq.f32.partialorder %v2135, 8.507059e+37
      %v2137 = vand.u32 %v2125, 2147483648
      %v2138 = vor.u32 1.1754944e-38, %v2137
      %v2139 = vsel %vm2136, %v2138, %v2134
      %v2140 = vmul.f32 %v2115, %v2139
      %v2141 = vmin.f32 %v2140, 1.0
      %v2142 = vmax.f32 %v2141, -1.0
      %v2143 = vmul.f32 %v1760, %v1760
      %v2144 = vmin.f32 16.0, %v2143
      %v2145 = vmul.f32 %v2144, 2.1237322e-06
      %v2146 = vadd.f32 %v2145, 0.00028619796
      %v2147 = vmul.f32 %v2144, %v2146
      %v2148 = vadd.f32 %v2147, 0.0036580483
      %v2149 = vmul.f32 %v2144, %v2148
      %v2150 = vadd.f32 %v2149, 0.05243302
      %v2151 = vmul.f32 %v2144, %v2150
      %v2152 = vadd.f32 %v2151, 0.18741608
      %v2153 = vmul.f32 %v2144, %v2152
      %v2154 = vadd.f32 %v2153, 1.1283791
      %v2155 = vmul.f32 %v1760, %v2154
      %v2156 = vmul.f32 %v2144, 3.8918573e-05
      %v2157 = vadd.f32 %v2156, 0.001143296
      %v2158 = vmul.f32 %v2144, %v2157
      %v2159 = vadd.f32 %v2158, 0.014752088
      %v2160 = vmul.f32 %v2144, %v2159
      %v2161 = vadd.f32 %v2160, 0.112945676
      %v2162 = vmul.f32 %v2144, %v2161
      %v2163 = vadd.f32 %v2162, 0.4994258
      %v2164 = vmul.f32 %v2144, %v2163
      %v2165 = vadd.f32 %v2164, 1.0
      %v2166 = vrcp.pop %v2165
      %v2167 = vmul.f32 %v2165, %v2166
      %v2168 = vsub.f32 1.0, %v2167
      %v2169 = vmul.f32 %v2166, %v2168
      %v2170 = vadd.f32 %v2166, %v2169
      %vm2171 = vweird.f32 %v2165
      %vm2172 = vweird.f32 %v2166
      %vm2173 = vmor %vm2171, %vm2172
      %v2174 = vsel %vm2173, %v2166, %v2170
      %v2175 = vand.u32 2147483647, %v2165
      %vm2176 = vcmp.eq.f32.partialorder %v2175, 8.507059e+37
      %v2177 = vand.u32 %v2165, 2147483648
      %v2178 = vor.u32 1.1754944e-38, %v2177
      %v2179 = vsel %vm2176, %v2178, %v2174
      %v2180 = vmul.f32 %v2155, %v2179
      %v2181 = vmin.f32 %v2180, 1.0
      %v2182 = vmax.f32 %v2181, -1.0
      %v2183 = vmul.f32 %v1761, %v1761
      %v2184 = vmin.f32 16.0, %v2183
      %v2185 = vmul.f32 %v2184, 2.1237322e-06
      %v2186 = vadd.f32 %v2185, 0.00028619796
      %v2187 = vmul.f32 %v2184, %v2186
      %v2188 = vadd.f32 %v2187, 0.0036580483
      %v2189 = vmul.f32 %v2184, %v2188
      %v2190 = vadd.f32 %v2189, 0.05243302
      %v2191 = vmul.f32 %v2184, %v2190
      %v2192 = vadd.f32 %v2191, 0.18741608
      %v2193 = vmul.f32 %v2184, %v2192
      %v2194 = vadd.f32 %v2193, 1.1283791
      %v2195 = vmul.f32 %v1761, %v2194
      %v2196 = vmul.f32 %v2184, 3.8918573e-05
      %v2197 = vadd.f32 %v2196, 0.001143296
      %v2198 = vmul.f32 %v2184, %v2197
      %v2199 = vadd.f32 %v2198, 0.014752088
      %v2200 = vmul.f32 %v2184, %v2199
      %v2201 = vadd.f32 %v2200, 0.112945676
      %v2202 = vmul.f32 %v2184, %v2201
      %v2203 = vadd.f32 %v2202, 0.4994258
      %v2204 = vmul.f32 %v2184, %v2203
      %v2205 = vadd.f32 %v2204, 1.0
      %v2206 = vrcp.pop %v2205
      %v2207 = vmul.f32 %v2205, %v2206
      %v2208 = vsub.f32 1.0, %v2207
      %v2209 = vmul.f32 %v2206, %v2208
      %v2210 = vadd.f32 %v2206, %v2209
      %vm2211 = vweird.f32 %v2205
      %vm2212 = vweird.f32 %v2206
      %vm2213 = vmor %vm2211, %vm2212
      %v2214 = vsel %vm2213, %v2206, %v2210
      %v2215 = vand.u32 2147483647, %v2205
      %vm2216 = vcmp.eq.f32.partialorder %v2215, 8.507059e+37
      %v2217 = vand.u32 %v2205, 2147483648
      %v2218 = vor.u32 1.1754944e-38, %v2217
      %v2219 = vsel %vm2216, %v2218, %v2214
      %v2220 = vmul.f32 %v2195, %v2219
      %v2221 = vmin.f32 %v2220, 1.0
      %v2222 = vmax.f32 %v2221, -1.0
      %v2223 = vmul.f32 %v1762, %v1762
      %v2224 = vmin.f32 16.0, %v2223
      %v2225 = vmul.f32 %v2224, 2.1237322e-06
      %v2226 = vadd.f32 %v2225, 0.00028619796
      %v2227 = vmul.f32 %v2224, %v2226
      %v2228 = vadd.f32 %v2227, 0.0036580483
      %v2229 = vmul.f32 %v2224, %v2228
      %v2230 = vadd.f32 %v2229, 0.05243302
      %v2231 = vmul.f32 %v2224, %v2230
      %v2232 = vadd.f32 %v2231, 0.18741608
      %v2233 = vmul.f32 %v2224, %v2232
      %v2234 = vadd.f32 %v2233, 1.1283791
      %v2235 = vmul.f32 %v1762, %v2234
      %v2236 = vmul.f32 %v2224, 3.8918573e-05
      %v2237 = vadd.f32 %v2236, 0.001143296
      %v2238 = vmul.f32 %v2224, %v2237
      %v2239 = vadd.f32 %v2238, 0.014752088
      %v2240 = vmul.f32 %v2224, %v2239
      %v2241 = vadd.f32 %v2240, 0.112945676
      %v2242 = vmul.f32 %v2224, %v2241
      %v2243 = vadd.f32 %v2242, 0.4994258
      %v2244 = vmul.f32 %v2224, %v2243
      %v2245 = vadd.f32 %v2244, 1.0
      %v2246 = vrcp.pop %v2245
      %v2247 = vmul.f32 %v2245, %v2246
      %v2248 = vsub.f32 1.0, %v2247
      %v2249 = vmul.f32 %v2246, %v2248
      %v2250 = vadd.f32 %v2246, %v2249
      %vm2251 = vweird.f32 %v2245
      %vm2252 = vweird.f32 %v2246
      %vm2253 = vmor %vm2251, %vm2252
      %v2254 = vsel %vm2253, %v2246, %v2250
      %v2255 = vand.u32 2147483647, %v2245
      %vm2256 = vcmp.eq.f32.partialorder %v2255, 8.507059e+37
      %v2257 = vand.u32 %v2245, 2147483648
      %v2258 = vor.u32 1.1754944e-38, %v2257
      %v2259 = vsel %vm2256, %v2258, %v2254
      %v2260 = vmul.f32 %v2235, %v2259
      %v2261 = vmin.f32 %v2260, 1.0
      %v2262 = vmax.f32 %v2261, -1.0
      %v2263 = vmul.f32 %v1763, %v1763
      %v2264 = vmin.f32 16.0, %v2263
      %v2265 = vmul.f32 %v2264, 2.1237322e-06
      %v2266 = vadd.f32 %v2265, 0.00028619796
      %v2267 = vmul.f32 %v2264, %v2266
      %v2268 = vadd.f32 %v2267, 0.0036580483
      %v2269 = vmul.f32 %v2264, %v2268
      %v2270 = vadd.f32 %v2269, 0.05243302
      %v2271 = vmul.f32 %v2264, %v2270
      %v2272 = vadd.f32 %v2271, 0.18741608
      %v2273 = vmul.f32 %v2264, %v2272
      %v2274 = vadd.f32 %v2273, 1.1283791
      %v2275 = vmul.f32 %v1763, %v2274
      %v2276 = vmul.f32 %v2264, 3.8918573e-05
      %v2277 = vadd.f32 %v2276, 0.001143296
      %v2278 = vmul.f32 %v2264, %v2277
      %v2279 = vadd.f32 %v2278, 0.014752088
      %v2280 = vmul.f32 %v2264, %v2279
      %v2281 = vadd.f32 %v2280, 0.112945676
      %v2282 = vmul.f32 %v2264, %v2281
      %v2283 = vadd.f32 %v2282, 0.4994258
      %v2284 = vmul.f32 %v2264, %v2283
      %v2285 = vadd.f32 %v2284, 1.0
      %v2286 = vrcp.pop %v2285
      %v2287 = vmul.f32 %v2285, %v2286
      %v2288 = vsub.f32 1.0, %v2287
      %v2289 = vmul.f32 %v2286, %v2288
      %v2290 = vadd.f32 %v2286, %v2289
      %vm2291 = vweird.f32 %v2285
      %vm2292 = vweird.f32 %v2286
      %vm2293 = vmor %vm2291, %vm2292
      %v2294 = vsel %vm2293, %v2286, %v2290
      %v2295 = vand.u32 2147483647, %v2285
      %vm2296 = vcmp.eq.f32.partialorder %v2295, 8.507059e+37
      %v2297 = vand.u32 %v2285, 2147483648
      %v2298 = vor.u32 1.1754944e-38, %v2297
      %v2299 = vsel %vm2296, %v2298, %v2294
      %v2300 = vmul.f32 %v2275, %v2299
      %v2301 = vmin.f32 %v2300, 1.0
      %v2302 = vmax.f32 %v2301, -1.0
      %v2303 = vmul.f32 %v1764, %v1764
      %v2304 = vmin.f32 16.0, %v2303
      %v2305 = vmul.f32 %v2304, 2.1237322e-06
      %v2306 = vadd.f32 %v2305, 0.00028619796
      %v2307 = vmul.f32 %v2304, %v2306
      %v2308 = vadd.f32 %v2307, 0.0036580483
      %v2309 = vmul.f32 %v2304, %v2308
      %v2310 = vadd.f32 %v2309, 0.05243302
      %v2311 = vmul.f32 %v2304, %v2310
      %v2312 = vadd.f32 %v2311, 0.18741608
      %v2313 = vmul.f32 %v2304, %v2312
      %v2314 = vadd.f32 %v2313, 1.1283791
      %v2315 = vmul.f32 %v1764, %v2314
      %v2316 = vmul.f32 %v2304, 3.8918573e-05
      %v2317 = vadd.f32 %v2316, 0.001143296
      %v2318 = vmul.f32 %v2304, %v2317
      %v2319 = vadd.f32 %v2318, 0.014752088
      %v2320 = vmul.f32 %v2304, %v2319
      %v2321 = vadd.f32 %v2320, 0.112945676
      %v2322 = vmul.f32 %v2304, %v2321
      %v2323 = vadd.f32 %v2322, 0.4994258
      %v2324 = vmul.f32 %v2304, %v2323
      %v2325 = vadd.f32 %v2324, 1.0
      %v2326 = vrcp.pop %v2325
      %v2327 = vmul.f32 %v2325, %v2326
      %v2328 = vsub.f32 1.0, %v2327
      %v2329 = vmul.f32 %v2326, %v2328
      %v2330 = vadd.f32 %v2326, %v2329
      %vm2331 = vweird.f32 %v2325
      %vm2332 = vweird.f32 %v2326
      %vm2333 = vmor %vm2331, %vm2332
      %v2334 = vsel %vm2333, %v2326, %v2330
      %v2335 = vand.u32 2147483647, %v2325
      %vm2336 = vcmp.eq.f32.partialorder %v2335, 8.507059e+37
      %v2337 = vand.u32 %v2325, 2147483648
      %v2338 = vor.u32 1.1754944e-38, %v2337
      %v2339 = vsel %vm2336, %v2338, %v2334
      %v2340 = vmul.f32 %v2315, %v2339
      %v2341 = vmin.f32 %v2340, 1.0
      %v2342 = vmax.f32 %v2341, -1.0
      %v2343 = vmul.f32 %v1765, %v1765
      %v2344 = vmin.f32 16.0, %v2343
      %v2345 = vmul.f32 %v2344, 2.1237322e-06
      %v2346 = vadd.f32 %v2345, 0.00028619796
      %v2347 = vmul.f32 %v2344, %v2346
      %v2348 = vadd.f32 %v2347, 0.0036580483
      %v2349 = vmul.f32 %v2344, %v2348
      %v2350 = vadd.f32 %v2349, 0.05243302
      %v2351 = vmul.f32 %v2344, %v2350
      %v2352 = vadd.f32 %v2351, 0.18741608
      %v2353 = vmul.f32 %v2344, %v2352
      %v2354 = vadd.f32 %v2353, 1.1283791
      %v2355 = vmul.f32 %v1765, %v2354
      %v2356 = vmul.f32 %v2344, 3.8918573e-05
      %v2357 = vadd.f32 %v2356, 0.001143296
      %v2358 = vmul.f32 %v2344, %v2357
      %v2359 = vadd.f32 %v2358, 0.014752088
      %v2360 = vmul.f32 %v2344, %v2359
      %v2361 = vadd.f32 %v2360, 0.112945676
      %v2362 = vmul.f32 %v2344, %v2361
      %v2363 = vadd.f32 %v2362, 0.4994258
      %v2364 = vmul.f32 %v2344, %v2363
      %v2365 = vadd.f32 %v2364, 1.0
      %v2366 = vrcp.pop %v2365
      %v2367 = vmul.f32 %v2365, %v2366
      %v2368 = vsub.f32 1.0, %v2367
      %v2369 = vmul.f32 %v2366, %v2368
      %v2370 = vadd.f32 %v2366, %v2369
      %vm2371 = vweird.f32 %v2365
      %vm2372 = vweird.f32 %v2366
      %vm2373 = vmor %vm2371, %vm2372
      %v2374 = vsel %vm2373, %v2366, %v2370
      %v2375 = vand.u32 2147483647, %v2365
      %vm2376 = vcmp.eq.f32.partialorder %v2375, 8.507059e+37
      %v2377 = vand.u32 %v2365, 2147483648
      %v2378 = vor.u32 1.1754944e-38, %v2377
      %v2379 = vsel %vm2376, %v2378, %v2374
      %v2380 = vmul.f32 %v2355, %v2379
      %v2381 = vmin.f32 %v2380, 1.0
      %v2382 = vmax.f32 %v2381, -1.0
      %v2383 = vmul.f32 %v1766, %v1766
      %v2384 = vmin.f32 16.0, %v2383
      %v2385 = vmul.f32 %v2384, 2.1237322e-06
      %v2386 = vadd.f32 %v2385, 0.00028619796
      %v2387 = vmul.f32 %v2384, %v2386
      %v2388 = vadd.f32 %v2387, 0.0036580483
      %v2389 = vmul.f32 %v2384, %v2388
      %v2390 = vadd.f32 %v2389, 0.05243302
      %v2391 = vmul.f32 %v2384, %v2390
      %v2392 = vadd.f32 %v2391, 0.18741608
      %v2393 = vmul.f32 %v2384, %v2392
      %v2394 = vadd.f32 %v2393, 1.1283791
      %v2395 = vmul.f32 %v1766, %v2394
      %v2396 = vmul.f32 %v2384, 3.8918573e-05
      %v2397 = vadd.f32 %v2396, 0.001143296
      %v2398 = vmul.f32 %v2384, %v2397
      %v2399 = vadd.f32 %v2398, 0.014752088
      %v2400 = vmul.f32 %v2384, %v2399
      %v2401 = vadd.f32 %v2400, 0.112945676
      %v2402 = vmul.f32 %v2384, %v2401
      %v2403 = vadd.f32 %v2402, 0.4994258
      %v2404 = vmul.f32 %v2384, %v2403
      %v2405 = vadd.f32 %v2404, 1.0
      %v2406 = vrcp.pop %v2405
      %v2407 = vmul.f32 %v2405, %v2406
      %v2408 = vsub.f32 1.0, %v2407
      %v2409 = vmul.f32 %v2406, %v2408
      %v2410 = vadd.f32 %v2406, %v2409
      %vm2411 = vweird.f32 %v2405
      %vm2412 = vweird.f32 %v2406
      %vm2413 = vmor %vm2411, %vm2412
      %v2414 = vsel %vm2413, %v2406, %v2410
      %v2415 = vand.u32 2147483647, %v2405
      %vm2416 = vcmp.eq.f32.partialorder %v2415, 8.507059e+37
      %v2417 = vand.u32 %v2405, 2147483648
      %v2418 = vor.u32 1.1754944e-38, %v2417
      %v2419 = vsel %vm2416, %v2418, %v2414
      %v2420 = vmul.f32 %v2395, %v2419
      %v2421 = vmin.f32 %v2420, 1.0
      %v2422 = vmax.f32 %v2421, -1.0
      %v2423 = vmul.f32 %v1767, %v1767
      %v2424 = vmin.f32 16.0, %v2423
      %v2425 = vmul.f32 %v2424, 2.1237322e-06
      %v2426 = vadd.f32 %v2425, 0.00028619796
      %v2427 = vmul.f32 %v2424, %v2426
      %v2428 = vadd.f32 %v2427, 0.0036580483
      %v2429 = vmul.f32 %v2424, %v2428
      %v2430 = vadd.f32 %v2429, 0.05243302
      %v2431 = vmul.f32 %v2424, %v2430
      %v2432 = vadd.f32 %v2431, 0.18741608
      %v2433 = vmul.f32 %v2424, %v2432
      %v2434 = vadd.f32 %v2433, 1.1283791
      %v2435 = vmul.f32 %v1767, %v2434
      %v2436 = vmul.f32 %v2424, 3.8918573e-05
      %v2437 = vadd.f32 %v2436, 0.001143296
      %v2438 = vmul.f32 %v2424, %v2437
      %v2439 = vadd.f32 %v2438, 0.014752088
      %v2440 = vmul.f32 %v2424, %v2439
      %v2441 = vadd.f32 %v2440, 0.112945676
      %v2442 = vmul.f32 %v2424, %v2441
      %v2443 = vadd.f32 %v2442, 0.4994258
      %v2444 = vmul.f32 %v2424, %v2443
      %v2445 = vadd.f32 %v2444, 1.0
      %v2446 = vrcp.pop %v2445
      %v2447 = vmul.f32 %v2445, %v2446
      %v2448 = vsub.f32 1.0, %v2447
      %v2449 = vmul.f32 %v2446, %v2448
      %v2450 = vadd.f32 %v2446, %v2449
      %vm2451 = vweird.f32 %v2445
      %vm2452 = vweird.f32 %v2446
      %vm2453 = vmor %vm2451, %vm2452
      %v2454 = vsel %vm2453, %v2446, %v2450
      %v2455 = vand.u32 2147483647, %v2445
      %vm2456 = vcmp.eq.f32.partialorder %v2455, 8.507059e+37
      %v2457 = vand.u32 %v2445, 2147483648
      %v2458 = vor.u32 1.1754944e-38, %v2457
      %v2459 = vsel %vm2456, %v2458, %v2454
      %v2460 = vmul.f32 %v2435, %v2459
      %v2461 = vmin.f32 %v2460, 1.0
      %v2462 = vmax.f32 %v2461, -1.0
      %v2463 = vmul.f32 %v1768, %v1768
      %v2464 = vmin.f32 16.0, %v2463
      %v2465 = vmul.f32 %v2464, 2.1237322e-06
      %v2466 = vadd.f32 %v2465, 0.00028619796
      %v2467 = vmul.f32 %v2464, %v2466
      %v2468 = vadd.f32 %v2467, 0.0036580483
      %v2469 = vmul.f32 %v2464, %v2468
      %v2470 = vadd.f32 %v2469, 0.05243302
      %v2471 = vmul.f32 %v2464, %v2470
      %v2472 = vadd.f32 %v2471, 0.18741608
      %v2473 = vmul.f32 %v2464, %v2472
      %v2474 = vadd.f32 %v2473, 1.1283791
      %v2475 = vmul.f32 %v1768, %v2474
      %v2476 = vmul.f32 %v2464, 3.8918573e-05
      %v2477 = vadd.f32 %v2476, 0.001143296
      %v2478 = vmul.f32 %v2464, %v2477
      %v2479 = vadd.f32 %v2478, 0.014752088
      %v2480 = vmul.f32 %v2464, %v2479
      %v2481 = vadd.f32 %v2480, 0.112945676
      %v2482 = vmul.f32 %v2464, %v2481
      %v2483 = vadd.f32 %v2482, 0.4994258
      %v2484 = vmul.f32 %v2464, %v2483
      %v2485 = vadd.f32 %v2484, 1.0
      %v2486 = vrcp.pop %v2485
      %v2487 = vmul.f32 %v2485, %v2486
      %v2488 = vsub.f32 1.0, %v2487
      %v2489 = vmul.f32 %v2486, %v2488
      %v2490 = vadd.f32 %v2486, %v2489
      %vm2491 = vweird.f32 %v2485
      %vm2492 = vweird.f32 %v2486
      %vm2493 = vmor %vm2491, %vm2492
      %v2494 = vsel %vm2493, %v2486, %v2490
      %v2495 = vand.u32 2147483647, %v2485
      %vm2496 = vcmp.eq.f32.partialorder %v2495, 8.507059e+37
      %v2497 = vand.u32 %v2485, 2147483648
      %v2498 = vor.u32 1.1754944e-38, %v2497
      %v2499 = vsel %vm2496, %v2498, %v2494
      %v2500 = vmul.f32 %v2475, %v2499
      %v2501 = vmin.f32 %v2500, 1.0
      %v2502 = vmax.f32 %v2501, -1.0
      %v2503 = vmul.f32 %v1769, %v1769
      %v2504 = vmin.f32 16.0, %v2503
      %v2505 = vmul.f32 %v2504, 2.1237322e-06
      %v2506 = vadd.f32 %v2505, 0.00028619796
      %v2507 = vmul.f32 %v2504, %v2506
      %v2508 = vadd.f32 %v2507, 0.0036580483
      %v2509 = vmul.f32 %v2504, %v2508
      %v2510 = vadd.f32 %v2509, 0.05243302
      %v2511 = vmul.f32 %v2504, %v2510
      %v2512 = vadd.f32 %v2511, 0.18741608
      %v2513 = vmul.f32 %v2504, %v2512
      %v2514 = vadd.f32 %v2513, 1.1283791
      %v2515 = vmul.f32 %v1769, %v2514
      %v2516 = vmul.f32 %v2504, 3.8918573e-05
      %v2517 = vadd.f32 %v2516, 0.001143296
      %v2518 = vmul.f32 %v2504, %v2517
      %v2519 = vadd.f32 %v2518, 0.014752088
      %v2520 = vmul.f32 %v2504, %v2519
      %v2521 = vadd.f32 %v2520, 0.112945676
      %v2522 = vmul.f32 %v2504, %v2521
      %v2523 = vadd.f32 %v2522, 0.4994258
      %v2524 = vmul.f32 %v2504, %v2523
      %v2525 = vadd.f32 %v2524, 1.0
      %v2526 = vrcp.pop %v2525
      %v2527 = vmul.f32 %v2525, %v2526
      %v2528 = vsub.f32 1.0, %v2527
      %v2529 = vmul.f32 %v2526, %v2528
      %v2530 = vadd.f32 %v2526, %v2529
      %vm2531 = vweird.f32 %v2525
      %vm2532 = vweird.f32 %v2526
      %vm2533 = vmor %vm2531, %vm2532
      %v2534 = vsel %vm2533, %v2526, %v2530
      %v2535 = vand.u32 2147483647, %v2525
      %vm2536 = vcmp.eq.f32.partialorder %v2535, 8.507059e+37
      %v2537 = vand.u32 %v2525, 2147483648
      %v2538 = vor.u32 1.1754944e-38, %v2537
      %v2539 = vsel %vm2536, %v2538, %v2534
      %v2540 = vmul.f32 %v2515, %v2539
      %v2541 = vmin.f32 %v2540, 1.0
      %v2542 = vmax.f32 %v2541, -1.0
      %v2543 = vmul.f32 %v1770, %v1770
      %v2544 = vmin.f32 16.0, %v2543
      %v2545 = vmul.f32 %v2544, 2.1237322e-06
      %v2546 = vadd.f32 %v2545, 0.00028619796
      %v2547 = vmul.f32 %v2544, %v2546
      %v2548 = vadd.f32 %v2547, 0.0036580483
      %v2549 = vmul.f32 %v2544, %v2548
      %v2550 = vadd.f32 %v2549, 0.05243302
      %v2551 = vmul.f32 %v2544, %v2550
      %v2552 = vadd.f32 %v2551, 0.18741608
      %v2553 = vmul.f32 %v2544, %v2552
      %v2554 = vadd.f32 %v2553, 1.1283791
      %v2555 = vmul.f32 %v1770, %v2554
      %v2556 = vmul.f32 %v2544, 3.8918573e-05
      %v2557 = vadd.f32 %v2556, 0.001143296
      %v2558 = vmul.f32 %v2544, %v2557
      %v2559 = vadd.f32 %v2558, 0.014752088
      %v2560 = vmul.f32 %v2544, %v2559
      %v2561 = vadd.f32 %v2560, 0.112945676
      %v2562 = vmul.f32 %v2544, %v2561
      %v2563 = vadd.f32 %v2562, 0.4994258
      %v2564 = vmul.f32 %v2544, %v2563
      %v2565 = vadd.f32 %v2564, 1.0
      %v2566 = vrcp.pop %v2565
      %v2567 = vmul.f32 %v2565, %v2566
      %v2568 = vsub.f32 1.0, %v2567
      %v2569 = vmul.f32 %v2566, %v2568
      %v2570 = vadd.f32 %v2566, %v2569
      %vm2571 = vweird.f32 %v2565
      %vm2572 = vweird.f32 %v2566
      %vm2573 = vmor %vm2571, %vm2572
      %v2574 = vsel %vm2573, %v2566, %v2570
      %v2575 = vand.u32 2147483647, %v2565
      %vm2576 = vcmp.eq.f32.partialorder %v2575, 8.507059e+37
      %v2577 = vand.u32 %v2565, 2147483648
      %v2578 = vor.u32 1.1754944e-38, %v2577
      %v2579 = vsel %vm2576, %v2578, %v2574
      %v2580 = vmul.f32 %v2555, %v2579
      %v2581 = vmin.f32 %v2580, 1.0
      %v2582 = vmax.f32 %v2581, -1.0
      %v2583 = vmul.f32 %v1771, %v1771
      %v2584 = vmin.f32 16.0, %v2583
      %v2585 = vmul.f32 %v2584, 2.1237322e-06
      %v2586 = vadd.f32 %v2585, 0.00028619796
      %v2587 = vmul.f32 %v2584, %v2586
      %v2588 = vadd.f32 %v2587, 0.0036580483
      %v2589 = vmul.f32 %v2584, %v2588
      %v2590 = vadd.f32 %v2589, 0.05243302
      %v2591 = vmul.f32 %v2584, %v2590
      %v2592 = vadd.f32 %v2591, 0.18741608
      %v2593 = vmul.f32 %v2584, %v2592
      %v2594 = vadd.f32 %v2593, 1.1283791
      %v2595 = vmul.f32 %v1771, %v2594
      %v2596 = vmul.f32 %v2584, 3.8918573e-05
      %v2597 = vadd.f32 %v2596, 0.001143296
      %v2598 = vmul.f32 %v2584, %v2597
      %v2599 = vadd.f32 %v2598, 0.014752088
      %v2600 = vmul.f32 %v2584, %v2599
      %v2601 = vadd.f32 %v2600, 0.112945676
      %v2602 = vmul.f32 %v2584, %v2601
      %v2603 = vadd.f32 %v2602, 0.4994258
      %v2604 = vmul.f32 %v2584, %v2603
      %v2605 = vadd.f32 %v2604, 1.0
      %v2606 = vrcp.pop %v2605
      %v2607 = vmul.f32 %v2605, %v2606
      %v2608 = vsub.f32 1.0, %v2607
      %v2609 = vmul.f32 %v2606, %v2608
      %v2610 = vadd.f32 %v2606, %v2609
      %vm2611 = vweird.f32 %v2605
      %vm2612 = vweird.f32 %v2606
      %vm2613 = vmor %vm2611, %vm2612
      %v2614 = vsel %vm2613, %v2606, %v2610
      %v2615 = vand.u32 2147483647, %v2605
      %vm2616 = vcmp.eq.f32.partialorder %v2615, 8.507059e+37
      %v2617 = vand.u32 %v2605, 2147483648
      %v2618 = vor.u32 1.1754944e-38, %v2617
      %v2619 = vsel %vm2616, %v2618, %v2614
      %v2620 = vmul.f32 %v2595, %v2619
      %v2621 = vmin.f32 %v2620, 1.0
      %v2622 = vmax.f32 %v2621, -1.0
      %v2623 = vmul.f32 %v1772, %v1772
      %v2624 = vmin.f32 16.0, %v2623
      %v2625 = vmul.f32 %v2624, 2.1237322e-06
      %v2626 = vadd.f32 %v2625, 0.00028619796
      %v2627 = vmul.f32 %v2624, %v2626
      %v2628 = vadd.f32 %v2627, 0.0036580483
      %v2629 = vmul.f32 %v2624, %v2628
      %v2630 = vadd.f32 %v2629, 0.05243302
      %v2631 = vmul.f32 %v2624, %v2630
      %v2632 = vadd.f32 %v2631, 0.18741608
      %v2633 = vmul.f32 %v2624, %v2632
      %v2634 = vadd.f32 %v2633, 1.1283791
      %v2635 = vmul.f32 %v1772, %v2634
      %v2636 = vmul.f32 %v2624, 3.8918573e-05
      %v2637 = vadd.f32 %v2636, 0.001143296
      %v2638 = vmul.f32 %v2624, %v2637
      %v2639 = vadd.f32 %v2638, 0.014752088
      %v2640 = vmul.f32 %v2624, %v2639
      %v2641 = vadd.f32 %v2640, 0.112945676
      %v2642 = vmul.f32 %v2624, %v2641
      %v2643 = vadd.f32 %v2642, 0.4994258
      %v2644 = vmul.f32 %v2624, %v2643
      %v2645 = vadd.f32 %v2644, 1.0
      %v2646 = vrcp.pop %v2645
      %v2647 = vmul.f32 %v2645, %v2646
      %v2648 = vsub.f32 1.0, %v2647
      %v2649 = vmul.f32 %v2646, %v2648
      %v2650 = vadd.f32 %v2646, %v2649
      %vm2651 = vweird.f32 %v2645
      %vm2652 = vweird.f32 %v2646
      %vm2653 = vmor %vm2651, %vm2652
      %v2654 = vsel %vm2653, %v2646, %v2650
      %v2655 = vand.u32 2147483647, %v2645
      %vm2656 = vcmp.eq.f32.partialorder %v2655, 8.507059e+37
      %v2657 = vand.u32 %v2645, 2147483648
      %v2658 = vor.u32 1.1754944e-38, %v2657
      %v2659 = vsel %vm2656, %v2658, %v2654
      %v2660 = vmul.f32 %v2635, %v2659
      %v2661 = vmin.f32 %v2660, 1.0
      %v2662 = vmax.f32 %v2661, -1.0
      %v2663 = vmul.f32 %v1773, %v1773
      %v2664 = vmin.f32 16.0, %v2663
      %v2665 = vmul.f32 %v2664, 2.1237322e-06
      %v2666 = vadd.f32 %v2665, 0.00028619796
      %v2667 = vmul.f32 %v2664, %v2666
      %v2668 = vadd.f32 %v2667, 0.0036580483
      %v2669 = vmul.f32 %v2664, %v2668
      %v2670 = vadd.f32 %v2669, 0.05243302
      %v2671 = vmul.f32 %v2664, %v2670
      %v2672 = vadd.f32 %v2671, 0.18741608
      %v2673 = vmul.f32 %v2664, %v2672
      %v2674 = vadd.f32 %v2673, 1.1283791
      %v2675 = vmul.f32 %v1773, %v2674
      %v2676 = vmul.f32 %v2664, 3.8918573e-05
      %v2677 = vadd.f32 %v2676, 0.001143296
      %v2678 = vmul.f32 %v2664, %v2677
      %v2679 = vadd.f32 %v2678, 0.014752088
      %v2680 = vmul.f32 %v2664, %v2679
      %v2681 = vadd.f32 %v2680, 0.112945676
      %v2682 = vmul.f32 %v2664, %v2681
      %v2683 = vadd.f32 %v2682, 0.4994258
      %v2684 = vmul.f32 %v2664, %v2683
      %v2685 = vadd.f32 %v2684, 1.0
      %v2686 = vrcp.pop %v2685
      %v2687 = vmul.f32 %v2685, %v2686
      %v2688 = vsub.f32 1.0, %v2687
      %v2689 = vmul.f32 %v2686, %v2688
      %v2690 = vadd.f32 %v2686, %v2689
      %vm2691 = vweird.f32 %v2685
      %vm2692 = vweird.f32 %v2686
      %vm2693 = vmor %vm2691, %vm2692
      %v2694 = vsel %vm2693, %v2686, %v2690
      %v2695 = vand.u32 2147483647, %v2685
      %vm2696 = vcmp.eq.f32.partialorder %v2695, 8.507059e+37
      %v2697 = vand.u32 %v2685, 2147483648
      %v2698 = vor.u32 1.1754944e-38, %v2697
      %v2699 = vsel %vm2696, %v2698, %v2694
      %v2700 = vmul.f32 %v2675, %v2699
      %v2701 = vmin.f32 %v2700, 1.0
      %v2702 = vmax.f32 %v2701, -1.0
      %v2703 = vmul.f32 %v1774, %v1774
      %v2704 = vmin.f32 16.0, %v2703
      %v2705 = vmul.f32 %v2704, 2.1237322e-06
      %v2706 = vadd.f32 %v2705, 0.00028619796
      %v2707 = vmul.f32 %v2704, %v2706
      %v2708 = vadd.f32 %v2707, 0.0036580483
      %v2709 = vmul.f32 %v2704, %v2708
      %v2710 = vadd.f32 %v2709, 0.05243302
      %v2711 = vmul.f32 %v2704, %v2710
      %v2712 = vadd.f32 %v2711, 0.18741608
      %v2713 = vmul.f32 %v2704, %v2712
      %v2714 = vadd.f32 %v2713, 1.1283791
      %v2715 = vmul.f32 %v1774, %v2714
      %v2716 = vmul.f32 %v2704, 3.8918573e-05
      %v2717 = vadd.f32 %v2716, 0.001143296
      %v2718 = vmul.f32 %v2704, %v2717
      %v2719 = vadd.f32 %v2718, 0.014752088
      %v2720 = vmul.f32 %v2704, %v2719
      %v2721 = vadd.f32 %v2720, 0.112945676
      %v2722 = vmul.f32 %v2704, %v2721
      %v2723 = vadd.f32 %v2722, 0.4994258
      %v2724 = vmul.f32 %v2704, %v2723
      %v2725 = vadd.f32 %v2724, 1.0
      %v2726 = vrcp.pop %v2725
      %v2727 = vmul.f32 %v2725, %v2726
      %v2728 = vsub.f32 1.0, %v2727
      %v2729 = vmul.f32 %v2726, %v2728
      %v2730 = vadd.f32 %v2726, %v2729
      %vm2731 = vweird.f32 %v2725
      %vm2732 = vweird.f32 %v2726
      %vm2733 = vmor %vm2731, %vm2732
      %v2734 = vsel %vm2733, %v2726, %v2730
      %v2735 = vand.u32 2147483647, %v2725
      %vm2736 = vcmp.eq.f32.partialorder %v2735, 8.507059e+37
      %v2737 = vand.u32 %v2725, 2147483648
      %v2738 = vor.u32 1.1754944e-38, %v2737
      %v2739 = vsel %vm2736, %v2738, %v2734
      %v2740 = vmul.f32 %v2715, %v2739
      %v2741 = vmin.f32 %v2740, 1.0
      %v2742 = vmax.f32 %v2741, -1.0
      %v2743 = vmul.f32 %v1775, %v1775
      %v2744 = vmin.f32 16.0, %v2743
      %v2745 = vmul.f32 %v2744, 2.1237322e-06
      %v2746 = vadd.f32 %v2745, 0.00028619796
      %v2747 = vmul.f32 %v2744, %v2746
      %v2748 = vadd.f32 %v2747, 0.0036580483
      %v2749 = vmul.f32 %v2744, %v2748
      %v2750 = vadd.f32 %v2749, 0.05243302
      %v2751 = vmul.f32 %v2744, %v2750
      %v2752 = vadd.f32 %v2751, 0.18741608
      %v2753 = vmul.f32 %v2744, %v2752
      %v2754 = vadd.f32 %v2753, 1.1283791
      %v2755 = vmul.f32 %v1775, %v2754
      %v2756 = vmul.f32 %v2744, 3.8918573e-05
      %v2757 = vadd.f32 %v2756, 0.001143296
      %v2758 = vmul.f32 %v2744, %v2757
      %v2759 = vadd.f32 %v2758, 0.014752088
      %v2760 = vmul.f32 %v2744, %v2759
      %v2761 = vadd.f32 %v2760, 0.112945676
      %v2762 = vmul.f32 %v2744, %v2761
      %v2763 = vadd.f32 %v2762, 0.4994258
      %v2764 = vmul.f32 %v2744, %v2763
      %v2765 = vadd.f32 %v2764, 1.0
      %v2766 = vrcp.pop %v2765
      %v2767 = vmul.f32 %v2765, %v2766
      %v2768 = vsub.f32 1.0, %v2767
      %v2769 = vmul.f32 %v2766, %v2768
      %v2770 = vadd.f32 %v2766, %v2769
      %vm2771 = vweird.f32 %v2765
      %vm2772 = vweird.f32 %v2766
      %vm2773 = vmor %vm2771, %vm2772
      %v2774 = vsel %vm2773, %v2766, %v2770
      %v2775 = vand.u32 2147483647, %v2765
      %vm2776 = vcmp.eq.f32.partialorder %v2775, 8.507059e+37
      %v2777 = vand.u32 %v2765, 2147483648
      %v2778 = vor.u32 1.1754944e-38, %v2777
      %v2779 = vsel %vm2776, %v2778, %v2774
      %v2780 = vmul.f32 %v2755, %v2779
      %v2781 = vmin.f32 %v2780, 1.0
      %v2782 = vmax.f32 %v2781, -1.0
      %v2783 = vmul.f32 %v1776, %v1776
      %v2784 = vmin.f32 16.0, %v2783
      %v2785 = vmul.f32 %v2784, 2.1237322e-06
      %v2786 = vadd.f32 %v2785, 0.00028619796
      %v2787 = vmul.f32 %v2784, %v2786
      %v2788 = vadd.f32 %v2787, 0.0036580483
      %v2789 = vmul.f32 %v2784, %v2788
      %v2790 = vadd.f32 %v2789, 0.05243302
      %v2791 = vmul.f32 %v2784, %v2790
      %v2792 = vadd.f32 %v2791, 0.18741608
      %v2793 = vmul.f32 %v2784, %v2792
      %v2794 = vadd.f32 %v2793, 1.1283791
      %v2795 = vmul.f32 %v1776, %v2794
      %v2796 = vmul.f32 %v2784, 3.8918573e-05
      %v2797 = vadd.f32 %v2796, 0.001143296
      %v2798 = vmul.f32 %v2784, %v2797
      %v2799 = vadd.f32 %v2798, 0.014752088
      %v2800 = vmul.f32 %v2784, %v2799
      %v2801 = vadd.f32 %v2800, 0.112945676
      %v2802 = vmul.f32 %v2784, %v2801
      %v2803 = vadd.f32 %v2802, 0.4994258
      %v2804 = vmul.f32 %v2784, %v2803
      %v2805 = vadd.f32 %v2804, 1.0
      %v2806 = vrcp.pop %v2805
      %v2807 = vmul.f32 %v2805, %v2806
      %v2808 = vsub.f32 1.0, %v2807
      %v2809 = vmul.f32 %v2806, %v2808
      %v2810 = vadd.f32 %v2806, %v2809
      %vm2811 = vweird.f32 %v2805
      %vm2812 = vweird.f32 %v2806
      %vm2813 = vmor %vm2811, %vm2812
      %v2814 = vsel %vm2813, %v2806, %v2810
      %v2815 = vand.u32 2147483647, %v2805
      %vm2816 = vcmp.eq.f32.partialorder %v2815, 8.507059e+37
      %v2817 = vand.u32 %v2805, 2147483648
      %v2818 = vor.u32 1.1754944e-38, %v2817
      %v2819 = vsel %vm2816, %v2818, %v2814
      %v2820 = vmul.f32 %v2795, %v2819
      %v2821 = vmin.f32 %v2820, 1.0
      %v2822 = vmax.f32 %v2821, -1.0
      %v2823 = vmul.f32 %v1777, %v1777
      %v2824 = vmin.f32 16.0, %v2823
      %v2825 = vmul.f32 %v2824, 2.1237322e-06
      %v2826 = vadd.f32 %v2825, 0.00028619796
      %v2827 = vmul.f32 %v2824, %v2826
      %v2828 = vadd.f32 %v2827, 0.0036580483
      %v2829 = vmul.f32 %v2824, %v2828
      %v2830 = vadd.f32 %v2829, 0.05243302
      %v2831 = vmul.f32 %v2824, %v2830
      %v2832 = vadd.f32 %v2831, 0.18741608
      %v2833 = vmul.f32 %v2824, %v2832
      %v2834 = vadd.f32 %v2833, 1.1283791
      %v2835 = vmul.f32 %v1777, %v2834
      %v2836 = vmul.f32 %v2824, 3.8918573e-05
      %v2837 = vadd.f32 %v2836, 0.001143296
      %v2838 = vmul.f32 %v2824, %v2837
      %v2839 = vadd.f32 %v2838, 0.014752088
      %v2840 = vmul.f32 %v2824, %v2839
      %v2841 = vadd.f32 %v2840, 0.112945676
      %v2842 = vmul.f32 %v2824, %v2841
      %v2843 = vadd.f32 %v2842, 0.4994258
      %v2844 = vmul.f32 %v2824, %v2843
      %v2845 = vadd.f32 %v2844, 1.0
      %v2846 = vrcp.pop %v2845
      %v2847 = vmul.f32 %v2845, %v2846
      %v2848 = vsub.f32 1.0, %v2847
      %v2849 = vmul.f32 %v2846, %v2848
      %v2850 = vadd.f32 %v2846, %v2849
      %vm2851 = vweird.f32 %v2845
      %vm2852 = vweird.f32 %v2846
      %vm2853 = vmor %vm2851, %vm2852
      %v2854 = vsel %vm2853, %v2846, %v2850
      %v2855 = vand.u32 2147483647, %v2845
      %vm2856 = vcmp.eq.f32.partialorder %v2855, 8.507059e+37
      %v2857 = vand.u32 %v2845, 2147483648
      %v2858 = vor.u32 1.1754944e-38, %v2857
      %v2859 = vsel %vm2856, %v2858, %v2854
      %v2860 = vmul.f32 %v2835, %v2859
      %v2861 = vmin.f32 %v2860, 1.0
      %v2862 = vmax.f32 %v2861, -1.0
      %v2863 = vmul.f32 %v1778, %v1778
      %v2864 = vmin.f32 16.0, %v2863
      %v2865 = vmul.f32 %v2864, 2.1237322e-06
      %v2866 = vadd.f32 %v2865, 0.00028619796
      %v2867 = vmul.f32 %v2864, %v2866
      %v2868 = vadd.f32 %v2867, 0.0036580483
      %v2869 = vmul.f32 %v2864, %v2868
      %v2870 = vadd.f32 %v2869, 0.05243302
      %v2871 = vmul.f32 %v2864, %v2870
      %v2872 = vadd.f32 %v2871, 0.18741608
      %v2873 = vmul.f32 %v2864, %v2872
      %v2874 = vadd.f32 %v2873, 1.1283791
      %v2875 = vmul.f32 %v1778, %v2874
      %v2876 = vmul.f32 %v2864, 3.8918573e-05
      %v2877 = vadd.f32 %v2876, 0.001143296
      %v2878 = vmul.f32 %v2864, %v2877
      %v2879 = vadd.f32 %v2878, 0.014752088
      %v2880 = vmul.f32 %v2864, %v2879
      %v2881 = vadd.f32 %v2880, 0.112945676
      %v2882 = vmul.f32 %v2864, %v2881
      %v2883 = vadd.f32 %v2882, 0.4994258
      %v2884 = vmul.f32 %v2864, %v2883
      %v2885 = vadd.f32 %v2884, 1.0
      %v2886 = vrcp.pop %v2885
      %v2887 = vmul.f32 %v2885, %v2886
      %v2888 = vsub.f32 1.0, %v2887
      %v2889 = vmul.f32 %v2886, %v2888
      %v2890 = vadd.f32 %v2886, %v2889
      %vm2891 = vweird.f32 %v2885
      %vm2892 = vweird.f32 %v2886
      %vm2893 = vmor %vm2891, %vm2892
      %v2894 = vsel %vm2893, %v2886, %v2890
      %v2895 = vand.u32 2147483647, %v2885
      %vm2896 = vcmp.eq.f32.partialorder %v2895, 8.507059e+37
      %v2897 = vand.u32 %v2885, 2147483648
      %v2898 = vor.u32 1.1754944e-38, %v2897
      %v2899 = vsel %vm2896, %v2898, %v2894
      %v2900 = vmul.f32 %v2875, %v2899
      %v2901 = vmin.f32 %v2900, 1.0
      %v2902 = vmax.f32 %v2901, -1.0
      %v2903 = vmul.f32 %v1779, %v1779
      %v2904 = vmin.f32 16.0, %v2903
      %v2905 = vmul.f32 %v2904, 2.1237322e-06
      %v2906 = vadd.f32 %v2905, 0.00028619796
      %v2907 = vmul.f32 %v2904, %v2906
      %v2908 = vadd.f32 %v2907, 0.0036580483
      %v2909 = vmul.f32 %v2904, %v2908
      %v2910 = vadd.f32 %v2909, 0.05243302
      %v2911 = vmul.f32 %v2904, %v2910
      %v2912 = vadd.f32 %v2911, 0.18741608
      %v2913 = vmul.f32 %v2904, %v2912
      %v2914 = vadd.f32 %v2913, 1.1283791
      %v2915 = vmul.f32 %v1779, %v2914
      %v2916 = vmul.f32 %v2904, 3.8918573e-05
      %v2917 = vadd.f32 %v2916, 0.001143296
      %v2918 = vmul.f32 %v2904, %v2917
      %v2919 = vadd.f32 %v2918, 0.014752088
      %v2920 = vmul.f32 %v2904, %v2919
      %v2921 = vadd.f32 %v2920, 0.112945676
      %v2922 = vmul.f32 %v2904, %v2921
      %v2923 = vadd.f32 %v2922, 0.4994258
      %v2924 = vmul.f32 %v2904, %v2923
      %v2925 = vadd.f32 %v2924, 1.0
      %v2926 = vrcp.pop %v2925
      %v2927 = vmul.f32 %v2925, %v2926
      %v2928 = vsub.f32 1.0, %v2927
      %v2929 = vmul.f32 %v2926, %v2928
      %v2930 = vadd.f32 %v2926, %v2929
      %vm2931 = vweird.f32 %v2925
      %vm2932 = vweird.f32 %v2926
      %vm2933 = vmor %vm2931, %vm2932
      %v2934 = vsel %vm2933, %v2926, %v2930
      %v2935 = vand.u32 2147483647, %v2925
      %vm2936 = vcmp.eq.f32.partialorder %v2935, 8.507059e+37
      %v2937 = vand.u32 %v2925, 2147483648
      %v2938 = vor.u32 1.1754944e-38, %v2937
      %v2939 = vsel %vm2936, %v2938, %v2934
      %v2940 = vmul.f32 %v2915, %v2939
      %v2941 = vmin.f32 %v2940, 1.0
      %v2942 = vmax.f32 %v2941, -1.0
      %v2943 = vmul.f32 %v1780, %v1780
      %v2944 = vmin.f32 16.0, %v2943
      %v2945 = vmul.f32 %v2944, 2.1237322e-06
      %v2946 = vadd.f32 %v2945, 0.00028619796
      %v2947 = vmul.f32 %v2944, %v2946
      %v2948 = vadd.f32 %v2947, 0.0036580483
      %v2949 = vmul.f32 %v2944, %v2948
      %v2950 = vadd.f32 %v2949, 0.05243302
      %v2951 = vmul.f32 %v2944, %v2950
      %v2952 = vadd.f32 %v2951, 0.18741608
      %v2953 = vmul.f32 %v2944, %v2952
      %v2954 = vadd.f32 %v2953, 1.1283791
      %v2955 = vmul.f32 %v1780, %v2954
      %v2956 = vmul.f32 %v2944, 3.8918573e-05
      %v2957 = vadd.f32 %v2956, 0.001143296
      %v2958 = vmul.f32 %v2944, %v2957
      %v2959 = vadd.f32 %v2958, 0.014752088
      %v2960 = vmul.f32 %v2944, %v2959
      %v2961 = vadd.f32 %v2960, 0.112945676
      %v2962 = vmul.f32 %v2944, %v2961
      %v2963 = vadd.f32 %v2962, 0.4994258
      %v2964 = vmul.f32 %v2944, %v2963
      %v2965 = vadd.f32 %v2964, 1.0
      %v2966 = vrcp.pop %v2965
      %v2967 = vmul.f32 %v2965, %v2966
      %v2968 = vsub.f32 1.0, %v2967
      %v2969 = vmul.f32 %v2966, %v2968
      %v2970 = vadd.f32 %v2966, %v2969
      %vm2971 = vweird.f32 %v2965
      %vm2972 = vweird.f32 %v2966
      %vm2973 = vmor %vm2971, %vm2972
      %v2974 = vsel %vm2973, %v2966, %v2970
      %v2975 = vand.u32 2147483647, %v2965
      %vm2976 = vcmp.eq.f32.partialorder %v2975, 8.507059e+37
      %v2977 = vand.u32 %v2965, 2147483648
      %v2978 = vor.u32 1.1754944e-38, %v2977
      %v2979 = vsel %vm2976, %v2978, %v2974
      %v2980 = vmul.f32 %v2955, %v2979
      %v2981 = vmin.f32 %v2980, 1.0
      %v2982 = vmax.f32 %v2981, -1.0
      %v2983 = vmul.f32 %v1781, %v1781
      %v2984 = vmin.f32 16.0, %v2983
      %v2985 = vmul.f32 %v2984, 2.1237322e-06
      %v2986 = vadd.f32 %v2985, 0.00028619796
      %v2987 = vmul.f32 %v2984, %v2986
      %v2988 = vadd.f32 %v2987, 0.0036580483
      %v2989 = vmul.f32 %v2984, %v2988
      %v2990 = vadd.f32 %v2989, 0.05243302
      %v2991 = vmul.f32 %v2984, %v2990
      %v2992 = vadd.f32 %v2991, 0.18741608
      %v2993 = vmul.f32 %v2984, %v2992
      %v2994 = vadd.f32 %v2993, 1.1283791
      %v2995 = vmul.f32 %v1781, %v2994
      %v2996 = vmul.f32 %v2984, 3.8918573e-05
      %v2997 = vadd.f32 %v2996, 0.001143296
      %v2998 = vmul.f32 %v2984, %v2997
      %v2999 = vadd.f32 %v2998, 0.014752088
      %v3000 = vmul.f32 %v2984, %v2999
      %v3001 = vadd.f32 %v3000, 0.112945676
      %v3002 = vmul.f32 %v2984, %v3001
      %v3003 = vadd.f32 %v3002, 0.4994258
      %v3004 = vmul.f32 %v2984, %v3003
      %v3005 = vadd.f32 %v3004, 1.0
      %v3006 = vrcp.pop %v3005
      %v3007 = vmul.f32 %v3005, %v3006
      %v3008 = vsub.f32 1.0, %v3007
      %v3009 = vmul.f32 %v3006, %v3008
      %v3010 = vadd.f32 %v3006, %v3009
      %vm3011 = vweird.f32 %v3005
      %vm3012 = vweird.f32 %v3006
      %vm3013 = vmor %vm3011, %vm3012
      %v3014 = vsel %vm3013, %v3006, %v3010
      %v3015 = vand.u32 2147483647, %v3005
      %vm3016 = vcmp.eq.f32.partialorder %v3015, 8.507059e+37
      %v3017 = vand.u32 %v3005, 2147483648
      %v3018 = vor.u32 1.1754944e-38, %v3017
      %v3019 = vsel %vm3016, %v3018, %v3014
      %v3020 = vmul.f32 %v2995, %v3019
      %v3021 = vmin.f32 %v3020, 1.0
      %v3022 = vmax.f32 %v3021, -1.0
      %v3023 = vmul.f32 %v1782, %v1782
      %v3024 = vmin.f32 16.0, %v3023
      %v3025 = vmul.f32 %v3024, 2.1237322e-06
      %v3026 = vadd.f32 %v3025, 0.00028619796
      %v3027 = vmul.f32 %v3024, %v3026
      %v3028 = vadd.f32 %v3027, 0.0036580483
      %v3029 = vmul.f32 %v3024, %v3028
      %v3030 = vadd.f32 %v3029, 0.05243302
      %v3031 = vmul.f32 %v3024, %v3030
      %v3032 = vadd.f32 %v3031, 0.18741608
      %v3033 = vmul.f32 %v3024, %v3032
      %v3034 = vadd.f32 %v3033, 1.1283791
      %v3035 = vmul.f32 %v1782, %v3034
      %v3036 = vmul.f32 %v3024, 3.8918573e-05
      %v3037 = vadd.f32 %v3036, 0.001143296
      %v3038 = vmul.f32 %v3024, %v3037
      %v3039 = vadd.f32 %v3038, 0.014752088
      %v3040 = vmul.f32 %v3024, %v3039
      %v3041 = vadd.f32 %v3040, 0.112945676
      %v3042 = vmul.f32 %v3024, %v3041
      %v3043 = vadd.f32 %v3042, 0.4994258
      %v3044 = vmul.f32 %v3024, %v3043
      %v3045 = vadd.f32 %v3044, 1.0
      %v3046 = vrcp.pop %v3045
      %v3047 = vmul.f32 %v3045, %v3046
      %v3048 = vsub.f32 1.0, %v3047
      %v3049 = vmul.f32 %v3046, %v3048
      %v3050 = vadd.f32 %v3046, %v3049
      %vm3051 = vweird.f32 %v3045
      %vm3052 = vweird.f32 %v3046
      %vm3053 = vmor %vm3051, %vm3052
      %v3054 = vsel %vm3053, %v3046, %v3050
      %v3055 = vand.u32 2147483647, %v3045
      %vm3056 = vcmp.eq.f32.partialorder %v3055, 8.507059e+37
      %v3057 = vand.u32 %v3045, 2147483648
      %v3058 = vor.u32 1.1754944e-38, %v3057
      %v3059 = vsel %vm3056, %v3058, %v3054
      %v3060 = vmul.f32 %v3035, %v3059
      %v3061 = vmin.f32 %v3060, 1.0
      %v3062 = vmax.f32 %v3061, -1.0
      %v3063 = vadd.f32 %v1822, 1.0
      %v3064 = vadd.f32 %v1862, 1.0
      %v3065 = vadd.f32 %v1902, 1.0
      %v3066 = vadd.f32 %v1942, 1.0
      %v3067 = vadd.f32 %v1982, 1.0
      %v3068 = vadd.f32 %v2022, 1.0
      %v3069 = vadd.f32 %v2062, 1.0
      %v3070 = vadd.f32 %v2102, 1.0
      %v3071 = vadd.f32 %v2142, 1.0
      %v3072 = vadd.f32 %v2182, 1.0
      %v3073 = vadd.f32 %v2222, 1.0
      %v3074 = vadd.f32 %v2262, 1.0
      %v3075 = vadd.f32 %v2302, 1.0
      %v3076 = vadd.f32 %v2342, 1.0
      %v3077 = vadd.f32 %v2382, 1.0
      %v3078 = vadd.f32 %v2422, 1.0
      %v3079 = vadd.f32 %v2462, 1.0
      %v3080 = vadd.f32 %v2502, 1.0
      %v3081 = vadd.f32 %v2542, 1.0
      %v3082 = vadd.f32 %v2582, 1.0
      %v3083 = vadd.f32 %v2622, 1.0
      %v3084 = vadd.f32 %v2662, 1.0
      %v3085 = vadd.f32 %v2702, 1.0
      %v3086 = vadd.f32 %v2742, 1.0
      %v3087 = vadd.f32 %v2782, 1.0
      %v3088 = vadd.f32 %v2822, 1.0
      %v3089 = vadd.f32 %v2862, 1.0
      %v3090 = vadd.f32 %v2902, 1.0
      %v3091 = vadd.f32 %v2942, 1.0
      %v3092 = vadd.f32 %v2982, 1.0
      %v3093 = vadd.f32 %v3022, 1.0
      %v3094 = vadd.f32 %v3062, 1.0
      %v3095 = vmul.f32 %v1719, %v3063
      %v3096 = vmul.f32 %v1720, %v3064
      %v3097 = vmul.f32 %v1721, %v3065
      %v3098 = vmul.f32 %v1722, %v3066
      %v3099 = vmul.f32 %v1723, %v3067
      %v3100 = vmul.f32 %v1724, %v3068
      %v3101 = vmul.f32 %v1725, %v3069
      %v3102 = vmul.f32 %v1726, %v3070
      %v3103 = vmul.f32 %v1727, %v3071
      %v3104 = vmul.f32 %v1728, %v3072
      %v3105 = vmul.f32 %v1729, %v3073
      %v3106 = vmul.f32 %v1730, %v3074
      %v3107 = vmul.f32 %v1731, %v3075
      %v3108 = vmul.f32 %v1732, %v3076
      %v3109 = vmul.f32 %v1733, %v3077
      %v3110 = vmul.f32 %v1734, %v3078
      %v3111 = vmul.f32 %v1735, %v3079
      %v3112 = vmul.f32 %v1736, %v3080
      %v3113 = vmul.f32 %v1737, %v3081
      %v3114 = vmul.f32 %v1738, %v3082
      %v3115 = vmul.f32 %v1739, %v3083
      %v3116 = vmul.f32 %v1740, %v3084
      %v3117 = vmul.f32 %v1741, %v3085
      %v3118 = vmul.f32 %v1742, %v3086
      %v3119 = vmul.f32 %v1743, %v3087
      %v3120 = vmul.f32 %v1744, %v3088
      %v3121 = vmul.f32 %v1745, %v3089
      %v3122 = vmul.f32 %v1746, %v3090
      %v3123 = vmul.f32 %v1747, %v3091
      %v3124 = vmul.f32 %v1748, %v3092
      %v3125 = vmul.f32 %v1749, %v3093
      %v3126 = vmul.f32 %v1750, %v3094
      %v3127 = vpack.c.bf16 %v3096, %v3095
      %v3128 = vpack.c.bf16 %v3098, %v3097
      %v3129 = vpack.c.bf16 %v3100, %v3099
      %v3130 = vpack.c.bf16 %v3102, %v3101
      %v3131 = vpack.c.bf16 %v3104, %v3103
      %v3132 = vpack.c.bf16 %v3106, %v3105
      %v3133 = vpack.c.bf16 %v3108, %v3107
      %v3134 = vpack.c.bf16 %v3110, %v3109
      %v3135 = vpack.c.bf16 %v3112, %v3111
      %v3136 = vpack.c.bf16 %v3114, %v3113
      %v3137 = vpack.c.bf16 %v3116, %v3115
      %v3138 = vpack.c.bf16 %v3118, %v3117
      %v3139 = vpack.c.bf16 %v3120, %v3119
      %v3140 = vpack.c.bf16 %v3122, %v3121
      %v3141 = vpack.c.bf16 %v3124, %v3123
      %v3142 = vpack.c.bf16 %v3126, %v3125
      %3144 = vset.pattern.permute.xlu0 0
      %3145 = vperm.xlu0 %3144, %v634
      %v3146 = vpop.permute.xlu0 %3145
      %3149 = vset.pattern.permute.xlu0 0
      %3150 = vperm.xlu0 %3149, %v635
      %v3151 = vpop.permute.xlu0 %3150
      %3154 = vset.pattern.permute.xlu0 0
      %3155 = vperm.xlu0 %3154, %v636
      %v3156 = vpop.permute.xlu0 %3155
      %3159 = vset.pattern.permute.xlu0 0
      %3160 = vperm.xlu0 %3159, %v637
      %v3161 = vpop.permute.xlu0 %3160
      %3164 = vset.pattern.permute.xlu0 0
      %3165 = vperm.xlu0 %3164, %v638
      %v3166 = vpop.permute.xlu0 %3165
      %3169 = vset.pattern.permute.xlu0 0
      %3170 = vperm.xlu0 %3169, %v639
      %v3171 = vpop.permute.xlu0 %3170
      %3174 = vset.pattern.permute.xlu0 0
      %3175 = vperm.xlu0 %3174, %v640
      %v3176 = vpop.permute.xlu0 %3175
      %3179 = vset.pattern.permute.xlu0 0
      %3180 = vperm.xlu0 %3179, %v641
      %v3181 = vpop.permute.xlu0 %3180
      %3184 = vset.pattern.permute.xlu0 0
      %3185 = vperm.xlu0 %3184, %v642
      %v3186 = vpop.permute.xlu0 %3185
      %3189 = vset.pattern.permute.xlu0 0
      %3190 = vperm.xlu0 %3189, %v643
      %v3191 = vpop.permute.xlu0 %3190
      %3194 = vset.pattern.permute.xlu0 0
      %3195 = vperm.xlu0 %3194, %v644
      %v3196 = vpop.permute.xlu0 %3195
      %3199 = vset.pattern.permute.xlu0 0
      %3200 = vperm.xlu0 %3199, %v645
      %v3201 = vpop.permute.xlu0 %3200
      %3204 = vset.pattern.permute.xlu0 0
      %3205 = vperm.xlu0 %3204, %v646
      %v3206 = vpop.permute.xlu0 %3205
      %3209 = vset.pattern.permute.xlu0 0
      %3210 = vperm.xlu0 %3209, %v647
      %v3211 = vpop.permute.xlu0 %3210
      %3214 = vset.pattern.permute.xlu0 0
      %3215 = vperm.xlu0 %3214, %v648
      %v3216 = vpop.permute.xlu0 %3215
      %3219 = vset.pattern.permute.xlu0 0
      %3220 = vperm.xlu0 %3219, %v649
      %v3221 = vpop.permute.xlu0 %3220
      %3224 = vset.pattern.permute.xlu0 0
      %3225 = vperm.xlu0 %3224, %v650
      %v3226 = vpop.permute.xlu0 %3225
      %3229 = vset.pattern.permute.xlu0 0
      %3230 = vperm.xlu0 %3229, %v651
      %v3231 = vpop.permute.xlu0 %3230
      %3234 = vset.pattern.permute.xlu0 0
      %3235 = vperm.xlu0 %3234, %v652
      %v3236 = vpop.permute.xlu0 %3235
      %3239 = vset.pattern.permute.xlu0 0
      %3240 = vperm.xlu0 %3239, %v653
      %v3241 = vpop.permute.xlu0 %3240
      %3244 = vset.pattern.permute.xlu0 0
      %3245 = vperm.xlu0 %3244, %v654
      %v3246 = vpop.permute.xlu0 %3245
      %3249 = vset.pattern.permute.xlu0 0
      %3250 = vperm.xlu0 %3249, %v655
      %v3251 = vpop.permute.xlu0 %3250
      %3254 = vset.pattern.permute.xlu0 0
      %3255 = vperm.xlu0 %3254, %v656
      %v3256 = vpop.permute.xlu0 %3255
      %3259 = vset.pattern.permute.xlu0 0
      %3260 = vperm.xlu0 %3259, %v657
      %v3261 = vpop.permute.xlu0 %3260
      %3264 = vset.pattern.permute.xlu0 0
      %3265 = vperm.xlu0 %3264, %v658
      %v3266 = vpop.permute.xlu0 %3265
      %3269 = vset.pattern.permute.xlu0 0
      %3270 = vperm.xlu0 %3269, %v659
      %v3271 = vpop.permute.xlu0 %3270
      %3274 = vset.pattern.permute.xlu0 0
      %3275 = vperm.xlu0 %3274, %v660
      %v3276 = vpop.permute.xlu0 %3275
      %3279 = vset.pattern.permute.xlu0 0
      %3280 = vperm.xlu0 %3279, %v661
      %v3281 = vpop.permute.xlu0 %3280
      %3284 = vset.pattern.permute.xlu0 0
      %3285 = vperm.xlu0 %3284, %v662
      %v3286 = vpop.permute.xlu0 %3285
      %3289 = vset.pattern.permute.xlu0 0
      %3290 = vperm.xlu0 %3289, %v663
      %v3291 = vpop.permute.xlu0 %3290
      %3294 = vset.pattern.permute.xlu0 0
      %3295 = vperm.xlu0 %3294, %v664
      %v3296 = vpop.permute.xlu0 %3295
      %3299 = vset.pattern.permute.xlu0 0
      %3300 = vperm.xlu0 %3299, %v665
      %v3301 = vpop.permute.xlu0 %3300
      %v3303 = vmul.f32 %v3095, %v3146
      %v3304 = vmul.f32 %v3096, %v3151
      %v3305 = vmul.f32 %v3097, %v3156
      %v3306 = vmul.f32 %v3098, %v3161
      %v3307 = vmul.f32 %v3099, %v3166
      %v3308 = vmul.f32 %v3100, %v3171
      %v3309 = vmul.f32 %v3101, %v3176
      %v3310 = vmul.f32 %v3102, %v3181
      %v3311 = vmul.f32 %v3103, %v3186
      %v3312 = vmul.f32 %v3104, %v3191
      %v3313 = vmul.f32 %v3105, %v3196
      %v3314 = vmul.f32 %v3106, %v3201
      %v3315 = vmul.f32 %v3107, %v3206
      %v3316 = vmul.f32 %v3108, %v3211
      %v3317 = vmul.f32 %v3109, %v3216
      %v3318 = vmul.f32 %v3110, %v3221
      %v3319 = vmul.f32 %v3111, %v3226
      %v3320 = vmul.f32 %v3112, %v3231
      %v3321 = vmul.f32 %v3113, %v3236
      %v3322 = vmul.f32 %v3114, %v3241
      %v3323 = vmul.f32 %v3115, %v3246
      %v3324 = vmul.f32 %v3116, %v3251
      %v3325 = vmul.f32 %v3117, %v3256
      %v3326 = vmul.f32 %v3118, %v3261
      %v3327 = vmul.f32 %v3119, %v3266
      %v3328 = vmul.f32 %v3120, %v3271
      %v3329 = vmul.f32 %v3121, %v3276
      %v3330 = vmul.f32 %v3122, %v3281
      %v3331 = vmul.f32 %v3123, %v3286
      %v3332 = vmul.f32 %v3124, %v3291
      %v3333 = vmul.f32 %v3125, %v3296
      %v3334 = vmul.f32 %v3126, %v3301
      %v3335 = vpack.c.bf16 %v3304, %v3303
      %v3336 = vpack.c.bf16 %v3306, %v3305
      %v3337 = vpack.c.bf16 %v3308, %v3307
      %v3338 = vpack.c.bf16 %v3310, %v3309
      %v3339 = vpack.c.bf16 %v3312, %v3311
      %v3340 = vpack.c.bf16 %v3314, %v3313
      %v3341 = vpack.c.bf16 %v3316, %v3315
      %v3342 = vpack.c.bf16 %v3318, %v3317
      %v3343 = vpack.c.bf16 %v3320, %v3319
      %v3344 = vpack.c.bf16 %v3322, %v3321
      %v3345 = vpack.c.bf16 %v3324, %v3323
      %v3346 = vpack.c.bf16 %v3326, %v3325
      %v3347 = vpack.c.bf16 %v3328, %v3327
      %v3348 = vpack.c.bf16 %v3330, %v3329
      %v3349 = vpack.c.bf16 %v3332, %v3331
      %v3350 = vpack.c.bf16 %v3334, %v3333
      %v3351 = vpack.c.bf16 %v635, %v634
      %v3352 = vpack.c.bf16 %v637, %v636
      %v3353 = vpack.c.bf16 %v639, %v638
      %v3354 = vpack.c.bf16 %v641, %v640
      %v3355 = vpack.c.bf16 %v643, %v642
      %v3356 = vpack.c.bf16 %v645, %v644
      %v3357 = vpack.c.bf16 %v647, %v646
      %v3358 = vpack.c.bf16 %v649, %v648
      %v3359 = vpack.c.bf16 %v651, %v650
      %v3360 = vpack.c.bf16 %v653, %v652
      %v3361 = vpack.c.bf16 %v655, %v654
      %v3362 = vpack.c.bf16 %v657, %v656
      %v3363 = vpack.c.bf16 %v659, %v658
      %v3364 = vpack.c.bf16 %v661, %v660
      %v3365 = vpack.c.bf16 %v663, %v662
      %v3366 = vpack.c.bf16 %v665, %v664
      %v3367 = vld [vmem:[%s2] sm:$0xff]
      %v3368 = vld [vmem:[%s2 + $0x8] sm:$0xff]
      %v3369 = vld [vmem:[%s2 + $0x10] sm:$0xff]
      %v3370 = vld [vmem:[%s2 + $0x18] sm:$0xff]
      %v3375 = vunpack.c.l.b16 %v3367
      %v3376 = vunpack.c.h.b16 %v3367
      %v3377 = vunpack.c.l.b16 %v3368
      %v3378 = vunpack.c.h.b16 %v3368
      %v3379 = vunpack.c.l.b16 %v3369
      %v3380 = vunpack.c.h.b16 %v3369
      %v3381 = vunpack.c.l.b16 %v3370
      %v3382 = vunpack.c.h.b16 %v3370
      %v3383 = vpack.c.b16 %v3377, %v3375
      %v3384 = vpack.c.b16 %v3378, %v3376
      %v3385 = vpack.c.b16 %v3381, %v3379
      %v3386 = vpack.c.b16 %v3382, %v3380
      %3391 = vmatpush.bf16.msra.mxu0 %v3342
      %3392 = vmatpush.bf16.msra.mxu0 %v3341
      %3393 = vmatpush.bf16.msra.mxu0 %v3340
      %3394 = vmatpush.bf16.msra.mxu0 %v3339
      %3395 = vmatpush.bf16.msra.mxu0 %v3338
      %3396 = vmatpush.bf16.msra.mxu0 %v3337
      %3397 = vmatpush.bf16.msra.mxu0 %v3336
      %3398 = vmatpush.bf16.msra.mxu0 %v3335
      %3399 = vmatmul.bf16.gmra.mxu0 %v3383
      %v3400 = vpop.f32.mrf.mxu0
      %v3401 = vadd.f32 0.0, %v3400
      %v3402 = vpop.f32.mrf.mxu0
      %v3403 = vadd.f32 0.0, %v3402
      %3404 = vmatmul.bf16.gmra.mxu0 %v3385
      %v3405 = vpop.f32.mrf.mxu0
      %v3406 = vadd.f32 0.0, %v3405
      %v3407 = vpop.f32.mrf.mxu0
      %v3408 = vadd.f32 0.0, %v3407
      %3409 = vdwg.mxu0
      %3410 = vmatpush.bf16.msra.mxu0 %v3350
      %3411 = vmatpush.bf16.msra.mxu0 %v3349
      %3412 = vmatpush.bf16.msra.mxu0 %v3348
      %3413 = vmatpush.bf16.msra.mxu0 %v3347
      %3414 = vmatpush.bf16.msra.mxu0 %v3346
      %3415 = vmatpush.bf16.msra.mxu0 %v3345
      %3416 = vmatpush.bf16.msra.mxu0 %v3344
      %3417 = vmatpush.bf16.msra.mxu0 %v3343
      %3418 = vmatmul.bf16.gmra.mxu0 %v3384
      %v3419 = vpop.f32.mrf.mxu0
      %v3420 = vadd.f32 %v3401, %v3419
      %v3421 = vpop.f32.mrf.mxu0
      %v3422 = vadd.f32 %v3403, %v3421
      %3423 = vmatmul.bf16.gmra.mxu0 %v3386
      %v3424 = vpop.f32.mrf.mxu0
      %v3425 = vadd.f32 %v3406, %v3424
      %v3426 = vpop.f32.mrf.mxu0
      %v3427 = vadd.f32 %v3408, %v3426
      %3428 = vdwg.mxu0
      %3429 = vmatpush.bf16.msra.mxu0 %v3358
      %3430 = vmatpush.bf16.msra.mxu0 %v3357
      %3431 = vmatpush.bf16.msra.mxu0 %v3356
      %3432 = vmatpush.bf16.msra.mxu0 %v3355
      %3433 = vmatpush.bf16.msra.mxu0 %v3354
      %3434 = vmatpush.bf16.msra.mxu0 %v3353
      %3435 = vmatpush.bf16.msra.mxu0 %v3352
      %3436 = vmatpush.bf16.msra.mxu0 %v3351
      %3437 = vmatmul.bf16.gmra.mxu0 %v3383
      %v3438 = vpop.f32.mrf.mxu0
      %v3439 = vadd.f32 0.0, %v3438
      %v3440 = vpop.f32.mrf.mxu0
      %v3441 = vadd.f32 0.0, %v3440
      %3442 = vmatmul.bf16.gmra.mxu0 %v3385
      %v3443 = vpop.f32.mrf.mxu0
      %v3444 = vadd.f32 0.0, %v3443
      %v3445 = vpop.f32.mrf.mxu0
      %v3446 = vadd.f32 0.0, %v3445
      %3447 = vdwg.mxu0
      %3448 = vmatpush.bf16.msra.mxu0 %v3366
      %3449 = vmatpush.bf16.msra.mxu0 %v3365
      %3450 = vmatpush.bf16.msra.mxu0 %v3364
      %3451 = vmatpush.bf16.msra.mxu0 %v3363
      %3452 = vmatpush.bf16.msra.mxu0 %v3362
      %3453 = vmatpush.bf16.msra.mxu0 %v3361
      %3454 = vmatpush.bf16.msra.mxu0 %v3360
      %3455 = vmatpush.bf16.msra.mxu0 %v3359
      %3456 = vmatmul.bf16.gmra.mxu0 %v3384
      %v3457 = vpop.f32.mrf.mxu0
      %v3458 = vadd.f32 %v3439, %v3457
      %v3459 = vpop.f32.mrf.mxu0
      %v3460 = vadd.f32 %v3441, %v3459
      %3461 = vmatmul.bf16.gmra.mxu0 %v3386
      %v3462 = vpop.f32.mrf.mxu0
      %v3463 = vadd.f32 %v3444, %v3462
      %v3464 = vpop.f32.mrf.mxu0
      %v3465 = vadd.f32 %v3446, %v3464
      %3466 = vdwg.mxu0
      %v3467 = vrcp.pop %v3458
      %v3468 = vrcp.pop %v3460
      %v3469 = vrcp.pop %v3463
      %v3470 = vrcp.pop %v3465
      %3472 = vset.pattern.permute.xlu0 0
      %3473 = vperm.xlu0 %3472, %v3467
      %v3474 = vpop.permute.xlu0 %3473
      %3477 = vset.pattern.permute.xlu0 0
      %3478 = vperm.xlu0 %3477, %v3468
      %v3479 = vpop.permute.xlu0 %3478
      %3482 = vset.pattern.permute.xlu0 0
      %3483 = vperm.xlu0 %3482, %v3469
      %v3484 = vpop.permute.xlu0 %3483
      %3487 = vset.pattern.permute.xlu0 0
      %3488 = vperm.xlu0 %3487, %v3470
      %v3489 = vpop.permute.xlu0 %3488
      %v3491 = vmul.f32 %v3420, %v3474
      %v3492 = vmul.f32 %v3422, %v3479
      %v3493 = vmul.f32 %v3425, %v3484
      %v3494 = vmul.f32 %v3427, %v3489
      %v3495 = vld [vmem:[%s4] sm:$0xff]
      %v3497 = vunpack.c.l.b16 %v3495
      %v3498 = vunpack.c.h.b16 %v3495
      %v3499 = vpack.c.b16 %v3497, %v3497
      %v3500 = vpack.c.b16 %v3498, %v3498
      %3503 = vmatpush.bf16.msra.mxu0 %v3342
      %3504 = vmatpush.bf16.msra.mxu0 %v3341
      %3505 = vmatpush.bf16.msra.mxu0 %v3340
      %3506 = vmatpush.bf16.msra.mxu0 %v3339
      %3507 = vmatpush.bf16.msra.mxu0 %v3338
      %3508 = vmatpush.bf16.msra.mxu0 %v3337
      %3509 = vmatpush.bf16.msra.mxu0 %v3336
      %3510 = vmatpush.bf16.msra.mxu0 %v3335
      %3511 = vmatmul.bf16.gmra.mxu0 %v3499
      %v3512 = vpop.f32.mrf.mxu0
      %v3513 = vadd.f32 0.0, %v3512
      %v3514 = vpop.f32.mrf.mxu0
      %3515 = vdwg.mxu0
      %3516 = vmatpush.bf16.msra.mxu0 %v3350
      %3517 = vmatpush.bf16.msra.mxu0 %v3349
      %3518 = vmatpush.bf16.msra.mxu0 %v3348
      %3519 = vmatpush.bf16.msra.mxu0 %v3347
      %3520 = vmatpush.bf16.msra.mxu0 %v3346
      %3521 = vmatpush.bf16.msra.mxu0 %v3345
      %3522 = vmatpush.bf16.msra.mxu0 %v3344
      %3523 = vmatpush.bf16.msra.mxu0 %v3343
      %3524 = vmatmul.bf16.gmra.mxu0 %v3500
      %v3525 = vpop.f32.mrf.mxu0
      %v3526 = vadd.f32 %v3513, %v3525
      %v3527 = vpop.f32.mrf.mxu0
      %3528 = vdwg.mxu0
      %3529 = vmatpush.bf16.msra.mxu0 %v3358
      %3530 = vmatpush.bf16.msra.mxu0 %v3357
      %3531 = vmatpush.bf16.msra.mxu0 %v3356
      %3532 = vmatpush.bf16.msra.mxu0 %v3355
      %3533 = vmatpush.bf16.msra.mxu0 %v3354
      %3534 = vmatpush.bf16.msra.mxu0 %v3353
      %3535 = vmatpush.bf16.msra.mxu0 %v3352
      %3536 = vmatpush.bf16.msra.mxu0 %v3351
      %3537 = vmatmul.bf16.gmra.mxu0 %v3499
      %v3538 = vpop.f32.mrf.mxu0
      %v3539 = vadd.f32 0.0, %v3538
      %v3540 = vpop.f32.mrf.mxu0
      %3541 = vdwg.mxu0
      %3542 = vmatpush.bf16.msra.mxu0 %v3366
      %3543 = vmatpush.bf16.msra.mxu0 %v3365
      %3544 = vmatpush.bf16.msra.mxu0 %v3364
      %3545 = vmatpush.bf16.msra.mxu0 %v3363
      %3546 = vmatpush.bf16.msra.mxu0 %v3362
      %3547 = vmatpush.bf16.msra.mxu0 %v3361
      %3548 = vmatpush.bf16.msra.mxu0 %v3360
      %3549 = vmatpush.bf16.msra.mxu0 %v3359
      %3550 = vmatmul.bf16.gmra.mxu0 %v3500
      %v3551 = vpop.f32.mrf.mxu0
      %v3552 = vadd.f32 %v3539, %v3551
      %v3553 = vpop.f32.mrf.mxu0
      %3554 = vdwg.mxu0
      %v3555 = vrcp.pop %v3552
      %3557 = vset.pattern.permute.xlu0 0
      %3558 = vperm.xlu0 %3557, %v3555
      %v3559 = vpop.permute.xlu0 %3558
      %v3561 = vmul.f32 %v3526, %v3559
      %v3562 = vld [vmem:[%s10] sm:$0xf]
      %v3563 = vld [vmem:[%s10 + $0x4] sm:$0xf]
      %v3564 = vld [vmem:[%s10 + $0x8] sm:$0xf]
      %v3565 = vld [vmem:[%s10 + $0xc] sm:$0xf]
      %v3566 = vld [vmem:[%s10 + $0x10] sm:$0xf]
      %v3567 = vld [vmem:[%s10 + $0x14] sm:$0xf]
      %v3568 = vld [vmem:[%s10 + $0x18] sm:$0xf]
      %v3569 = vld [vmem:[%s10 + $0x1c] sm:$0xf]
      %v3570 = vld [vmem:[%s10 + $0x20] sm:$0xf]
      %v3571 = vld [vmem:[%s10 + $0x24] sm:$0xf]
      %v3572 = vld [vmem:[%s10 + $0x28] sm:$0xf]
      %v3573 = vld [vmem:[%s10 + $0x2c] sm:$0xf]
      %v3574 = vpack.c.bf16 %v3492, %v3491
      %v3575 = vpack.c.bf16 %v3494, %v3493
      %v3576 = vld [vmem:[%s11] sm:$0xf]
      %v3577 = vld [vmem:[%s11 + $0x4] sm:$0xf]
      %v3578 = vld [vmem:[%s11 + $0x8] sm:$0xf]
      %v3579 = vld [vmem:[%s11 + $0xc] sm:$0xf]
      %v3580 = vld [vmem:[%s11 + $0x10] sm:$0xf]
      %v3581 = vld [vmem:[%s11 + $0x14] sm:$0xf]
      %v3582 = vld [vmem:[%s11 + $0x18] sm:$0xf]
      %v3583 = vld [vmem:[%s11 + $0x1c] sm:$0xf]
      %v3584 = vld [vmem:[%s11 + $0x20] sm:$0xf]
      %v3585 = vld [vmem:[%s11 + $0x24] sm:$0xf]
      %v3586 = vld [vmem:[%s11 + $0x28] sm:$0xf]
      %v3587 = vld [vmem:[%s11 + $0x2c] sm:$0xf]
      %v3600 = vunpack.c.l.b16 %v3576
      %v3601 = vunpack.c.l.b16 %v3577
      %v3602 = vunpack.c.l.b16 %v3578
      %v3603 = vunpack.c.l.b16 %v3579
      %v3604 = vunpack.c.l.b16 %v3580
      %v3605 = vunpack.c.l.b16 %v3581
      %v3606 = vunpack.c.l.b16 %v3582
      %v3607 = vunpack.c.l.b16 %v3583
      %v3608 = vunpack.c.l.b16 %v3584
      %v3609 = vunpack.c.l.b16 %v3585
      %v3610 = vunpack.c.l.b16 %v3586
      %v3611 = vunpack.c.l.b16 %v3587
      %v3612 = vpack.c.b16 %v3601, %v3600
      %v3613 = vpack.c.b16 %v3603, %v3602
      %v3614 = vpack.c.b16 %v3605, %v3604
      %v3615 = vpack.c.b16 %v3607, %v3606
      %v3616 = vpack.c.b16 %v3609, %v3608
      %v3617 = vpack.c.b16 %v3611, %v3610
      %v3625 = vsel %vm666, %v3574, 0
      %v3628 = vsel %vm666, %v3575, 0
      %3630 = vmatpush.bf16.msra.mxu0 0
      %3631 = vmatpush.bf16.msra.mxu0 0
      %3632 = vmatpush.bf16.msra.mxu0 %v3617
      %3633 = vmatpush.bf16.msra.mxu0 %v3616
      %3634 = vmatpush.bf16.msra.mxu0 %v3615
      %3635 = vmatpush.bf16.msra.mxu0 %v3614
      %3636 = vmatpush.bf16.msra.mxu0 %v3613
      %3637 = vmatpush.bf16.msra.mxu0 %v3612
      %3638 = vmatmul.bf16.gmra.mxu0 %v3625
      %v3639 = vpop.f32.mrf.mxu0
      %v3640 = vadd.f32 0.0, %v3639
      %v3641 = vpop.f32.mrf.mxu0
      %v3642 = vadd.f32 0.0, %v3641
      %3643 = vmatmul.bf16.gmra.mxu0 %v3628
      %v3644 = vpop.f32.mrf.mxu0
      %v3645 = vadd.f32 0.0, %v3644
      %v3646 = vpop.f32.mrf.mxu0
      %v3647 = vadd.f32 0.0, %v3646
      %3648 = vdwg.mxu0
      %v3649 = vld [vmem:[%s3] sm:$0xf]
      %v3650 = vld [vmem:[%s3 + $0x4] sm:$0xf]
      %v3651 = vld [vmem:[%s3 + $0x8] sm:$0xf]
      %v3652 = vld [vmem:[%s3 + $0xc] sm:$0xf]
      %v3653 = vld [vmem:[%s3 + $0x10] sm:$0xf]
      %v3654 = vld [vmem:[%s3 + $0x14] sm:$0xf]
      %v3655 = vld [vmem:[%s3 + $0x18] sm:$0xf]
      %v3656 = vld [vmem:[%s3 + $0x1c] sm:$0xf]
      %v3657 = vld [vmem:[%s3 + $0x20] sm:$0xf]
      %v3658 = vld [vmem:[%s3 + $0x24] sm:$0xf]
      %v3659 = vld [vmem:[%s3 + $0x28] sm:$0xf]
      %v3660 = vld [vmem:[%s3 + $0x2c] sm:$0xf]
      %v3661 = vld [vmem:[%s3 + $0x30] sm:$0xf]
      %v3662 = vld [vmem:[%s3 + $0x34] sm:$0xf]
      %v3663 = vld [vmem:[%s3 + $0x38] sm:$0xf]
      %v3664 = vld [vmem:[%s3 + $0x3c] sm:$0xf]
      %v3665 = vld [vmem:[%s3 + $0x40] sm:$0xf]
      %v3666 = vld [vmem:[%s3 + $0x44] sm:$0xf]
      %v3667 = vld [vmem:[%s3 + $0x48] sm:$0xf]
      %v3668 = vld [vmem:[%s3 + $0x4c] sm:$0xf]
      %v3669 = vld [vmem:[%s3 + $0x50] sm:$0xf]
      %v3670 = vld [vmem:[%s3 + $0x54] sm:$0xf]
      %v3671 = vld [vmem:[%s3 + $0x58] sm:$0xf]
      %v3672 = vld [vmem:[%s3 + $0x5c] sm:$0xf]
      %v3673 = vld [vmem:[%s3 + $0x60] sm:$0xf]
      %v3674 = vld [vmem:[%s3 + $0x64] sm:$0xf]
      %v3675 = vld [vmem:[%s3 + $0x68] sm:$0xf]
      %v3676 = vld [vmem:[%s3 + $0x6c] sm:$0xf]
      %v3677 = vld [vmem:[%s3 + $0x70] sm:$0xf]
      %v3678 = vld [vmem:[%s3 + $0x74] sm:$0xf]
      %v3679 = vld [vmem:[%s3 + $0x78] sm:$0xf]
      %v3680 = vld [vmem:[%s3 + $0x7c] sm:$0xf]
      %v3681 = vpack.c.bf16 %v3642, %v3640
      %v3682 = vpack.c.bf16 %v3647, %v3645
      %v3715 = vunpack.c.l.b16 %v3649
      %v3716 = vunpack.c.l.b16 %v3650
      %v3717 = vunpack.c.l.b16 %v3651
      %v3718 = vunpack.c.l.b16 %v3652
      %v3719 = vunpack.c.l.b16 %v3653
      %v3720 = vunpack.c.l.b16 %v3654
      %v3721 = vunpack.c.l.b16 %v3655
      %v3722 = vunpack.c.l.b16 %v3656
      %v3723 = vunpack.c.l.b16 %v3657
      %v3724 = vunpack.c.l.b16 %v3658
      %v3725 = vunpack.c.l.b16 %v3659
      %v3726 = vunpack.c.l.b16 %v3660
      %v3727 = vunpack.c.l.b16 %v3661
      %v3728 = vunpack.c.l.b16 %v3662
      %v3729 = vunpack.c.l.b16 %v3663
      %v3730 = vunpack.c.l.b16 %v3664
      %v3731 = vunpack.c.l.b16 %v3665
      %v3732 = vunpack.c.l.b16 %v3666
      %v3733 = vunpack.c.l.b16 %v3667
      %v3734 = vunpack.c.l.b16 %v3668
      %v3735 = vunpack.c.l.b16 %v3669
      %v3736 = vunpack.c.l.b16 %v3670
      %v3737 = vunpack.c.l.b16 %v3671
      %v3738 = vunpack.c.l.b16 %v3672
      %v3739 = vunpack.c.l.b16 %v3673
      %v3740 = vunpack.c.l.b16 %v3674
      %v3741 = vunpack.c.l.b16 %v3675
      %v3742 = vunpack.c.l.b16 %v3676
      %v3743 = vunpack.c.l.b16 %v3677
      %v3744 = vunpack.c.l.b16 %v3678
      %v3745 = vunpack.c.l.b16 %v3679
      %v3746 = vunpack.c.l.b16 %v3680
      %v3747 = vpack.c.b16 %v3716, %v3715
      %v3748 = vpack.c.b16 %v3718, %v3717
      %v3749 = vpack.c.b16 %v3720, %v3719
      %v3750 = vpack.c.b16 %v3722, %v3721
      %v3751 = vpack.c.b16 %v3724, %v3723
      %v3752 = vpack.c.b16 %v3726, %v3725
      %v3753 = vpack.c.b16 %v3728, %v3727
      %v3754 = vpack.c.b16 %v3730, %v3729
      %v3755 = vpack.c.b16 %v3732, %v3731
      %v3756 = vpack.c.b16 %v3734, %v3733
      %v3757 = vpack.c.b16 %v3736, %v3735
      %v3758 = vpack.c.b16 %v3738, %v3737
      %v3759 = vpack.c.b16 %v3740, %v3739
      %v3760 = vpack.c.b16 %v3742, %v3741
      %v3761 = vpack.c.b16 %v3744, %v3743
      %v3762 = vpack.c.b16 %v3746, %v3745
      %vm3763 = vcmask 261120
      %v3765 = vsel %vm3763, %v3747, 0
      %v3768 = vsel %vm3763, %v3748, 0
      %v3771 = vsel %vm3763, %v3749, 0
      %v3774 = vsel %vm3763, %v3750, 0
      %v3777 = vsel %vm3763, %v3751, 0
      %v3780 = vsel %vm3763, %v3752, 0
      %v3783 = vsel %vm3763, %v3753, 0
      %v3786 = vsel %vm3763, %v3754, 0
      %v3789 = vsel %vm3763, %v3755, 0
      %v3792 = vsel %vm3763, %v3756, 0
      %v3795 = vsel %vm3763, %v3757, 0
      %v3798 = vsel %vm3763, %v3758, 0
      %v3801 = vsel %vm3763, %v3759, 0
      %v3804 = vsel %vm3763, %v3760, 0
      %v3807 = vsel %vm3763, %v3761, 0
      %v3810 = vsel %vm3763, %v3762, 0
      %3812 = vmatpush.bf16.msra.mxu0 0
      %3813 = vmatpush.bf16.msra.mxu0 0
      %3814 = vmatpush.bf16.msra.mxu0 0
      %3815 = vmatpush.bf16.msra.mxu0 0
      %3816 = vmatpush.bf16.msra.mxu0 0
      %3817 = vmatpush.bf16.msra.mxu0 0
      %3818 = vmatpush.bf16.msra.mxu0 %v3682
      %3819 = vmatpush.bf16.msra.mxu0 %v3681
      %3820 = vmatmul.bf16.gmra.mxu0 %v3765
      %v3821 = vpop.f32.mrf.mxu0
      %v3822 = vadd.f32 0.0, %v3821
      %v3823 = vpop.f32.mrf.mxu0
      %v3824 = vadd.f32 0.0, %v3823
      %3825 = vmatmul.bf16.gmra.mxu0 %v3768
      %v3826 = vpop.f32.mrf.mxu0
      %v3827 = vadd.f32 0.0, %v3826
      %v3828 = vpop.f32.mrf.mxu0
      %v3829 = vadd.f32 0.0, %v3828
      %3830 = vmatmul.bf16.gmra.mxu0 %v3771
      %v3831 = vpop.f32.mrf.mxu0
      %v3832 = vadd.f32 0.0, %v3831
      %v3833 = vpop.f32.mrf.mxu0
      %v3834 = vadd.f32 0.0, %v3833
      %3835 = vmatmul.bf16.gmra.mxu0 %v3774
      %v3836 = vpop.f32.mrf.mxu0
      %v3837 = vadd.f32 0.0, %v3836
      %v3838 = vpop.f32.mrf.mxu0
      %v3839 = vadd.f32 0.0, %v3838
      %3840 = vmatmul.bf16.gmra.mxu0 %v3777
      %v3841 = vpop.f32.mrf.mxu0
      %v3842 = vadd.f32 0.0, %v3841
      %v3843 = vpop.f32.mrf.mxu0
      %v3844 = vadd.f32 0.0, %v3843
      %3845 = vmatmul.bf16.gmra.mxu0 %v3780
      %v3846 = vpop.f32.mrf.mxu0
      %v3847 = vadd.f32 0.0, %v3846
      %v3848 = vpop.f32.mrf.mxu0
      %v3849 = vadd.f32 0.0, %v3848
      %3850 = vmatmul.bf16.gmra.mxu0 %v3783
      %v3851 = vpop.f32.mrf.mxu0
      %v3852 = vadd.f32 0.0, %v3851
      %v3853 = vpop.f32.mrf.mxu0
      %v3854 = vadd.f32 0.0, %v3853
      %3855 = vmatmul.bf16.gmra.mxu0 %v3786
      %v3856 = vpop.f32.mrf.mxu0
      %v3857 = vadd.f32 0.0, %v3856
      %v3858 = vpop.f32.mrf.mxu0
      %v3859 = vadd.f32 0.0, %v3858
      %3860 = vmatmul.bf16.gmra.mxu0 %v3789
      %v3861 = vpop.f32.mrf.mxu0
      %v3862 = vadd.f32 0.0, %v3861
      %v3863 = vpop.f32.mrf.mxu0
      %v3864 = vadd.f32 0.0, %v3863
      %3865 = vmatmul.bf16.gmra.mxu0 %v3792
      %v3866 = vpop.f32.mrf.mxu0
      %v3867 = vadd.f32 0.0, %v3866
      %v3868 = vpop.f32.mrf.mxu0
      %v3869 = vadd.f32 0.0, %v3868
      %3870 = vmatmul.bf16.gmra.mxu0 %v3795
      %v3871 = vpop.f32.mrf.mxu0
      %v3872 = vadd.f32 0.0, %v3871
      %v3873 = vpop.f32.mrf.mxu0
      %v3874 = vadd.f32 0.0, %v3873
      %3875 = vmatmul.bf16.gmra.mxu0 %v3798
      %v3876 = vpop.f32.mrf.mxu0
      %v3877 = vadd.f32 0.0, %v3876
      %v3878 = vpop.f32.mrf.mxu0
      %v3879 = vadd.f32 0.0, %v3878
      %3880 = vmatmul.bf16.gmra.mxu0 %v3801
      %v3881 = vpop.f32.mrf.mxu0
      %v3882 = vadd.f32 0.0, %v3881
      %v3883 = vpop.f32.mrf.mxu0
      %v3884 = vadd.f32 0.0, %v3883
      %3885 = vmatmul.bf16.gmra.mxu0 %v3804
      %v3886 = vpop.f32.mrf.mxu0
      %v3887 = vadd.f32 0.0, %v3886
      %v3888 = vpop.f32.mrf.mxu0
      %v3889 = vadd.f32 0.0, %v3888
      %3890 = vmatmul.bf16.gmra.mxu0 %v3807
      %v3891 = vpop.f32.mrf.mxu0
      %v3892 = vadd.f32 0.0, %v3891
      %v3893 = vpop.f32.mrf.mxu0
      %v3894 = vadd.f32 0.0, %v3893
      %3895 = vmatmul.bf16.gmra.mxu0 %v3810
      %v3896 = vpop.f32.mrf.mxu0
      %v3897 = vadd.f32 0.0, %v3896
      %v3898 = vpop.f32.mrf.mxu0
      %v3899 = vadd.f32 0.0, %v3898
      %3900 = vdwg.mxu0
      %v3913 = vunpack.c.l.b16 %v3562
      %v3914 = vunpack.c.l.b16 %v3563
      %v3915 = vunpack.c.l.b16 %v3564
      %v3916 = vunpack.c.l.b16 %v3565
      %v3917 = vunpack.c.l.b16 %v3566
      %v3918 = vunpack.c.l.b16 %v3567
      %v3919 = vunpack.c.l.b16 %v3568
      %v3920 = vunpack.c.l.b16 %v3569
      %v3921 = vunpack.c.l.b16 %v3570
      %v3922 = vunpack.c.l.b16 %v3571
      %v3923 = vunpack.c.l.b16 %v3572
      %v3924 = vunpack.c.l.b16 %v3573
      %v3925 = vpack.c.b16 %v3914, %v3913
      %v3926 = vpack.c.b16 %v3916, %v3915
      %v3927 = vpack.c.b16 %v3918, %v3917
      %v3928 = vpack.c.b16 %v3920, %v3919
      %v3929 = vpack.c.b16 %v3922, %v3921
      %v3930 = vpack.c.b16 %v3924, %v3923
      %v3938 = vsel %vm666, %v3127, 0
      %v3941 = vsel %vm666, %v3128, 0
      %v3944 = vsel %vm666, %v3129, 0
      %v3947 = vsel %vm666, %v3130, 0
      %v3950 = vsel %vm666, %v3131, 0
      %v3953 = vsel %vm666, %v3132, 0
      %v3956 = vsel %vm666, %v3133, 0
      %v3959 = vsel %vm666, %v3134, 0
      %v3962 = vsel %vm666, %v3135, 0
      %v3965 = vsel %vm666, %v3136, 0
      %v3968 = vsel %vm666, %v3137, 0
      %v3971 = vsel %vm666, %v3138, 0
      %v3974 = vsel %vm666, %v3139, 0
      %v3977 = vsel %vm666, %v3140, 0
      %v3980 = vsel %vm666, %v3141, 0
      %v3983 = vsel %vm666, %v3142, 0
      %3985 = vmatpush.bf16.msra.mxu0 0
      %3986 = vmatpush.bf16.msra.mxu0 0
      %3987 = vmatpush.bf16.msra.mxu0 %v3930
      %3988 = vmatpush.bf16.msra.mxu0 %v3929
      %3989 = vmatpush.bf16.msra.mxu0 %v3928
      %3990 = vmatpush.bf16.msra.mxu0 %v3927
      %3991 = vmatpush.bf16.msra.mxu0 %v3926
      %3992 = vmatpush.bf16.msra.mxu0 %v3925
      %3993 = vmatmul.bf16.gmra.mxu0 %v3938
      %v3994 = vpop.f32.mrf.mxu0
      %v3995 = vadd.f32 %v3822, %v3994
      %v3996 = vpop.f32.mrf.mxu0
      %v3997 = vadd.f32 %v3824, %v3996
      %3998 = vmatmul.bf16.gmra.mxu0 %v3941
      %v3999 = vpop.f32.mrf.mxu0
      %v4000 = vadd.f32 %v3827, %v3999
      %v4001 = vpop.f32.mrf.mxu0
      %v4002 = vadd.f32 %v3829, %v4001
      %4003 = vmatmul.bf16.gmra.mxu0 %v3944
      %v4004 = vpop.f32.mrf.mxu0
      %v4005 = vadd.f32 %v3832, %v4004
      %v4006 = vpop.f32.mrf.mxu0
      %v4007 = vadd.f32 %v3834, %v4006
      %4008 = vmatmul.bf16.gmra.mxu0 %v3947
      %v4009 = vpop.f32.mrf.mxu0
      %v4010 = vadd.f32 %v3837, %v4009
      %v4011 = vpop.f32.mrf.mxu0
      %v4012 = vadd.f32 %v3839, %v4011
      %4013 = vmatmul.bf16.gmra.mxu0 %v3950
      %v4014 = vpop.f32.mrf.mxu0
      %v4015 = vadd.f32 %v3842, %v4014
      %v4016 = vpop.f32.mrf.mxu0
      %v4017 = vadd.f32 %v3844, %v4016
      %4018 = vmatmul.bf16.gmra.mxu0 %v3953
      %v4019 = vpop.f32.mrf.mxu0
      %v4020 = vadd.f32 %v3847, %v4019
      %v4021 = vpop.f32.mrf.mxu0
      %v4022 = vadd.f32 %v3849, %v4021
      %4023 = vmatmul.bf16.gmra.mxu0 %v3956
      %v4024 = vpop.f32.mrf.mxu0
      %v4025 = vadd.f32 %v3852, %v4024
      %v4026 = vpop.f32.mrf.mxu0
      %v4027 = vadd.f32 %v3854, %v4026
      %4028 = vmatmul.bf16.gmra.mxu0 %v3959
      %v4029 = vpop.f32.mrf.mxu0
      %v4030 = vadd.f32 %v3857, %v4029
      %v4031 = vpop.f32.mrf.mxu0
      %v4032 = vadd.f32 %v3859, %v4031
      %4033 = vmatmul.bf16.gmra.mxu0 %v3962
      %v4034 = vpop.f32.mrf.mxu0
      %v4035 = vadd.f32 %v3862, %v4034
      %v4036 = vpop.f32.mrf.mxu0
      %v4037 = vadd.f32 %v3864, %v4036
      %4038 = vmatmul.bf16.gmra.mxu0 %v3965
      %v4039 = vpop.f32.mrf.mxu0
      %v4040 = vadd.f32 %v3867, %v4039
      %v4041 = vpop.f32.mrf.mxu0
      %v4042 = vadd.f32 %v3869, %v4041
      %4043 = vmatmul.bf16.gmra.mxu0 %v3968
      %v4044 = vpop.f32.mrf.mxu0
      %v4045 = vadd.f32 %v3872, %v4044
      %v4046 = vpop.f32.mrf.mxu0
      %v4047 = vadd.f32 %v3874, %v4046
      %4048 = vmatmul.bf16.gmra.mxu0 %v3971
      %v4049 = vpop.f32.mrf.mxu0
      %v4050 = vadd.f32 %v3877, %v4049
      %v4051 = vpop.f32.mrf.mxu0
      %v4052 = vadd.f32 %v3879, %v4051
      %4053 = vmatmul.bf16.gmra.mxu0 %v3974
      %v4054 = vpop.f32.mrf.mxu0
      %v4055 = vadd.f32 %v3882, %v4054
      %v4056 = vpop.f32.mrf.mxu0
      %v4057 = vadd.f32 %v3884, %v4056
      %4058 = vmatmul.bf16.gmra.mxu0 %v3977
      %v4059 = vpop.f32.mrf.mxu0
      %v4060 = vadd.f32 %v3887, %v4059
      %v4061 = vpop.f32.mrf.mxu0
      %v4062 = vadd.f32 %v3889, %v4061
      %4063 = vmatmul.bf16.gmra.mxu0 %v3980
      %v4064 = vpop.f32.mrf.mxu0
      %v4065 = vadd.f32 %v3892, %v4064
      %v4066 = vpop.f32.mrf.mxu0
      %v4067 = vadd.f32 %v3894, %v4066
      %4068 = vmatmul.bf16.gmra.mxu0 %v3983
      %v4069 = vpop.f32.mrf.mxu0
      %v4070 = vadd.f32 %v3897, %v4069
      %v4071 = vpop.f32.mrf.mxu0
      %v4072 = vadd.f32 %v3899, %v4071
      %4073 = vdwg.mxu0
      %v4074 = vpack.c.bf16 %v3561, %v3561
      %v4075 = vld [vmem:[%s12] sm:$0xf]
      %v4076 = vld [vmem:[%s12 + $0x4] sm:$0xf]
      %v4077 = vld [vmem:[%s12 + $0x8] sm:$0xf]
      %v4078 = vld [vmem:[%s12 + $0xc] sm:$0xf]
      %v4079 = vld [vmem:[%s12 + $0x10] sm:$0xf]
      %v4080 = vld [vmem:[%s12 + $0x14] sm:$0xf]
      %v4081 = vld [vmem:[%s12 + $0x18] sm:$0xf]
      %v4082 = vld [vmem:[%s12 + $0x1c] sm:$0xf]
      %v4083 = vld [vmem:[%s12 + $0x20] sm:$0xf]
      %v4084 = vld [vmem:[%s12 + $0x24] sm:$0xf]
      %v4085 = vld [vmem:[%s12 + $0x28] sm:$0xf]
      %v4086 = vld [vmem:[%s12 + $0x2c] sm:$0xf]
      %v4099 = vunpack.c.l.b16 %v4075
      %v4100 = vunpack.c.l.b16 %v4076
      %v4101 = vunpack.c.l.b16 %v4077
      %v4102 = vunpack.c.l.b16 %v4078
      %v4103 = vunpack.c.l.b16 %v4079
      %v4104 = vunpack.c.l.b16 %v4080
      %v4105 = vunpack.c.l.b16 %v4081
      %v4106 = vunpack.c.l.b16 %v4082
      %v4107 = vunpack.c.l.b16 %v4083
      %v4108 = vunpack.c.l.b16 %v4084
      %v4109 = vunpack.c.l.b16 %v4085
      %v4110 = vunpack.c.l.b16 %v4086
      %v4111 = vpack.c.b16 %v4100, %v4099
      %v4112 = vpack.c.b16 %v4102, %v4101
      %v4113 = vpack.c.b16 %v4104, %v4103
      %v4114 = vpack.c.b16 %v4106, %v4105
      %v4115 = vpack.c.b16 %v4108, %v4107
      %v4116 = vpack.c.b16 %v4110, %v4109
      %v4124 = vsel %vm666, %v4074, 0
      %4126 = vmatpush.bf16.msra.mxu0 0
      %4127 = vmatpush.bf16.msra.mxu0 0
      %4128 = vmatpush.bf16.msra.mxu0 %v4116
      %4129 = vmatpush.bf16.msra.mxu0 %v4115
      %4130 = vmatpush.bf16.msra.mxu0 %v4114
      %4131 = vmatpush.bf16.msra.mxu0 %v4113
      %4132 = vmatpush.bf16.msra.mxu0 %v4112
      %4133 = vmatpush.bf16.msra.mxu0 %v4111
      %4134 = vmatmul.bf16.gmra.mxu0 %v4124
      %v4135 = vpop.f32.mrf.mxu0
      %v4136 = vadd.f32 0.0, %v4135
      %v4137 = vpop.f32.mrf.mxu0
      %4138 = vdwg.mxu0
      %v4139 = vld [vmem:[%s5] sm:$0xf]
      %v4140 = vld [vmem:[%s5 + $0x4] sm:$0xf]
      %v4141 = vld [vmem:[%s5 + $0x8] sm:$0xf]
      %v4142 = vld [vmem:[%s5 + $0xc] sm:$0xf]
      %v4143 = vld [vmem:[%s5 + $0x10] sm:$0xf]
      %v4144 = vld [vmem:[%s5 + $0x14] sm:$0xf]
      %v4145 = vld [vmem:[%s5 + $0x18] sm:$0xf]
      %v4146 = vld [vmem:[%s5 + $0x1c] sm:$0xf]
      %v4147 = vld [vmem:[%s5 + $0x20] sm:$0xf]
      %v4148 = vld [vmem:[%s5 + $0x24] sm:$0xf]
      %v4149 = vld [vmem:[%s5 + $0x28] sm:$0xf]
      %v4150 = vld [vmem:[%s5 + $0x2c] sm:$0xf]
      %v4151 = vld [vmem:[%s5 + $0x30] sm:$0xf]
      %v4152 = vld [vmem:[%s5 + $0x34] sm:$0xf]
      %v4153 = vld [vmem:[%s5 + $0x38] sm:$0xf]
      %v4154 = vld [vmem:[%s5 + $0x3c] sm:$0xf]
      %v4155 = vld [vmem:[%s5 + $0x40] sm:$0xf]
      %v4156 = vld [vmem:[%s5 + $0x44] sm:$0xf]
      %v4157 = vld [vmem:[%s5 + $0x48] sm:$0xf]
      %v4158 = vld [vmem:[%s5 + $0x4c] sm:$0xf]
      %v4159 = vld [vmem:[%s5 + $0x50] sm:$0xf]
      %v4160 = vld [vmem:[%s5 + $0x54] sm:$0xf]
      %v4161 = vld [vmem:[%s5 + $0x58] sm:$0xf]
      %v4162 = vld [vmem:[%s5 + $0x5c] sm:$0xf]
      %v4163 = vld [vmem:[%s5 + $0x60] sm:$0xf]
      %v4164 = vld [vmem:[%s5 + $0x64] sm:$0xf]
      %v4165 = vld [vmem:[%s5 + $0x68] sm:$0xf]
      %v4166 = vld [vmem:[%s5 + $0x6c] sm:$0xf]
      %v4167 = vld [vmem:[%s5 + $0x70] sm:$0xf]
      %v4168 = vld [vmem:[%s5 + $0x74] sm:$0xf]
      %v4169 = vld [vmem:[%s5 + $0x78] sm:$0xf]
      %v4170 = vld [vmem:[%s5 + $0x7c] sm:$0xf]
      %v4171 = vpack.c.bf16 %v4136, %v4136
      %v4204 = vunpack.c.l.b16 %v4139
      %v4205 = vunpack.c.l.b16 %v4140
      %v4206 = vunpack.c.l.b16 %v4141
      %v4207 = vunpack.c.l.b16 %v4142
      %v4208 = vunpack.c.l.b16 %v4143
      %v4209 = vunpack.c.l.b16 %v4144
      %v4210 = vunpack.c.l.b16 %v4145
      %v4211 = vunpack.c.l.b16 %v4146
      %v4212 = vunpack.c.l.b16 %v4147
      %v4213 = vunpack.c.l.b16 %v4148
      %v4214 = vunpack.c.l.b16 %v4149
      %v4215 = vunpack.c.l.b16 %v4150
      %v4216 = vunpack.c.l.b16 %v4151
      %v4217 = vunpack.c.l.b16 %v4152
      %v4218 = vunpack.c.l.b16 %v4153
      %v4219 = vunpack.c.l.b16 %v4154
      %v4220 = vunpack.c.l.b16 %v4155
      %v4221 = vunpack.c.l.b16 %v4156
      %v4222 = vunpack.c.l.b16 %v4157
      %v4223 = vunpack.c.l.b16 %v4158
      %v4224 = vunpack.c.l.b16 %v4159
      %v4225 = vunpack.c.l.b16 %v4160
      %v4226 = vunpack.c.l.b16 %v4161
      %v4227 = vunpack.c.l.b16 %v4162
      %v4228 = vunpack.c.l.b16 %v4163
      %v4229 = vunpack.c.l.b16 %v4164
      %v4230 = vunpack.c.l.b16 %v4165
      %v4231 = vunpack.c.l.b16 %v4166
      %v4232 = vunpack.c.l.b16 %v4167
      %v4233 = vunpack.c.l.b16 %v4168
      %v4234 = vunpack.c.l.b16 %v4169
      %v4235 = vunpack.c.l.b16 %v4170
      %v4236 = vpack.c.b16 %v4205, %v4204
      %v4237 = vpack.c.b16 %v4207, %v4206
      %v4238 = vpack.c.b16 %v4209, %v4208
      %v4239 = vpack.c.b16 %v4211, %v4210
      %v4240 = vpack.c.b16 %v4213, %v4212
      %v4241 = vpack.c.b16 %v4215, %v4214
      %v4242 = vpack.c.b16 %v4217, %v4216
      %v4243 = vpack.c.b16 %v4219, %v4218
      %v4244 = vpack.c.b16 %v4221, %v4220
      %v4245 = vpack.c.b16 %v4223, %v4222
      %v4246 = vpack.c.b16 %v4225, %v4224
      %v4247 = vpack.c.b16 %v4227, %v4226
      %v4248 = vpack.c.b16 %v4229, %v4228
      %v4249 = vpack.c.b16 %v4231, %v4230
      %v4250 = vpack.c.b16 %v4233, %v4232
      %v4251 = vpack.c.b16 %v4235, %v4234
      %vm4252 = vcmask 64512
      %v4254 = vsel %vm4252, %v4236, 0
      %v4257 = vsel %vm4252, %v4237, 0
      %v4260 = vsel %vm4252, %v4238, 0
      %v4263 = vsel %vm4252, %v4239, 0
      %v4266 = vsel %vm4252, %v4240, 0
      %v4269 = vsel %vm4252, %v4241, 0
      %v4272 = vsel %vm4252, %v4242, 0
      %v4275 = vsel %vm4252, %v4243, 0
      %v4278 = vsel %vm4252, %v4244, 0
      %v4281 = vsel %vm4252, %v4245, 0
      %v4284 = vsel %vm4252, %v4246, 0
      %v4287 = vsel %vm4252, %v4247, 0
      %v4290 = vsel %vm4252, %v4248, 0
      %v4293 = vsel %vm4252, %v4249, 0
      %v4296 = vsel %vm4252, %v4250, 0
      %v4299 = vsel %vm4252, %v4251, 0
      %vm4301 = vcmask 1043456
      %v4303 = vsel %vm4301, %v4171, 0
      %4305 = vmatpush.bf16.msra.mxu0 0
      %4306 = vmatpush.bf16.msra.mxu0 0
      %4307 = vmatpush.bf16.msra.mxu0 0
      %4308 = vmatpush.bf16.msra.mxu0 0
      %4309 = vmatpush.bf16.msra.mxu0 0
      %4310 = vmatpush.bf16.msra.mxu0 0
      %4311 = vmatpush.bf16.msra.mxu0 0
      %4312 = vmatpush.bf16.msra.mxu0 %v4303
      %4313 = vmatmul.bf16.gmra.mxu0 %v4254
      %v4314 = vpop.f32.mrf.mxu0
      %v4315 = vadd.f32 0.0, %v4314
      %v4316 = vpop.f32.mrf.mxu0
      %v4317 = vadd.f32 0.0, %v4316
      %4318 = vmatmul.bf16.gmra.mxu0 %v4257
      %v4319 = vpop.f32.mrf.mxu0
      %v4320 = vadd.f32 0.0, %v4319
      %v4321 = vpop.f32.mrf.mxu0
      %v4322 = vadd.f32 0.0, %v4321
      %4323 = vmatmul.bf16.gmra.mxu0 %v4260
      %v4324 = vpop.f32.mrf.mxu0
      %v4325 = vadd.f32 0.0, %v4324
      %v4326 = vpop.f32.mrf.mxu0
      %v4327 = vadd.f32 0.0, %v4326
      %4328 = vmatmul.bf16.gmra.mxu0 %v4263
      %v4329 = vpop.f32.mrf.mxu0
      %v4330 = vadd.f32 0.0, %v4329
      %v4331 = vpop.f32.mrf.mxu0
      %v4332 = vadd.f32 0.0, %v4331
      %4333 = vmatmul.bf16.gmra.mxu0 %v4266
      %v4334 = vpop.f32.mrf.mxu0
      %v4335 = vadd.f32 0.0, %v4334
      %v4336 = vpop.f32.mrf.mxu0
      %v4337 = vadd.f32 0.0, %v4336
      %4338 = vmatmul.bf16.gmra.mxu0 %v4269
      %v4339 = vpop.f32.mrf.mxu0
      %v4340 = vadd.f32 0.0, %v4339
      %v4341 = vpop.f32.mrf.mxu0
      %v4342 = vadd.f32 0.0, %v4341
      %4343 = vmatmul.bf16.gmra.mxu0 %v4272
      %v4344 = vpop.f32.mrf.mxu0
      %v4345 = vadd.f32 0.0, %v4344
      %v4346 = vpop.f32.mrf.mxu0
      %v4347 = vadd.f32 0.0, %v4346
      %4348 = vmatmul.bf16.gmra.mxu0 %v4275
      %v4349 = vpop.f32.mrf.mxu0
      %v4350 = vadd.f32 0.0, %v4349
      %v4351 = vpop.f32.mrf.mxu0
      %v4352 = vadd.f32 0.0, %v4351
      %4353 = vmatmul.bf16.gmra.mxu0 %v4278
      %v4354 = vpop.f32.mrf.mxu0
      %v4355 = vadd.f32 0.0, %v4354
      %v4356 = vpop.f32.mrf.mxu0
      %v4357 = vadd.f32 0.0, %v4356
      %4358 = vmatmul.bf16.gmra.mxu0 %v4281
      %v4359 = vpop.f32.mrf.mxu0
      %v4360 = vadd.f32 0.0, %v4359
      %v4361 = vpop.f32.mrf.mxu0
      %v4362 = vadd.f32 0.0, %v4361
      %4363 = vmatmul.bf16.gmra.mxu0 %v4284
      %v4364 = vpop.f32.mrf.mxu0
      %v4365 = vadd.f32 0.0, %v4364
      %v4366 = vpop.f32.mrf.mxu0
      %v4367 = vadd.f32 0.0, %v4366
      %4368 = vmatmul.bf16.gmra.mxu0 %v4287
      %v4369 = vpop.f32.mrf.mxu0
      %v4370 = vadd.f32 0.0, %v4369
      %v4371 = vpop.f32.mrf.mxu0
      %v4372 = vadd.f32 0.0, %v4371
      %4373 = vmatmul.bf16.gmra.mxu0 %v4290
      %v4374 = vpop.f32.mrf.mxu0
      %v4375 = vadd.f32 0.0, %v4374
      %v4376 = vpop.f32.mrf.mxu0
      %v4377 = vadd.f32 0.0, %v4376
      %4378 = vmatmul.bf16.gmra.mxu0 %v4293
      %v4379 = vpop.f32.mrf.mxu0
      %v4380 = vadd.f32 0.0, %v4379
      %v4381 = vpop.f32.mrf.mxu0
      %v4382 = vadd.f32 0.0, %v4381
      %4383 = vmatmul.bf16.gmra.mxu0 %v4296
      %v4384 = vpop.f32.mrf.mxu0
      %v4385 = vadd.f32 0.0, %v4384
      %v4386 = vpop.f32.mrf.mxu0
      %v4387 = vadd.f32 0.0, %v4386
      %4388 = vmatmul.bf16.gmra.mxu0 %v4299
      %v4389 = vpop.f32.mrf.mxu0
      %v4390 = vadd.f32 0.0, %v4389
      %v4391 = vpop.f32.mrf.mxu0
      %v4392 = vadd.f32 0.0, %v4391
      %4393 = vdwg.mxu0
      %v4394 = vadd.f32 %v3995, %v4315
      %v4395 = vadd.f32 %v3997, %v4317
      %v4396 = vadd.f32 %v4000, %v4320
      %v4397 = vadd.f32 %v4002, %v4322
      %v4398 = vadd.f32 %v4005, %v4325
      %v4399 = vadd.f32 %v4007, %v4327
      %v4400 = vadd.f32 %v4010, %v4330
      %v4401 = vadd.f32 %v4012, %v4332
      %v4402 = vadd.f32 %v4015, %v4335
      %v4403 = vadd.f32 %v4017, %v4337
      %v4404 = vadd.f32 %v4020, %v4340
      %v4405 = vadd.f32 %v4022, %v4342
      %v4406 = vadd.f32 %v4025, %v4345
      %v4407 = vadd.f32 %v4027, %v4347
      %v4408 = vadd.f32 %v4030, %v4350
      %v4409 = vadd.f32 %v4032, %v4352
      %v4410 = vadd.f32 %v4035, %v4355
      %v4411 = vadd.f32 %v4037, %v4357
      %v4412 = vadd.f32 %v4040, %v4360
      %v4413 = vadd.f32 %v4042, %v4362
      %v4414 = vadd.f32 %v4045, %v4365
      %v4415 = vadd.f32 %v4047, %v4367
      %v4416 = vadd.f32 %v4050, %v4370
      %v4417 = vadd.f32 %v4052, %v4372
      %v4418 = vadd.f32 %v4055, %v4375
      %v4419 = vadd.f32 %v4057, %v4377
      %v4420 = vadd.f32 %v4060, %v4380
      %v4421 = vadd.f32 %v4062, %v4382
      %v4422 = vadd.f32 %v4065, %v4385
      %v4423 = vadd.f32 %v4067, %v4387
      %v4424 = vadd.f32 %v4070, %v4390
      %v4425 = vadd.f32 %v4072, %v4392
      %v4426 = vld [vmem:[%s13] sm:$0x1]
      %v4428 = vperm.slane %v4426, 0
      %v4430 = vadd.f32 %v4394, %v4428
      %v4431 = vadd.f32 %v4395, %v4428
      %v4432 = vadd.f32 %v4396, %v4428
      %v4433 = vadd.f32 %v4397, %v4428
      %v4434 = vadd.f32 %v4398, %v4428
      %v4435 = vadd.f32 %v4399, %v4428
      %v4436 = vadd.f32 %v4400, %v4428
      %v4437 = vadd.f32 %v4401, %v4428
      %v4438 = vadd.f32 %v4402, %v4428
      %v4439 = vadd.f32 %v4403, %v4428
      %v4440 = vadd.f32 %v4404, %v4428
      %v4441 = vadd.f32 %v4405, %v4428
      %v4442 = vadd.f32 %v4406, %v4428
      %v4443 = vadd.f32 %v4407, %v4428
      %v4444 = vadd.f32 %v4408, %v4428
      %v4445 = vadd.f32 %v4409, %v4428
      %v4446 = vadd.f32 %v4410, %v4428
      %v4447 = vadd.f32 %v4411, %v4428
      %v4448 = vadd.f32 %v4412, %v4428
      %v4449 = vadd.f32 %v4413, %v4428
      %v4450 = vadd.f32 %v4414, %v4428
      %v4451 = vadd.f32 %v4415, %v4428
      %v4452 = vadd.f32 %v4416, %v4428
      %v4453 = vadd.f32 %v4417, %v4428
      %v4454 = vadd.f32 %v4418, %v4428
      %v4455 = vadd.f32 %v4419, %v4428
      %v4456 = vadd.f32 %v4420, %v4428
      %v4457 = vadd.f32 %v4421, %v4428
      %v4458 = vadd.f32 %v4422, %v4428
      %v4459 = vadd.f32 %v4423, %v4428
      %v4460 = vadd.f32 %v4424, %v4428
      %v4461 = vadd.f32 %v4425, %v4428
      %v4462 = vmul.f32 %v4430, 0.5
      %v4463 = vmul.f32 %v4431, 0.5
      %v4464 = vmul.f32 %v4432, 0.5
      %v4465 = vmul.f32 %v4433, 0.5
      %v4466 = vmul.f32 %v4434, 0.5
      %v4467 = vmul.f32 %v4435, 0.5
      %v4468 = vmul.f32 %v4436, 0.5
      %v4469 = vmul.f32 %v4437, 0.5
      %v4470 = vmul.f32 %v4438, 0.5
      %v4471 = vmul.f32 %v4439, 0.5
      %v4472 = vmul.f32 %v4440, 0.5
      %v4473 = vmul.f32 %v4441, 0.5
      %v4474 = vmul.f32 %v4442, 0.5
      %v4475 = vmul.f32 %v4443, 0.5
      %v4476 = vmul.f32 %v4444, 0.5
      %v4477 = vmul.f32 %v4445, 0.5
      %v4478 = vmul.f32 %v4446, 0.5
      %v4479 = vmul.f32 %v4447, 0.5
      %v4480 = vmul.f32 %v4448, 0.5
      %v4481 = vmul.f32 %v4449, 0.5
      %v4482 = vmul.f32 %v4450, 0.5
      %v4483 = vmul.f32 %v4451, 0.5
      %v4484 = vmul.f32 %v4452, 0.5
      %v4485 = vmul.f32 %v4453, 0.5
      %v4486 = vmul.f32 %v4454, 0.5
      %v4487 = vmul.f32 %v4455, 0.5
      %v4488 = vmul.f32 %v4456, 0.5
      %v4489 = vmul.f32 %v4457, 0.5
      %v4490 = vmul.f32 %v4458, 0.5
      %v4491 = vmul.f32 %v4459, 0.5
      %v4492 = vmul.f32 %v4460, 0.5
      %v4493 = vmul.f32 %v4461, 0.5
      %v4494 = vmul.f32 %v4430, 0.70710677
      %v4495 = vmul.f32 %v4431, 0.70710677
      %v4496 = vmul.f32 %v4432, 0.70710677
      %v4497 = vmul.f32 %v4433, 0.70710677
      %v4498 = vmul.f32 %v4434, 0.70710677
      %v4499 = vmul.f32 %v4435, 0.70710677
      %v4500 = vmul.f32 %v4436, 0.70710677
      %v4501 = vmul.f32 %v4437, 0.70710677
      %v4502 = vmul.f32 %v4438, 0.70710677
      %v4503 = vmul.f32 %v4439, 0.70710677
      %v4504 = vmul.f32 %v4440, 0.70710677
      %v4505 = vmul.f32 %v4441, 0.70710677
      %v4506 = vmul.f32 %v4442, 0.70710677
      %v4507 = vmul.f32 %v4443, 0.70710677
      %v4508 = vmul.f32 %v4444, 0.70710677
      %v4509 = vmul.f32 %v4445, 0.70710677
      %v4510 = vmul.f32 %v4446, 0.70710677
      %v4511 = vmul.f32 %v4447, 0.70710677
      %v4512 = vmul.f32 %v4448, 0.70710677
      %v4513 = vmul.f32 %v4449, 0.70710677
      %v4514 = vmul.f32 %v4450, 0.70710677
      %v4515 = vmul.f32 %v4451, 0.70710677
      %v4516 = vmul.f32 %v4452, 0.70710677
      %v4517 = vmul.f32 %v4453, 0.70710677
      %v4518 = vmul.f32 %v4454, 0.70710677
      %v4519 = vmul.f32 %v4455, 0.70710677
      %v4520 = vmul.f32 %v4456, 0.70710677
      %v4521 = vmul.f32 %v4457, 0.70710677
      %v4522 = vmul.f32 %v4458, 0.70710677
      %v4523 = vmul.f32 %v4459, 0.70710677
      %v4524 = vmul.f32 %v4460, 0.70710677
      %v4525 = vmul.f32 %v4461, 0.70710677
      %v4526 = vmul.f32 %v4494, %v4494
      %v4527 = vmin.f32 16.0, %v4526
      %v4528 = vmul.f32 %v4527, 2.1237322e-06
      %v4529 = vadd.f32 %v4528, 0.00028619796
      %v4530 = vmul.f32 %v4527, %v4529
      %v4531 = vadd.f32 %v4530, 0.0036580483
      %v4532 = vmul.f32 %v4527, %v4531
      %v4533 = vadd.f32 %v4532, 0.05243302
      %v4534 = vmul.f32 %v4527, %v4533
      %v4535 = vadd.f32 %v4534, 0.18741608
      %v4536 = vmul.f32 %v4527, %v4535
      %v4537 = vadd.f32 %v4536, 1.1283791
      %v4538 = vmul.f32 %v4494, %v4537
      %v4539 = vmul.f32 %v4527, 3.8918573e-05
      %v4540 = vadd.f32 %v4539, 0.001143296
      %v4541 = vmul.f32 %v4527, %v4540
      %v4542 = vadd.f32 %v4541, 0.014752088
      %v4543 = vmul.f32 %v4527, %v4542
      %v4544 = vadd.f32 %v4543, 0.112945676
      %v4545 = vmul.f32 %v4527, %v4544
      %v4546 = vadd.f32 %v4545, 0.4994258
      %v4547 = vmul.f32 %v4527, %v4546
      %v4548 = vadd.f32 %v4547, 1.0
      %v4549 = vrcp.pop %v4548
      %v4550 = vmul.f32 %v4548, %v4549
      %v4551 = vsub.f32 1.0, %v4550
      %v4552 = vmul.f32 %v4549, %v4551
      %v4553 = vadd.f32 %v4549, %v4552
      %vm4554 = vweird.f32 %v4548
      %vm4555 = vweird.f32 %v4549
      %vm4556 = vmor %vm4554, %vm4555
      %v4557 = vsel %vm4556, %v4549, %v4553
      %v4558 = vand.u32 2147483647, %v4548
      %vm4559 = vcmp.eq.f32.partialorder %v4558, 8.507059e+37
      %v4560 = vand.u32 %v4548, 2147483648
      %v4561 = vor.u32 1.1754944e-38, %v4560
      %v4562 = vsel %vm4559, %v4561, %v4557
      %v4563 = vmul.f32 %v4538, %v4562
      %v4564 = vmin.f32 %v4563, 1.0
      %v4565 = vmax.f32 %v4564, -1.0
      %v4566 = vmul.f32 %v4495, %v4495
      %v4567 = vmin.f32 16.0, %v4566
      %v4568 = vmul.f32 %v4567, 2.1237322e-06
      %v4569 = vadd.f32 %v4568, 0.00028619796
      %v4570 = vmul.f32 %v4567, %v4569
      %v4571 = vadd.f32 %v4570, 0.0036580483
      %v4572 = vmul.f32 %v4567, %v4571
      %v4573 = vadd.f32 %v4572, 0.05243302
      %v4574 = vmul.f32 %v4567, %v4573
      %v4575 = vadd.f32 %v4574, 0.18741608
      %v4576 = vmul.f32 %v4567, %v4575
      %v4577 = vadd.f32 %v4576, 1.1283791
      %v4578 = vmul.f32 %v4495, %v4577
      %v4579 = vmul.f32 %v4567, 3.8918573e-05
      %v4580 = vadd.f32 %v4579, 0.001143296
      %v4581 = vmul.f32 %v4567, %v4580
      %v4582 = vadd.f32 %v4581, 0.014752088
      %v4583 = vmul.f32 %v4567, %v4582
      %v4584 = vadd.f32 %v4583, 0.112945676
      %v4585 = vmul.f32 %v4567, %v4584
      %v4586 = vadd.f32 %v4585, 0.4994258
      %v4587 = vmul.f32 %v4567, %v4586
      %v4588 = vadd.f32 %v4587, 1.0
      %v4589 = vrcp.pop %v4588
      %v4590 = vmul.f32 %v4588, %v4589
      %v4591 = vsub.f32 1.0, %v4590
      %v4592 = vmul.f32 %v4589, %v4591
      %v4593 = vadd.f32 %v4589, %v4592
      %vm4594 = vweird.f32 %v4588
      %vm4595 = vweird.f32 %v4589
      %vm4596 = vmor %vm4594, %vm4595
      %v4597 = vsel %vm4596, %v4589, %v4593
      %v4598 = vand.u32 2147483647, %v4588
      %vm4599 = vcmp.eq.f32.partialorder %v4598, 8.507059e+37
      %v4600 = vand.u32 %v4588, 2147483648
      %v4601 = vor.u32 1.1754944e-38, %v4600
      %v4602 = vsel %vm4599, %v4601, %v4597
      %v4603 = vmul.f32 %v4578, %v4602
      %v4604 = vmin.f32 %v4603, 1.0
      %v4605 = vmax.f32 %v4604, -1.0
      %v4606 = vmul.f32 %v4496, %v4496
      %v4607 = vmin.f32 16.0, %v4606
      %v4608 = vmul.f32 %v4607, 2.1237322e-06
      %v4609 = vadd.f32 %v4608, 0.00028619796
      %v4610 = vmul.f32 %v4607, %v4609
      %v4611 = vadd.f32 %v4610, 0.0036580483
      %v4612 = vmul.f32 %v4607, %v4611
      %v4613 = vadd.f32 %v4612, 0.05243302
      %v4614 = vmul.f32 %v4607, %v4613
      %v4615 = vadd.f32 %v4614, 0.18741608
      %v4616 = vmul.f32 %v4607, %v4615
      %v4617 = vadd.f32 %v4616, 1.1283791
      %v4618 = vmul.f32 %v4496, %v4617
      %v4619 = vmul.f32 %v4607, 3.8918573e-05
      %v4620 = vadd.f32 %v4619, 0.001143296
      %v4621 = vmul.f32 %v4607, %v4620
      %v4622 = vadd.f32 %v4621, 0.014752088
      %v4623 = vmul.f32 %v4607, %v4622
      %v4624 = vadd.f32 %v4623, 0.112945676
      %v4625 = vmul.f32 %v4607, %v4624
      %v4626 = vadd.f32 %v4625, 0.4994258
      %v4627 = vmul.f32 %v4607, %v4626
      %v4628 = vadd.f32 %v4627, 1.0
      %v4629 = vrcp.pop %v4628
      %v4630 = vmul.f32 %v4628, %v4629
      %v4631 = vsub.f32 1.0, %v4630
      %v4632 = vmul.f32 %v4629, %v4631
      %v4633 = vadd.f32 %v4629, %v4632
      %vm4634 = vweird.f32 %v4628
      %vm4635 = vweird.f32 %v4629
      %vm4636 = vmor %vm4634, %vm4635
      %v4637 = vsel %vm4636, %v4629, %v4633
      %v4638 = vand.u32 2147483647, %v4628
      %vm4639 = vcmp.eq.f32.partialorder %v4638, 8.507059e+37
      %v4640 = vand.u32 %v4628, 2147483648
      %v4641 = vor.u32 1.1754944e-38, %v4640
      %v4642 = vsel %vm4639, %v4641, %v4637
      %v4643 = vmul.f32 %v4618, %v4642
      %v4644 = vmin.f32 %v4643, 1.0
      %v4645 = vmax.f32 %v4644, -1.0
      %v4646 = vmul.f32 %v4497, %v4497
      %v4647 = vmin.f32 16.0, %v4646
      %v4648 = vmul.f32 %v4647, 2.1237322e-06
      %v4649 = vadd.f32 %v4648, 0.00028619796
      %v4650 = vmul.f32 %v4647, %v4649
      %v4651 = vadd.f32 %v4650, 0.0036580483
      %v4652 = vmul.f32 %v4647, %v4651
      %v4653 = vadd.f32 %v4652, 0.05243302
      %v4654 = vmul.f32 %v4647, %v4653
      %v4655 = vadd.f32 %v4654, 0.18741608
      %v4656 = vmul.f32 %v4647, %v4655
      %v4657 = vadd.f32 %v4656, 1.1283791
      %v4658 = vmul.f32 %v4497, %v4657
      %v4659 = vmul.f32 %v4647, 3.8918573e-05
      %v4660 = vadd.f32 %v4659, 0.001143296
      %v4661 = vmul.f32 %v4647, %v4660
      %v4662 = vadd.f32 %v4661, 0.014752088
      %v4663 = vmul.f32 %v4647, %v4662
      %v4664 = vadd.f32 %v4663, 0.112945676
      %v4665 = vmul.f32 %v4647, %v4664
      %v4666 = vadd.f32 %v4665, 0.4994258
      %v4667 = vmul.f32 %v4647, %v4666
      %v4668 = vadd.f32 %v4667, 1.0
      %v4669 = vrcp.pop %v4668
      %v4670 = vmul.f32 %v4668, %v4669
      %v4671 = vsub.f32 1.0, %v4670
      %v4672 = vmul.f32 %v4669, %v4671
      %v4673 = vadd.f32 %v4669, %v4672
      %vm4674 = vweird.f32 %v4668
      %vm4675 = vweird.f32 %v4669
      %vm4676 = vmor %vm4674, %vm4675
      %v4677 = vsel %vm4676, %v4669, %v4673
      %v4678 = vand.u32 2147483647, %v4668
      %vm4679 = vcmp.eq.f32.partialorder %v4678, 8.507059e+37
      %v4680 = vand.u32 %v4668, 2147483648
      %v4681 = vor.u32 1.1754944e-38, %v4680
      %v4682 = vsel %vm4679, %v4681, %v4677
      %v4683 = vmul.f32 %v4658, %v4682
      %v4684 = vmin.f32 %v4683, 1.0
      %v4685 = vmax.f32 %v4684, -1.0
      %v4686 = vmul.f32 %v4498, %v4498
      %v4687 = vmin.f32 16.0, %v4686
      %v4688 = vmul.f32 %v4687, 2.1237322e-06
      %v4689 = vadd.f32 %v4688, 0.00028619796
      %v4690 = vmul.f32 %v4687, %v4689
      %v4691 = vadd.f32 %v4690, 0.0036580483
      %v4692 = vmul.f32 %v4687, %v4691
      %v4693 = vadd.f32 %v4692, 0.05243302
      %v4694 = vmul.f32 %v4687, %v4693
      %v4695 = vadd.f32 %v4694, 0.18741608
      %v4696 = vmul.f32 %v4687, %v4695
      %v4697 = vadd.f32 %v4696, 1.1283791
      %v4698 = vmul.f32 %v4498, %v4697
      %v4699 = vmul.f32 %v4687, 3.8918573e-05
      %v4700 = vadd.f32 %v4699, 0.001143296
      %v4701 = vmul.f32 %v4687, %v4700
      %v4702 = vadd.f32 %v4701, 0.014752088
      %v4703 = vmul.f32 %v4687, %v4702
      %v4704 = vadd.f32 %v4703, 0.112945676
      %v4705 = vmul.f32 %v4687, %v4704
      %v4706 = vadd.f32 %v4705, 0.4994258
      %v4707 = vmul.f32 %v4687, %v4706
      %v4708 = vadd.f32 %v4707, 1.0
      %v4709 = vrcp.pop %v4708
      %v4710 = vmul.f32 %v4708, %v4709
      %v4711 = vsub.f32 1.0, %v4710
      %v4712 = vmul.f32 %v4709, %v4711
      %v4713 = vadd.f32 %v4709, %v4712
      %vm4714 = vweird.f32 %v4708
      %vm4715 = vweird.f32 %v4709
      %vm4716 = vmor %vm4714, %vm4715
      %v4717 = vsel %vm4716, %v4709, %v4713
      %v4718 = vand.u32 2147483647, %v4708
      %vm4719 = vcmp.eq.f32.partialorder %v4718, 8.507059e+37
      %v4720 = vand.u32 %v4708, 2147483648
      %v4721 = vor.u32 1.1754944e-38, %v4720
      %v4722 = vsel %vm4719, %v4721, %v4717
      %v4723 = vmul.f32 %v4698, %v4722
      %v4724 = vmin.f32 %v4723, 1.0
      %v4725 = vmax.f32 %v4724, -1.0
      %v4726 = vmul.f32 %v4499, %v4499
      %v4727 = vmin.f32 16.0, %v4726
      %v4728 = vmul.f32 %v4727, 2.1237322e-06
      %v4729 = vadd.f32 %v4728, 0.00028619796
      %v4730 = vmul.f32 %v4727, %v4729
      %v4731 = vadd.f32 %v4730, 0.0036580483
      %v4732 = vmul.f32 %v4727, %v4731
      %v4733 = vadd.f32 %v4732, 0.05243302
      %v4734 = vmul.f32 %v4727, %v4733
      %v4735 = vadd.f32 %v4734, 0.18741608
      %v4736 = vmul.f32 %v4727, %v4735
      %v4737 = vadd.f32 %v4736, 1.1283791
      %v4738 = vmul.f32 %v4499, %v4737
      %v4739 = vmul.f32 %v4727, 3.8918573e-05
      %v4740 = vadd.f32 %v4739, 0.001143296
      %v4741 = vmul.f32 %v4727, %v4740
      %v4742 = vadd.f32 %v4741, 0.014752088
      %v4743 = vmul.f32 %v4727, %v4742
      %v4744 = vadd.f32 %v4743, 0.112945676
      %v4745 = vmul.f32 %v4727, %v4744
      %v4746 = vadd.f32 %v4745, 0.4994258
      %v4747 = vmul.f32 %v4727, %v4746
      %v4748 = vadd.f32 %v4747, 1.0
      %v4749 = vrcp.pop %v4748
      %v4750 = vmul.f32 %v4748, %v4749
      %v4751 = vsub.f32 1.0, %v4750
      %v4752 = vmul.f32 %v4749, %v4751
      %v4753 = vadd.f32 %v4749, %v4752
      %vm4754 = vweird.f32 %v4748
      %vm4755 = vweird.f32 %v4749
      %vm4756 = vmor %vm4754, %vm4755
      %v4757 = vsel %vm4756, %v4749, %v4753
      %v4758 = vand.u32 2147483647, %v4748
      %vm4759 = vcmp.eq.f32.partialorder %v4758, 8.507059e+37
      %v4760 = vand.u32 %v4748, 2147483648
      %v4761 = vor.u32 1.1754944e-38, %v4760
      %v4762 = vsel %vm4759, %v4761, %v4757
      %v4763 = vmul.f32 %v4738, %v4762
      %v4764 = vmin.f32 %v4763, 1.0
      %v4765 = vmax.f32 %v4764, -1.0
      %v4766 = vmul.f32 %v4500, %v4500
      %v4767 = vmin.f32 16.0, %v4766
      %v4768 = vmul.f32 %v4767, 2.1237322e-06
      %v4769 = vadd.f32 %v4768, 0.00028619796
      %v4770 = vmul.f32 %v4767, %v4769
      %v4771 = vadd.f32 %v4770, 0.0036580483
      %v4772 = vmul.f32 %v4767, %v4771
      %v4773 = vadd.f32 %v4772, 0.05243302
      %v4774 = vmul.f32 %v4767, %v4773
      %v4775 = vadd.f32 %v4774, 0.18741608
      %v4776 = vmul.f32 %v4767, %v4775
      %v4777 = vadd.f32 %v4776, 1.1283791
      %v4778 = vmul.f32 %v4500, %v4777
      %v4779 = vmul.f32 %v4767, 3.8918573e-05
      %v4780 = vadd.f32 %v4779, 0.001143296
      %v4781 = vmul.f32 %v4767, %v4780
      %v4782 = vadd.f32 %v4781, 0.014752088
      %v4783 = vmul.f32 %v4767, %v4782
      %v4784 = vadd.f32 %v4783, 0.112945676
      %v4785 = vmul.f32 %v4767, %v4784
      %v4786 = vadd.f32 %v4785, 0.4994258
      %v4787 = vmul.f32 %v4767, %v4786
      %v4788 = vadd.f32 %v4787, 1.0
      %v4789 = vrcp.pop %v4788
      %v4790 = vmul.f32 %v4788, %v4789
      %v4791 = vsub.f32 1.0, %v4790
      %v4792 = vmul.f32 %v4789, %v4791
      %v4793 = vadd.f32 %v4789, %v4792
      %vm4794 = vweird.f32 %v4788
      %vm4795 = vweird.f32 %v4789
      %vm4796 = vmor %vm4794, %vm4795
      %v4797 = vsel %vm4796, %v4789, %v4793
      %v4798 = vand.u32 2147483647, %v4788
      %vm4799 = vcmp.eq.f32.partialorder %v4798, 8.507059e+37
      %v4800 = vand.u32 %v4788, 2147483648
      %v4801 = vor.u32 1.1754944e-38, %v4800
      %v4802 = vsel %vm4799, %v4801, %v4797
      %v4803 = vmul.f32 %v4778, %v4802
      %v4804 = vmin.f32 %v4803, 1.0
      %v4805 = vmax.f32 %v4804, -1.0
      %v4806 = vmul.f32 %v4501, %v4501
      %v4807 = vmin.f32 16.0, %v4806
      %v4808 = vmul.f32 %v4807, 2.1237322e-06
      %v4809 = vadd.f32 %v4808, 0.00028619796
      %v4810 = vmul.f32 %v4807, %v4809
      %v4811 = vadd.f32 %v4810, 0.0036580483
      %v4812 = vmul.f32 %v4807, %v4811
      %v4813 = vadd.f32 %v4812, 0.05243302
      %v4814 = vmul.f32 %v4807, %v4813
      %v4815 = vadd.f32 %v4814, 0.18741608
      %v4816 = vmul.f32 %v4807, %v4815
      %v4817 = vadd.f32 %v4816, 1.1283791
      %v4818 = vmul.f32 %v4501, %v4817
      %v4819 = vmul.f32 %v4807, 3.8918573e-05
      %v4820 = vadd.f32 %v4819, 0.001143296
      %v4821 = vmul.f32 %v4807, %v4820
      %v4822 = vadd.f32 %v4821, 0.014752088
      %v4823 = vmul.f32 %v4807, %v4822
      %v4824 = vadd.f32 %v4823, 0.112945676
      %v4825 = vmul.f32 %v4807, %v4824
      %v4826 = vadd.f32 %v4825, 0.4994258
      %v4827 = vmul.f32 %v4807, %v4826
      %v4828 = vadd.f32 %v4827, 1.0
      %v4829 = vrcp.pop %v4828
      %v4830 = vmul.f32 %v4828, %v4829
      %v4831 = vsub.f32 1.0, %v4830
      %v4832 = vmul.f32 %v4829, %v4831
      %v4833 = vadd.f32 %v4829, %v4832
      %vm4834 = vweird.f32 %v4828
      %vm4835 = vweird.f32 %v4829
      %vm4836 = vmor %vm4834, %vm4835
      %v4837 = vsel %vm4836, %v4829, %v4833
      %v4838 = vand.u32 2147483647, %v4828
      %vm4839 = vcmp.eq.f32.partialorder %v4838, 8.507059e+37
      %v4840 = vand.u32 %v4828, 2147483648
      %v4841 = vor.u32 1.1754944e-38, %v4840
      %v4842 = vsel %vm4839, %v4841, %v4837
      %v4843 = vmul.f32 %v4818, %v4842
      %v4844 = vmin.f32 %v4843, 1.0
      %v4845 = vmax.f32 %v4844, -1.0
      %v4846 = vmul.f32 %v4502, %v4502
      %v4847 = vmin.f32 16.0, %v4846
      %v4848 = vmul.f32 %v4847, 2.1237322e-06
      %v4849 = vadd.f32 %v4848, 0.00028619796
      %v4850 = vmul.f32 %v4847, %v4849
      %v4851 = vadd.f32 %v4850, 0.0036580483
      %v4852 = vmul.f32 %v4847, %v4851
      %v4853 = vadd.f32 %v4852, 0.05243302
      %v4854 = vmul.f32 %v4847, %v4853
      %v4855 = vadd.f32 %v4854, 0.18741608
      %v4856 = vmul.f32 %v4847, %v4855
      %v4857 = vadd.f32 %v4856, 1.1283791
      %v4858 = vmul.f32 %v4502, %v4857
      %v4859 = vmul.f32 %v4847, 3.8918573e-05
      %v4860 = vadd.f32 %v4859, 0.001143296
      %v4861 = vmul.f32 %v4847, %v4860
      %v4862 = vadd.f32 %v4861, 0.014752088
      %v4863 = vmul.f32 %v4847, %v4862
      %v4864 = vadd.f32 %v4863, 0.112945676
      %v4865 = vmul.f32 %v4847, %v4864
      %v4866 = vadd.f32 %v4865, 0.4994258
      %v4867 = vmul.f32 %v4847, %v4866
      %v4868 = vadd.f32 %v4867, 1.0
      %v4869 = vrcp.pop %v4868
      %v4870 = vmul.f32 %v4868, %v4869
      %v4871 = vsub.f32 1.0, %v4870
      %v4872 = vmul.f32 %v4869, %v4871
      %v4873 = vadd.f32 %v4869, %v4872
      %vm4874 = vweird.f32 %v4868
      %vm4875 = vweird.f32 %v4869
      %vm4876 = vmor %vm4874, %vm4875
      %v4877 = vsel %vm4876, %v4869, %v4873
      %v4878 = vand.u32 2147483647, %v4868
      %vm4879 = vcmp.eq.f32.partialorder %v4878, 8.507059e+37
      %v4880 = vand.u32 %v4868, 2147483648
      %v4881 = vor.u32 1.1754944e-38, %v4880
      %v4882 = vsel %vm4879, %v4881, %v4877
      %v4883 = vmul.f32 %v4858, %v4882
      %v4884 = vmin.f32 %v4883, 1.0
      %v4885 = vmax.f32 %v4884, -1.0
      %v4886 = vmul.f32 %v4503, %v4503
      %v4887 = vmin.f32 16.0, %v4886
      %v4888 = vmul.f32 %v4887, 2.1237322e-06
      %v4889 = vadd.f32 %v4888, 0.00028619796
      %v4890 = vmul.f32 %v4887, %v4889
      %v4891 = vadd.f32 %v4890, 0.0036580483
      %v4892 = vmul.f32 %v4887, %v4891
      %v4893 = vadd.f32 %v4892, 0.05243302
      %v4894 = vmul.f32 %v4887, %v4893
      %v4895 = vadd.f32 %v4894, 0.18741608
      %v4896 = vmul.f32 %v4887, %v4895
      %v4897 = vadd.f32 %v4896, 1.1283791
      %v4898 = vmul.f32 %v4503, %v4897
      %v4899 = vmul.f32 %v4887, 3.8918573e-05
      %v4900 = vadd.f32 %v4899, 0.001143296
      %v4901 = vmul.f32 %v4887, %v4900
      %v4902 = vadd.f32 %v4901, 0.014752088
      %v4903 = vmul.f32 %v4887, %v4902
      %v4904 = vadd.f32 %v4903, 0.112945676
      %v4905 = vmul.f32 %v4887, %v4904
      %v4906 = vadd.f32 %v4905, 0.4994258
      %v4907 = vmul.f32 %v4887, %v4906
      %v4908 = vadd.f32 %v4907, 1.0
      %v4909 = vrcp.pop %v4908
      %v4910 = vmul.f32 %v4908, %v4909
      %v4911 = vsub.f32 1.0, %v4910
      %v4912 = vmul.f32 %v4909, %v4911
      %v4913 = vadd.f32 %v4909, %v4912
      %vm4914 = vweird.f32 %v4908
      %vm4915 = vweird.f32 %v4909
      %vm4916 = vmor %vm4914, %vm4915
      %v4917 = vsel %vm4916, %v4909, %v4913
      %v4918 = vand.u32 2147483647, %v4908
      %vm4919 = vcmp.eq.f32.partialorder %v4918, 8.507059e+37
      %v4920 = vand.u32 %v4908, 2147483648
      %v4921 = vor.u32 1.1754944e-38, %v4920
      %v4922 = vsel %vm4919, %v4921, %v4917
      %v4923 = vmul.f32 %v4898, %v4922
      %v4924 = vmin.f32 %v4923, 1.0
      %v4925 = vmax.f32 %v4924, -1.0
      %v4926 = vmul.f32 %v4504, %v4504
      %v4927 = vmin.f32 16.0, %v4926
      %v4928 = vmul.f32 %v4927, 2.1237322e-06
      %v4929 = vadd.f32 %v4928, 0.00028619796
      %v4930 = vmul.f32 %v4927, %v4929
      %v4931 = vadd.f32 %v4930, 0.0036580483
      %v4932 = vmul.f32 %v4927, %v4931
      %v4933 = vadd.f32 %v4932, 0.05243302
      %v4934 = vmul.f32 %v4927, %v4933
      %v4935 = vadd.f32 %v4934, 0.18741608
      %v4936 = vmul.f32 %v4927, %v4935
      %v4937 = vadd.f32 %v4936, 1.1283791
      %v4938 = vmul.f32 %v4504, %v4937
      %v4939 = vmul.f32 %v4927, 3.8918573e-05
      %v4940 = vadd.f32 %v4939, 0.001143296
      %v4941 = vmul.f32 %v4927, %v4940
      %v4942 = vadd.f32 %v4941, 0.014752088
      %v4943 = vmul.f32 %v4927, %v4942
      %v4944 = vadd.f32 %v4943, 0.112945676
      %v4945 = vmul.f32 %v4927, %v4944
      %v4946 = vadd.f32 %v4945, 0.4994258
      %v4947 = vmul.f32 %v4927, %v4946
      %v4948 = vadd.f32 %v4947, 1.0
      %v4949 = vrcp.pop %v4948
      %v4950 = vmul.f32 %v4948, %v4949
      %v4951 = vsub.f32 1.0, %v4950
      %v4952 = vmul.f32 %v4949, %v4951
      %v4953 = vadd.f32 %v4949, %v4952
      %vm4954 = vweird.f32 %v4948
      %vm4955 = vweird.f32 %v4949
      %vm4956 = vmor %vm4954, %vm4955
      %v4957 = vsel %vm4956, %v4949, %v4953
      %v4958 = vand.u32 2147483647, %v4948
      %vm4959 = vcmp.eq.f32.partialorder %v4958, 8.507059e+37
      %v4960 = vand.u32 %v4948, 2147483648
      %v4961 = vor.u32 1.1754944e-38, %v4960
      %v4962 = vsel %vm4959, %v4961, %v4957
      %v4963 = vmul.f32 %v4938, %v4962
      %v4964 = vmin.f32 %v4963, 1.0
      %v4965 = vmax.f32 %v4964, -1.0
      %v4966 = vmul.f32 %v4505, %v4505
      %v4967 = vmin.f32 16.0, %v4966
      %v4968 = vmul.f32 %v4967, 2.1237322e-06
      %v4969 = vadd.f32 %v4968, 0.00028619796
      %v4970 = vmul.f32 %v4967, %v4969
      %v4971 = vadd.f32 %v4970, 0.0036580483
      %v4972 = vmul.f32 %v4967, %v4971
      %v4973 = vadd.f32 %v4972, 0.05243302
      %v4974 = vmul.f32 %v4967, %v4973
      %v4975 = vadd.f32 %v4974, 0.18741608
      %v4976 = vmul.f32 %v4967, %v4975
      %v4977 = vadd.f32 %v4976, 1.1283791
      %v4978 = vmul.f32 %v4505, %v4977
      %v4979 = vmul.f32 %v4967, 3.8918573e-05
      %v4980 = vadd.f32 %v4979, 0.001143296
      %v4981 = vmul.f32 %v4967, %v4980
      %v4982 = vadd.f32 %v4981, 0.014752088
      %v4983 = vmul.f32 %v4967, %v4982
      %v4984 = vadd.f32 %v4983, 0.112945676
      %v4985 = vmul.f32 %v4967, %v4984
      %v4986 = vadd.f32 %v4985, 0.4994258
      %v4987 = vmul.f32 %v4967, %v4986
      %v4988 = vadd.f32 %v4987, 1.0
      %v4989 = vrcp.pop %v4988
      %v4990 = vmul.f32 %v4988, %v4989
      %v4991 = vsub.f32 1.0, %v4990
      %v4992 = vmul.f32 %v4989, %v4991
      %v4993 = vadd.f32 %v4989, %v4992
      %vm4994 = vweird.f32 %v4988
      %vm4995 = vweird.f32 %v4989
      %vm4996 = vmor %vm4994, %vm4995
      %v4997 = vsel %vm4996, %v4989, %v4993
      %v4998 = vand.u32 2147483647, %v4988
      %vm4999 = vcmp.eq.f32.partialorder %v4998, 8.507059e+37
      %v5000 = vand.u32 %v4988, 2147483648
      %v5001 = vor.u32 1.1754944e-38, %v5000
      %v5002 = vsel %vm4999, %v5001, %v4997
      %v5003 = vmul.f32 %v4978, %v5002
      %v5004 = vmin.f32 %v5003, 1.0
      %v5005 = vmax.f32 %v5004, -1.0
      %v5006 = vmul.f32 %v4506, %v4506
      %v5007 = vmin.f32 16.0, %v5006
      %v5008 = vmul.f32 %v5007, 2.1237322e-06
      %v5009 = vadd.f32 %v5008, 0.00028619796
      %v5010 = vmul.f32 %v5007, %v5009
      %v5011 = vadd.f32 %v5010, 0.0036580483
      %v5012 = vmul.f32 %v5007, %v5011
      %v5013 = vadd.f32 %v5012, 0.05243302
      %v5014 = vmul.f32 %v5007, %v5013
      %v5015 = vadd.f32 %v5014, 0.18741608
      %v5016 = vmul.f32 %v5007, %v5015
      %v5017 = vadd.f32 %v5016, 1.1283791
      %v5018 = vmul.f32 %v4506, %v5017
      %v5019 = vmul.f32 %v5007, 3.8918573e-05
      %v5020 = vadd.f32 %v5019, 0.001143296
      %v5021 = vmul.f32 %v5007, %v5020
      %v5022 = vadd.f32 %v5021, 0.014752088
      %v5023 = vmul.f32 %v5007, %v5022
      %v5024 = vadd.f32 %v5023, 0.112945676
      %v5025 = vmul.f32 %v5007, %v5024
      %v5026 = vadd.f32 %v5025, 0.4994258
      %v5027 = vmul.f32 %v5007, %v5026
      %v5028 = vadd.f32 %v5027, 1.0
      %v5029 = vrcp.pop %v5028
      %v5030 = vmul.f32 %v5028, %v5029
      %v5031 = vsub.f32 1.0, %v5030
      %v5032 = vmul.f32 %v5029, %v5031
      %v5033 = vadd.f32 %v5029, %v5032
      %vm5034 = vweird.f32 %v5028
      %vm5035 = vweird.f32 %v5029
      %vm5036 = vmor %vm5034, %vm5035
      %v5037 = vsel %vm5036, %v5029, %v5033
      %v5038 = vand.u32 2147483647, %v5028
      %vm5039 = vcmp.eq.f32.partialorder %v5038, 8.507059e+37
      %v5040 = vand.u32 %v5028, 2147483648
      %v5041 = vor.u32 1.1754944e-38, %v5040
      %v5042 = vsel %vm5039, %v5041, %v5037
      %v5043 = vmul.f32 %v5018, %v5042
      %v5044 = vmin.f32 %v5043, 1.0
      %v5045 = vmax.f32 %v5044, -1.0
      %v5046 = vmul.f32 %v4507, %v4507
      %v5047 = vmin.f32 16.0, %v5046
      %v5048 = vmul.f32 %v5047, 2.1237322e-06
      %v5049 = vadd.f32 %v5048, 0.00028619796
      %v5050 = vmul.f32 %v5047, %v5049
      %v5051 = vadd.f32 %v5050, 0.0036580483
      %v5052 = vmul.f32 %v5047, %v5051
      %v5053 = vadd.f32 %v5052, 0.05243302
      %v5054 = vmul.f32 %v5047, %v5053
      %v5055 = vadd.f32 %v5054, 0.18741608
      %v5056 = vmul.f32 %v5047, %v5055
      %v5057 = vadd.f32 %v5056, 1.1283791
      %v5058 = vmul.f32 %v4507, %v5057
      %v5059 = vmul.f32 %v5047, 3.8918573e-05
      %v5060 = vadd.f32 %v5059, 0.001143296
      %v5061 = vmul.f32 %v5047, %v5060
      %v5062 = vadd.f32 %v5061, 0.014752088
      %v5063 = vmul.f32 %v5047, %v5062
      %v5064 = vadd.f32 %v5063, 0.112945676
      %v5065 = vmul.f32 %v5047, %v5064
      %v5066 = vadd.f32 %v5065, 0.4994258
      %v5067 = vmul.f32 %v5047, %v5066
      %v5068 = vadd.f32 %v5067, 1.0
      %v5069 = vrcp.pop %v5068
      %v5070 = vmul.f32 %v5068, %v5069
      %v5071 = vsub.f32 1.0, %v5070
      %v5072 = vmul.f32 %v5069, %v5071
      %v5073 = vadd.f32 %v5069, %v5072
      %vm5074 = vweird.f32 %v5068
      %vm5075 = vweird.f32 %v5069
      %vm5076 = vmor %vm5074, %vm5075
      %v5077 = vsel %vm5076, %v5069, %v5073
      %v5078 = vand.u32 2147483647, %v5068
      %vm5079 = vcmp.eq.f32.partialorder %v5078, 8.507059e+37
      %v5080 = vand.u32 %v5068, 2147483648
      %v5081 = vor.u32 1.1754944e-38, %v5080
      %v5082 = vsel %vm5079, %v5081, %v5077
      %v5083 = vmul.f32 %v5058, %v5082
      %v5084 = vmin.f32 %v5083, 1.0
      %v5085 = vmax.f32 %v5084, -1.0
      %v5086 = vmul.f32 %v4508, %v4508
      %v5087 = vmin.f32 16.0, %v5086
      %v5088 = vmul.f32 %v5087, 2.1237322e-06
      %v5089 = vadd.f32 %v5088, 0.00028619796
      %v5090 = vmul.f32 %v5087, %v5089
      %v5091 = vadd.f32 %v5090, 0.0036580483
      %v5092 = vmul.f32 %v5087, %v5091
      %v5093 = vadd.f32 %v5092, 0.05243302
      %v5094 = vmul.f32 %v5087, %v5093
      %v5095 = vadd.f32 %v5094, 0.18741608
      %v5096 = vmul.f32 %v5087, %v5095
      %v5097 = vadd.f32 %v5096, 1.1283791
      %v5098 = vmul.f32 %v4508, %v5097
      %v5099 = vmul.f32 %v5087, 3.8918573e-05
      %v5100 = vadd.f32 %v5099, 0.001143296
      %v5101 = vmul.f32 %v5087, %v5100
      %v5102 = vadd.f32 %v5101, 0.014752088
      %v5103 = vmul.f32 %v5087, %v5102
      %v5104 = vadd.f32 %v5103, 0.112945676
      %v5105 = vmul.f32 %v5087, %v5104
      %v5106 = vadd.f32 %v5105, 0.4994258
      %v5107 = vmul.f32 %v5087, %v5106
      %v5108 = vadd.f32 %v5107, 1.0
      %v5109 = vrcp.pop %v5108
      %v5110 = vmul.f32 %v5108, %v5109
      %v5111 = vsub.f32 1.0, %v5110
      %v5112 = vmul.f32 %v5109, %v5111
      %v5113 = vadd.f32 %v5109, %v5112
      %vm5114 = vweird.f32 %v5108
      %vm5115 = vweird.f32 %v5109
      %vm5116 = vmor %vm5114, %vm5115
      %v5117 = vsel %vm5116, %v5109, %v5113
      %v5118 = vand.u32 2147483647, %v5108
      %vm5119 = vcmp.eq.f32.partialorder %v5118, 8.507059e+37
      %v5120 = vand.u32 %v5108, 2147483648
      %v5121 = vor.u32 1.1754944e-38, %v5120
      %v5122 = vsel %vm5119, %v5121, %v5117
      %v5123 = vmul.f32 %v5098, %v5122
      %v5124 = vmin.f32 %v5123, 1.0
      %v5125 = vmax.f32 %v5124, -1.0
      %v5126 = vmul.f32 %v4509, %v4509
      %v5127 = vmin.f32 16.0, %v5126
      %v5128 = vmul.f32 %v5127, 2.1237322e-06
      %v5129 = vadd.f32 %v5128, 0.00028619796
      %v5130 = vmul.f32 %v5127, %v5129
      %v5131 = vadd.f32 %v5130, 0.0036580483
      %v5132 = vmul.f32 %v5127, %v5131
      %v5133 = vadd.f32 %v5132, 0.05243302
      %v5134 = vmul.f32 %v5127, %v5133
      %v5135 = vadd.f32 %v5134, 0.18741608
      %v5136 = vmul.f32 %v5127, %v5135
      %v5137 = vadd.f32 %v5136, 1.1283791
      %v5138 = vmul.f32 %v4509, %v5137
      %v5139 = vmul.f32 %v5127, 3.8918573e-05
      %v5140 = vadd.f32 %v5139, 0.001143296
      %v5141 = vmul.f32 %v5127, %v5140
      %v5142 = vadd.f32 %v5141, 0.014752088
      %v5143 = vmul.f32 %v5127, %v5142
      %v5144 = vadd.f32 %v5143, 0.112945676
      %v5145 = vmul.f32 %v5127, %v5144
      %v5146 = vadd.f32 %v5145, 0.4994258
      %v5147 = vmul.f32 %v5127, %v5146
      %v5148 = vadd.f32 %v5147, 1.0
      %v5149 = vrcp.pop %v5148
      %v5150 = vmul.f32 %v5148, %v5149
      %v5151 = vsub.f32 1.0, %v5150
      %v5152 = vmul.f32 %v5149, %v5151
      %v5153 = vadd.f32 %v5149, %v5152
      %vm5154 = vweird.f32 %v5148
      %vm5155 = vweird.f32 %v5149
      %vm5156 = vmor %vm5154, %vm5155
      %v5157 = vsel %vm5156, %v5149, %v5153
      %v5158 = vand.u32 2147483647, %v5148
      %vm5159 = vcmp.eq.f32.partialorder %v5158, 8.507059e+37
      %v5160 = vand.u32 %v5148, 2147483648
      %v5161 = vor.u32 1.1754944e-38, %v5160
      %v5162 = vsel %vm5159, %v5161, %v5157
      %v5163 = vmul.f32 %v5138, %v5162
      %v5164 = vmin.f32 %v5163, 1.0
      %v5165 = vmax.f32 %v5164, -1.0
      %v5166 = vmul.f32 %v4510, %v4510
      %v5167 = vmin.f32 16.0, %v5166
      %v5168 = vmul.f32 %v5167, 2.1237322e-06
      %v5169 = vadd.f32 %v5168, 0.00028619796
      %v5170 = vmul.f32 %v5167, %v5169
      %v5171 = vadd.f32 %v5170, 0.0036580483
      %v5172 = vmul.f32 %v5167, %v5171
      %v5173 = vadd.f32 %v5172, 0.05243302
      %v5174 = vmul.f32 %v5167, %v5173
      %v5175 = vadd.f32 %v5174, 0.18741608
      %v5176 = vmul.f32 %v5167, %v5175
      %v5177 = vadd.f32 %v5176, 1.1283791
      %v5178 = vmul.f32 %v4510, %v5177
      %v5179 = vmul.f32 %v5167, 3.8918573e-05
      %v5180 = vadd.f32 %v5179, 0.001143296
      %v5181 = vmul.f32 %v5167, %v5180
      %v5182 = vadd.f32 %v5181, 0.014752088
      %v5183 = vmul.f32 %v5167, %v5182
      %v5184 = vadd.f32 %v5183, 0.112945676
      %v5185 = vmul.f32 %v5167, %v5184
      %v5186 = vadd.f32 %v5185, 0.4994258
      %v5187 = vmul.f32 %v5167, %v5186
      %v5188 = vadd.f32 %v5187, 1.0
      %v5189 = vrcp.pop %v5188
      %v5190 = vmul.f32 %v5188, %v5189
      %v5191 = vsub.f32 1.0, %v5190
      %v5192 = vmul.f32 %v5189, %v5191
      %v5193 = vadd.f32 %v5189, %v5192
      %vm5194 = vweird.f32 %v5188
      %vm5195 = vweird.f32 %v5189
      %vm5196 = vmor %vm5194, %vm5195
      %v5197 = vsel %vm5196, %v5189, %v5193
      %v5198 = vand.u32 2147483647, %v5188
      %vm5199 = vcmp.eq.f32.partialorder %v5198, 8.507059e+37
      %v5200 = vand.u32 %v5188, 2147483648
      %v5201 = vor.u32 1.1754944e-38, %v5200
      %v5202 = vsel %vm5199, %v5201, %v5197
      %v5203 = vmul.f32 %v5178, %v5202
      %v5204 = vmin.f32 %v5203, 1.0
      %v5205 = vmax.f32 %v5204, -1.0
      %v5206 = vmul.f32 %v4511, %v4511
      %v5207 = vmin.f32 16.0, %v5206
      %v5208 = vmul.f32 %v5207, 2.1237322e-06
      %v5209 = vadd.f32 %v5208, 0.00028619796
      %v5210 = vmul.f32 %v5207, %v5209
      %v5211 = vadd.f32 %v5210, 0.0036580483
      %v5212 = vmul.f32 %v5207, %v5211
      %v5213 = vadd.f32 %v5212, 0.05243302
      %v5214 = vmul.f32 %v5207, %v5213
      %v5215 = vadd.f32 %v5214, 0.18741608
      %v5216 = vmul.f32 %v5207, %v5215
      %v5217 = vadd.f32 %v5216, 1.1283791
      %v5218 = vmul.f32 %v4511, %v5217
      %v5219 = vmul.f32 %v5207, 3.8918573e-05
      %v5220 = vadd.f32 %v5219, 0.001143296
      %v5221 = vmul.f32 %v5207, %v5220
      %v5222 = vadd.f32 %v5221, 0.014752088
      %v5223 = vmul.f32 %v5207, %v5222
      %v5224 = vadd.f32 %v5223, 0.112945676
      %v5225 = vmul.f32 %v5207, %v5224
      %v5226 = vadd.f32 %v5225, 0.4994258
      %v5227 = vmul.f32 %v5207, %v5226
      %v5228 = vadd.f32 %v5227, 1.0
      %v5229 = vrcp.pop %v5228
      %v5230 = vmul.f32 %v5228, %v5229
      %v5231 = vsub.f32 1.0, %v5230
      %v5232 = vmul.f32 %v5229, %v5231
      %v5233 = vadd.f32 %v5229, %v5232
      %vm5234 = vweird.f32 %v5228
      %vm5235 = vweird.f32 %v5229
      %vm5236 = vmor %vm5234, %vm5235
      %v5237 = vsel %vm5236, %v5229, %v5233
      %v5238 = vand.u32 2147483647, %v5228
      %vm5239 = vcmp.eq.f32.partialorder %v5238, 8.507059e+37
      %v5240 = vand.u32 %v5228, 2147483648
      %v5241 = vor.u32 1.1754944e-38, %v5240
      %v5242 = vsel %vm5239, %v5241, %v5237
      %v5243 = vmul.f32 %v5218, %v5242
      %v5244 = vmin.f32 %v5243, 1.0
      %v5245 = vmax.f32 %v5244, -1.0
      %v5246 = vmul.f32 %v4512, %v4512
      %v5247 = vmin.f32 16.0, %v5246
      %v5248 = vmul.f32 %v5247, 2.1237322e-06
      %v5249 = vadd.f32 %v5248, 0.00028619796
      %v5250 = vmul.f32 %v5247, %v5249
      %v5251 = vadd.f32 %v5250, 0.0036580483
      %v5252 = vmul.f32 %v5247, %v5251
      %v5253 = vadd.f32 %v5252, 0.05243302
      %v5254 = vmul.f32 %v5247, %v5253
      %v5255 = vadd.f32 %v5254, 0.18741608
      %v5256 = vmul.f32 %v5247, %v5255
      %v5257 = vadd.f32 %v5256, 1.1283791
      %v5258 = vmul.f32 %v4512, %v5257
      %v5259 = vmul.f32 %v5247, 3.8918573e-05
      %v5260 = vadd.f32 %v5259, 0.001143296
      %v5261 = vmul.f32 %v5247, %v5260
      %v5262 = vadd.f32 %v5261, 0.014752088
      %v5263 = vmul.f32 %v5247, %v5262
      %v5264 = vadd.f32 %v5263, 0.112945676
      %v5265 = vmul.f32 %v5247, %v5264
      %v5266 = vadd.f32 %v5265, 0.4994258
      %v5267 = vmul.f32 %v5247, %v5266
      %v5268 = vadd.f32 %v5267, 1.0
      %v5269 = vrcp.pop %v5268
      %v5270 = vmul.f32 %v5268, %v5269
      %v5271 = vsub.f32 1.0, %v5270
      %v5272 = vmul.f32 %v5269, %v5271
      %v5273 = vadd.f32 %v5269, %v5272
      %vm5274 = vweird.f32 %v5268
      %vm5275 = vweird.f32 %v5269
      %vm5276 = vmor %vm5274, %vm5275
      %v5277 = vsel %vm5276, %v5269, %v5273
      %v5278 = vand.u32 2147483647, %v5268
      %vm5279 = vcmp.eq.f32.partialorder %v5278, 8.507059e+37
      %v5280 = vand.u32 %v5268, 2147483648
      %v5281 = vor.u32 1.1754944e-38, %v5280
      %v5282 = vsel %vm5279, %v5281, %v5277
      %v5283 = vmul.f32 %v5258, %v5282
      %v5284 = vmin.f32 %v5283, 1.0
      %v5285 = vmax.f32 %v5284, -1.0
      %v5286 = vmul.f32 %v4513, %v4513
      %v5287 = vmin.f32 16.0, %v5286
      %v5288 = vmul.f32 %v5287, 2.1237322e-06
      %v5289 = vadd.f32 %v5288, 0.00028619796
      %v5290 = vmul.f32 %v5287, %v5289
      %v5291 = vadd.f32 %v5290, 0.0036580483
      %v5292 = vmul.f32 %v5287, %v5291
      %v5293 = vadd.f32 %v5292, 0.05243302
      %v5294 = vmul.f32 %v5287, %v5293
      %v5295 = vadd.f32 %v5294, 0.18741608
      %v5296 = vmul.f32 %v5287, %v5295
      %v5297 = vadd.f32 %v5296, 1.1283791
      %v5298 = vmul.f32 %v4513, %v5297
      %v5299 = vmul.f32 %v5287, 3.8918573e-05
      %v5300 = vadd.f32 %v5299, 0.001143296
      %v5301 = vmul.f32 %v5287, %v5300
      %v5302 = vadd.f32 %v5301, 0.014752088
      %v5303 = vmul.f32 %v5287, %v5302
      %v5304 = vadd.f32 %v5303, 0.112945676
      %v5305 = vmul.f32 %v5287, %v5304
      %v5306 = vadd.f32 %v5305, 0.4994258
      %v5307 = vmul.f32 %v5287, %v5306
      %v5308 = vadd.f32 %v5307, 1.0
      %v5309 = vrcp.pop %v5308
      %v5310 = vmul.f32 %v5308, %v5309
      %v5311 = vsub.f32 1.0, %v5310
      %v5312 = vmul.f32 %v5309, %v5311
      %v5313 = vadd.f32 %v5309, %v5312
      %vm5314 = vweird.f32 %v5308
      %vm5315 = vweird.f32 %v5309
      %vm5316 = vmor %vm5314, %vm5315
      %v5317 = vsel %vm5316, %v5309, %v5313
      %v5318 = vand.u32 2147483647, %v5308
      %vm5319 = vcmp.eq.f32.partialorder %v5318, 8.507059e+37
      %v5320 = vand.u32 %v5308, 2147483648
      %v5321 = vor.u32 1.1754944e-38, %v5320
      %v5322 = vsel %vm5319, %v5321, %v5317
      %v5323 = vmul.f32 %v5298, %v5322
      %v5324 = vmin.f32 %v5323, 1.0
      %v5325 = vmax.f32 %v5324, -1.0
      %v5326 = vmul.f32 %v4514, %v4514
      %v5327 = vmin.f32 16.0, %v5326
      %v5328 = vmul.f32 %v5327, 2.1237322e-06
      %v5329 = vadd.f32 %v5328, 0.00028619796
      %v5330 = vmul.f32 %v5327, %v5329
      %v5331 = vadd.f32 %v5330, 0.0036580483
      %v5332 = vmul.f32 %v5327, %v5331
      %v5333 = vadd.f32 %v5332, 0.05243302
      %v5334 = vmul.f32 %v5327, %v5333
      %v5335 = vadd.f32 %v5334, 0.18741608
      %v5336 = vmul.f32 %v5327, %v5335
      %v5337 = vadd.f32 %v5336, 1.1283791
      %v5338 = vmul.f32 %v4514, %v5337
      %v5339 = vmul.f32 %v5327, 3.8918573e-05
      %v5340 = vadd.f32 %v5339, 0.001143296
      %v5341 = vmul.f32 %v5327, %v5340
      %v5342 = vadd.f32 %v5341, 0.014752088
      %v5343 = vmul.f32 %v5327, %v5342
      %v5344 = vadd.f32 %v5343, 0.112945676
      %v5345 = vmul.f32 %v5327, %v5344
      %v5346 = vadd.f32 %v5345, 0.4994258
      %v5347 = vmul.f32 %v5327, %v5346
      %v5348 = vadd.f32 %v5347, 1.0
      %v5349 = vrcp.pop %v5348
      %v5350 = vmul.f32 %v5348, %v5349
      %v5351 = vsub.f32 1.0, %v5350
      %v5352 = vmul.f32 %v5349, %v5351
      %v5353 = vadd.f32 %v5349, %v5352
      %vm5354 = vweird.f32 %v5348
      %vm5355 = vweird.f32 %v5349
      %vm5356 = vmor %vm5354, %vm5355
      %v5357 = vsel %vm5356, %v5349, %v5353
      %v5358 = vand.u32 2147483647, %v5348
      %vm5359 = vcmp.eq.f32.partialorder %v5358, 8.507059e+37
      %v5360 = vand.u32 %v5348, 2147483648
      %v5361 = vor.u32 1.1754944e-38, %v5360
      %v5362 = vsel %vm5359, %v5361, %v5357
      %v5363 = vmul.f32 %v5338, %v5362
      %v5364 = vmin.f32 %v5363, 1.0
      %v5365 = vmax.f32 %v5364, -1.0
      %v5366 = vmul.f32 %v4515, %v4515
      %v5367 = vmin.f32 16.0, %v5366
      %v5368 = vmul.f32 %v5367, 2.1237322e-06
      %v5369 = vadd.f32 %v5368, 0.00028619796
      %v5370 = vmul.f32 %v5367, %v5369
      %v5371 = vadd.f32 %v5370, 0.0036580483
      %v5372 = vmul.f32 %v5367, %v5371
      %v5373 = vadd.f32 %v5372, 0.05243302
      %v5374 = vmul.f32 %v5367, %v5373
      %v5375 = vadd.f32 %v5374, 0.18741608
      %v5376 = vmul.f32 %v5367, %v5375
      %v5377 = vadd.f32 %v5376, 1.1283791
      %v5378 = vmul.f32 %v4515, %v5377
      %v5379 = vmul.f32 %v5367, 3.8918573e-05
      %v5380 = vadd.f32 %v5379, 0.001143296
      %v5381 = vmul.f32 %v5367, %v5380
      %v5382 = vadd.f32 %v5381, 0.014752088
      %v5383 = vmul.f32 %v5367, %v5382
      %v5384 = vadd.f32 %v5383, 0.112945676
      %v5385 = vmul.f32 %v5367, %v5384
      %v5386 = vadd.f32 %v5385, 0.4994258
      %v5387 = vmul.f32 %v5367, %v5386
      %v5388 = vadd.f32 %v5387, 1.0
      %v5389 = vrcp.pop %v5388
      %v5390 = vmul.f32 %v5388, %v5389
      %v5391 = vsub.f32 1.0, %v5390
      %v5392 = vmul.f32 %v5389, %v5391
      %v5393 = vadd.f32 %v5389, %v5392
      %vm5394 = vweird.f32 %v5388
      %vm5395 = vweird.f32 %v5389
      %vm5396 = vmor %vm5394, %vm5395
      %v5397 = vsel %vm5396, %v5389, %v5393
      %v5398 = vand.u32 2147483647, %v5388
      %vm5399 = vcmp.eq.f32.partialorder %v5398, 8.507059e+37
      %v5400 = vand.u32 %v5388, 2147483648
      %v5401 = vor.u32 1.1754944e-38, %v5400
      %v5402 = vsel %vm5399, %v5401, %v5397
      %v5403 = vmul.f32 %v5378, %v5402
      %v5404 = vmin.f32 %v5403, 1.0
      %v5405 = vmax.f32 %v5404, -1.0
      %v5406 = vmul.f32 %v4516, %v4516
      %v5407 = vmin.f32 16.0, %v5406
      %v5408 = vmul.f32 %v5407, 2.1237322e-06
      %v5409 = vadd.f32 %v5408, 0.00028619796
      %v5410 = vmul.f32 %v5407, %v5409
      %v5411 = vadd.f32 %v5410, 0.0036580483
      %v5412 = vmul.f32 %v5407, %v5411
      %v5413 = vadd.f32 %v5412, 0.05243302
      %v5414 = vmul.f32 %v5407, %v5413
      %v5415 = vadd.f32 %v5414, 0.18741608
      %v5416 = vmul.f32 %v5407, %v5415
      %v5417 = vadd.f32 %v5416, 1.1283791
      %v5418 = vmul.f32 %v4516, %v5417
      %v5419 = vmul.f32 %v5407, 3.8918573e-05
      %v5420 = vadd.f32 %v5419, 0.001143296
      %v5421 = vmul.f32 %v5407, %v5420
      %v5422 = vadd.f32 %v5421, 0.014752088
      %v5423 = vmul.f32 %v5407, %v5422
      %v5424 = vadd.f32 %v5423, 0.112945676
      %v5425 = vmul.f32 %v5407, %v5424
      %v5426 = vadd.f32 %v5425, 0.4994258
      %v5427 = vmul.f32 %v5407, %v5426
      %v5428 = vadd.f32 %v5427, 1.0
      %v5429 = vrcp.pop %v5428
      %v5430 = vmul.f32 %v5428, %v5429
      %v5431 = vsub.f32 1.0, %v5430
      %v5432 = vmul.f32 %v5429, %v5431
      %v5433 = vadd.f32 %v5429, %v5432
      %vm5434 = vweird.f32 %v5428
      %vm5435 = vweird.f32 %v5429
      %vm5436 = vmor %vm5434, %vm5435
      %v5437 = vsel %vm5436, %v5429, %v5433
      %v5438 = vand.u32 2147483647, %v5428
      %vm5439 = vcmp.eq.f32.partialorder %v5438, 8.507059e+37
      %v5440 = vand.u32 %v5428, 2147483648
      %v5441 = vor.u32 1.1754944e-38, %v5440
      %v5442 = vsel %vm5439, %v5441, %v5437
      %v5443 = vmul.f32 %v5418, %v5442
      %v5444 = vmin.f32 %v5443, 1.0
      %v5445 = vmax.f32 %v5444, -1.0
      %v5446 = vmul.f32 %v4517, %v4517
      %v5447 = vmin.f32 16.0, %v5446
      %v5448 = vmul.f32 %v5447, 2.1237322e-06
      %v5449 = vadd.f32 %v5448, 0.00028619796
      %v5450 = vmul.f32 %v5447, %v5449
      %v5451 = vadd.f32 %v5450, 0.0036580483
      %v5452 = vmul.f32 %v5447, %v5451
      %v5453 = vadd.f32 %v5452, 0.05243302
      %v5454 = vmul.f32 %v5447, %v5453
      %v5455 = vadd.f32 %v5454, 0.18741608
      %v5456 = vmul.f32 %v5447, %v5455
      %v5457 = vadd.f32 %v5456, 1.1283791
      %v5458 = vmul.f32 %v4517, %v5457
      %v5459 = vmul.f32 %v5447, 3.8918573e-05
      %v5460 = vadd.f32 %v5459, 0.001143296
      %v5461 = vmul.f32 %v5447, %v5460
      %v5462 = vadd.f32 %v5461, 0.014752088
      %v5463 = vmul.f32 %v5447, %v5462
      %v5464 = vadd.f32 %v5463, 0.112945676
      %v5465 = vmul.f32 %v5447, %v5464
      %v5466 = vadd.f32 %v5465, 0.4994258
      %v5467 = vmul.f32 %v5447, %v5466
      %v5468 = vadd.f32 %v5467, 1.0
      %v5469 = vrcp.pop %v5468
      %v5470 = vmul.f32 %v5468, %v5469
      %v5471 = vsub.f32 1.0, %v5470
      %v5472 = vmul.f32 %v5469, %v5471
      %v5473 = vadd.f32 %v5469, %v5472
      %vm5474 = vweird.f32 %v5468
      %vm5475 = vweird.f32 %v5469
      %vm5476 = vmor %vm5474, %vm5475
      %v5477 = vsel %vm5476, %v5469, %v5473
      %v5478 = vand.u32 2147483647, %v5468
      %vm5479 = vcmp.eq.f32.partialorder %v5478, 8.507059e+37
      %v5480 = vand.u32 %v5468, 2147483648
      %v5481 = vor.u32 1.1754944e-38, %v5480
      %v5482 = vsel %vm5479, %v5481, %v5477
      %v5483 = vmul.f32 %v5458, %v5482
      %v5484 = vmin.f32 %v5483, 1.0
      %v5485 = vmax.f32 %v5484, -1.0
      %v5486 = vmul.f32 %v4518, %v4518
      %v5487 = vmin.f32 16.0, %v5486
      %v5488 = vmul.f32 %v5487, 2.1237322e-06
      %v5489 = vadd.f32 %v5488, 0.00028619796
      %v5490 = vmul.f32 %v5487, %v5489
      %v5491 = vadd.f32 %v5490, 0.0036580483
      %v5492 = vmul.f32 %v5487, %v5491
      %v5493 = vadd.f32 %v5492, 0.05243302
      %v5494 = vmul.f32 %v5487, %v5493
      %v5495 = vadd.f32 %v5494, 0.18741608
      %v5496 = vmul.f32 %v5487, %v5495
      %v5497 = vadd.f32 %v5496, 1.1283791
      %v5498 = vmul.f32 %v4518, %v5497
      %v5499 = vmul.f32 %v5487, 3.8918573e-05
      %v5500 = vadd.f32 %v5499, 0.001143296
      %v5501 = vmul.f32 %v5487, %v5500
      %v5502 = vadd.f32 %v5501, 0.014752088
      %v5503 = vmul.f32 %v5487, %v5502
      %v5504 = vadd.f32 %v5503, 0.112945676
      %v5505 = vmul.f32 %v5487, %v5504
      %v5506 = vadd.f32 %v5505, 0.4994258
      %v5507 = vmul.f32 %v5487, %v5506
      %v5508 = vadd.f32 %v5507, 1.0
      %v5509 = vrcp.pop %v5508
      %v5510 = vmul.f32 %v5508, %v5509
      %v5511 = vsub.f32 1.0, %v5510
      %v5512 = vmul.f32 %v5509, %v5511
      %v5513 = vadd.f32 %v5509, %v5512
      %vm5514 = vweird.f32 %v5508
      %vm5515 = vweird.f32 %v5509
      %vm5516 = vmor %vm5514, %vm5515
      %v5517 = vsel %vm5516, %v5509, %v5513
      %v5518 = vand.u32 2147483647, %v5508
      %vm5519 = vcmp.eq.f32.partialorder %v5518, 8.507059e+37
      %v5520 = vand.u32 %v5508, 2147483648
      %v5521 = vor.u32 1.1754944e-38, %v5520
      %v5522 = vsel %vm5519, %v5521, %v5517
      %v5523 = vmul.f32 %v5498, %v5522
      %v5524 = vmin.f32 %v5523, 1.0
      %v5525 = vmax.f32 %v5524, -1.0
      %v5526 = vmul.f32 %v4519, %v4519
      %v5527 = vmin.f32 16.0, %v5526
      %v5528 = vmul.f32 %v5527, 2.1237322e-06
      %v5529 = vadd.f32 %v5528, 0.00028619796
      %v5530 = vmul.f32 %v5527, %v5529
      %v5531 = vadd.f32 %v5530, 0.0036580483
      %v5532 = vmul.f32 %v5527, %v5531
      %v5533 = vadd.f32 %v5532, 0.05243302
      %v5534 = vmul.f32 %v5527, %v5533
      %v5535 = vadd.f32 %v5534, 0.18741608
      %v5536 = vmul.f32 %v5527, %v5535
      %v5537 = vadd.f32 %v5536, 1.1283791
      %v5538 = vmul.f32 %v4519, %v5537
      %v5539 = vmul.f32 %v5527, 3.8918573e-05
      %v5540 = vadd.f32 %v5539, 0.001143296
      %v5541 = vmul.f32 %v5527, %v5540
      %v5542 = vadd.f32 %v5541, 0.014752088
      %v5543 = vmul.f32 %v5527, %v5542
      %v5544 = vadd.f32 %v5543, 0.112945676
      %v5545 = vmul.f32 %v5527, %v5544
      %v5546 = vadd.f32 %v5545, 0.4994258
      %v5547 = vmul.f32 %v5527, %v5546
      %v5548 = vadd.f32 %v5547, 1.0
      %v5549 = vrcp.pop %v5548
      %v5550 = vmul.f32 %v5548, %v5549
      %v5551 = vsub.f32 1.0, %v5550
      %v5552 = vmul.f32 %v5549, %v5551
      %v5553 = vadd.f32 %v5549, %v5552
      %vm5554 = vweird.f32 %v5548
      %vm5555 = vweird.f32 %v5549
      %vm5556 = vmor %vm5554, %vm5555
      %v5557 = vsel %vm5556, %v5549, %v5553
      %v5558 = vand.u32 2147483647, %v5548
      %vm5559 = vcmp.eq.f32.partialorder %v5558, 8.507059e+37
      %v5560 = vand.u32 %v5548, 2147483648
      %v5561 = vor.u32 1.1754944e-38, %v5560
      %v5562 = vsel %vm5559, %v5561, %v5557
      %v5563 = vmul.f32 %v5538, %v5562
      %v5564 = vmin.f32 %v5563, 1.0
      %v5565 = vmax.f32 %v5564, -1.0
      %v5566 = vmul.f32 %v4520, %v4520
      %v5567 = vmin.f32 16.0, %v5566
      %v5568 = vmul.f32 %v5567, 2.1237322e-06
      %v5569 = vadd.f32 %v5568, 0.00028619796
      %v5570 = vmul.f32 %v5567, %v5569
      %v5571 = vadd.f32 %v5570, 0.0036580483
      %v5572 = vmul.f32 %v5567, %v5571
      %v5573 = vadd.f32 %v5572, 0.05243302
      %v5574 = vmul.f32 %v5567, %v5573
      %v5575 = vadd.f32 %v5574, 0.18741608
      %v5576 = vmul.f32 %v5567, %v5575
      %v5577 = vadd.f32 %v5576, 1.1283791
      %v5578 = vmul.f32 %v4520, %v5577
      %v5579 = vmul.f32 %v5567, 3.8918573e-05
      %v5580 = vadd.f32 %v5579, 0.001143296
      %v5581 = vmul.f32 %v5567, %v5580
      %v5582 = vadd.f32 %v5581, 0.014752088
      %v5583 = vmul.f32 %v5567, %v5582
      %v5584 = vadd.f32 %v5583, 0.112945676
      %v5585 = vmul.f32 %v5567, %v5584
      %v5586 = vadd.f32 %v5585, 0.4994258
      %v5587 = vmul.f32 %v5567, %v5586
      %v5588 = vadd.f32 %v5587, 1.0
      %v5589 = vrcp.pop %v5588
      %v5590 = vmul.f32 %v5588, %v5589
      %v5591 = vsub.f32 1.0, %v5590
      %v5592 = vmul.f32 %v5589, %v5591
      %v5593 = vadd.f32 %v5589, %v5592
      %vm5594 = vweird.f32 %v5588
      %vm5595 = vweird.f32 %v5589
      %vm5596 = vmor %vm5594, %vm5595
      %v5597 = vsel %vm5596, %v5589, %v5593
      %v5598 = vand.u32 2147483647, %v5588
      %vm5599 = vcmp.eq.f32.partialorder %v5598, 8.507059e+37
      %v5600 = vand.u32 %v5588, 2147483648
      %v5601 = vor.u32 1.1754944e-38, %v5600
      %v5602 = vsel %vm5599, %v5601, %v5597
      %v5603 = vmul.f32 %v5578, %v5602
      %v5604 = vmin.f32 %v5603, 1.0
      %v5605 = vmax.f32 %v5604, -1.0
      %v5606 = vmul.f32 %v4521, %v4521
      %v5607 = vmin.f32 16.0, %v5606
      %v5608 = vmul.f32 %v5607, 2.1237322e-06
      %v5609 = vadd.f32 %v5608, 0.00028619796
      %v5610 = vmul.f32 %v5607, %v5609
      %v5611 = vadd.f32 %v5610, 0.0036580483
      %v5612 = vmul.f32 %v5607, %v5611
      %v5613 = vadd.f32 %v5612, 0.05243302
      %v5614 = vmul.f32 %v5607, %v5613
      %v5615 = vadd.f32 %v5614, 0.18741608
      %v5616 = vmul.f32 %v5607, %v5615
      %v5617 = vadd.f32 %v5616, 1.1283791
      %v5618 = vmul.f32 %v4521, %v5617
      %v5619 = vmul.f32 %v5607, 3.8918573e-05
      %v5620 = vadd.f32 %v5619, 0.001143296
      %v5621 = vmul.f32 %v5607, %v5620
      %v5622 = vadd.f32 %v5621, 0.014752088
      %v5623 = vmul.f32 %v5607, %v5622
      %v5624 = vadd.f32 %v5623, 0.112945676
      %v5625 = vmul.f32 %v5607, %v5624
      %v5626 = vadd.f32 %v5625, 0.4994258
      %v5627 = vmul.f32 %v5607, %v5626
      %v5628 = vadd.f32 %v5627, 1.0
      %v5629 = vrcp.pop %v5628
      %v5630 = vmul.f32 %v5628, %v5629
      %v5631 = vsub.f32 1.0, %v5630
      %v5632 = vmul.f32 %v5629, %v5631
      %v5633 = vadd.f32 %v5629, %v5632
      %vm5634 = vweird.f32 %v5628
      %vm5635 = vweird.f32 %v5629
      %vm5636 = vmor %vm5634, %vm5635
      %v5637 = vsel %vm5636, %v5629, %v5633
      %v5638 = vand.u32 2147483647, %v5628
      %vm5639 = vcmp.eq.f32.partialorder %v5638, 8.507059e+37
      %v5640 = vand.u32 %v5628, 2147483648
      %v5641 = vor.u32 1.1754944e-38, %v5640
      %v5642 = vsel %vm5639, %v5641, %v5637
      %v5643 = vmul.f32 %v5618, %v5642
      %v5644 = vmin.f32 %v5643, 1.0
      %v5645 = vmax.f32 %v5644, -1.0
      %v5646 = vmul.f32 %v4522, %v4522
      %v5647 = vmin.f32 16.0, %v5646
      %v5648 = vmul.f32 %v5647, 2.1237322e-06
      %v5649 = vadd.f32 %v5648, 0.00028619796
      %v5650 = vmul.f32 %v5647, %v5649
      %v5651 = vadd.f32 %v5650, 0.0036580483
      %v5652 = vmul.f32 %v5647, %v5651
      %v5653 = vadd.f32 %v5652, 0.05243302
      %v5654 = vmul.f32 %v5647, %v5653
      %v5655 = vadd.f32 %v5654, 0.18741608
      %v5656 = vmul.f32 %v5647, %v5655
      %v5657 = vadd.f32 %v5656, 1.1283791
      %v5658 = vmul.f32 %v4522, %v5657
      %v5659 = vmul.f32 %v5647, 3.8918573e-05
      %v5660 = vadd.f32 %v5659, 0.001143296
      %v5661 = vmul.f32 %v5647, %v5660
      %v5662 = vadd.f32 %v5661, 0.014752088
      %v5663 = vmul.f32 %v5647, %v5662
      %v5664 = vadd.f32 %v5663, 0.112945676
      %v5665 = vmul.f32 %v5647, %v5664
      %v5666 = vadd.f32 %v5665, 0.4994258
      %v5667 = vmul.f32 %v5647, %v5666
      %v5668 = vadd.f32 %v5667, 1.0
      %v5669 = vrcp.pop %v5668
      %v5670 = vmul.f32 %v5668, %v5669
      %v5671 = vsub.f32 1.0, %v5670
      %v5672 = vmul.f32 %v5669, %v5671
      %v5673 = vadd.f32 %v5669, %v5672
      %vm5674 = vweird.f32 %v5668
      %vm5675 = vweird.f32 %v5669
      %vm5676 = vmor %vm5674, %vm5675
      %v5677 = vsel %vm5676, %v5669, %v5673
      %v5678 = vand.u32 2147483647, %v5668
      %vm5679 = vcmp.eq.f32.partialorder %v5678, 8.507059e+37
      %v5680 = vand.u32 %v5668, 2147483648
      %v5681 = vor.u32 1.1754944e-38, %v5680
      %v5682 = vsel %vm5679, %v5681, %v5677
      %v5683 = vmul.f32 %v5658, %v5682
      %v5684 = vmin.f32 %v5683, 1.0
      %v5685 = vmax.f32 %v5684, -1.0
      %v5686 = vmul.f32 %v4523, %v4523
      %v5687 = vmin.f32 16.0, %v5686
      %v5688 = vmul.f32 %v5687, 2.1237322e-06
      %v5689 = vadd.f32 %v5688, 0.00028619796
      %v5690 = vmul.f32 %v5687, %v5689
      %v5691 = vadd.f32 %v5690, 0.0036580483
      %v5692 = vmul.f32 %v5687, %v5691
      %v5693 = vadd.f32 %v5692, 0.05243302
      %v5694 = vmul.f32 %v5687, %v5693
      %v5695 = vadd.f32 %v5694, 0.18741608
      %v5696 = vmul.f32 %v5687, %v5695
      %v5697 = vadd.f32 %v5696, 1.1283791
      %v5698 = vmul.f32 %v4523, %v5697
      %v5699 = vmul.f32 %v5687, 3.8918573e-05
      %v5700 = vadd.f32 %v5699, 0.001143296
      %v5701 = vmul.f32 %v5687, %v5700
      %v5702 = vadd.f32 %v5701, 0.014752088
      %v5703 = vmul.f32 %v5687, %v5702
      %v5704 = vadd.f32 %v5703, 0.112945676
      %v5705 = vmul.f32 %v5687, %v5704
      %v5706 = vadd.f32 %v5705, 0.4994258
      %v5707 = vmul.f32 %v5687, %v5706
      %v5708 = vadd.f32 %v5707, 1.0
      %v5709 = vrcp.pop %v5708
      %v5710 = vmul.f32 %v5708, %v5709
      %v5711 = vsub.f32 1.0, %v5710
      %v5712 = vmul.f32 %v5709, %v5711
      %v5713 = vadd.f32 %v5709, %v5712
      %vm5714 = vweird.f32 %v5708
      %vm5715 = vweird.f32 %v5709
      %vm5716 = vmor %vm5714, %vm5715
      %v5717 = vsel %vm5716, %v5709, %v5713
      %v5718 = vand.u32 2147483647, %v5708
      %vm5719 = vcmp.eq.f32.partialorder %v5718, 8.507059e+37
      %v5720 = vand.u32 %v5708, 2147483648
      %v5721 = vor.u32 1.1754944e-38, %v5720
      %v5722 = vsel %vm5719, %v5721, %v5717
      %v5723 = vmul.f32 %v5698, %v5722
      %v5724 = vmin.f32 %v5723, 1.0
      %v5725 = vmax.f32 %v5724, -1.0
      %v5726 = vmul.f32 %v4524, %v4524
      %v5727 = vmin.f32 16.0, %v5726
      %v5728 = vmul.f32 %v5727, 2.1237322e-06
      %v5729 = vadd.f32 %v5728, 0.00028619796
      %v5730 = vmul.f32 %v5727, %v5729
      %v5731 = vadd.f32 %v5730, 0.0036580483
      %v5732 = vmul.f32 %v5727, %v5731
      %v5733 = vadd.f32 %v5732, 0.05243302
      %v5734 = vmul.f32 %v5727, %v5733
      %v5735 = vadd.f32 %v5734, 0.18741608
      %v5736 = vmul.f32 %v5727, %v5735
      %v5737 = vadd.f32 %v5736, 1.1283791
      %v5738 = vmul.f32 %v4524, %v5737
      %v5739 = vmul.f32 %v5727, 3.8918573e-05
      %v5740 = vadd.f32 %v5739, 0.001143296
      %v5741 = vmul.f32 %v5727, %v5740
      %v5742 = vadd.f32 %v5741, 0.014752088
      %v5743 = vmul.f32 %v5727, %v5742
      %v5744 = vadd.f32 %v5743, 0.112945676
      %v5745 = vmul.f32 %v5727, %v5744
      %v5746 = vadd.f32 %v5745, 0.4994258
      %v5747 = vmul.f32 %v5727, %v5746
      %v5748 = vadd.f32 %v5747, 1.0
      %v5749 = vrcp.pop %v5748
      %v5750 = vmul.f32 %v5748, %v5749
      %v5751 = vsub.f32 1.0, %v5750
      %v5752 = vmul.f32 %v5749, %v5751
      %v5753 = vadd.f32 %v5749, %v5752
      %vm5754 = vweird.f32 %v5748
      %vm5755 = vweird.f32 %v5749
      %vm5756 = vmor %vm5754, %vm5755
      %v5757 = vsel %vm5756, %v5749, %v5753
      %v5758 = vand.u32 2147483647, %v5748
      %vm5759 = vcmp.eq.f32.partialorder %v5758, 8.507059e+37
      %v5760 = vand.u32 %v5748, 2147483648
      %v5761 = vor.u32 1.1754944e-38, %v5760
      %v5762 = vsel %vm5759, %v5761, %v5757
      %v5763 = vmul.f32 %v5738, %v5762
      %v5764 = vmin.f32 %v5763, 1.0
      %v5765 = vmax.f32 %v5764, -1.0
      %v5766 = vmul.f32 %v4525, %v4525
      %v5767 = vmin.f32 16.0, %v5766
      %v5768 = vmul.f32 %v5767, 2.1237322e-06
      %v5769 = vadd.f32 %v5768, 0.00028619796
      %v5770 = vmul.f32 %v5767, %v5769
      %v5771 = vadd.f32 %v5770, 0.0036580483
      %v5772 = vmul.f32 %v5767, %v5771
      %v5773 = vadd.f32 %v5772, 0.05243302
      %v5774 = vmul.f32 %v5767, %v5773
      %v5775 = vadd.f32 %v5774, 0.18741608
      %v5776 = vmul.f32 %v5767, %v5775
      %v5777 = vadd.f32 %v5776, 1.1283791
      %v5778 = vmul.f32 %v4525, %v5777
      %v5779 = vmul.f32 %v5767, 3.8918573e-05
      %v5780 = vadd.f32 %v5779, 0.001143296
      %v5781 = vmul.f32 %v5767, %v5780
      %v5782 = vadd.f32 %v5781, 0.014752088
      %v5783 = vmul.f32 %v5767, %v5782
      %v5784 = vadd.f32 %v5783, 0.112945676
      %v5785 = vmul.f32 %v5767, %v5784
      %v5786 = vadd.f32 %v5785, 0.4994258
      %v5787 = vmul.f32 %v5767, %v5786
      %v5788 = vadd.f32 %v5787, 1.0
      %v5789 = vrcp.pop %v5788
      %v5790 = vmul.f32 %v5788, %v5789
      %v5791 = vsub.f32 1.0, %v5790
      %v5792 = vmul.f32 %v5789, %v5791
      %v5793 = vadd.f32 %v5789, %v5792
      %vm5794 = vweird.f32 %v5788
      %vm5795 = vweird.f32 %v5789
      %vm5796 = vmor %vm5794, %vm5795
      %v5797 = vsel %vm5796, %v5789, %v5793
      %v5798 = vand.u32 2147483647, %v5788
      %vm5799 = vcmp.eq.f32.partialorder %v5798, 8.507059e+37
      %v5800 = vand.u32 %v5788, 2147483648
      %v5801 = vor.u32 1.1754944e-38, %v5800
      %v5802 = vsel %vm5799, %v5801, %v5797
      %v5803 = vmul.f32 %v5778, %v5802
      %v5804 = vmin.f32 %v5803, 1.0
      %v5805 = vmax.f32 %v5804, -1.0
      %v5806 = vadd.f32 %v4565, 1.0
      %v5807 = vadd.f32 %v4605, 1.0
      %v5808 = vadd.f32 %v4645, 1.0
      %v5809 = vadd.f32 %v4685, 1.0
      %v5810 = vadd.f32 %v4725, 1.0
      %v5811 = vadd.f32 %v4765, 1.0
      %v5812 = vadd.f32 %v4805, 1.0
      %v5813 = vadd.f32 %v4845, 1.0
      %v5814 = vadd.f32 %v4885, 1.0
      %v5815 = vadd.f32 %v4925, 1.0
      %v5816 = vadd.f32 %v4965, 1.0
      %v5817 = vadd.f32 %v5005, 1.0
      %v5818 = vadd.f32 %v5045, 1.0
      %v5819 = vadd.f32 %v5085, 1.0
      %v5820 = vadd.f32 %v5125, 1.0
      %v5821 = vadd.f32 %v5165, 1.0
      %v5822 = vadd.f32 %v5205, 1.0
      %v5823 = vadd.f32 %v5245, 1.0
      %v5824 = vadd.f32 %v5285, 1.0
      %v5825 = vadd.f32 %v5325, 1.0
      %v5826 = vadd.f32 %v5365, 1.0
      %v5827 = vadd.f32 %v5405, 1.0
      %v5828 = vadd.f32 %v5445, 1.0
      %v5829 = vadd.f32 %v5485, 1.0
      %v5830 = vadd.f32 %v5525, 1.0
      %v5831 = vadd.f32 %v5565, 1.0
      %v5832 = vadd.f32 %v5605, 1.0
      %v5833 = vadd.f32 %v5645, 1.0
      %v5834 = vadd.f32 %v5685, 1.0
      %v5835 = vadd.f32 %v5725, 1.0
      %v5836 = vadd.f32 %v5765, 1.0
      %v5837 = vadd.f32 %v5805, 1.0
      %v5838 = vmul.f32 %v4462, %v5806
      %v5839 = vmul.f32 %v4463, %v5807
      %v5840 = vmul.f32 %v4464, %v5808
      %v5841 = vmul.f32 %v4465, %v5809
      %v5842 = vmul.f32 %v4466, %v5810
      %v5843 = vmul.f32 %v4467, %v5811
      %v5844 = vmul.f32 %v4468, %v5812
      %v5845 = vmul.f32 %v4469, %v5813
      %v5846 = vmul.f32 %v4470, %v5814
      %v5847 = vmul.f32 %v4471, %v5815
      %v5848 = vmul.f32 %v4472, %v5816
      %v5849 = vmul.f32 %v4473, %v5817
      %v5850 = vmul.f32 %v4474, %v5818
      %v5851 = vmul.f32 %v4475, %v5819
      %v5852 = vmul.f32 %v4476, %v5820
      %v5853 = vmul.f32 %v4477, %v5821
      %v5854 = vmul.f32 %v4478, %v5822
      %v5855 = vmul.f32 %v4479, %v5823
      %v5856 = vmul.f32 %v4480, %v5824
      %v5857 = vmul.f32 %v4481, %v5825
      %v5858 = vmul.f32 %v4482, %v5826
      %v5859 = vmul.f32 %v4483, %v5827
      %v5860 = vmul.f32 %v4484, %v5828
      %v5861 = vmul.f32 %v4485, %v5829
      %v5862 = vmul.f32 %v4486, %v5830
      %v5863 = vmul.f32 %v4487, %v5831
      %v5864 = vmul.f32 %v4488, %v5832
      %v5865 = vmul.f32 %v4489, %v5833
      %v5866 = vmul.f32 %v4490, %v5834
      %v5867 = vmul.f32 %v4491, %v5835
      %v5868 = vmul.f32 %v4492, %v5836
      %v5869 = vmul.f32 %v4493, %v5837
      %v5870 = vpack.c.bf16 %v5839, %v5838
      %v5871 = vpack.c.bf16 %v5841, %v5840
      %v5872 = vpack.c.bf16 %v5843, %v5842
      %v5873 = vpack.c.bf16 %v5845, %v5844
      %v5874 = vpack.c.bf16 %v5847, %v5846
      %v5875 = vpack.c.bf16 %v5849, %v5848
      %v5876 = vpack.c.bf16 %v5851, %v5850
      %v5877 = vpack.c.bf16 %v5853, %v5852
      %v5878 = vpack.c.bf16 %v5855, %v5854
      %v5879 = vpack.c.bf16 %v5857, %v5856
      %v5880 = vpack.c.bf16 %v5859, %v5858
      %v5881 = vpack.c.bf16 %v5861, %v5860
      %v5882 = vpack.c.bf16 %v5863, %v5862
      %v5883 = vpack.c.bf16 %v5865, %v5864
      %v5884 = vpack.c.bf16 %v5867, %v5866
      %v5885 = vpack.c.bf16 %v5869, %v5868
      %v5886 = vld [vmem:[%s14] sm:$0xf]
      %v5887 = vld [vmem:[%s14 + $0x4] sm:$0xf]
      %v5888 = vld [vmem:[%s14 + $0x8] sm:$0xf]
      %v5889 = vld [vmem:[%s14 + $0xc] sm:$0xf]
      %v5890 = vld [vmem:[%s14 + $0x10] sm:$0xf]
      %v5891 = vld [vmem:[%s14 + $0x14] sm:$0xf]
      %v5892 = vld [vmem:[%s15] sm:$0x1]
      %v5894 = vperm.slane %v5892, 0
      %v5902 = vunpack.c.l.b16 %v5886
      %v5903 = vunpack.c.l.b16 %v5887
      %v5904 = vunpack.c.l.b16 %v5888
      %v5905 = vunpack.c.l.b16 %v5889
      %v5906 = vunpack.c.l.b16 %v5890
      %v5907 = vunpack.c.l.b16 %v5891
      %v5908 = vpack.c.b16 %v5903, %v5902
      %v5909 = vpack.c.b16 %v5905, %v5904
      %v5910 = vpack.c.b16 %v5907, %v5906
      %vm5914 = vcmask 392192
      %v5916 = vsel %vm5914, %v5870, 0
      %v5919 = vsel %vm5914, %v5871, 0
      %v5922 = vsel %vm5914, %v5872, 0
      %v5925 = vsel %vm5914, %v5873, 0
      %v5928 = vsel %vm5914, %v5874, 0
      %v5931 = vsel %vm5914, %v5875, 0
      %v5934 = vsel %vm5914, %v5876, 0
      %v5937 = vsel %vm5914, %v5877, 0
      %v5940 = vsel %vm5914, %v5878, 0
      %v5943 = vsel %vm5914, %v5879, 0
      %v5946 = vsel %vm5914, %v5880, 0
      %v5949 = vsel %vm5914, %v5881, 0
      %v5952 = vsel %vm5914, %v5882, 0
      %v5955 = vsel %vm5914, %v5883, 0
      %v5958 = vsel %vm5914, %v5884, 0
      %v5961 = vsel %vm5914, %v5885, 0
      %5963 = vmatpush.bf16.msra.mxu0 0
      %5964 = vmatpush.bf16.msra.mxu0 0
      %5965 = vmatpush.bf16.msra.mxu0 0
      %5966 = vmatpush.bf16.msra.mxu0 0
      %5967 = vmatpush.bf16.msra.mxu0 0
      %5968 = vmatpush.bf16.msra.mxu0 %v5910
      %5969 = vmatpush.bf16.msra.mxu0 %v5909
      %5970 = vmatpush.bf16.msra.mxu0 %v5908
      %5971 = vmatmul.bf16.gmra.mxu0 %v5916
      %v5972 = vpop.f32.mrf.mxu0
      %v5973 = vadd.f32 %v5894, %v5972
      %v5974 = vpop.f32.mrf.mxu0
      %v5975 = vadd.f32 %v5894, %v5974
      %5976 = vmatmul.bf16.gmra.mxu0 %v5919
      %v5977 = vpop.f32.mrf.mxu0
      %v5978 = vadd.f32 %v5894, %v5977
      %v5979 = vpop.f32.mrf.mxu0
      %v5980 = vadd.f32 %v5894, %v5979
      %5981 = vmatmul.bf16.gmra.mxu0 %v5922
      %v5982 = vpop.f32.mrf.mxu0
      %v5983 = vadd.f32 %v5894, %v5982
      %v5984 = vpop.f32.mrf.mxu0
      %v5985 = vadd.f32 %v5894, %v5984
      %5986 = vmatmul.bf16.gmra.mxu0 %v5925
      %v5987 = vpop.f32.mrf.mxu0
      %v5988 = vadd.f32 %v5894, %v5987
      %v5989 = vpop.f32.mrf.mxu0
      %v5990 = vadd.f32 %v5894, %v5989
      %5991 = vmatmul.bf16.gmra.mxu0 %v5928
      %v5992 = vpop.f32.mrf.mxu0
      %v5993 = vadd.f32 %v5894, %v5992
      %v5994 = vpop.f32.mrf.mxu0
      %v5995 = vadd.f32 %v5894, %v5994
      %5996 = vmatmul.bf16.gmra.mxu0 %v5931
      %v5997 = vpop.f32.mrf.mxu0
      %v5998 = vadd.f32 %v5894, %v5997
      %v5999 = vpop.f32.mrf.mxu0
      %v6000 = vadd.f32 %v5894, %v5999
      %6001 = vmatmul.bf16.gmra.mxu0 %v5934
      %v6002 = vpop.f32.mrf.mxu0
      %v6003 = vadd.f32 %v5894, %v6002
      %v6004 = vpop.f32.mrf.mxu0
      %v6005 = vadd.f32 %v5894, %v6004
      %6006 = vmatmul.bf16.gmra.mxu0 %v5937
      %v6007 = vpop.f32.mrf.mxu0
      %v6008 = vadd.f32 %v5894, %v6007
      %v6009 = vpop.f32.mrf.mxu0
      %v6010 = vadd.f32 %v5894, %v6009
      %6011 = vmatmul.bf16.gmra.mxu0 %v5940
      %v6012 = vpop.f32.mrf.mxu0
      %v6013 = vadd.f32 %v5894, %v6012
      %v6014 = vpop.f32.mrf.mxu0
      %v6015 = vadd.f32 %v5894, %v6014
      %6016 = vmatmul.bf16.gmra.mxu0 %v5943
      %v6017 = vpop.f32.mrf.mxu0
      %v6018 = vadd.f32 %v5894, %v6017
      %v6019 = vpop.f32.mrf.mxu0
      %v6020 = vadd.f32 %v5894, %v6019
      %6021 = vmatmul.bf16.gmra.mxu0 %v5946
      %v6022 = vpop.f32.mrf.mxu0
      %v6023 = vadd.f32 %v5894, %v6022
      %v6024 = vpop.f32.mrf.mxu0
      %v6025 = vadd.f32 %v5894, %v6024
      %6026 = vmatmul.bf16.gmra.mxu0 %v5949
      %v6027 = vpop.f32.mrf.mxu0
      %v6028 = vadd.f32 %v5894, %v6027
      %v6029 = vpop.f32.mrf.mxu0
      %v6030 = vadd.f32 %v5894, %v6029
      %6031 = vmatmul.bf16.gmra.mxu0 %v5952
      %v6032 = vpop.f32.mrf.mxu0
      %v6033 = vadd.f32 %v5894, %v6032
      %v6034 = vpop.f32.mrf.mxu0
      %v6035 = vadd.f32 %v5894, %v6034
      %6036 = vmatmul.bf16.gmra.mxu0 %v5955
      %v6037 = vpop.f32.mrf.mxu0
      %v6038 = vadd.f32 %v5894, %v6037
      %v6039 = vpop.f32.mrf.mxu0
      %v6040 = vadd.f32 %v5894, %v6039
      %6041 = vmatmul.bf16.gmra.mxu0 %v5958
      %v6042 = vpop.f32.mrf.mxu0
      %v6043 = vadd.f32 %v5894, %v6042
      %v6044 = vpop.f32.mrf.mxu0
      %v6045 = vadd.f32 %v5894, %v6044
      %6046 = vmatmul.bf16.gmra.mxu0 %v5961
      %v6047 = vpop.f32.mrf.mxu0
      %v6048 = vadd.f32 %v5894, %v6047
      %v6049 = vpop.f32.mrf.mxu0
      %v6050 = vadd.f32 %v5894, %v6049
      %6051 = vdwg.mxu0
      %v6052 = vmul.f32 %v5973, 0.5
      %v6053 = vmul.f32 %v5975, 0.5
      %v6054 = vmul.f32 %v5978, 0.5
      %v6055 = vmul.f32 %v5980, 0.5
      %v6056 = vmul.f32 %v5983, 0.5
      %v6057 = vmul.f32 %v5985, 0.5
      %v6058 = vmul.f32 %v5988, 0.5
      %v6059 = vmul.f32 %v5990, 0.5
      %v6060 = vmul.f32 %v5993, 0.5
      %v6061 = vmul.f32 %v5995, 0.5
      %v6062 = vmul.f32 %v5998, 0.5
      %v6063 = vmul.f32 %v6000, 0.5
      %v6064 = vmul.f32 %v6003, 0.5
      %v6065 = vmul.f32 %v6005, 0.5
      %v6066 = vmul.f32 %v6008, 0.5
      %v6067 = vmul.f32 %v6010, 0.5
      %v6068 = vmul.f32 %v6013, 0.5
      %v6069 = vmul.f32 %v6015, 0.5
      %v6070 = vmul.f32 %v6018, 0.5
      %v6071 = vmul.f32 %v6020, 0.5
      %v6072 = vmul.f32 %v6023, 0.5
      %v6073 = vmul.f32 %v6025, 0.5
      %v6074 = vmul.f32 %v6028, 0.5
      %v6075 = vmul.f32 %v6030, 0.5
      %v6076 = vmul.f32 %v6033, 0.5
      %v6077 = vmul.f32 %v6035, 0.5
      %v6078 = vmul.f32 %v6038, 0.5
      %v6079 = vmul.f32 %v6040, 0.5
      %v6080 = vmul.f32 %v6043, 0.5
      %v6081 = vmul.f32 %v6045, 0.5
      %v6082 = vmul.f32 %v6048, 0.5
      %v6083 = vmul.f32 %v6050, 0.5
      %v6084 = vmul.f32 %v5973, 0.70710677
      %v6085 = vmul.f32 %v5975, 0.70710677
      %v6086 = vmul.f32 %v5978, 0.70710677
      %v6087 = vmul.f32 %v5980, 0.70710677
      %v6088 = vmul.f32 %v5983, 0.70710677
      %v6089 = vmul.f32 %v5985, 0.70710677
      %v6090 = vmul.f32 %v5988, 0.70710677
      %v6091 = vmul.f32 %v5990, 0.70710677
      %v6092 = vmul.f32 %v5993, 0.70710677
      %v6093 = vmul.f32 %v5995, 0.70710677
      %v6094 = vmul.f32 %v5998, 0.70710677
      %v6095 = vmul.f32 %v6000, 0.70710677
      %v6096 = vmul.f32 %v6003, 0.70710677
      %v6097 = vmul.f32 %v6005, 0.70710677
      %v6098 = vmul.f32 %v6008, 0.70710677
      %v6099 = vmul.f32 %v6010, 0.70710677
      %v6100 = vmul.f32 %v6013, 0.70710677
      %v6101 = vmul.f32 %v6015, 0.70710677
      %v6102 = vmul.f32 %v6018, 0.70710677
      %v6103 = vmul.f32 %v6020, 0.70710677
      %v6104 = vmul.f32 %v6023, 0.70710677
      %v6105 = vmul.f32 %v6025, 0.70710677
      %v6106 = vmul.f32 %v6028, 0.70710677
      %v6107 = vmul.f32 %v6030, 0.70710677
      %v6108 = vmul.f32 %v6033, 0.70710677
      %v6109 = vmul.f32 %v6035, 0.70710677
      %v6110 = vmul.f32 %v6038, 0.70710677
      %v6111 = vmul.f32 %v6040, 0.70710677
      %v6112 = vmul.f32 %v6043, 0.70710677
      %v6113 = vmul.f32 %v6045, 0.70710677
      %v6114 = vmul.f32 %v6048, 0.70710677
      %v6115 = vmul.f32 %v6050, 0.70710677
      %v6116 = vmul.f32 %v6084, %v6084
      %v6117 = vmin.f32 16.0, %v6116
      %v6118 = vmul.f32 %v6117, 2.1237322e-06
      %v6119 = vadd.f32 %v6118, 0.00028619796
      %v6120 = vmul.f32 %v6117, %v6119
      %v6121 = vadd.f32 %v6120, 0.0036580483
      %v6122 = vmul.f32 %v6117, %v6121
      %v6123 = vadd.f32 %v6122, 0.05243302
      %v6124 = vmul.f32 %v6117, %v6123
      %v6125 = vadd.f32 %v6124, 0.18741608
      %v6126 = vmul.f32 %v6117, %v6125
      %v6127 = vadd.f32 %v6126, 1.1283791
      %v6128 = vmul.f32 %v6084, %v6127
      %v6129 = vmul.f32 %v6117, 3.8918573e-05
      %v6130 = vadd.f32 %v6129, 0.001143296
      %v6131 = vmul.f32 %v6117, %v6130
      %v6132 = vadd.f32 %v6131, 0.014752088
      %v6133 = vmul.f32 %v6117, %v6132
      %v6134 = vadd.f32 %v6133, 0.112945676
      %v6135 = vmul.f32 %v6117, %v6134
      %v6136 = vadd.f32 %v6135, 0.4994258
      %v6137 = vmul.f32 %v6117, %v6136
      %v6138 = vadd.f32 %v6137, 1.0
      %v6139 = vrcp.pop %v6138
      %v6140 = vmul.f32 %v6138, %v6139
      %v6141 = vsub.f32 1.0, %v6140
      %v6142 = vmul.f32 %v6139, %v6141
      %v6143 = vadd.f32 %v6139, %v6142
      %vm6144 = vweird.f32 %v6138
      %vm6145 = vweird.f32 %v6139
      %vm6146 = vmor %vm6144, %vm6145
      %v6147 = vsel %vm6146, %v6139, %v6143
      %v6148 = vand.u32 2147483647, %v6138
      %vm6149 = vcmp.eq.f32.partialorder %v6148, 8.507059e+37
      %v6150 = vand.u32 %v6138, 2147483648
      %v6151 = vor.u32 1.1754944e-38, %v6150
      %v6152 = vsel %vm6149, %v6151, %v6147
      %v6153 = vmul.f32 %v6128, %v6152
      %v6154 = vmin.f32 %v6153, 1.0
      %v6155 = vmax.f32 %v6154, -1.0
      %v6156 = vmul.f32 %v6085, %v6085
      %v6157 = vmin.f32 16.0, %v6156
      %v6158 = vmul.f32 %v6157, 2.1237322e-06
      %v6159 = vadd.f32 %v6158, 0.00028619796
      %v6160 = vmul.f32 %v6157, %v6159
      %v6161 = vadd.f32 %v6160, 0.0036580483
      %v6162 = vmul.f32 %v6157, %v6161
      %v6163 = vadd.f32 %v6162, 0.05243302
      %v6164 = vmul.f32 %v6157, %v6163
      %v6165 = vadd.f32 %v6164, 0.18741608
      %v6166 = vmul.f32 %v6157, %v6165
      %v6167 = vadd.f32 %v6166, 1.1283791
      %v6168 = vmul.f32 %v6085, %v6167
      %v6169 = vmul.f32 %v6157, 3.8918573e-05
      %v6170 = vadd.f32 %v6169, 0.001143296
      %v6171 = vmul.f32 %v6157, %v6170
      %v6172 = vadd.f32 %v6171, 0.014752088
      %v6173 = vmul.f32 %v6157, %v6172
      %v6174 = vadd.f32 %v6173, 0.112945676
      %v6175 = vmul.f32 %v6157, %v6174
      %v6176 = vadd.f32 %v6175, 0.4994258
      %v6177 = vmul.f32 %v6157, %v6176
      %v6178 = vadd.f32 %v6177, 1.0
      %v6179 = vrcp.pop %v6178
      %v6180 = vmul.f32 %v6178, %v6179
      %v6181 = vsub.f32 1.0, %v6180
      %v6182 = vmul.f32 %v6179, %v6181
      %v6183 = vadd.f32 %v6179, %v6182
      %vm6184 = vweird.f32 %v6178
      %vm6185 = vweird.f32 %v6179
      %vm6186 = vmor %vm6184, %vm6185
      %v6187 = vsel %vm6186, %v6179, %v6183
      %v6188 = vand.u32 2147483647, %v6178
      %vm6189 = vcmp.eq.f32.partialorder %v6188, 8.507059e+37
      %v6190 = vand.u32 %v6178, 2147483648
      %v6191 = vor.u32 1.1754944e-38, %v6190
      %v6192 = vsel %vm6189, %v6191, %v6187
      %v6193 = vmul.f32 %v6168, %v6192
      %v6194 = vmin.f32 %v6193, 1.0
      %v6195 = vmax.f32 %v6194, -1.0
      %v6196 = vmul.f32 %v6086, %v6086
      %v6197 = vmin.f32 16.0, %v6196
      %v6198 = vmul.f32 %v6197, 2.1237322e-06
      %v6199 = vadd.f32 %v6198, 0.00028619796
      %v6200 = vmul.f32 %v6197, %v6199
      %v6201 = vadd.f32 %v6200, 0.0036580483
      %v6202 = vmul.f32 %v6197, %v6201
      %v6203 = vadd.f32 %v6202, 0.05243302
      %v6204 = vmul.f32 %v6197, %v6203
      %v6205 = vadd.f32 %v6204, 0.18741608
      %v6206 = vmul.f32 %v6197, %v6205
      %v6207 = vadd.f32 %v6206, 1.1283791
      %v6208 = vmul.f32 %v6086, %v6207
      %v6209 = vmul.f32 %v6197, 3.8918573e-05
      %v6210 = vadd.f32 %v6209, 0.001143296
      %v6211 = vmul.f32 %v6197, %v6210
      %v6212 = vadd.f32 %v6211, 0.014752088
      %v6213 = vmul.f32 %v6197, %v6212
      %v6214 = vadd.f32 %v6213, 0.112945676
      %v6215 = vmul.f32 %v6197, %v6214
      %v6216 = vadd.f32 %v6215, 0.4994258
      %v6217 = vmul.f32 %v6197, %v6216
      %v6218 = vadd.f32 %v6217, 1.0
      %v6219 = vrcp.pop %v6218
      %v6220 = vmul.f32 %v6218, %v6219
      %v6221 = vsub.f32 1.0, %v6220
      %v6222 = vmul.f32 %v6219, %v6221
      %v6223 = vadd.f32 %v6219, %v6222
      %vm6224 = vweird.f32 %v6218
      %vm6225 = vweird.f32 %v6219
      %vm6226 = vmor %vm6224, %vm6225
      %v6227 = vsel %vm6226, %v6219, %v6223
      %v6228 = vand.u32 2147483647, %v6218
      %vm6229 = vcmp.eq.f32.partialorder %v6228, 8.507059e+37
      %v6230 = vand.u32 %v6218, 2147483648
      %v6231 = vor.u32 1.1754944e-38, %v6230
      %v6232 = vsel %vm6229, %v6231, %v6227
      %v6233 = vmul.f32 %v6208, %v6232
      %v6234 = vmin.f32 %v6233, 1.0
      %v6235 = vmax.f32 %v6234, -1.0
      %v6236 = vmul.f32 %v6087, %v6087
      %v6237 = vmin.f32 16.0, %v6236
      %v6238 = vmul.f32 %v6237, 2.1237322e-06
      %v6239 = vadd.f32 %v6238, 0.00028619796
      %v6240 = vmul.f32 %v6237, %v6239
      %v6241 = vadd.f32 %v6240, 0.0036580483
      %v6242 = vmul.f32 %v6237, %v6241
      %v6243 = vadd.f32 %v6242, 0.05243302
      %v6244 = vmul.f32 %v6237, %v6243
      %v6245 = vadd.f32 %v6244, 0.18741608
      %v6246 = vmul.f32 %v6237, %v6245
      %v6247 = vadd.f32 %v6246, 1.1283791
      %v6248 = vmul.f32 %v6087, %v6247
      %v6249 = vmul.f32 %v6237, 3.8918573e-05
      %v6250 = vadd.f32 %v6249, 0.001143296
      %v6251 = vmul.f32 %v6237, %v6250
      %v6252 = vadd.f32 %v6251, 0.014752088
      %v6253 = vmul.f32 %v6237, %v6252
      %v6254 = vadd.f32 %v6253, 0.112945676
      %v6255 = vmul.f32 %v6237, %v6254
      %v6256 = vadd.f32 %v6255, 0.4994258
      %v6257 = vmul.f32 %v6237, %v6256
      %v6258 = vadd.f32 %v6257, 1.0
      %v6259 = vrcp.pop %v6258
      %v6260 = vmul.f32 %v6258, %v6259
      %v6261 = vsub.f32 1.0, %v6260
      %v6262 = vmul.f32 %v6259, %v6261
      %v6263 = vadd.f32 %v6259, %v6262
      %vm6264 = vweird.f32 %v6258
      %vm6265 = vweird.f32 %v6259
      %vm6266 = vmor %vm6264, %vm6265
      %v6267 = vsel %vm6266, %v6259, %v6263
      %v6268 = vand.u32 2147483647, %v6258
      %vm6269 = vcmp.eq.f32.partialorder %v6268, 8.507059e+37
      %v6270 = vand.u32 %v6258, 2147483648
      %v6271 = vor.u32 1.1754944e-38, %v6270
      %v6272 = vsel %vm6269, %v6271, %v6267
      %v6273 = vmul.f32 %v6248, %v6272
      %v6274 = vmin.f32 %v6273, 1.0
      %v6275 = vmax.f32 %v6274, -1.0
      %v6276 = vmul.f32 %v6088, %v6088
      %v6277 = vmin.f32 16.0, %v6276
      %v6278 = vmul.f32 %v6277, 2.1237322e-06
      %v6279 = vadd.f32 %v6278, 0.00028619796
      %v6280 = vmul.f32 %v6277, %v6279
      %v6281 = vadd.f32 %v6280, 0.0036580483
      %v6282 = vmul.f32 %v6277, %v6281
      %v6283 = vadd.f32 %v6282, 0.05243302
      %v6284 = vmul.f32 %v6277, %v6283
      %v6285 = vadd.f32 %v6284, 0.18741608
      %v6286 = vmul.f32 %v6277, %v6285
      %v6287 = vadd.f32 %v6286, 1.1283791
      %v6288 = vmul.f32 %v6088, %v6287
      %v6289 = vmul.f32 %v6277, 3.8918573e-05
      %v6290 = vadd.f32 %v6289, 0.001143296
      %v6291 = vmul.f32 %v6277, %v6290
      %v6292 = vadd.f32 %v6291, 0.014752088
      %v6293 = vmul.f32 %v6277, %v6292
      %v6294 = vadd.f32 %v6293, 0.112945676
      %v6295 = vmul.f32 %v6277, %v6294
      %v6296 = vadd.f32 %v6295, 0.4994258
      %v6297 = vmul.f32 %v6277, %v6296
      %v6298 = vadd.f32 %v6297, 1.0
      %v6299 = vrcp.pop %v6298
      %v6300 = vmul.f32 %v6298, %v6299
      %v6301 = vsub.f32 1.0, %v6300
      %v6302 = vmul.f32 %v6299, %v6301
      %v6303 = vadd.f32 %v6299, %v6302
      %vm6304 = vweird.f32 %v6298
      %vm6305 = vweird.f32 %v6299
      %vm6306 = vmor %vm6304, %vm6305
      %v6307 = vsel %vm6306, %v6299, %v6303
      %v6308 = vand.u32 2147483647, %v6298
      %vm6309 = vcmp.eq.f32.partialorder %v6308, 8.507059e+37
      %v6310 = vand.u32 %v6298, 2147483648
      %v6311 = vor.u32 1.1754944e-38, %v6310
      %v6312 = vsel %vm6309, %v6311, %v6307
      %v6313 = vmul.f32 %v6288, %v6312
      %v6314 = vmin.f32 %v6313, 1.0
      %v6315 = vmax.f32 %v6314, -1.0
      %v6316 = vmul.f32 %v6089, %v6089
      %v6317 = vmin.f32 16.0, %v6316
      %v6318 = vmul.f32 %v6317, 2.1237322e-06
      %v6319 = vadd.f32 %v6318, 0.00028619796
      %v6320 = vmul.f32 %v6317, %v6319
      %v6321 = vadd.f32 %v6320, 0.0036580483
      %v6322 = vmul.f32 %v6317, %v6321
      %v6323 = vadd.f32 %v6322, 0.05243302
      %v6324 = vmul.f32 %v6317, %v6323
      %v6325 = vadd.f32 %v6324, 0.18741608
      %v6326 = vmul.f32 %v6317, %v6325
      %v6327 = vadd.f32 %v6326, 1.1283791
      %v6328 = vmul.f32 %v6089, %v6327
      %v6329 = vmul.f32 %v6317, 3.8918573e-05
      %v6330 = vadd.f32 %v6329, 0.001143296
      %v6331 = vmul.f32 %v6317, %v6330
      %v6332 = vadd.f32 %v6331, 0.014752088
      %v6333 = vmul.f32 %v6317, %v6332
      %v6334 = vadd.f32 %v6333, 0.112945676
      %v6335 = vmul.f32 %v6317, %v6334
      %v6336 = vadd.f32 %v6335, 0.4994258
      %v6337 = vmul.f32 %v6317, %v6336
      %v6338 = vadd.f32 %v6337, 1.0
      %v6339 = vrcp.pop %v6338
      %v6340 = vmul.f32 %v6338, %v6339
      %v6341 = vsub.f32 1.0, %v6340
      %v6342 = vmul.f32 %v6339, %v6341
      %v6343 = vadd.f32 %v6339, %v6342
      %vm6344 = vweird.f32 %v6338
      %vm6345 = vweird.f32 %v6339
      %vm6346 = vmor %vm6344, %vm6345
      %v6347 = vsel %vm6346, %v6339, %v6343
      %v6348 = vand.u32 2147483647, %v6338
      %vm6349 = vcmp.eq.f32.partialorder %v6348, 8.507059e+37
      %v6350 = vand.u32 %v6338, 2147483648
      %v6351 = vor.u32 1.1754944e-38, %v6350
      %v6352 = vsel %vm6349, %v6351, %v6347
      %v6353 = vmul.f32 %v6328, %v6352
      %v6354 = vmin.f32 %v6353, 1.0
      %v6355 = vmax.f32 %v6354, -1.0
      %v6356 = vmul.f32 %v6090, %v6090
      %v6357 = vmin.f32 16.0, %v6356
      %v6358 = vmul.f32 %v6357, 2.1237322e-06
      %v6359 = vadd.f32 %v6358, 0.00028619796
      %v6360 = vmul.f32 %v6357, %v6359
      %v6361 = vadd.f32 %v6360, 0.0036580483
      %v6362 = vmul.f32 %v6357, %v6361
      %v6363 = vadd.f32 %v6362, 0.05243302
      %v6364 = vmul.f32 %v6357, %v6363
      %v6365 = vadd.f32 %v6364, 0.18741608
      %v6366 = vmul.f32 %v6357, %v6365
      %v6367 = vadd.f32 %v6366, 1.1283791
      %v6368 = vmul.f32 %v6090, %v6367
      %v6369 = vmul.f32 %v6357, 3.8918573e-05
      %v6370 = vadd.f32 %v6369, 0.001143296
      %v6371 = vmul.f32 %v6357, %v6370
      %v6372 = vadd.f32 %v6371, 0.014752088
      %v6373 = vmul.f32 %v6357, %v6372
      %v6374 = vadd.f32 %v6373, 0.112945676
      %v6375 = vmul.f32 %v6357, %v6374
      %v6376 = vadd.f32 %v6375, 0.4994258
      %v6377 = vmul.f32 %v6357, %v6376
      %v6378 = vadd.f32 %v6377, 1.0
      %v6379 = vrcp.pop %v6378
      %v6380 = vmul.f32 %v6378, %v6379
      %v6381 = vsub.f32 1.0, %v6380
      %v6382 = vmul.f32 %v6379, %v6381
      %v6383 = vadd.f32 %v6379, %v6382
      %vm6384 = vweird.f32 %v6378
      %vm6385 = vweird.f32 %v6379
      %vm6386 = vmor %vm6384, %vm6385
      %v6387 = vsel %vm6386, %v6379, %v6383
      %v6388 = vand.u32 2147483647, %v6378
      %vm6389 = vcmp.eq.f32.partialorder %v6388, 8.507059e+37
      %v6390 = vand.u32 %v6378, 2147483648
      %v6391 = vor.u32 1.1754944e-38, %v6390
      %v6392 = vsel %vm6389, %v6391, %v6387
      %v6393 = vmul.f32 %v6368, %v6392
      %v6394 = vmin.f32 %v6393, 1.0
      %v6395 = vmax.f32 %v6394, -1.0
      %v6396 = vmul.f32 %v6091, %v6091
      %v6397 = vmin.f32 16.0, %v6396
      %v6398 = vmul.f32 %v6397, 2.1237322e-06
      %v6399 = vadd.f32 %v6398, 0.00028619796
      %v6400 = vmul.f32 %v6397, %v6399
      %v6401 = vadd.f32 %v6400, 0.0036580483
      %v6402 = vmul.f32 %v6397, %v6401
      %v6403 = vadd.f32 %v6402, 0.05243302
      %v6404 = vmul.f32 %v6397, %v6403
      %v6405 = vadd.f32 %v6404, 0.18741608
      %v6406 = vmul.f32 %v6397, %v6405
      %v6407 = vadd.f32 %v6406, 1.1283791
      %v6408 = vmul.f32 %v6091, %v6407
      %v6409 = vmul.f32 %v6397, 3.8918573e-05
      %v6410 = vadd.f32 %v6409, 0.001143296
      %v6411 = vmul.f32 %v6397, %v6410
      %v6412 = vadd.f32 %v6411, 0.014752088
      %v6413 = vmul.f32 %v6397, %v6412
      %v6414 = vadd.f32 %v6413, 0.112945676
      %v6415 = vmul.f32 %v6397, %v6414
      %v6416 = vadd.f32 %v6415, 0.4994258
      %v6417 = vmul.f32 %v6397, %v6416
      %v6418 = vadd.f32 %v6417, 1.0
      %v6419 = vrcp.pop %v6418
      %v6420 = vmul.f32 %v6418, %v6419
      %v6421 = vsub.f32 1.0, %v6420
      %v6422 = vmul.f32 %v6419, %v6421
      %v6423 = vadd.f32 %v6419, %v6422
      %vm6424 = vweird.f32 %v6418
      %vm6425 = vweird.f32 %v6419
      %vm6426 = vmor %vm6424, %vm6425
      %v6427 = vsel %vm6426, %v6419, %v6423
      %v6428 = vand.u32 2147483647, %v6418
      %vm6429 = vcmp.eq.f32.partialorder %v6428, 8.507059e+37
      %v6430 = vand.u32 %v6418, 2147483648
      %v6431 = vor.u32 1.1754944e-38, %v6430
      %v6432 = vsel %vm6429, %v6431, %v6427
      %v6433 = vmul.f32 %v6408, %v6432
      %v6434 = vmin.f32 %v6433, 1.0
      %v6435 = vmax.f32 %v6434, -1.0
      %v6436 = vmul.f32 %v6092, %v6092
      %v6437 = vmin.f32 16.0, %v6436
      %v6438 = vmul.f32 %v6437, 2.1237322e-06
      %v6439 = vadd.f32 %v6438, 0.00028619796
      %v6440 = vmul.f32 %v6437, %v6439
      %v6441 = vadd.f32 %v6440, 0.0036580483
      %v6442 = vmul.f32 %v6437, %v6441
      %v6443 = vadd.f32 %v6442, 0.05243302
      %v6444 = vmul.f32 %v6437, %v6443
      %v6445 = vadd.f32 %v6444, 0.18741608
      %v6446 = vmul.f32 %v6437, %v6445
      %v6447 = vadd.f32 %v6446, 1.1283791
      %v6448 = vmul.f32 %v6092, %v6447
      %v6449 = vmul.f32 %v6437, 3.8918573e-05
      %v6450 = vadd.f32 %v6449, 0.001143296
      %v6451 = vmul.f32 %v6437, %v6450
      %v6452 = vadd.f32 %v6451, 0.014752088
      %v6453 = vmul.f32 %v6437, %v6452
      %v6454 = vadd.f32 %v6453, 0.112945676
      %v6455 = vmul.f32 %v6437, %v6454
      %v6456 = vadd.f32 %v6455, 0.4994258
      %v6457 = vmul.f32 %v6437, %v6456
      %v6458 = vadd.f32 %v6457, 1.0
      %v6459 = vrcp.pop %v6458
      %v6460 = vmul.f32 %v6458, %v6459
      %v6461 = vsub.f32 1.0, %v6460
      %v6462 = vmul.f32 %v6459, %v6461
      %v6463 = vadd.f32 %v6459, %v6462
      %vm6464 = vweird.f32 %v6458
      %vm6465 = vweird.f32 %v6459
      %vm6466 = vmor %vm6464, %vm6465
      %v6467 = vsel %vm6466, %v6459, %v6463
      %v6468 = vand.u32 2147483647, %v6458
      %vm6469 = vcmp.eq.f32.partialorder %v6468, 8.507059e+37
      %v6470 = vand.u32 %v6458, 2147483648
      %v6471 = vor.u32 1.1754944e-38, %v6470
      %v6472 = vsel %vm6469, %v6471, %v6467
      %v6473 = vmul.f32 %v6448, %v6472
      %v6474 = vmin.f32 %v6473, 1.0
      %v6475 = vmax.f32 %v6474, -1.0
      %v6476 = vmul.f32 %v6093, %v6093
      %v6477 = vmin.f32 16.0, %v6476
      %v6478 = vmul.f32 %v6477, 2.1237322e-06
      %v6479 = vadd.f32 %v6478, 0.00028619796
      %v6480 = vmul.f32 %v6477, %v6479
      %v6481 = vadd.f32 %v6480, 0.0036580483
      %v6482 = vmul.f32 %v6477, %v6481
      %v6483 = vadd.f32 %v6482, 0.05243302
      %v6484 = vmul.f32 %v6477, %v6483
      %v6485 = vadd.f32 %v6484, 0.18741608
      %v6486 = vmul.f32 %v6477, %v6485
      %v6487 = vadd.f32 %v6486, 1.1283791
      %v6488 = vmul.f32 %v6093, %v6487
      %v6489 = vmul.f32 %v6477, 3.8918573e-05
      %v6490 = vadd.f32 %v6489, 0.001143296
      %v6491 = vmul.f32 %v6477, %v6490
      %v6492 = vadd.f32 %v6491, 0.014752088
      %v6493 = vmul.f32 %v6477, %v6492
      %v6494 = vadd.f32 %v6493, 0.112945676
      %v6495 = vmul.f32 %v6477, %v6494
      %v6496 = vadd.f32 %v6495, 0.4994258
      %v6497 = vmul.f32 %v6477, %v6496
      %v6498 = vadd.f32 %v6497, 1.0
      %v6499 = vrcp.pop %v6498
      %v6500 = vmul.f32 %v6498, %v6499
      %v6501 = vsub.f32 1.0, %v6500
      %v6502 = vmul.f32 %v6499, %v6501
      %v6503 = vadd.f32 %v6499, %v6502
      %vm6504 = vweird.f32 %v6498
      %vm6505 = vweird.f32 %v6499
      %vm6506 = vmor %vm6504, %vm6505
      %v6507 = vsel %vm6506, %v6499, %v6503
      %v6508 = vand.u32 2147483647, %v6498
      %vm6509 = vcmp.eq.f32.partialorder %v6508, 8.507059e+37
      %v6510 = vand.u32 %v6498, 2147483648
      %v6511 = vor.u32 1.1754944e-38, %v6510
      %v6512 = vsel %vm6509, %v6511, %v6507
      %v6513 = vmul.f32 %v6488, %v6512
      %v6514 = vmin.f32 %v6513, 1.0
      %v6515 = vmax.f32 %v6514, -1.0
      %v6516 = vmul.f32 %v6094, %v6094
      %v6517 = vmin.f32 16.0, %v6516
      %v6518 = vmul.f32 %v6517, 2.1237322e-06
      %v6519 = vadd.f32 %v6518, 0.00028619796
      %v6520 = vmul.f32 %v6517, %v6519
      %v6521 = vadd.f32 %v6520, 0.0036580483
      %v6522 = vmul.f32 %v6517, %v6521
      %v6523 = vadd.f32 %v6522, 0.05243302
      %v6524 = vmul.f32 %v6517, %v6523
      %v6525 = vadd.f32 %v6524, 0.18741608
      %v6526 = vmul.f32 %v6517, %v6525
      %v6527 = vadd.f32 %v6526, 1.1283791
      %v6528 = vmul.f32 %v6094, %v6527
      %v6529 = vmul.f32 %v6517, 3.8918573e-05
      %v6530 = vadd.f32 %v6529, 0.001143296
      %v6531 = vmul.f32 %v6517, %v6530
      %v6532 = vadd.f32 %v6531, 0.014752088
      %v6533 = vmul.f32 %v6517, %v6532
      %v6534 = vadd.f32 %v6533, 0.112945676
      %v6535 = vmul.f32 %v6517, %v6534
      %v6536 = vadd.f32 %v6535, 0.4994258
      %v6537 = vmul.f32 %v6517, %v6536
      %v6538 = vadd.f32 %v6537, 1.0
      %v6539 = vrcp.pop %v6538
      %v6540 = vmul.f32 %v6538, %v6539
      %v6541 = vsub.f32 1.0, %v6540
      %v6542 = vmul.f32 %v6539, %v6541
      %v6543 = vadd.f32 %v6539, %v6542
      %vm6544 = vweird.f32 %v6538
      %vm6545 = vweird.f32 %v6539
      %vm6546 = vmor %vm6544, %vm6545
      %v6547 = vsel %vm6546, %v6539, %v6543
      %v6548 = vand.u32 2147483647, %v6538
      %vm6549 = vcmp.eq.f32.partialorder %v6548, 8.507059e+37
      %v6550 = vand.u32 %v6538, 2147483648
      %v6551 = vor.u32 1.1754944e-38, %v6550
      %v6552 = vsel %vm6549, %v6551, %v6547
      %v6553 = vmul.f32 %v6528, %v6552
      %v6554 = vmin.f32 %v6553, 1.0
      %v6555 = vmax.f32 %v6554, -1.0
      %v6556 = vmul.f32 %v6095, %v6095
      %v6557 = vmin.f32 16.0, %v6556
      %v6558 = vmul.f32 %v6557, 2.1237322e-06
      %v6559 = vadd.f32 %v6558, 0.00028619796
      %v6560 = vmul.f32 %v6557, %v6559
      %v6561 = vadd.f32 %v6560, 0.0036580483
      %v6562 = vmul.f32 %v6557, %v6561
      %v6563 = vadd.f32 %v6562, 0.05243302
      %v6564 = vmul.f32 %v6557, %v6563
      %v6565 = vadd.f32 %v6564, 0.18741608
      %v6566 = vmul.f32 %v6557, %v6565
      %v6567 = vadd.f32 %v6566, 1.1283791
      %v6568 = vmul.f32 %v6095, %v6567
      %v6569 = vmul.f32 %v6557, 3.8918573e-05
      %v6570 = vadd.f32 %v6569, 0.001143296
      %v6571 = vmul.f32 %v6557, %v6570
      %v6572 = vadd.f32 %v6571, 0.014752088
      %v6573 = vmul.f32 %v6557, %v6572
      %v6574 = vadd.f32 %v6573, 0.112945676
      %v6575 = vmul.f32 %v6557, %v6574
      %v6576 = vadd.f32 %v6575, 0.4994258
      %v6577 = vmul.f32 %v6557, %v6576
      %v6578 = vadd.f32 %v6577, 1.0
      %v6579 = vrcp.pop %v6578
      %v6580 = vmul.f32 %v6578, %v6579
      %v6581 = vsub.f32 1.0, %v6580
      %v6582 = vmul.f32 %v6579, %v6581
      %v6583 = vadd.f32 %v6579, %v6582
      %vm6584 = vweird.f32 %v6578
      %vm6585 = vweird.f32 %v6579
      %vm6586 = vmor %vm6584, %vm6585
      %v6587 = vsel %vm6586, %v6579, %v6583
      %v6588 = vand.u32 2147483647, %v6578
      %vm6589 = vcmp.eq.f32.partialorder %v6588, 8.507059e+37
      %v6590 = vand.u32 %v6578, 2147483648
      %v6591 = vor.u32 1.1754944e-38, %v6590
      %v6592 = vsel %vm6589, %v6591, %v6587
      %v6593 = vmul.f32 %v6568, %v6592
      %v6594 = vmin.f32 %v6593, 1.0
      %v6595 = vmax.f32 %v6594, -1.0
      %v6596 = vmul.f32 %v6096, %v6096
      %v6597 = vmin.f32 16.0, %v6596
      %v6598 = vmul.f32 %v6597, 2.1237322e-06
      %v6599 = vadd.f32 %v6598, 0.00028619796
      %v6600 = vmul.f32 %v6597, %v6599
      %v6601 = vadd.f32 %v6600, 0.0036580483
      %v6602 = vmul.f32 %v6597, %v6601
      %v6603 = vadd.f32 %v6602, 0.05243302
      %v6604 = vmul.f32 %v6597, %v6603
      %v6605 = vadd.f32 %v6604, 0.18741608
      %v6606 = vmul.f32 %v6597, %v6605
      %v6607 = vadd.f32 %v6606, 1.1283791
      %v6608 = vmul.f32 %v6096, %v6607
      %v6609 = vmul.f32 %v6597, 3.8918573e-05
      %v6610 = vadd.f32 %v6609, 0.001143296
      %v6611 = vmul.f32 %v6597, %v6610
      %v6612 = vadd.f32 %v6611, 0.014752088
      %v6613 = vmul.f32 %v6597, %v6612
      %v6614 = vadd.f32 %v6613, 0.112945676
      %v6615 = vmul.f32 %v6597, %v6614
      %v6616 = vadd.f32 %v6615, 0.4994258
      %v6617 = vmul.f32 %v6597, %v6616
      %v6618 = vadd.f32 %v6617, 1.0
      %v6619 = vrcp.pop %v6618
      %v6620 = vmul.f32 %v6618, %v6619
      %v6621 = vsub.f32 1.0, %v6620
      %v6622 = vmul.f32 %v6619, %v6621
      %v6623 = vadd.f32 %v6619, %v6622
      %vm6624 = vweird.f32 %v6618
      %vm6625 = vweird.f32 %v6619
      %vm6626 = vmor %vm6624, %vm6625
      %v6627 = vsel %vm6626, %v6619, %v6623
      %v6628 = vand.u32 2147483647, %v6618
      %vm6629 = vcmp.eq.f32.partialorder %v6628, 8.507059e+37
      %v6630 = vand.u32 %v6618, 2147483648
      %v6631 = vor.u32 1.1754944e-38, %v6630
      %v6632 = vsel %vm6629, %v6631, %v6627
      %v6633 = vmul.f32 %v6608, %v6632
      %v6634 = vmin.f32 %v6633, 1.0
      %v6635 = vmax.f32 %v6634, -1.0
      %v6636 = vmul.f32 %v6097, %v6097
      %v6637 = vmin.f32 16.0, %v6636
      %v6638 = vmul.f32 %v6637, 2.1237322e-06
      %v6639 = vadd.f32 %v6638, 0.00028619796
      %v6640 = vmul.f32 %v6637, %v6639
      %v6641 = vadd.f32 %v6640, 0.0036580483
      %v6642 = vmul.f32 %v6637, %v6641
      %v6643 = vadd.f32 %v6642, 0.05243302
      %v6644 = vmul.f32 %v6637, %v6643
      %v6645 = vadd.f32 %v6644, 0.18741608
      %v6646 = vmul.f32 %v6637, %v6645
      %v6647 = vadd.f32 %v6646, 1.1283791
      %v6648 = vmul.f32 %v6097, %v6647
      %v6649 = vmul.f32 %v6637, 3.8918573e-05
      %v6650 = vadd.f32 %v6649, 0.001143296
      %v6651 = vmul.f32 %v6637, %v6650
      %v6652 = vadd.f32 %v6651, 0.014752088
      %v6653 = vmul.f32 %v6637, %v6652
      %v6654 = vadd.f32 %v6653, 0.112945676
      %v6655 = vmul.f32 %v6637, %v6654
      %v6656 = vadd.f32 %v6655, 0.4994258
      %v6657 = vmul.f32 %v6637, %v6656
      %v6658 = vadd.f32 %v6657, 1.0
      %v6659 = vrcp.pop %v6658
      %v6660 = vmul.f32 %v6658, %v6659
      %v6661 = vsub.f32 1.0, %v6660
      %v6662 = vmul.f32 %v6659, %v6661
      %v6663 = vadd.f32 %v6659, %v6662
      %vm6664 = vweird.f32 %v6658
      %vm6665 = vweird.f32 %v6659
      %vm6666 = vmor %vm6664, %vm6665
      %v6667 = vsel %vm6666, %v6659, %v6663
      %v6668 = vand.u32 2147483647, %v6658
      %vm6669 = vcmp.eq.f32.partialorder %v6668, 8.507059e+37
      %v6670 = vand.u32 %v6658, 2147483648
      %v6671 = vor.u32 1.1754944e-38, %v6670
      %v6672 = vsel %vm6669, %v6671, %v6667
      %v6673 = vmul.f32 %v6648, %v6672
      %v6674 = vmin.f32 %v6673, 1.0
      %v6675 = vmax.f32 %v6674, -1.0
      %v6676 = vmul.f32 %v6098, %v6098
      %v6677 = vmin.f32 16.0, %v6676
      %v6678 = vmul.f32 %v6677, 2.1237322e-06
      %v6679 = vadd.f32 %v6678, 0.00028619796
      %v6680 = vmul.f32 %v6677, %v6679
      %v6681 = vadd.f32 %v6680, 0.0036580483
      %v6682 = vmul.f32 %v6677, %v6681
      %v6683 = vadd.f32 %v6682, 0.05243302
      %v6684 = vmul.f32 %v6677, %v6683
      %v6685 = vadd.f32 %v6684, 0.18741608
      %v6686 = vmul.f32 %v6677, %v6685
      %v6687 = vadd.f32 %v6686, 1.1283791
      %v6688 = vmul.f32 %v6098, %v6687
      %v6689 = vmul.f32 %v6677, 3.8918573e-05
      %v6690 = vadd.f32 %v6689, 0.001143296
      %v6691 = vmul.f32 %v6677, %v6690
      %v6692 = vadd.f32 %v6691, 0.014752088
      %v6693 = vmul.f32 %v6677, %v6692
      %v6694 = vadd.f32 %v6693, 0.112945676
      %v6695 = vmul.f32 %v6677, %v6694
      %v6696 = vadd.f32 %v6695, 0.4994258
      %v6697 = vmul.f32 %v6677, %v6696
      %v6698 = vadd.f32 %v6697, 1.0
      %v6699 = vrcp.pop %v6698
      %v6700 = vmul.f32 %v6698, %v6699
      %v6701 = vsub.f32 1.0, %v6700
      %v6702 = vmul.f32 %v6699, %v6701
      %v6703 = vadd.f32 %v6699, %v6702
      %vm6704 = vweird.f32 %v6698
      %vm6705 = vweird.f32 %v6699
      %vm6706 = vmor %vm6704, %vm6705
      %v6707 = vsel %vm6706, %v6699, %v6703
      %v6708 = vand.u32 2147483647, %v6698
      %vm6709 = vcmp.eq.f32.partialorder %v6708, 8.507059e+37
      %v6710 = vand.u32 %v6698, 2147483648
      %v6711 = vor.u32 1.1754944e-38, %v6710
      %v6712 = vsel %vm6709, %v6711, %v6707
      %v6713 = vmul.f32 %v6688, %v6712
      %v6714 = vmin.f32 %v6713, 1.0
      %v6715 = vmax.f32 %v6714, -1.0
      %v6716 = vmul.f32 %v6099, %v6099
      %v6717 = vmin.f32 16.0, %v6716
      %v6718 = vmul.f32 %v6717, 2.1237322e-06
      %v6719 = vadd.f32 %v6718, 0.00028619796
      %v6720 = vmul.f32 %v6717, %v6719
      %v6721 = vadd.f32 %v6720, 0.0036580483
      %v6722 = vmul.f32 %v6717, %v6721
      %v6723 = vadd.f32 %v6722, 0.05243302
      %v6724 = vmul.f32 %v6717, %v6723
      %v6725 = vadd.f32 %v6724, 0.18741608
      %v6726 = vmul.f32 %v6717, %v6725
      %v6727 = vadd.f32 %v6726, 1.1283791
      %v6728 = vmul.f32 %v6099, %v6727
      %v6729 = vmul.f32 %v6717, 3.8918573e-05
      %v6730 = vadd.f32 %v6729, 0.001143296
      %v6731 = vmul.f32 %v6717, %v6730
      %v6732 = vadd.f32 %v6731, 0.014752088
      %v6733 = vmul.f32 %v6717, %v6732
      %v6734 = vadd.f32 %v6733, 0.112945676
      %v6735 = vmul.f32 %v6717, %v6734
      %v6736 = vadd.f32 %v6735, 0.4994258
      %v6737 = vmul.f32 %v6717, %v6736
      %v6738 = vadd.f32 %v6737, 1.0
      %v6739 = vrcp.pop %v6738
      %v6740 = vmul.f32 %v6738, %v6739
      %v6741 = vsub.f32 1.0, %v6740
      %v6742 = vmul.f32 %v6739, %v6741
      %v6743 = vadd.f32 %v6739, %v6742
      %vm6744 = vweird.f32 %v6738
      %vm6745 = vweird.f32 %v6739
      %vm6746 = vmor %vm6744, %vm6745
      %v6747 = vsel %vm6746, %v6739, %v6743
      %v6748 = vand.u32 2147483647, %v6738
      %vm6749 = vcmp.eq.f32.partialorder %v6748, 8.507059e+37
      %v6750 = vand.u32 %v6738, 2147483648
      %v6751 = vor.u32 1.1754944e-38, %v6750
      %v6752 = vsel %vm6749, %v6751, %v6747
      %v6753 = vmul.f32 %v6728, %v6752
      %v6754 = vmin.f32 %v6753, 1.0
      %v6755 = vmax.f32 %v6754, -1.0
      %v6756 = vmul.f32 %v6100, %v6100
      %v6757 = vmin.f32 16.0, %v6756
      %v6758 = vmul.f32 %v6757, 2.1237322e-06
      %v6759 = vadd.f32 %v6758, 0.00028619796
      %v6760 = vmul.f32 %v6757, %v6759
      %v6761 = vadd.f32 %v6760, 0.0036580483
      %v6762 = vmul.f32 %v6757, %v6761
      %v6763 = vadd.f32 %v6762, 0.05243302
      %v6764 = vmul.f32 %v6757, %v6763
      %v6765 = vadd.f32 %v6764, 0.18741608
      %v6766 = vmul.f32 %v6757, %v6765
      %v6767 = vadd.f32 %v6766, 1.1283791
      %v6768 = vmul.f32 %v6100, %v6767
      %v6769 = vmul.f32 %v6757, 3.8918573e-05
      %v6770 = vadd.f32 %v6769, 0.001143296
      %v6771 = vmul.f32 %v6757, %v6770
      %v6772 = vadd.f32 %v6771, 0.014752088
      %v6773 = vmul.f32 %v6757, %v6772
      %v6774 = vadd.f32 %v6773, 0.112945676
      %v6775 = vmul.f32 %v6757, %v6774
      %v6776 = vadd.f32 %v6775, 0.4994258
      %v6777 = vmul.f32 %v6757, %v6776
      %v6778 = vadd.f32 %v6777, 1.0
      %v6779 = vrcp.pop %v6778
      %v6780 = vmul.f32 %v6778, %v6779
      %v6781 = vsub.f32 1.0, %v6780
      %v6782 = vmul.f32 %v6779, %v6781
      %v6783 = vadd.f32 %v6779, %v6782
      %vm6784 = vweird.f32 %v6778
      %vm6785 = vweird.f32 %v6779
      %vm6786 = vmor %vm6784, %vm6785
      %v6787 = vsel %vm6786, %v6779, %v6783
      %v6788 = vand.u32 2147483647, %v6778
      %vm6789 = vcmp.eq.f32.partialorder %v6788, 8.507059e+37
      %v6790 = vand.u32 %v6778, 2147483648
      %v6791 = vor.u32 1.1754944e-38, %v6790
      %v6792 = vsel %vm6789, %v6791, %v6787
      %v6793 = vmul.f32 %v6768, %v6792
      %v6794 = vmin.f32 %v6793, 1.0
      %v6795 = vmax.f32 %v6794, -1.0
      %v6796 = vmul.f32 %v6101, %v6101
      %v6797 = vmin.f32 16.0, %v6796
      %v6798 = vmul.f32 %v6797, 2.1237322e-06
      %v6799 = vadd.f32 %v6798, 0.00028619796
      %v6800 = vmul.f32 %v6797, %v6799
      %v6801 = vadd.f32 %v6800, 0.0036580483
      %v6802 = vmul.f32 %v6797, %v6801
      %v6803 = vadd.f32 %v6802, 0.05243302
      %v6804 = vmul.f32 %v6797, %v6803
      %v6805 = vadd.f32 %v6804, 0.18741608
      %v6806 = vmul.f32 %v6797, %v6805
      %v6807 = vadd.f32 %v6806, 1.1283791
      %v6808 = vmul.f32 %v6101, %v6807
      %v6809 = vmul.f32 %v6797, 3.8918573e-05
      %v6810 = vadd.f32 %v6809, 0.001143296
      %v6811 = vmul.f32 %v6797, %v6810
      %v6812 = vadd.f32 %v6811, 0.014752088
      %v6813 = vmul.f32 %v6797, %v6812
      %v6814 = vadd.f32 %v6813, 0.112945676
      %v6815 = vmul.f32 %v6797, %v6814
      %v6816 = vadd.f32 %v6815, 0.4994258
      %v6817 = vmul.f32 %v6797, %v6816
      %v6818 = vadd.f32 %v6817, 1.0
      %v6819 = vrcp.pop %v6818
      %v6820 = vmul.f32 %v6818, %v6819
      %v6821 = vsub.f32 1.0, %v6820
      %v6822 = vmul.f32 %v6819, %v6821
      %v6823 = vadd.f32 %v6819, %v6822
      %vm6824 = vweird.f32 %v6818
      %vm6825 = vweird.f32 %v6819
      %vm6826 = vmor %vm6824, %vm6825
      %v6827 = vsel %vm6826, %v6819, %v6823
      %v6828 = vand.u32 2147483647, %v6818
      %vm6829 = vcmp.eq.f32.partialorder %v6828, 8.507059e+37
      %v6830 = vand.u32 %v6818, 2147483648
      %v6831 = vor.u32 1.1754944e-38, %v6830
      %v6832 = vsel %vm6829, %v6831, %v6827
      %v6833 = vmul.f32 %v6808, %v6832
      %v6834 = vmin.f32 %v6833, 1.0
      %v6835 = vmax.f32 %v6834, -1.0
      %v6836 = vmul.f32 %v6102, %v6102
      %v6837 = vmin.f32 16.0, %v6836
      %v6838 = vmul.f32 %v6837, 2.1237322e-06
      %v6839 = vadd.f32 %v6838, 0.00028619796
      %v6840 = vmul.f32 %v6837, %v6839
      %v6841 = vadd.f32 %v6840, 0.0036580483
      %v6842 = vmul.f32 %v6837, %v6841
      %v6843 = vadd.f32 %v6842, 0.05243302
      %v6844 = vmul.f32 %v6837, %v6843
      %v6845 = vadd.f32 %v6844, 0.18741608
      %v6846 = vmul.f32 %v6837, %v6845
      %v6847 = vadd.f32 %v6846, 1.1283791
      %v6848 = vmul.f32 %v6102, %v6847
      %v6849 = vmul.f32 %v6837, 3.8918573e-05
      %v6850 = vadd.f32 %v6849, 0.001143296
      %v6851 = vmul.f32 %v6837, %v6850
      %v6852 = vadd.f32 %v6851, 0.014752088
      %v6853 = vmul.f32 %v6837, %v6852
      %v6854 = vadd.f32 %v6853, 0.112945676
      %v6855 = vmul.f32 %v6837, %v6854
      %v6856 = vadd.f32 %v6855, 0.4994258
      %v6857 = vmul.f32 %v6837, %v6856
      %v6858 = vadd.f32 %v6857, 1.0
      %v6859 = vrcp.pop %v6858
      %v6860 = vmul.f32 %v6858, %v6859
      %v6861 = vsub.f32 1.0, %v6860
      %v6862 = vmul.f32 %v6859, %v6861
      %v6863 = vadd.f32 %v6859, %v6862
      %vm6864 = vweird.f32 %v6858
      %vm6865 = vweird.f32 %v6859
      %vm6866 = vmor %vm6864, %vm6865
      %v6867 = vsel %vm6866, %v6859, %v6863
      %v6868 = vand.u32 2147483647, %v6858
      %vm6869 = vcmp.eq.f32.partialorder %v6868, 8.507059e+37
      %v6870 = vand.u32 %v6858, 2147483648
      %v6871 = vor.u32 1.1754944e-38, %v6870
      %v6872 = vsel %vm6869, %v6871, %v6867
      %v6873 = vmul.f32 %v6848, %v6872
      %v6874 = vmin.f32 %v6873, 1.0
      %v6875 = vmax.f32 %v6874, -1.0
      %v6876 = vmul.f32 %v6103, %v6103
      %v6877 = vmin.f32 16.0, %v6876
      %v6878 = vmul.f32 %v6877, 2.1237322e-06
      %v6879 = vadd.f32 %v6878, 0.00028619796
      %v6880 = vmul.f32 %v6877, %v6879
      %v6881 = vadd.f32 %v6880, 0.0036580483
      %v6882 = vmul.f32 %v6877, %v6881
      %v6883 = vadd.f32 %v6882, 0.05243302
      %v6884 = vmul.f32 %v6877, %v6883
      %v6885 = vadd.f32 %v6884, 0.18741608
      %v6886 = vmul.f32 %v6877, %v6885
      %v6887 = vadd.f32 %v6886, 1.1283791
      %v6888 = vmul.f32 %v6103, %v6887
      %v6889 = vmul.f32 %v6877, 3.8918573e-05
      %v6890 = vadd.f32 %v6889, 0.001143296
      %v6891 = vmul.f32 %v6877, %v6890
      %v6892 = vadd.f32 %v6891, 0.014752088
      %v6893 = vmul.f32 %v6877, %v6892
      %v6894 = vadd.f32 %v6893, 0.112945676
      %v6895 = vmul.f32 %v6877, %v6894
      %v6896 = vadd.f32 %v6895, 0.4994258
      %v6897 = vmul.f32 %v6877, %v6896
      %v6898 = vadd.f32 %v6897, 1.0
      %v6899 = vrcp.pop %v6898
      %v6900 = vmul.f32 %v6898, %v6899
      %v6901 = vsub.f32 1.0, %v6900
      %v6902 = vmul.f32 %v6899, %v6901
      %v6903 = vadd.f32 %v6899, %v6902
      %vm6904 = vweird.f32 %v6898
      %vm6905 = vweird.f32 %v6899
      %vm6906 = vmor %vm6904, %vm6905
      %v6907 = vsel %vm6906, %v6899, %v6903
      %v6908 = vand.u32 2147483647, %v6898
      %vm6909 = vcmp.eq.f32.partialorder %v6908, 8.507059e+37
      %v6910 = vand.u32 %v6898, 2147483648
      %v6911 = vor.u32 1.1754944e-38, %v6910
      %v6912 = vsel %vm6909, %v6911, %v6907
      %v6913 = vmul.f32 %v6888, %v6912
      %v6914 = vmin.f32 %v6913, 1.0
      %v6915 = vmax.f32 %v6914, -1.0
      %v6916 = vmul.f32 %v6104, %v6104
      %v6917 = vmin.f32 16.0, %v6916
      %v6918 = vmul.f32 %v6917, 2.1237322e-06
      %v6919 = vadd.f32 %v6918, 0.00028619796
      %v6920 = vmul.f32 %v6917, %v6919
      %v6921 = vadd.f32 %v6920, 0.0036580483
      %v6922 = vmul.f32 %v6917, %v6921
      %v6923 = vadd.f32 %v6922, 0.05243302
      %v6924 = vmul.f32 %v6917, %v6923
      %v6925 = vadd.f32 %v6924, 0.18741608
      %v6926 = vmul.f32 %v6917, %v6925
      %v6927 = vadd.f32 %v6926, 1.1283791
      %v6928 = vmul.f32 %v6104, %v6927
      %v6929 = vmul.f32 %v6917, 3.8918573e-05
      %v6930 = vadd.f32 %v6929, 0.001143296
      %v6931 = vmul.f32 %v6917, %v6930
      %v6932 = vadd.f32 %v6931, 0.014752088
      %v6933 = vmul.f32 %v6917, %v6932
      %v6934 = vadd.f32 %v6933, 0.112945676
      %v6935 = vmul.f32 %v6917, %v6934
      %v6936 = vadd.f32 %v6935, 0.4994258
      %v6937 = vmul.f32 %v6917, %v6936
      %v6938 = vadd.f32 %v6937, 1.0
      %v6939 = vrcp.pop %v6938
      %v6940 = vmul.f32 %v6938, %v6939
      %v6941 = vsub.f32 1.0, %v6940
      %v6942 = vmul.f32 %v6939, %v6941
      %v6943 = vadd.f32 %v6939, %v6942
      %vm6944 = vweird.f32 %v6938
      %vm6945 = vweird.f32 %v6939
      %vm6946 = vmor %vm6944, %vm6945
      %v6947 = vsel %vm6946, %v6939, %v6943
      %v6948 = vand.u32 2147483647, %v6938
      %vm6949 = vcmp.eq.f32.partialorder %v6948, 8.507059e+37
      %v6950 = vand.u32 %v6938, 2147483648
      %v6951 = vor.u32 1.1754944e-38, %v6950
      %v6952 = vsel %vm6949, %v6951, %v6947
      %v6953 = vmul.f32 %v6928, %v6952
      %v6954 = vmin.f32 %v6953, 1.0
      %v6955 = vmax.f32 %v6954, -1.0
      %v6956 = vmul.f32 %v6105, %v6105
      %v6957 = vmin.f32 16.0, %v6956
      %v6958 = vmul.f32 %v6957, 2.1237322e-06
      %v6959 = vadd.f32 %v6958, 0.00028619796
      %v6960 = vmul.f32 %v6957, %v6959
      %v6961 = vadd.f32 %v6960, 0.0036580483
      %v6962 = vmul.f32 %v6957, %v6961
      %v6963 = vadd.f32 %v6962, 0.05243302
      %v6964 = vmul.f32 %v6957, %v6963
      %v6965 = vadd.f32 %v6964, 0.18741608
      %v6966 = vmul.f32 %v6957, %v6965
      %v6967 = vadd.f32 %v6966, 1.1283791
      %v6968 = vmul.f32 %v6105, %v6967
      %v6969 = vmul.f32 %v6957, 3.8918573e-05
      %v6970 = vadd.f32 %v6969, 0.001143296
      %v6971 = vmul.f32 %v6957, %v6970
      %v6972 = vadd.f32 %v6971, 0.014752088
      %v6973 = vmul.f32 %v6957, %v6972
      %v6974 = vadd.f32 %v6973, 0.112945676
      %v6975 = vmul.f32 %v6957, %v6974
      %v6976 = vadd.f32 %v6975, 0.4994258
      %v6977 = vmul.f32 %v6957, %v6976
      %v6978 = vadd.f32 %v6977, 1.0
      %v6979 = vrcp.pop %v6978
      %v6980 = vmul.f32 %v6978, %v6979
      %v6981 = vsub.f32 1.0, %v6980
      %v6982 = vmul.f32 %v6979, %v6981
      %v6983 = vadd.f32 %v6979, %v6982
      %vm6984 = vweird.f32 %v6978
      %vm6985 = vweird.f32 %v6979
      %vm6986 = vmor %vm6984, %vm6985
      %v6987 = vsel %vm6986, %v6979, %v6983
      %v6988 = vand.u32 2147483647, %v6978
      %vm6989 = vcmp.eq.f32.partialorder %v6988, 8.507059e+37
      %v6990 = vand.u32 %v6978, 2147483648
      %v6991 = vor.u32 1.1754944e-38, %v6990
      %v6992 = vsel %vm6989, %v6991, %v6987
      %v6993 = vmul.f32 %v6968, %v6992
      %v6994 = vmin.f32 %v6993, 1.0
      %v6995 = vmax.f32 %v6994, -1.0
      %v6996 = vmul.f32 %v6106, %v6106
      %v6997 = vmin.f32 16.0, %v6996
      %v6998 = vmul.f32 %v6997, 2.1237322e-06
      %v6999 = vadd.f32 %v6998, 0.00028619796
      %v7000 = vmul.f32 %v6997, %v6999
      %v7001 = vadd.f32 %v7000, 0.0036580483
      %v7002 = vmul.f32 %v6997, %v7001
      %v7003 = vadd.f32 %v7002, 0.05243302
      %v7004 = vmul.f32 %v6997, %v7003
      %v7005 = vadd.f32 %v7004, 0.18741608
      %v7006 = vmul.f32 %v6997, %v7005
      %v7007 = vadd.f32 %v7006, 1.1283791
      %v7008 = vmul.f32 %v6106, %v7007
      %v7009 = vmul.f32 %v6997, 3.8918573e-05
      %v7010 = vadd.f32 %v7009, 0.001143296
      %v7011 = vmul.f32 %v6997, %v7010
      %v7012 = vadd.f32 %v7011, 0.014752088
      %v7013 = vmul.f32 %v6997, %v7012
      %v7014 = vadd.f32 %v7013, 0.112945676
      %v7015 = vmul.f32 %v6997, %v7014
      %v7016 = vadd.f32 %v7015, 0.4994258
      %v7017 = vmul.f32 %v6997, %v7016
      %v7018 = vadd.f32 %v7017, 1.0
      %v7019 = vrcp.pop %v7018
      %v7020 = vmul.f32 %v7018, %v7019
      %v7021 = vsub.f32 1.0, %v7020
      %v7022 = vmul.f32 %v7019, %v7021
      %v7023 = vadd.f32 %v7019, %v7022
      %vm7024 = vweird.f32 %v7018
      %vm7025 = vweird.f32 %v7019
      %vm7026 = vmor %vm7024, %vm7025
      %v7027 = vsel %vm7026, %v7019, %v7023
      %v7028 = vand.u32 2147483647, %v7018
      %vm7029 = vcmp.eq.f32.partialorder %v7028, 8.507059e+37
      %v7030 = vand.u32 %v7018, 2147483648
      %v7031 = vor.u32 1.1754944e-38, %v7030
      %v7032 = vsel %vm7029, %v7031, %v7027
      %v7033 = vmul.f32 %v7008, %v7032
      %v7034 = vmin.f32 %v7033, 1.0
      %v7035 = vmax.f32 %v7034, -1.0
      %v7036 = vmul.f32 %v6107, %v6107
      %v7037 = vmin.f32 16.0, %v7036
      %v7038 = vmul.f32 %v7037, 2.1237322e-06
      %v7039 = vadd.f32 %v7038, 0.00028619796
      %v7040 = vmul.f32 %v7037, %v7039
      %v7041 = vadd.f32 %v7040, 0.0036580483
      %v7042 = vmul.f32 %v7037, %v7041
      %v7043 = vadd.f32 %v7042, 0.05243302
      %v7044 = vmul.f32 %v7037, %v7043
      %v7045 = vadd.f32 %v7044, 0.18741608
      %v7046 = vmul.f32 %v7037, %v7045
      %v7047 = vadd.f32 %v7046, 1.1283791
      %v7048 = vmul.f32 %v6107, %v7047
      %v7049 = vmul.f32 %v7037, 3.8918573e-05
      %v7050 = vadd.f32 %v7049, 0.001143296
      %v7051 = vmul.f32 %v7037, %v7050
      %v7052 = vadd.f32 %v7051, 0.014752088
      %v7053 = vmul.f32 %v7037, %v7052
      %v7054 = vadd.f32 %v7053, 0.112945676
      %v7055 = vmul.f32 %v7037, %v7054
      %v7056 = vadd.f32 %v7055, 0.4994258
      %v7057 = vmul.f32 %v7037, %v7056
      %v7058 = vadd.f32 %v7057, 1.0
      %v7059 = vrcp.pop %v7058
      %v7060 = vmul.f32 %v7058, %v7059
      %v7061 = vsub.f32 1.0, %v7060
      %v7062 = vmul.f32 %v7059, %v7061
      %v7063 = vadd.f32 %v7059, %v7062
      %vm7064 = vweird.f32 %v7058
      %vm7065 = vweird.f32 %v7059
      %vm7066 = vmor %vm7064, %vm7065
      %v7067 = vsel %vm7066, %v7059, %v7063
      %v7068 = vand.u32 2147483647, %v7058
      %vm7069 = vcmp.eq.f32.partialorder %v7068, 8.507059e+37
      %v7070 = vand.u32 %v7058, 2147483648
      %v7071 = vor.u32 1.1754944e-38, %v7070
      %v7072 = vsel %vm7069, %v7071, %v7067
      %v7073 = vmul.f32 %v7048, %v7072
      %v7074 = vmin.f32 %v7073, 1.0
      %v7075 = vmax.f32 %v7074, -1.0
      %v7076 = vmul.f32 %v6108, %v6108
      %v7077 = vmin.f32 16.0, %v7076
      %v7078 = vmul.f32 %v7077, 2.1237322e-06
      %v7079 = vadd.f32 %v7078, 0.00028619796
      %v7080 = vmul.f32 %v7077, %v7079
      %v7081 = vadd.f32 %v7080, 0.0036580483
      %v7082 = vmul.f32 %v7077, %v7081
      %v7083 = vadd.f32 %v7082, 0.05243302
      %v7084 = vmul.f32 %v7077, %v7083
      %v7085 = vadd.f32 %v7084, 0.18741608
      %v7086 = vmul.f32 %v7077, %v7085
      %v7087 = vadd.f32 %v7086, 1.1283791
      %v7088 = vmul.f32 %v6108, %v7087
      %v7089 = vmul.f32 %v7077, 3.8918573e-05
      %v7090 = vadd.f32 %v7089, 0.001143296
      %v7091 = vmul.f32 %v7077, %v7090
      %v7092 = vadd.f32 %v7091, 0.014752088
      %v7093 = vmul.f32 %v7077, %v7092
      %v7094 = vadd.f32 %v7093, 0.112945676
      %v7095 = vmul.f32 %v7077, %v7094
      %v7096 = vadd.f32 %v7095, 0.4994258
      %v7097 = vmul.f32 %v7077, %v7096
      %v7098 = vadd.f32 %v7097, 1.0
      %v7099 = vrcp.pop %v7098
      %v7100 = vmul.f32 %v7098, %v7099
      %v7101 = vsub.f32 1.0, %v7100
      %v7102 = vmul.f32 %v7099, %v7101
      %v7103 = vadd.f32 %v7099, %v7102
      %vm7104 = vweird.f32 %v7098
      %vm7105 = vweird.f32 %v7099
      %vm7106 = vmor %vm7104, %vm7105
      %v7107 = vsel %vm7106, %v7099, %v7103
      %v7108 = vand.u32 2147483647, %v7098
      %vm7109 = vcmp.eq.f32.partialorder %v7108, 8.507059e+37
      %v7110 = vand.u32 %v7098, 2147483648
      %v7111 = vor.u32 1.1754944e-38, %v7110
      %v7112 = vsel %vm7109, %v7111, %v7107
      %v7113 = vmul.f32 %v7088, %v7112
      %v7114 = vmin.f32 %v7113, 1.0
      %v7115 = vmax.f32 %v7114, -1.0
      %v7116 = vmul.f32 %v6109, %v6109
      %v7117 = vmin.f32 16.0, %v7116
      %v7118 = vmul.f32 %v7117, 2.1237322e-06
      %v7119 = vadd.f32 %v7118, 0.00028619796
      %v7120 = vmul.f32 %v7117, %v7119
      %v7121 = vadd.f32 %v7120, 0.0036580483
      %v7122 = vmul.f32 %v7117, %v7121
      %v7123 = vadd.f32 %v7122, 0.05243302
      %v7124 = vmul.f32 %v7117, %v7123
      %v7125 = vadd.f32 %v7124, 0.18741608
      %v7126 = vmul.f32 %v7117, %v7125
      %v7127 = vadd.f32 %v7126, 1.1283791
      %v7128 = vmul.f32 %v6109, %v7127
      %v7129 = vmul.f32 %v7117, 3.8918573e-05
      %v7130 = vadd.f32 %v7129, 0.001143296
      %v7131 = vmul.f32 %v7117, %v7130
      %v7132 = vadd.f32 %v7131, 0.014752088
      %v7133 = vmul.f32 %v7117, %v7132
      %v7134 = vadd.f32 %v7133, 0.112945676
      %v7135 = vmul.f32 %v7117, %v7134
      %v7136 = vadd.f32 %v7135, 0.4994258
      %v7137 = vmul.f32 %v7117, %v7136
      %v7138 = vadd.f32 %v7137, 1.0
      %v7139 = vrcp.pop %v7138
      %v7140 = vmul.f32 %v7138, %v7139
      %v7141 = vsub.f32 1.0, %v7140
      %v7142 = vmul.f32 %v7139, %v7141
      %v7143 = vadd.f32 %v7139, %v7142
      %vm7144 = vweird.f32 %v7138
      %vm7145 = vweird.f32 %v7139
      %vm7146 = vmor %vm7144, %vm7145
      %v7147 = vsel %vm7146, %v7139, %v7143
      %v7148 = vand.u32 2147483647, %v7138
      %vm7149 = vcmp.eq.f32.partialorder %v7148, 8.507059e+37
      %v7150 = vand.u32 %v7138, 2147483648
      %v7151 = vor.u32 1.1754944e-38, %v7150
      %v7152 = vsel %vm7149, %v7151, %v7147
      %v7153 = vmul.f32 %v7128, %v7152
      %v7154 = vmin.f32 %v7153, 1.0
      %v7155 = vmax.f32 %v7154, -1.0
      %v7156 = vmul.f32 %v6110, %v6110
      %v7157 = vmin.f32 16.0, %v7156
      %v7158 = vmul.f32 %v7157, 2.1237322e-06
      %v7159 = vadd.f32 %v7158, 0.00028619796
      %v7160 = vmul.f32 %v7157, %v7159
      %v7161 = vadd.f32 %v7160, 0.0036580483
      %v7162 = vmul.f32 %v7157, %v7161
      %v7163 = vadd.f32 %v7162, 0.05243302
      %v7164 = vmul.f32 %v7157, %v7163
      %v7165 = vadd.f32 %v7164, 0.18741608
      %v7166 = vmul.f32 %v7157, %v7165
      %v7167 = vadd.f32 %v7166, 1.1283791
      %v7168 = vmul.f32 %v6110, %v7167
      %v7169 = vmul.f32 %v7157, 3.8918573e-05
      %v7170 = vadd.f32 %v7169, 0.001143296
      %v7171 = vmul.f32 %v7157, %v7170
      %v7172 = vadd.f32 %v7171, 0.014752088
      %v7173 = vmul.f32 %v7157, %v7172
      %v7174 = vadd.f32 %v7173, 0.112945676
      %v7175 = vmul.f32 %v7157, %v7174
      %v7176 = vadd.f32 %v7175, 0.4994258
      %v7177 = vmul.f32 %v7157, %v7176
      %v7178 = vadd.f32 %v7177, 1.0
      %v7179 = vrcp.pop %v7178
      %v7180 = vmul.f32 %v7178, %v7179
      %v7181 = vsub.f32 1.0, %v7180
      %v7182 = vmul.f32 %v7179, %v7181
      %v7183 = vadd.f32 %v7179, %v7182
      %vm7184 = vweird.f32 %v7178
      %vm7185 = vweird.f32 %v7179
      %vm7186 = vmor %vm7184, %vm7185
      %v7187 = vsel %vm7186, %v7179, %v7183
      %v7188 = vand.u32 2147483647, %v7178
      %vm7189 = vcmp.eq.f32.partialorder %v7188, 8.507059e+37
      %v7190 = vand.u32 %v7178, 2147483648
      %v7191 = vor.u32 1.1754944e-38, %v7190
      %v7192 = vsel %vm7189, %v7191, %v7187
      %v7193 = vmul.f32 %v7168, %v7192
      %v7194 = vmin.f32 %v7193, 1.0
      %v7195 = vmax.f32 %v7194, -1.0
      %v7196 = vmul.f32 %v6111, %v6111
      %v7197 = vmin.f32 16.0, %v7196
      %v7198 = vmul.f32 %v7197, 2.1237322e-06
      %v7199 = vadd.f32 %v7198, 0.00028619796
      %v7200 = vmul.f32 %v7197, %v7199
      %v7201 = vadd.f32 %v7200, 0.0036580483
      %v7202 = vmul.f32 %v7197, %v7201
      %v7203 = vadd.f32 %v7202, 0.05243302
      %v7204 = vmul.f32 %v7197, %v7203
      %v7205 = vadd.f32 %v7204, 0.18741608
      %v7206 = vmul.f32 %v7197, %v7205
      %v7207 = vadd.f32 %v7206, 1.1283791
      %v7208 = vmul.f32 %v6111, %v7207
      %v7209 = vmul.f32 %v7197, 3.8918573e-05
      %v7210 = vadd.f32 %v7209, 0.001143296
      %v7211 = vmul.f32 %v7197, %v7210
      %v7212 = vadd.f32 %v7211, 0.014752088
      %v7213 = vmul.f32 %v7197, %v7212
      %v7214 = vadd.f32 %v7213, 0.112945676
      %v7215 = vmul.f32 %v7197, %v7214
      %v7216 = vadd.f32 %v7215, 0.4994258
      %v7217 = vmul.f32 %v7197, %v7216
      %v7218 = vadd.f32 %v7217, 1.0
      %v7219 = vrcp.pop %v7218
      %v7220 = vmul.f32 %v7218, %v7219
      %v7221 = vsub.f32 1.0, %v7220
      %v7222 = vmul.f32 %v7219, %v7221
      %v7223 = vadd.f32 %v7219, %v7222
      %vm7224 = vweird.f32 %v7218
      %vm7225 = vweird.f32 %v7219
      %vm7226 = vmor %vm7224, %vm7225
      %v7227 = vsel %vm7226, %v7219, %v7223
      %v7228 = vand.u32 2147483647, %v7218
      %vm7229 = vcmp.eq.f32.partialorder %v7228, 8.507059e+37
      %v7230 = vand.u32 %v7218, 2147483648
      %v7231 = vor.u32 1.1754944e-38, %v7230
      %v7232 = vsel %vm7229, %v7231, %v7227
      %v7233 = vmul.f32 %v7208, %v7232
      %v7234 = vmin.f32 %v7233, 1.0
      %v7235 = vmax.f32 %v7234, -1.0
      %v7236 = vmul.f32 %v6112, %v6112
      %v7237 = vmin.f32 16.0, %v7236
      %v7238 = vmul.f32 %v7237, 2.1237322e-06
      %v7239 = vadd.f32 %v7238, 0.00028619796
      %v7240 = vmul.f32 %v7237, %v7239
      %v7241 = vadd.f32 %v7240, 0.0036580483
      %v7242 = vmul.f32 %v7237, %v7241
      %v7243 = vadd.f32 %v7242, 0.05243302
      %v7244 = vmul.f32 %v7237, %v7243
      %v7245 = vadd.f32 %v7244, 0.18741608
      %v7246 = vmul.f32 %v7237, %v7245
      %v7247 = vadd.f32 %v7246, 1.1283791
      %v7248 = vmul.f32 %v6112, %v7247
      %v7249 = vmul.f32 %v7237, 3.8918573e-05
      %v7250 = vadd.f32 %v7249, 0.001143296
      %v7251 = vmul.f32 %v7237, %v7250
      %v7252 = vadd.f32 %v7251, 0.014752088
      %v7253 = vmul.f32 %v7237, %v7252
      %v7254 = vadd.f32 %v7253, 0.112945676
      %v7255 = vmul.f32 %v7237, %v7254
      %v7256 = vadd.f32 %v7255, 0.4994258
      %v7257 = vmul.f32 %v7237, %v7256
      %v7258 = vadd.f32 %v7257, 1.0
      %v7259 = vrcp.pop %v7258
      %v7260 = vmul.f32 %v7258, %v7259
      %v7261 = vsub.f32 1.0, %v7260
      %v7262 = vmul.f32 %v7259, %v7261
      %v7263 = vadd.f32 %v7259, %v7262
      %vm7264 = vweird.f32 %v7258
      %vm7265 = vweird.f32 %v7259
      %vm7266 = vmor %vm7264, %vm7265
      %v7267 = vsel %vm7266, %v7259, %v7263
      %v7268 = vand.u32 2147483647, %v7258
      %vm7269 = vcmp.eq.f32.partialorder %v7268, 8.507059e+37
      %v7270 = vand.u32 %v7258, 2147483648
      %v7271 = vor.u32 1.1754944e-38, %v7270
      %v7272 = vsel %vm7269, %v7271, %v7267
      %v7273 = vmul.f32 %v7248, %v7272
      %v7274 = vmin.f32 %v7273, 1.0
      %v7275 = vmax.f32 %v7274, -1.0
      %v7276 = vmul.f32 %v6113, %v6113
      %v7277 = vmin.f32 16.0, %v7276
      %v7278 = vmul.f32 %v7277, 2.1237322e-06
      %v7279 = vadd.f32 %v7278, 0.00028619796
      %v7280 = vmul.f32 %v7277, %v7279
      %v7281 = vadd.f32 %v7280, 0.0036580483
      %v7282 = vmul.f32 %v7277, %v7281
      %v7283 = vadd.f32 %v7282, 0.05243302
      %v7284 = vmul.f32 %v7277, %v7283
      %v7285 = vadd.f32 %v7284, 0.18741608
      %v7286 = vmul.f32 %v7277, %v7285
      %v7287 = vadd.f32 %v7286, 1.1283791
      %v7288 = vmul.f32 %v6113, %v7287
      %v7289 = vmul.f32 %v7277, 3.8918573e-05
      %v7290 = vadd.f32 %v7289, 0.001143296
      %v7291 = vmul.f32 %v7277, %v7290
      %v7292 = vadd.f32 %v7291, 0.014752088
      %v7293 = vmul.f32 %v7277, %v7292
      %v7294 = vadd.f32 %v7293, 0.112945676
      %v7295 = vmul.f32 %v7277, %v7294
      %v7296 = vadd.f32 %v7295, 0.4994258
      %v7297 = vmul.f32 %v7277, %v7296
      %v7298 = vadd.f32 %v7297, 1.0
      %v7299 = vrcp.pop %v7298
      %v7300 = vmul.f32 %v7298, %v7299
      %v7301 = vsub.f32 1.0, %v7300
      %v7302 = vmul.f32 %v7299, %v7301
      %v7303 = vadd.f32 %v7299, %v7302
      %vm7304 = vweird.f32 %v7298
      %vm7305 = vweird.f32 %v7299
      %vm7306 = vmor %vm7304, %vm7305
      %v7307 = vsel %vm7306, %v7299, %v7303
      %v7308 = vand.u32 2147483647, %v7298
      %vm7309 = vcmp.eq.f32.partialorder %v7308, 8.507059e+37
      %v7310 = vand.u32 %v7298, 2147483648
      %v7311 = vor.u32 1.1754944e-38, %v7310
      %v7312 = vsel %vm7309, %v7311, %v7307
      %v7313 = vmul.f32 %v7288, %v7312
      %v7314 = vmin.f32 %v7313, 1.0
      %v7315 = vmax.f32 %v7314, -1.0
      %v7316 = vmul.f32 %v6114, %v6114
      %v7317 = vmin.f32 16.0, %v7316
      %v7318 = vmul.f32 %v7317, 2.1237322e-06
      %v7319 = vadd.f32 %v7318, 0.00028619796
      %v7320 = vmul.f32 %v7317, %v7319
      %v7321 = vadd.f32 %v7320, 0.0036580483
      %v7322 = vmul.f32 %v7317, %v7321
      %v7323 = vadd.f32 %v7322, 0.05243302
      %v7324 = vmul.f32 %v7317, %v7323
      %v7325 = vadd.f32 %v7324, 0.18741608
      %v7326 = vmul.f32 %v7317, %v7325
      %v7327 = vadd.f32 %v7326, 1.1283791
      %v7328 = vmul.f32 %v6114, %v7327
      %v7329 = vmul.f32 %v7317, 3.8918573e-05
      %v7330 = vadd.f32 %v7329, 0.001143296
      %v7331 = vmul.f32 %v7317, %v7330
      %v7332 = vadd.f32 %v7331, 0.014752088
      %v7333 = vmul.f32 %v7317, %v7332
      %v7334 = vadd.f32 %v7333, 0.112945676
      %v7335 = vmul.f32 %v7317, %v7334
      %v7336 = vadd.f32 %v7335, 0.4994258
      %v7337 = vmul.f32 %v7317, %v7336
      %v7338 = vadd.f32 %v7337, 1.0
      %v7339 = vrcp.pop %v7338
      %v7340 = vmul.f32 %v7338, %v7339
      %v7341 = vsub.f32 1.0, %v7340
      %v7342 = vmul.f32 %v7339, %v7341
      %v7343 = vadd.f32 %v7339, %v7342
      %vm7344 = vweird.f32 %v7338
      %vm7345 = vweird.f32 %v7339
      %vm7346 = vmor %vm7344, %vm7345
      %v7347 = vsel %vm7346, %v7339, %v7343
      %v7348 = vand.u32 2147483647, %v7338
      %vm7349 = vcmp.eq.f32.partialorder %v7348, 8.507059e+37
      %v7350 = vand.u32 %v7338, 2147483648
      %v7351 = vor.u32 1.1754944e-38, %v7350
      %v7352 = vsel %vm7349, %v7351, %v7347
      %v7353 = vmul.f32 %v7328, %v7352
      %v7354 = vmin.f32 %v7353, 1.0
      %v7355 = vmax.f32 %v7354, -1.0
      %v7356 = vmul.f32 %v6115, %v6115
      %v7357 = vmin.f32 16.0, %v7356
      %v7358 = vmul.f32 %v7357, 2.1237322e-06
      %v7359 = vadd.f32 %v7358, 0.00028619796
      %v7360 = vmul.f32 %v7357, %v7359
      %v7361 = vadd.f32 %v7360, 0.0036580483
      %v7362 = vmul.f32 %v7357, %v7361
      %v7363 = vadd.f32 %v7362, 0.05243302
      %v7364 = vmul.f32 %v7357, %v7363
      %v7365 = vadd.f32 %v7364, 0.18741608
      %v7366 = vmul.f32 %v7357, %v7365
      %v7367 = vadd.f32 %v7366, 1.1283791
      %v7368 = vmul.f32 %v6115, %v7367
      %v7369 = vmul.f32 %v7357, 3.8918573e-05
      %v7370 = vadd.f32 %v7369, 0.001143296
      %v7371 = vmul.f32 %v7357, %v7370
      %v7372 = vadd.f32 %v7371, 0.014752088
      %v7373 = vmul.f32 %v7357, %v7372
      %v7374 = vadd.f32 %v7373, 0.112945676
      %v7375 = vmul.f32 %v7357, %v7374
      %v7376 = vadd.f32 %v7375, 0.4994258
      %v7377 = vmul.f32 %v7357, %v7376
      %v7378 = vadd.f32 %v7377, 1.0
      %v7379 = vrcp.pop %v7378
      %v7380 = vmul.f32 %v7378, %v7379
      %v7381 = vsub.f32 1.0, %v7380
      %v7382 = vmul.f32 %v7379, %v7381
      %v7383 = vadd.f32 %v7379, %v7382
      %vm7384 = vweird.f32 %v7378
      %vm7385 = vweird.f32 %v7379
      %vm7386 = vmor %vm7384, %vm7385
      %v7387 = vsel %vm7386, %v7379, %v7383
      %v7388 = vand.u32 2147483647, %v7378
      %vm7389 = vcmp.eq.f32.partialorder %v7388, 8.507059e+37
      %v7390 = vand.u32 %v7378, 2147483648
      %v7391 = vor.u32 1.1754944e-38, %v7390
      %v7392 = vsel %vm7389, %v7391, %v7387
      %v7393 = vmul.f32 %v7368, %v7392
      %v7394 = vmin.f32 %v7393, 1.0
      %v7395 = vmax.f32 %v7394, -1.0
      %v7396 = vadd.f32 %v6155, 1.0
      %v7397 = vadd.f32 %v6195, 1.0
      %v7398 = vadd.f32 %v6235, 1.0
      %v7399 = vadd.f32 %v6275, 1.0
      %v7400 = vadd.f32 %v6315, 1.0
      %v7401 = vadd.f32 %v6355, 1.0
      %v7402 = vadd.f32 %v6395, 1.0
      %v7403 = vadd.f32 %v6435, 1.0
      %v7404 = vadd.f32 %v6475, 1.0
      %v7405 = vadd.f32 %v6515, 1.0
      %v7406 = vadd.f32 %v6555, 1.0
      %v7407 = vadd.f32 %v6595, 1.0
      %v7408 = vadd.f32 %v6635, 1.0
      %v7409 = vadd.f32 %v6675, 1.0
      %v7410 = vadd.f32 %v6715, 1.0
      %v7411 = vadd.f32 %v6755, 1.0
      %v7412 = vadd.f32 %v6795, 1.0
      %v7413 = vadd.f32 %v6835, 1.0
      %v7414 = vadd.f32 %v6875, 1.0
      %v7415 = vadd.f32 %v6915, 1.0
      %v7416 = vadd.f32 %v6955, 1.0
      %v7417 = vadd.f32 %v6995, 1.0
      %v7418 = vadd.f32 %v7035, 1.0
      %v7419 = vadd.f32 %v7075, 1.0
      %v7420 = vadd.f32 %v7115, 1.0
      %v7421 = vadd.f32 %v7155, 1.0
      %v7422 = vadd.f32 %v7195, 1.0
      %v7423 = vadd.f32 %v7235, 1.0
      %v7424 = vadd.f32 %v7275, 1.0
      %v7425 = vadd.f32 %v7315, 1.0
      %v7426 = vadd.f32 %v7355, 1.0
      %v7427 = vadd.f32 %v7395, 1.0
      %v7428 = vmul.f32 %v6052, %v7396
      %v7429 = vmul.f32 %v6053, %v7397
      %v7430 = vmul.f32 %v6054, %v7398
      %v7431 = vmul.f32 %v6055, %v7399
      %v7432 = vmul.f32 %v6056, %v7400
      %v7433 = vmul.f32 %v6057, %v7401
      %v7434 = vmul.f32 %v6058, %v7402
      %v7435 = vmul.f32 %v6059, %v7403
      %v7436 = vmul.f32 %v6060, %v7404
      %v7437 = vmul.f32 %v6061, %v7405
      %v7438 = vmul.f32 %v6062, %v7406
      %v7439 = vmul.f32 %v6063, %v7407
      %v7440 = vmul.f32 %v6064, %v7408
      %v7441 = vmul.f32 %v6065, %v7409
      %v7442 = vmul.f32 %v6066, %v7410
      %v7443 = vmul.f32 %v6067, %v7411
      %v7444 = vmul.f32 %v6068, %v7412
      %v7445 = vmul.f32 %v6069, %v7413
      %v7446 = vmul.f32 %v6070, %v7414
      %v7447 = vmul.f32 %v6071, %v7415
      %v7448 = vmul.f32 %v6072, %v7416
      %v7449 = vmul.f32 %v6073, %v7417
      %v7450 = vmul.f32 %v6074, %v7418
      %v7451 = vmul.f32 %v6075, %v7419
      %v7452 = vmul.f32 %v6076, %v7420
      %v7453 = vmul.f32 %v6077, %v7421
      %v7454 = vmul.f32 %v6078, %v7422
      %v7455 = vmul.f32 %v6079, %v7423
      %v7456 = vmul.f32 %v6080, %v7424
      %v7457 = vmul.f32 %v6081, %v7425
      %v7458 = vmul.f32 %v6082, %v7426
      %v7459 = vmul.f32 %v6083, %v7427
      %v7460 = vpack.c.bf16 %v7429, %v7428
      %v7461 = vpack.c.bf16 %v7431, %v7430
      %v7462 = vpack.c.bf16 %v7433, %v7432
      %v7463 = vpack.c.bf16 %v7435, %v7434
      %v7464 = vpack.c.bf16 %v7437, %v7436
      %v7465 = vpack.c.bf16 %v7439, %v7438
      %v7466 = vpack.c.bf16 %v7441, %v7440
      %v7467 = vpack.c.bf16 %v7443, %v7442
      %v7468 = vpack.c.bf16 %v7445, %v7444
      %v7469 = vpack.c.bf16 %v7447, %v7446
      %v7470 = vpack.c.bf16 %v7449, %v7448
      %v7471 = vpack.c.bf16 %v7451, %v7450
      %v7472 = vpack.c.bf16 %v7453, %v7452
      %v7473 = vpack.c.bf16 %v7455, %v7454
      %v7474 = vpack.c.bf16 %v7457, %v7456
      %v7475 = vpack.c.bf16 %v7459, %v7458
      %v7476 = vld [vmem:[%s16] sm:$0xf]
      %v7477 = vld [vmem:[%s16 + $0x4] sm:$0xf]
      %v7478 = vld [vmem:[%s16 + $0x8] sm:$0xf]
      %v7479 = vld [vmem:[%s17] sm:$0x1]
      %v7481 = vperm.slane %v7479, 0
      %v7486 = vunpack.c.l.b16 %v7476
      %v7487 = vunpack.c.l.b16 %v7477
      %v7488 = vunpack.c.l.b16 %v7478
      %v7489 = vpack.c.b16 %v7487, %v7486
      %v7490 = vpack.c.b16 %v7488, %v7488
      %vm7492 = vcmask 195584
      %v7494 = vsel %vm7492, %v7460, 0
      %v7497 = vsel %vm7492, %v7461, 0
      %v7500 = vsel %vm7492, %v7462, 0
      %v7503 = vsel %vm7492, %v7463, 0
      %v7506 = vsel %vm7492, %v7464, 0
      %v7509 = vsel %vm7492, %v7465, 0
      %v7512 = vsel %vm7492, %v7466, 0
      %v7515 = vsel %vm7492, %v7467, 0
      %v7518 = vsel %vm7492, %v7468, 0
      %v7521 = vsel %vm7492, %v7469, 0
      %v7524 = vsel %vm7492, %v7470, 0
      %v7527 = vsel %vm7492, %v7471, 0
      %v7530 = vsel %vm7492, %v7472, 0
      %v7533 = vsel %vm7492, %v7473, 0
      %v7536 = vsel %vm7492, %v7474, 0
      %v7539 = vsel %vm7492, %v7475, 0
      %v7542 = vsel %vm4301, %v7490, 0
      %7544 = vmatpush.bf16.msra.mxu0 0
      %7545 = vmatpush.bf16.msra.mxu0 0
      %7546 = vmatpush.bf16.msra.mxu0 0
      %7547 = vmatpush.bf16.msra.mxu0 0
      %7548 = vmatpush.bf16.msra.mxu0 0
      %7549 = vmatpush.bf16.msra.mxu0 0
      %7550 = vmatpush.bf16.msra.mxu0 %v7542
      %7551 = vmatpush.bf16.msra.mxu0 %v7489
      %7552 = vmatmul.bf16.gmra.mxu0 %v7494
      %v7553 = vpop.f32.mrf.mxu0
      %v7554 = vadd.f32 %v7481, %v7553
      %v7555 = vpop.f32.mrf.mxu0
      %v7556 = vadd.f32 %v7481, %v7555
      %7557 = vmatmul.bf16.gmra.mxu0 %v7497
      %v7558 = vpop.f32.mrf.mxu0
      %v7559 = vadd.f32 %v7481, %v7558
      %v7560 = vpop.f32.mrf.mxu0
      %v7561 = vadd.f32 %v7481, %v7560
      %7562 = vmatmul.bf16.gmra.mxu0 %v7500
      %v7563 = vpop.f32.mrf.mxu0
      %v7564 = vadd.f32 %v7481, %v7563
      %v7565 = vpop.f32.mrf.mxu0
      %v7566 = vadd.f32 %v7481, %v7565
      %7567 = vmatmul.bf16.gmra.mxu0 %v7503
      %v7568 = vpop.f32.mrf.mxu0
      %v7569 = vadd.f32 %v7481, %v7568
      %v7570 = vpop.f32.mrf.mxu0
      %v7571 = vadd.f32 %v7481, %v7570
      %7572 = vmatmul.bf16.gmra.mxu0 %v7506
      %v7573 = vpop.f32.mrf.mxu0
      %v7574 = vadd.f32 %v7481, %v7573
      %v7575 = vpop.f32.mrf.mxu0
      %v7576 = vadd.f32 %v7481, %v7575
      %7577 = vmatmul.bf16.gmra.mxu0 %v7509
      %v7578 = vpop.f32.mrf.mxu0
      %v7579 = vadd.f32 %v7481, %v7578
      %v7580 = vpop.f32.mrf.mxu0
      %v7581 = vadd.f32 %v7481, %v7580
      %7582 = vmatmul.bf16.gmra.mxu0 %v7512
      %v7583 = vpop.f32.mrf.mxu0
      %v7584 = vadd.f32 %v7481, %v7583
      %v7585 = vpop.f32.mrf.mxu0
      %v7586 = vadd.f32 %v7481, %v7585
      %7587 = vmatmul.bf16.gmra.mxu0 %v7515
      %v7588 = vpop.f32.mrf.mxu0
      %v7589 = vadd.f32 %v7481, %v7588
      %v7590 = vpop.f32.mrf.mxu0
      %v7591 = vadd.f32 %v7481, %v7590
      %7592 = vmatmul.bf16.gmra.mxu0 %v7518
      %v7593 = vpop.f32.mrf.mxu0
      %v7594 = vadd.f32 %v7481, %v7593
      %v7595 = vpop.f32.mrf.mxu0
      %v7596 = vadd.f32 %v7481, %v7595
      %7597 = vmatmul.bf16.gmra.mxu0 %v7521
      %v7598 = vpop.f32.mrf.mxu0
      %v7599 = vadd.f32 %v7481, %v7598
      %v7600 = vpop.f32.mrf.mxu0
      %v7601 = vadd.f32 %v7481, %v7600
      %7602 = vmatmul.bf16.gmra.mxu0 %v7524
      %v7603 = vpop.f32.mrf.mxu0
      %v7604 = vadd.f32 %v7481, %v7603
      %v7605 = vpop.f32.mrf.mxu0
      %v7606 = vadd.f32 %v7481, %v7605
      %7607 = vmatmul.bf16.gmra.mxu0 %v7527
      %v7608 = vpop.f32.mrf.mxu0
      %v7609 = vadd.f32 %v7481, %v7608
      %v7610 = vpop.f32.mrf.mxu0
      %v7611 = vadd.f32 %v7481, %v7610
      %7612 = vmatmul.bf16.gmra.mxu0 %v7530
      %v7613 = vpop.f32.mrf.mxu0
      %v7614 = vadd.f32 %v7481, %v7613
      %v7615 = vpop.f32.mrf.mxu0
      %v7616 = vadd.f32 %v7481, %v7615
      %7617 = vmatmul.bf16.gmra.mxu0 %v7533
      %v7618 = vpop.f32.mrf.mxu0
      %v7619 = vadd.f32 %v7481, %v7618
      %v7620 = vpop.f32.mrf.mxu0
      %v7621 = vadd.f32 %v7481, %v7620
      %7622 = vmatmul.bf16.gmra.mxu0 %v7536
      %v7623 = vpop.f32.mrf.mxu0
      %v7624 = vadd.f32 %v7481, %v7623
      %v7625 = vpop.f32.mrf.mxu0
      %v7626 = vadd.f32 %v7481, %v7625
      %7627 = vmatmul.bf16.gmra.mxu0 %v7539
      %v7628 = vpop.f32.mrf.mxu0
      %v7629 = vadd.f32 %v7481, %v7628
      %v7630 = vpop.f32.mrf.mxu0
      %v7631 = vadd.f32 %v7481, %v7630
      %7632 = vdwg.mxu0
      %vm7633 = vcmask 15360
      %v7634 = vsel %vm7633, %v7554, -inf
      %7635 = vmax.xlane.f32.xlu0 %v7634
      %v7636 = vpop.xlane.xlu0 %7635
      %v7637 = vsel %vm7633, %v7556, -inf
      %7638 = vmax.xlane.f32.xlu0 %v7637
      %v7639 = vpop.xlane.xlu0 %7638
      %v7640 = vsel %vm7633, %v7559, -inf
      %7641 = vmax.xlane.f32.xlu0 %v7640
      %v7642 = vpop.xlane.xlu0 %7641
      %v7643 = vsel %vm7633, %v7561, -inf
      %7644 = vmax.xlane.f32.xlu0 %v7643
      %v7645 = vpop.xlane.xlu0 %7644
      %v7646 = vsel %vm7633, %v7564, -inf
      %7647 = vmax.xlane.f32.xlu0 %v7646
      %v7648 = vpop.xlane.xlu0 %7647
      %v7649 = vsel %vm7633, %v7566, -inf
      %7650 = vmax.xlane.f32.xlu0 %v7649
      %v7651 = vpop.xlane.xlu0 %7650
      %v7652 = vsel %vm7633, %v7569, -inf
      %7653 = vmax.xlane.f32.xlu0 %v7652
      %v7654 = vpop.xlane.xlu0 %7653
      %v7655 = vsel %vm7633, %v7571, -inf
      %7656 = vmax.xlane.f32.xlu0 %v7655
      %v7657 = vpop.xlane.xlu0 %7656
      %v7658 = vsel %vm7633, %v7574, -inf
      %7659 = vmax.xlane.f32.xlu0 %v7658
      %v7660 = vpop.xlane.xlu0 %7659
      %v7661 = vsel %vm7633, %v7576, -inf
      %7662 = vmax.xlane.f32.xlu0 %v7661
      %v7663 = vpop.xlane.xlu0 %7662
      %v7664 = vsel %vm7633, %v7579, -inf
      %7665 = vmax.xlane.f32.xlu0 %v7664
      %v7666 = vpop.xlane.xlu0 %7665
      %v7667 = vsel %vm7633, %v7581, -inf
      %7668 = vmax.xlane.f32.xlu0 %v7667
      %v7669 = vpop.xlane.xlu0 %7668
      %v7670 = vsel %vm7633, %v7584, -inf
      %7671 = vmax.xlane.f32.xlu0 %v7670
      %v7672 = vpop.xlane.xlu0 %7671
      %v7673 = vsel %vm7633, %v7586, -inf
      %7674 = vmax.xlane.f32.xlu0 %v7673
      %v7675 = vpop.xlane.xlu0 %7674
      %v7676 = vsel %vm7633, %v7589, -inf
      %7677 = vmax.xlane.f32.xlu0 %v7676
      %v7678 = vpop.xlane.xlu0 %7677
      %v7679 = vsel %vm7633, %v7591, -inf
      %7680 = vmax.xlane.f32.xlu0 %v7679
      %v7681 = vpop.xlane.xlu0 %7680
      %v7682 = vsel %vm7633, %v7594, -inf
      %7683 = vmax.xlane.f32.xlu0 %v7682
      %v7684 = vpop.xlane.xlu0 %7683
      %v7685 = vsel %vm7633, %v7596, -inf
      %7686 = vmax.xlane.f32.xlu0 %v7685
      %v7687 = vpop.xlane.xlu0 %7686
      %v7688 = vsel %vm7633, %v7599, -inf
      %7689 = vmax.xlane.f32.xlu0 %v7688
      %v7690 = vpop.xlane.xlu0 %7689
      %v7691 = vsel %vm7633, %v7601, -inf
      %7692 = vmax.xlane.f32.xlu0 %v7691
      %v7693 = vpop.xlane.xlu0 %7692
      %v7694 = vsel %vm7633, %v7604, -inf
      %7695 = vmax.xlane.f32.xlu0 %v7694
      %v7696 = vpop.xlane.xlu0 %7695
      %v7697 = vsel %vm7633, %v7606, -inf
      %7698 = vmax.xlane.f32.xlu0 %v7697
      %v7699 = vpop.xlane.xlu0 %7698
      %v7700 = vsel %vm7633, %v7609, -inf
      %7701 = vmax.xlane.f32.xlu0 %v7700
      %v7702 = vpop.xlane.xlu0 %7701
      %v7703 = vsel %vm7633, %v7611, -inf
      %7704 = vmax.xlane.f32.xlu0 %v7703
      %v7705 = vpop.xlane.xlu0 %7704
      %v7706 = vsel %vm7633, %v7614, -inf
      %7707 = vmax.xlane.f32.xlu0 %v7706
      %v7708 = vpop.xlane.xlu0 %7707
      %v7709 = vsel %vm7633, %v7616, -inf
      %7710 = vmax.xlane.f32.xlu0 %v7709
      %v7711 = vpop.xlane.xlu0 %7710
      %v7712 = vsel %vm7633, %v7619, -inf
      %7713 = vmax.xlane.f32.xlu0 %v7712
      %v7714 = vpop.xlane.xlu0 %7713
      %v7715 = vsel %vm7633, %v7621, -inf
      %7716 = vmax.xlane.f32.xlu0 %v7715
      %v7717 = vpop.xlane.xlu0 %7716
      %v7718 = vsel %vm7633, %v7624, -inf
      %7719 = vmax.xlane.f32.xlu0 %v7718
      %v7720 = vpop.xlane.xlu0 %7719
      %v7721 = vsel %vm7633, %v7626, -inf
      %7722 = vmax.xlane.f32.xlu0 %v7721
      %v7723 = vpop.xlane.xlu0 %7722
      %v7724 = vsel %vm7633, %v7629, -inf
      %7725 = vmax.xlane.f32.xlu0 %v7724
      %v7726 = vpop.xlane.xlu0 %7725
      %v7727 = vsel %vm7633, %v7631, -inf
      %7728 = vmax.xlane.f32.xlu0 %v7727
      %v7729 = vpop.xlane.xlu0 %7728
      %v7730 = vsub.f32 %v7554, %v7636
      %v7731 = vsub.f32 %v7556, %v7639
      %v7732 = vsub.f32 %v7559, %v7642
      %v7733 = vsub.f32 %v7561, %v7645
      %v7734 = vsub.f32 %v7564, %v7648
      %v7735 = vsub.f32 %v7566, %v7651
      %v7736 = vsub.f32 %v7569, %v7654
      %v7737 = vsub.f32 %v7571, %v7657
      %v7738 = vsub.f32 %v7574, %v7660
      %v7739 = vsub.f32 %v7576, %v7663
      %v7740 = vsub.f32 %v7579, %v7666
      %v7741 = vsub.f32 %v7581, %v7669
      %v7742 = vsub.f32 %v7584, %v7672
      %v7743 = vsub.f32 %v7586, %v7675
      %v7744 = vsub.f32 %v7589, %v7678
      %v7745 = vsub.f32 %v7591, %v7681
      %v7746 = vsub.f32 %v7594, %v7684
      %v7747 = vsub.f32 %v7596, %v7687
      %v7748 = vsub.f32 %v7599, %v7690
      %v7749 = vsub.f32 %v7601, %v7693
      %v7750 = vsub.f32 %v7604, %v7696
      %v7751 = vsub.f32 %v7606, %v7699
      %v7752 = vsub.f32 %v7609, %v7702
      %v7753 = vsub.f32 %v7611, %v7705
      %v7754 = vsub.f32 %v7614, %v7708
      %v7755 = vsub.f32 %v7616, %v7711
      %v7756 = vsub.f32 %v7619, %v7714
      %v7757 = vsub.f32 %v7621, %v7717
      %v7758 = vsub.f32 %v7624, %v7720
      %v7759 = vsub.f32 %v7626, %v7723
      %v7760 = vsub.f32 %v7629, %v7726
      %v7761 = vsub.f32 %v7631, %v7729
      %v7762 = vmul.f32 %v7730, 1.442695
      %v7763 = vpow.pop %v7762
      %v7764 = vmul.f32 %v7731, 1.442695
      %v7765 = vpow.pop %v7764
      %v7766 = vmul.f32 %v7732, 1.442695
      %v7767 = vpow.pop %v7766
      %v7768 = vmul.f32 %v7733, 1.442695
      %v7769 = vpow.pop %v7768
      %v7770 = vmul.f32 %v7734, 1.442695
      %v7771 = vpow.pop %v7770
      %v7772 = vmul.f32 %v7735, 1.442695
      %v7773 = vpow.pop %v7772
      %v7774 = vmul.f32 %v7736, 1.442695
      %v7775 = vpow.pop %v7774
      %v7776 = vmul.f32 %v7737, 1.442695
      %v7777 = vpow.pop %v7776
      %v7778 = vmul.f32 %v7738, 1.442695
      %v7779 = vpow.pop %v7778
      %v7780 = vmul.f32 %v7739, 1.442695
      %v7781 = vpow.pop %v7780
      %v7782 = vmul.f32 %v7740, 1.442695
      %v7783 = vpow.pop %v7782
      %v7784 = vmul.f32 %v7741, 1.442695
      %v7785 = vpow.pop %v7784
      %v7786 = vmul.f32 %v7742, 1.442695
      %v7787 = vpow.pop %v7786
      %v7788 = vmul.f32 %v7743, 1.442695
      %v7789 = vpow.pop %v7788
      %v7790 = vmul.f32 %v7744, 1.442695
      %v7791 = vpow.pop %v7790
      %v7792 = vmul.f32 %v7745, 1.442695
      %v7793 = vpow.pop %v7792
      %v7794 = vmul.f32 %v7746, 1.442695
      %v7795 = vpow.pop %v7794
      %v7796 = vmul.f32 %v7747, 1.442695
      %v7797 = vpow.pop %v7796
      %v7798 = vmul.f32 %v7748, 1.442695
      %v7799 = vpow.pop %v7798
      %v7800 = vmul.f32 %v7749, 1.442695
      %v7801 = vpow.pop %v7800
      %v7802 = vmul.f32 %v7750, 1.442695
      %v7803 = vpow.pop %v7802
      %v7804 = vmul.f32 %v7751, 1.442695
      %v7805 = vpow.pop %v7804
      %v7806 = vmul.f32 %v7752, 1.442695
      %v7807 = vpow.pop %v7806
      %v7808 = vmul.f32 %v7753, 1.442695
      %v7809 = vpow.pop %v7808
      %v7810 = vmul.f32 %v7754, 1.442695
      %v7811 = vpow.pop %v7810
      %v7812 = vmul.f32 %v7755, 1.442695
      %v7813 = vpow.pop %v7812
      %v7814 = vmul.f32 %v7756, 1.442695
      %v7815 = vpow.pop %v7814
      %v7816 = vmul.f32 %v7757, 1.442695
      %v7817 = vpow.pop %v7816
      %v7818 = vmul.f32 %v7758, 1.442695
      %v7819 = vpow.pop %v7818
      %v7820 = vmul.f32 %v7759, 1.442695
      %v7821 = vpow.pop %v7820
      %v7822 = vmul.f32 %v7760, 1.442695
      %v7823 = vpow.pop %v7822
      %v7824 = vmul.f32 %v7761, 1.442695
      %v7825 = vpow.pop %v7824
      %v7826 = vsel %vm7633, %v7763, 0.0
      %7827 = vadd.xlane.f32.xlu0 %v7826
      %v7828 = vpop.xlane.xlu0 %7827
      %v7829 = vsel %vm7633, %v7765, 0.0
      %7830 = vadd.xlane.f32.xlu0 %v7829
      %v7831 = vpop.xlane.xlu0 %7830
      %v7832 = vsel %vm7633, %v7767, 0.0
      %7833 = vadd.xlane.f32.xlu0 %v7832
      %v7834 = vpop.xlane.xlu0 %7833
      %v7835 = vsel %vm7633, %v7769, 0.0
      %7836 = vadd.xlane.f32.xlu0 %v7835
      %v7837 = vpop.xlane.xlu0 %7836
      %v7838 = vsel %vm7633, %v7771, 0.0
      %7839 = vadd.xlane.f32.xlu0 %v7838
      %v7840 = vpop.xlane.xlu0 %7839
      %v7841 = vsel %vm7633, %v7773, 0.0
      %7842 = vadd.xlane.f32.xlu0 %v7841
      %v7843 = vpop.xlane.xlu0 %7842
      %v7844 = vsel %vm7633, %v7775, 0.0
      %7845 = vadd.xlane.f32.xlu0 %v7844
      %v7846 = vpop.xlane.xlu0 %7845
      %v7847 = vsel %vm7633, %v7777, 0.0
      %7848 = vadd.xlane.f32.xlu0 %v7847
      %v7849 = vpop.xlane.xlu0 %7848
      %v7850 = vsel %vm7633, %v7779, 0.0
      %7851 = vadd.xlane.f32.xlu0 %v7850
      %v7852 = vpop.xlane.xlu0 %7851
      %v7853 = vsel %vm7633, %v7781, 0.0
      %7854 = vadd.xlane.f32.xlu0 %v7853
      %v7855 = vpop.xlane.xlu0 %7854
      %v7856 = vsel %vm7633, %v7783, 0.0
      %7857 = vadd.xlane.f32.xlu0 %v7856
      %v7858 = vpop.xlane.xlu0 %7857
      %v7859 = vsel %vm7633, %v7785, 0.0
      %7860 = vadd.xlane.f32.xlu0 %v7859
      %v7861 = vpop.xlane.xlu0 %7860
      %v7862 = vsel %vm7633, %v7787, 0.0
      %7863 = vadd.xlane.f32.xlu0 %v7862
      %v7864 = vpop.xlane.xlu0 %7863
      %v7865 = vsel %vm7633, %v7789, 0.0
      %7866 = vadd.xlane.f32.xlu0 %v7865
      %v7867 = vpop.xlane.xlu0 %7866
      %v7868 = vsel %vm7633, %v7791, 0.0
      %7869 = vadd.xlane.f32.xlu0 %v7868
      %v7870 = vpop.xlane.xlu0 %7869
      %v7871 = vsel %vm7633, %v7793, 0.0
      %7872 = vadd.xlane.f32.xlu0 %v7871
      %v7873 = vpop.xlane.xlu0 %7872
      %v7874 = vsel %vm7633, %v7795, 0.0
      %7875 = vadd.xlane.f32.xlu0 %v7874
      %v7876 = vpop.xlane.xlu0 %7875
      %v7877 = vsel %vm7633, %v7797, 0.0
      %7878 = vadd.xlane.f32.xlu0 %v7877
      %v7879 = vpop.xlane.xlu0 %7878
      %v7880 = vsel %vm7633, %v7799, 0.0
      %7881 = vadd.xlane.f32.xlu0 %v7880
      %v7882 = vpop.xlane.xlu0 %7881
      %v7883 = vsel %vm7633, %v7801, 0.0
      %7884 = vadd.xlane.f32.xlu0 %v7883
      %v7885 = vpop.xlane.xlu0 %7884
      %v7886 = vsel %vm7633, %v7803, 0.0
      %7887 = vadd.xlane.f32.xlu0 %v7886
      %v7888 = vpop.xlane.xlu0 %7887
      %v7889 = vsel %vm7633, %v7805, 0.0
      %7890 = vadd.xlane.f32.xlu0 %v7889
      %v7891 = vpop.xlane.xlu0 %7890
      %v7892 = vsel %vm7633, %v7807, 0.0
      %7893 = vadd.xlane.f32.xlu0 %v7892
      %v7894 = vpop.xlane.xlu0 %7893
      %v7895 = vsel %vm7633, %v7809, 0.0
      %7896 = vadd.xlane.f32.xlu0 %v7895
      %v7897 = vpop.xlane.xlu0 %7896
      %v7898 = vsel %vm7633, %v7811, 0.0
      %7899 = vadd.xlane.f32.xlu0 %v7898
      %v7900 = vpop.xlane.xlu0 %7899
      %v7901 = vsel %vm7633, %v7813, 0.0
      %7902 = vadd.xlane.f32.xlu0 %v7901
      %v7903 = vpop.xlane.xlu0 %7902
      %v7904 = vsel %vm7633, %v7815, 0.0
      %7905 = vadd.xlane.f32.xlu0 %v7904
      %v7906 = vpop.xlane.xlu0 %7905
      %v7907 = vsel %vm7633, %v7817, 0.0
      %7908 = vadd.xlane.f32.xlu0 %v7907
      %v7909 = vpop.xlane.xlu0 %7908
      %v7910 = vsel %vm7633, %v7819, 0.0
      %7911 = vadd.xlane.f32.xlu0 %v7910
      %v7912 = vpop.xlane.xlu0 %7911
      %v7913 = vsel %vm7633, %v7821, 0.0
      %7914 = vadd.xlane.f32.xlu0 %v7913
      %v7915 = vpop.xlane.xlu0 %7914
      %v7916 = vsel %vm7633, %v7823, 0.0
      %7917 = vadd.xlane.f32.xlu0 %v7916
      %v7918 = vpop.xlane.xlu0 %7917
      %v7919 = vsel %vm7633, %v7825, 0.0
      %7920 = vadd.xlane.f32.xlu0 %v7919
      %v7921 = vpop.xlane.xlu0 %7920
      %v7922 = vlog2.pop %v7828
      %v7923 = vmul.f32 %v7922, 0.6931472
      %v7924 = vlog2.pop %v7831
      %v7925 = vmul.f32 %v7924, 0.6931472
      %v7926 = vlog2.pop %v7834
      %v7927 = vmul.f32 %v7926, 0.6931472
      %v7928 = vlog2.pop %v7837
      %v7929 = vmul.f32 %v7928, 0.6931472
      %v7930 = vlog2.pop %v7840
      %v7931 = vmul.f32 %v7930, 0.6931472
      %v7932 = vlog2.pop %v7843
      %v7933 = vmul.f32 %v7932, 0.6931472
      %v7934 = vlog2.pop %v7846
      %v7935 = vmul.f32 %v7934, 0.6931472
      %v7936 = vlog2.pop %v7849
      %v7937 = vmul.f32 %v7936, 0.6931472
      %v7938 = vlog2.pop %v7852
      %v7939 = vmul.f32 %v7938, 0.6931472
      %v7940 = vlog2.pop %v7855
      %v7941 = vmul.f32 %v7940, 0.6931472
      %v7942 = vlog2.pop %v7858
      %v7943 = vmul.f32 %v7942, 0.6931472
      %v7944 = vlog2.pop %v7861
      %v7945 = vmul.f32 %v7944, 0.6931472
      %v7946 = vlog2.pop %v7864
      %v7947 = vmul.f32 %v7946, 0.6931472
      %v7948 = vlog2.pop %v7867
      %v7949 = vmul.f32 %v7948, 0.6931472
      %v7950 = vlog2.pop %v7870
      %v7951 = vmul.f32 %v7950, 0.6931472
      %v7952 = vlog2.pop %v7873
      %v7953 = vmul.f32 %v7952, 0.6931472
      %v7954 = vlog2.pop %v7876
      %v7955 = vmul.f32 %v7954, 0.6931472
      %v7956 = vlog2.pop %v7879
      %v7957 = vmul.f32 %v7956, 0.6931472
      %v7958 = vlog2.pop %v7882
      %v7959 = vmul.f32 %v7958, 0.6931472
      %v7960 = vlog2.pop %v7885
      %v7961 = vmul.f32 %v7960, 0.6931472
      %v7962 = vlog2.pop %v7888
      %v7963 = vmul.f32 %v7962, 0.6931472
      %v7964 = vlog2.pop %v7891
      %v7965 = vmul.f32 %v7964, 0.6931472
      %v7966 = vlog2.pop %v7894
      %v7967 = vmul.f32 %v7966, 0.6931472
      %v7968 = vlog2.pop %v7897
      %v7969 = vmul.f32 %v7968, 0.6931472
      %v7970 = vlog2.pop %v7900
      %v7971 = vmul.f32 %v7970, 0.6931472
      %v7972 = vlog2.pop %v7903
      %v7973 = vmul.f32 %v7972, 0.6931472
      %v7974 = vlog2.pop %v7906
      %v7975 = vmul.f32 %v7974, 0.6931472
      %v7976 = vlog2.pop %v7909
      %v7977 = vmul.f32 %v7976, 0.6931472
      %v7978 = vlog2.pop %v7912
      %v7979 = vmul.f32 %v7978, 0.6931472
      %v7980 = vlog2.pop %v7915
      %v7981 = vmul.f32 %v7980, 0.6931472
      %v7982 = vlog2.pop %v7918
      %v7983 = vmul.f32 %v7982, 0.6931472
      %v7984 = vlog2.pop %v7921
      %v7985 = vmul.f32 %v7984, 0.6931472
      %v7986 = vsub.f32 %v7730, %v7923
      %v7987 = vsub.f32 %v7731, %v7925
      %v7988 = vsub.f32 %v7732, %v7927
      %v7989 = vsub.f32 %v7733, %v7929
      %v7990 = vsub.f32 %v7734, %v7931
      %v7991 = vsub.f32 %v7735, %v7933
      %v7992 = vsub.f32 %v7736, %v7935
      %v7993 = vsub.f32 %v7737, %v7937
      %v7994 = vsub.f32 %v7738, %v7939
      %v7995 = vsub.f32 %v7739, %v7941
      %v7996 = vsub.f32 %v7740, %v7943
      %v7997 = vsub.f32 %v7741, %v7945
      %v7998 = vsub.f32 %v7742, %v7947
      %v7999 = vsub.f32 %v7743, %v7949
      %v8000 = vsub.f32 %v7744, %v7951
      %v8001 = vsub.f32 %v7745, %v7953
      %v8002 = vsub.f32 %v7746, %v7955
      %v8003 = vsub.f32 %v7747, %v7957
      %v8004 = vsub.f32 %v7748, %v7959
      %v8005 = vsub.f32 %v7749, %v7961
      %v8006 = vsub.f32 %v7750, %v7963
      %v8007 = vsub.f32 %v7751, %v7965
      %v8008 = vsub.f32 %v7752, %v7967
      %v8009 = vsub.f32 %v7753, %v7969
      %v8010 = vsub.f32 %v7754, %v7971
      %v8011 = vsub.f32 %v7755, %v7973
      %v8012 = vsub.f32 %v7756, %v7975
      %v8013 = vsub.f32 %v7757, %v7977
      %v8014 = vsub.f32 %v7758, %v7979
      %v8015 = vsub.f32 %v7759, %v7981
      %v8016 = vsub.f32 %v7760, %v7983
      %v8017 = vsub.f32 %v7761, %v7985
      %8018 = vst.msk [vmem:[%s599] sm:$0xff] %vm7633, %v7986
      %8019 = vst.msk [vmem:[%s599 + $0x8] sm:$0xff] %vm7633, %v7987
      %8020 = vst.msk [vmem:[%s599 + $0x10] sm:$0xff] %vm7633, %v7988
      %8021 = vst.msk [vmem:[%s599 + $0x18] sm:$0xff] %vm7633, %v7989
      %8022 = vst.msk [vmem:[%s599 + $0x20] sm:$0xff] %vm7633, %v7990
      %8023 = vst.msk [vmem:[%s599 + $0x28] sm:$0xff] %vm7633, %v7991
      %8024 = vst.msk [vmem:[%s599 + $0x30] sm:$0xff] %vm7633, %v7992
      %8025 = vst.msk [vmem:[%s599 + $0x38] sm:$0xff] %vm7633, %v7993
      %8026 = vst.msk [vmem:[%s599 + $0x40] sm:$0xff] %vm7633, %v7994
      %8027 = vst.msk [vmem:[%s599 + $0x48] sm:$0xff] %vm7633, %v7995
      %8028 = vst.msk [vmem:[%s599 + $0x50] sm:$0xff] %vm7633, %v7996
      %8029 = vst.msk [vmem:[%s599 + $0x58] sm:$0xff] %vm7633, %v7997
      %8030 = vst.msk [vmem:[%s599 + $0x60] sm:$0xff] %vm7633, %v7998
      %8031 = vst.msk [vmem:[%s599 + $0x68] sm:$0xff] %vm7633, %v7999
      %8032 = vst.msk [vmem:[%s599 + $0x70] sm:$0xff] %vm7633, %v8000
      %8033 = vst.msk [vmem:[%s599 + $0x78] sm:$0xff] %vm7633, %v8001
      %8034 = vst.msk [vmem:[%s599 + $0x80] sm:$0xff] %vm7633, %v8002
      %8035 = vst.msk [vmem:[%s599 + $0x88] sm:$0xff] %vm7633, %v8003
      %8036 = vst.msk [vmem:[%s599 + $0x90] sm:$0xff] %vm7633, %v8004
      %8037 = vst.msk [vmem:[%s599 + $0x98] sm:$0xff] %vm7633, %v8005
      %8038 = vst.msk [vmem:[%s599 + $0xa0] sm:$0xff] %vm7633, %v8006
      %8039 = vst.msk [vmem:[%s599 + $0xa8] sm:$0xff] %vm7633, %v8007
      %8040 = vst.msk [vmem:[%s599 + $0xb0] sm:$0xff] %vm7633, %v8008
      %8041 = vst.msk [vmem:[%s599 + $0xb8] sm:$0xff] %vm7633, %v8009
      %8042 = vst.msk [vmem:[%s599 + $0xc0] sm:$0xff] %vm7633, %v8010
      %8043 = vst.msk [vmem:[%s599 + $0xc8] sm:$0xff] %vm7633, %v8011
      %8044 = vst.msk [vmem:[%s599 + $0xd0] sm:$0xff] %vm7633, %v8012
      %8045 = vst.msk [vmem:[%s599 + $0xd8] sm:$0xff] %vm7633, %v8013
      %8046 = vst.msk [vmem:[%s599 + $0xe0] sm:$0xff] %vm7633, %v8014
      %8047 = vst.msk [vmem:[%s599 + $0xe8] sm:$0xff] %vm7633, %v8015
      %8048 = vst.msk [vmem:[%s599 + $0xf0] sm:$0xff] %vm7633, %v8016
      %8049 = vst.msk [vmem:[%s599 + $0xf8] sm:$0xff] %vm7633, %v8017
      %s8050 = smul.u32 32, %s29
      %p8051 = scmp.lt.s32.totalorder %s8050, 63
      %s8052 = scalar_select %p8051, %s8050, 63
      %s8053 = smul.addr %s8052, 8
      %s8054 = scalar_lea.vmem %s18, %s8053
      // Predicated region
      $region93: #{tpu_custom_call.1} parent=91 // pred_check
        %p8055 = pneg %p435
      $region94: #{tpu_custom_call.1} parent=91 // pred_check_branch
        %8057 = sbr.rel (%p8055) target = $region96
      $region95: #{tpu_custom_call.1} parent=91 // pred_region
        %s8058 = smul.u32 32, %s29
      $region96: #{tpu_custom_call.1} parent=91 // pred_fallthru
        _
    $region92: #{tpu_custom_call.1} parent=5 // pred_fallthru
      _
    %p8059 = scmp.le.s32.totalorder 2, %s24
    // Predicated region
    $region97: #{tpu_custom_call.1} parent=5 // pred_check
      %p8060 = pneg %p8059
    $region98: #{tpu_custom_call.1} parent=5 // pred_check_branch
      %8062 = sbr.rel (%p8060) target = $region100
    $region99: #{tpu_custom_call.1} parent=5 // pred_region
      %s8063 = ssub.s32 %s24, 2
      // Predicated region
      $region101: #{tpu_custom_call.1} parent=99 // pred_check
        %p8064 = pneg %p441
      $region102: #{tpu_custom_call.1} parent=99 // pred_check_branch
        %8066 = sbr.rel (%p8064) target = $region104
      $region103: #{tpu_custom_call.1} parent=99 // pred_region
        %s8067 = smul.u32 32, %s30
        %p8068 = scmp.lt.s32.totalorder %s8067, 63
        %s8069 = scalar_select %p8068, %s8067, 63
        %s8070 = smul.addr %s8069, 8
        %s8071 = scalar_lea.vmem %s18, %s8070
      $region104: #{tpu_custom_call.1} parent=99 // pred_fallthru
        _
    $region100: #{tpu_custom_call.1} parent=5 // pred_fallthru
      _
  $region6: #{tpu_custom_call.1} parent=0 // loop_footer
    %s28 = sadd.s32 1, %s24
  $region7: #{tpu_custom_call.1} parent=0 // loop_footer_branch
    %23 = sbr.rel target = $region3
  $region8: #{tpu_custom_call.1} parent=0 // loop_exit
    _

</llo_original>
